<compile_context>
chip_gen: v7x
topology: tpu7x:2x2x1
jax: 0.10.0
libtpu: 0.0.40
codegen_flags: <defaults>
</compile_context>

<pallas_src>
import jax
import jax.numpy as jnp
from jax import lax
from jax.experimental import pallas as pl
from jax.experimental.pallas import tpu as pltpu

BN_EPS = 1e-5


def _basic_block_kernel(x_ref, w1_ref, g1_ref, b1_ref,
                        w2_ref, g2_ref, b2_ref,
                        out_ref, pad_ref):
    N, H, W, C = x_ref.shape
    planes = out_ref.shape[-1]
    NHW = N * H * W
    inv_nhw = 1.0 / float(NHW)

    def conv3x3(cin, w_ref):
        # 3x3 conv (basis conv folded with the 1x1 conv) as a sum of 9
        # (NHW, cin) x (cin, planes) MXU matmuls.  No im2col slab: each tap
        # slice of the padded scratch is cast to bf16 just before its matmul
        # and accumulated in f32.
        acc = jnp.zeros((NHW, planes), jnp.float32)
        for dy in range(3):
            for dx in range(3):
                tap = pad_ref[:, pl.ds(dy, H), pl.ds(dx, W), :]
                tap = tap.reshape(NHW, cin).astype(jnp.bfloat16)
                w_tap = w_ref[pl.ds((dy * 3 + dx) * cin, cin), :]
                acc = acc + jnp.dot(tap, w_tap,
                                    preferred_element_type=jnp.float32)
        return acc

    def batchnorm(y, gamma, beta):
        # training-mode batch stats over (N*H*W); centered two-pass variance
        # (avoids the E[y^2]-E[y]^2 cancellation), fused scale/shift.
        mean = jnp.sum(y, axis=0, keepdims=True) * inv_nhw
        yc = y - mean
        var = jnp.sum(yc * yc, axis=0, keepdims=True) * inv_nhw
        a = gamma * lax.rsqrt(var + BN_EPS)
        return yc * a + beta

    # Zero only the 1-pixel halo (left/right columns, top/bottom rows); the
    # interior is overwritten before each conv and the halo stays zero.
    zcol = jnp.zeros((N, H + 2, 1, C), jnp.float32)
    pad_ref[:, :, pl.ds(0, 1), :] = zcol
    pad_ref[:, :, pl.ds(W + 1, 1), :] = zcol
    zrow = jnp.zeros((N, 1, W + 2, C), jnp.float32)
    pad_ref[:, pl.ds(0, 1), :, :] = zrow
    pad_ref[:, pl.ds(H + 1, 1), :, :] = zrow

    x = x_ref[...]
    pad_ref[:, pl.ds(1, H), pl.ds(1, W), :] = x

    # ---- conv1 (folded DecomBlock) + bn1 + relu ----
    out1 = conv3x3(C, w1_ref)
    out1 = jnp.maximum(batchnorm(out1, g1_ref[...], b1_ref[...]), 0.0)

    # ---- conv2 (folded DecomBlock) + bn2 + residual + relu ----
    pad_ref[:, pl.ds(1, H), pl.ds(1, W), :] = out1.reshape(N, H, W, planes)
    out2 = conv3x3(planes, w2_ref)
    out2 = batchnorm(out2, g2_ref[...], b2_ref[...]) + x.reshape(NHW, planes)
    out_ref[...] = jnp.maximum(out2, 0.0).reshape(N, H, W, planes)


def _fold_weights(fb, w, group, n_basis, basis_size):
    """Fold the shared (n_basis, basis_size, 3, 3) filter bank (block-diagonal
    over groups) with the 1x1 conv weight (planes, group*n_basis) into a single
    (9*group*basis_size, planes) matrix.

    Row index is (tap, g, c) -- matching the NHWC channel order of each im2col
    tap -- and columns are output channels:
        W_eff[(t, g, c), o] = sum_b fb[b, c, t] * w[o, g*n_basis + b]
    """
    fbt = jnp.transpose(fb, (2, 3, 1, 0)).reshape(9, basis_size, n_basis)  # (t,c,b)
    wg = jnp.transpose(w).reshape(group, n_basis, -1)                      # (g,b,o)
    w_eff = jnp.einsum("tcb,gbo->tgco", fbt, wg,
                       precision=lax.Precision.HIGHEST)                    # f32 fold
    return w_eff.reshape(9 * group * basis_size, -1)


def basic_block_forward(x_nchw, params, *, n_basis, basis_size):
    N, C, H, W = x_nchw.shape
    planes = params["w1"].shape[0]
    assert C == planes, "stride=1 / downsample=False requires inplanes == planes"
    assert C % basis_size == 0 and planes % basis_size == 0
    group1 = C // basis_size
    group2 = planes // basis_size

    # NCHW <-> NHWC conversion only at the module boundary; padding happens
    # inside the kernel (no xpad materialized in HBM).
    x = jnp.transpose(x_nchw, (0, 2, 3, 1)).astype(jnp.float32)            # NHWC

    # fold basis conv + 1x1 conv into one weight per DecomBlock (exact).
    w1_eff = _fold_weights(params["fb1"], params["w1"], group1, n_basis, basis_size)
    w2_eff = _fold_weights(params["fb2"], params["w2"], group2, n_basis, basis_size)

    vmem = pl.BlockSpec(memory_space=pltpu.MemorySpace.VMEM)
    out_nhwc = pl.pallas_call(
        _basic_block_kernel,
        out_shape=jax.ShapeDtypeStruct((N, H, W, planes), jnp.float32),
        in_specs=[vmem] * 7,
        out_specs=vmem,
        scratch_shapes=[pltpu.VMEM((N, H + 2, W + 2, C), jnp.float32)],
        # only binding on v5e's 16 MiB default scoped limit; harmless elsewhere.
        compiler_params=pltpu.CompilerParams(vmem_limit_bytes=32 * 1024 * 1024),
    )(x,
      w1_eff.astype(jnp.bfloat16),
      params["gamma1"].reshape(1, -1).astype(jnp.float32),
      params["beta1"].reshape(1, -1).astype(jnp.float32),
      w2_eff.astype(jnp.bfloat16),
      params["gamma2"].reshape(1, -1).astype(jnp.float32),
      params["beta2"].reshape(1, -1).astype(jnp.float32))
    return jnp.transpose(out_nhwc, (0, 3, 1, 2))                           # NCHW


def init_params(key, inplanes, planes, n_basis, basis_size):
    k1, k2, k3 = jax.random.split(key, 3)
    # deterministic analogue of torch.nn.init.orthogonal on (2*nb, bs*3*3)
    Xm = jax.random.normal(k1, (2 * n_basis, basis_size * 9), jnp.float32)
    Q, _ = jnp.linalg.qr(Xm.T)                         # orthonormal columns
    fb_all = jnp.transpose(Q).reshape(2 * n_basis, basis_size, 3, 3)
    group1 = inplanes // basis_size
    group2 = planes // basis_size
    w1 = jax.random.normal(k2, (planes, group1 * n_basis), jnp.float32) * 0.1
    w2 = jax.random.normal(k3, (planes, group2 * n_basis), jnp.float32) * 0.1
    return dict(
        fb1=fb_all[:n_basis], fb2=fb_all[n_basis:],
        w1=w1, w2=w2,
        gamma1=jnp.ones((planes,), jnp.float32),
        beta1=jnp.zeros((planes,), jnp.float32),
        gamma2=jnp.ones((planes,), jnp.float32),
        beta2=jnp.zeros((planes,), jnp.float32),
    )


def reference_forward(x_nchw, params, *, n_basis, basis_size):
    """Pure-JAX reference mirroring the PyTorch forward (NCHW, default XLA
    precision so both paths use the TPU's bf16 MXU input rounding)."""
    def conv_basis(x, fb):
        group = x.shape[1] // basis_size
        outs = []
        for g in range(group):
            xi = x[:, g * basis_size:(g + 1) * basis_size]
            outs.append(lax.conv_general_dilated(
                xi, fb, (1, 1), ((1, 1), (1, 1)),
                dimension_numbers=("NCHW", "OIHW", "NCHW")))
        return jnp.concatenate(outs, axis=1)

    def conv1x1(x, w):
        return jnp.einsum("nchw,oc->nohw", x, w)

    def bn(x, g, b):
        mean = jnp.mean(x, axis=(0, 2, 3), keepdims=True)
        var = jnp.mean((x - mean) ** 2, axis=(0, 2, 3), keepdims=True)
        return (g[None, :, None, None] * (x - mean) * lax.rsqrt(var + BN_EPS)
                + b[None, :, None, None])

    out = conv1x1(conv_basis(x_nchw, params["fb1"]), params["w1"])
    out = jnp.maximum(bn(out, params["gamma1"], params["beta1"]), 0.0)
    out = conv1x1(conv_basis(out, params["fb2"]), params["w2"])
    out = bn(out, params["gamma2"], params["beta2"]) + x_nchw
    return jnp.maximum(out, 0.0)


if __name__ == "__main__":
    # ResNet-ish config: inplanes=planes=128, n_basis=16, basis_size=16
    # (group=8), stride=1, downsample=False, batch=2, 16x16 spatial.
    # planes=128 keeps every matmul operand / output block lane-dense.
    inplanes = planes = 128
    n_basis, basis_size = 16, 16
    N, H, W = 2, 16, 16

    key = jax.random.PRNGKey(0)
    kx, kp = jax.random.split(key)
    x = jax.random.normal(kx, (N, inplanes, H, W), jnp.float32)
    params = init_params(kp, inplanes, planes, n_basis, basis_size)

    out = basic_block_forward(x, params, n_basis=n_basis, basis_size=basis_size)
    out = jax.block_until_ready(out)

    ref = reference_forward(x, params, n_basis=n_basis, basis_size=basis_size)
    err = float(jnp.max(jnp.abs(out - ref)))
    assert out.shape == (N, planes, H, W), out.shape
    # both kernel and reference use bf16 MXU input rounding (f32 accumulation);
    # 5e-2 comfortably covers that while still catching structural bugs.
    assert err < 5e-2, f"max abs err vs reference = {err}"
    print("KERNEL_OK")
</pallas_src>

<mosaic_0001>
module attributes {stable_mosaic.version = 11 : i64} {
  func.func @_basic_block_kernel(%arg0: memref<2x16x16x128xf32, #tpu.memory_space<vmem>>, %arg1: memref<1152x128xbf16, #tpu.memory_space<vmem>>, %arg2: memref<1x128xf32, #tpu.memory_space<vmem>>, %arg3: memref<1x128xf32, #tpu.memory_space<vmem>>, %arg4: memref<1152x128xbf16, #tpu.memory_space<vmem>>, %arg5: memref<1x128xf32, #tpu.memory_space<vmem>>, %arg6: memref<1x128xf32, #tpu.memory_space<vmem>>, %arg7: memref<2x16x16x128xf32, #tpu.memory_space<vmem>>, %arg8: memref<2x18x18x128xf32, #tpu.memory_space<vmem>>) attributes {dimension_semantics = [], scalar_prefetch = 0 : i64, scratch_operands = 1 : i64, tpu.core_type = #tpu.core_type<tc>} {
    %cst = arith.constant 0.000000e+00 : f32
    %0 = vector.broadcast %cst : f32 to vector<2x18x1x128xf32>
    %c0 = arith.constant 0 : index
    %c0_0 = arith.constant 0 : index
    %c0_1 = arith.constant 0 : index
    %c0_2 = arith.constant 0 : index
    %1 = vector.load %arg8[%c0, %c0_0, %c0_1, %c0_2] : memref<2x18x18x128xf32, #tpu.memory_space<vmem>>, vector<2x18x1x128xf32>
    tpu.vector_store %arg8[%c0, %c0_0, %c0_1, %c0_2], %0 {strides = array<i32>} : memref<2x18x18x128xf32, #tpu.memory_space<vmem>>, vector<2x18x1x128xf32>,
    %c0_3 = arith.constant 0 : index
    %c0_4 = arith.constant 0 : index
    %c17 = arith.constant 17 : index
    %c0_5 = arith.constant 0 : index
    %2 = vector.load %arg8[%c0_3, %c0_4, %c17, %c0_5] : memref<2x18x18x128xf32, #tpu.memory_space<vmem>>, vector<2x18x1x128xf32>
    tpu.vector_store %arg8[%c0_3, %c0_4, %c17, %c0_5], %0 {strides = array<i32>} : memref<2x18x18x128xf32, #tpu.memory_space<vmem>>, vector<2x18x1x128xf32>,
    %cst_6 = arith.constant 0.000000e+00 : f32
    %3 = vector.broadcast %cst_6 : f32 to vector<2x1x18x128xf32>
    %c0_7 = arith.constant 0 : index
    %c0_8 = arith.constant 0 : index
    %c0_9 = arith.constant 0 : index
    %c0_10 = arith.constant 0 : index
    %4 = vector.load %arg8[%c0_7, %c0_8, %c0_9, %c0_10] : memref<2x18x18x128xf32, #tpu.memory_space<vmem>>, vector<2x1x18x128xf32>
    tpu.vector_store %arg8[%c0_7, %c0_8, %c0_9, %c0_10], %3 {strides = array<i32>} : memref<2x18x18x128xf32, #tpu.memory_space<vmem>>, vector<2x1x18x128xf32>,
    %c0_11 = arith.constant 0 : index
    %c17_12 = arith.constant 17 : index
    %c0_13 = arith.constant 0 : index
    %c0_14 = arith.constant 0 : index
    %5 = vector.load %arg8[%c0_11, %c17_12, %c0_13, %c0_14] : memref<2x18x18x128xf32, #tpu.memory_space<vmem>>, vector<2x1x18x128xf32>
    tpu.vector_store %arg8[%c0_11, %c17_12, %c0_13, %c0_14], %3 {strides = array<i32>} : memref<2x18x18x128xf32, #tpu.memory_space<vmem>>, vector<2x1x18x128xf32>,
    %c0_15 = arith.constant 0 : index
    %c0_16 = arith.constant 0 : index
    %c0_17 = arith.constant 0 : index
    %c0_18 = arith.constant 0 : index
    %6 = vector.load %arg0[%c0_15, %c0_16, %c0_17, %c0_18] : memref<2x16x16x128xf32, #tpu.memory_space<vmem>>, vector<2x16x16x128xf32>
    %c0_19 = arith.constant 0 : index
    %c1 = arith.constant 1 : index
    %c1_20 = arith.constant 1 : index
    %c0_21 = arith.constant 0 : index
    %7 = vector.load %arg8[%c0_19, %c1, %c1_20, %c0_21] : memref<2x18x18x128xf32, #tpu.memory_space<vmem>>, vector<2x16x16x128xf32>
    tpu.vector_store %arg8[%c0_19, %c1, %c1_20, %c0_21], %6 {strides = array<i32>} : memref<2x18x18x128xf32, #tpu.memory_space<vmem>>, vector<2x16x16x128xf32>,
    %cst_22 = arith.constant 0.000000e+00 : f32
    %8 = vector.broadcast %cst_22 : f32 to vector<512x128xf32>
    %c0_23 = arith.constant 0 : index
    %c0_24 = arith.constant 0 : index
    %c0_25 = arith.constant 0 : index
    %c0_26 = arith.constant 0 : index
    %9 = vector.load %arg8[%c0_23, %c0_24, %c0_25, %c0_26] : memref<2x18x18x128xf32, #tpu.memory_space<vmem>>, vector<2x16x16x128xf32>
    %10 = vector.shape_cast %9 : vector<2x16x16x128xf32> to vector<512x128xf32>
    %11 = arith.truncf %10 : vector<512x128xf32> to vector<512x128xbf16>
    %c0_27 = arith.constant 0 : index
    %c0_28 = arith.constant 0 : index
    %12 = vector.load %arg1[%c0_27, %c0_28] : memref<1152x128xbf16, #tpu.memory_space<vmem>>, vector<128x128xbf16>
    %cst_29 = arith.constant dense<0.000000e+00> : vector<512x128xf32>
    %13 = tpu.matmul %11, %12, %cst_29 {dimension_numbers = #tpu.dot_dimension_numbers<[1], [0], [0], [1], [0, 0, 1, 1], [], []>} : vector<512x128xbf16>, vector<128x128xbf16>, vector<512x128xf32> -> vector<512x128xf32>
    %14 = arith.addf %8, %13 : vector<512x128xf32>
    %c0_30 = arith.constant 0 : index
    %c0_31 = arith.constant 0 : index
    %c1_32 = arith.constant 1 : index
    %c0_33 = arith.constant 0 : index
    %15 = vector.load %arg8[%c0_30, %c0_31, %c1_32, %c0_33] : memref<2x18x18x128xf32, #tpu.memory_space<vmem>>, vector<2x16x16x128xf32>
    %16 = vector.shape_cast %15 : vector<2x16x16x128xf32> to vector<512x128xf32>
    %17 = arith.truncf %16 : vector<512x128xf32> to vector<512x128xbf16>
    %c128 = arith.constant 128 : index
    %c0_34 = arith.constant 0 : index
    %18 = vector.load %arg1[%c128, %c0_34] : memref<1152x128xbf16, #tpu.memory_space<vmem>>, vector<128x128xbf16>
    %cst_35 = arith.constant dense<0.000000e+00> : vector<512x128xf32>
    %19 = tpu.matmul %17, %18, %cst_35 {dimension_numbers = #tpu.dot_dimension_numbers<[1], [0], [0], [1], [0, 0, 1, 1], [], []>} : vector<512x128xbf16>, vector<128x128xbf16>, vector<512x128xf32> -> vector<512x128xf32>
    %20 = arith.addf %14, %19 : vector<512x128xf32>
    %c0_36 = arith.constant 0 : index
    %c0_37 = arith.constant 0 : index
    %c2 = arith.constant 2 : index
    %c0_38 = arith.constant 0 : index
    %21 = vector.load %arg8[%c0_36, %c0_37, %c2, %c0_38] : memref<2x18x18x128xf32, #tpu.memory_space<vmem>>, vector<2x16x16x128xf32>
    %22 = vector.shape_cast %21 : vector<2x16x16x128xf32> to vector<512x128xf32>
    %23 = arith.truncf %22 : vector<512x128xf32> to vector<512x128xbf16>
    %c256 = arith.constant 256 : index
    %c0_39 = arith.constant 0 : index
    %24 = vector.load %arg1[%c256, %c0_39] : memref<1152x128xbf16, #tpu.memory_space<vmem>>, vector<128x128xbf16>
    %cst_40 = arith.constant dense<0.000000e+00> : vector<512x128xf32>
    %25 = tpu.matmul %23, %24, %cst_40 {dimension_numbers = #tpu.dot_dimension_numbers<[1], [0], [0], [1], [0, 0, 1, 1], [], []>} : vector<512x128xbf16>, vector<128x128xbf16>, vector<512x128xf32> -> vector<512x128xf32>
    %26 = arith.addf %20, %25 : vector<512x128xf32>
    %c0_41 = arith.constant 0 : index
    %c1_42 = arith.constant 1 : index
    %c0_43 = arith.constant 0 : index
    %c0_44 = arith.constant 0 : index
    %27 = vector.load %arg8[%c0_41, %c1_42, %c0_43, %c0_44] : memref<2x18x18x128xf32, #tpu.memory_space<vmem>>, vector<2x16x16x128xf32>
    %28 = vector.shape_cast %27 : vector<2x16x16x128xf32> to vector<512x128xf32>
    %29 = arith.truncf %28 : vector<512x128xf32> to vector<512x128xbf16>
    %c384 = arith.constant 384 : index
    %c0_45 = arith.constant 0 : index
    %30 = vector.load %arg1[%c384, %c0_45] : memref<1152x128xbf16, #tpu.memory_space<vmem>>, vector<128x128xbf16>
    %cst_46 = arith.constant dense<0.000000e+00> : vector<512x128xf32>
    %31 = tpu.matmul %29, %30, %cst_46 {dimension_numbers = #tpu.dot_dimension_numbers<[1], [0], [0], [1], [0, 0, 1, 1], [], []>} : vector<512x128xbf16>, vector<128x128xbf16>, vector<512x128xf32> -> vector<512x128xf32>
    %32 = arith.addf %26, %31 : vector<512x128xf32>
    %c0_47 = arith.constant 0 : index
    %c1_48 = arith.constant 1 : index
    %c1_49 = arith.constant 1 : index
    %c0_50 = arith.constant 0 : index
    %33 = vector.load %arg8[%c0_47, %c1_48, %c1_49, %c0_50] : memref<2x18x18x128xf32, #tpu.memory_space<vmem>>, vector<2x16x16x128xf32>
    %34 = vector.shape_cast %33 : vector<2x16x16x128xf32> to vector<512x128xf32>
    %35 = arith.truncf %34 : vector<512x128xf32> to vector<512x128xbf16>
    %c512 = arith.constant 512 : index
    %c0_51 = arith.constant 0 : index
    %36 = vector.load %arg1[%c512, %c0_51] : memref<1152x128xbf16, #tpu.memory_space<vmem>>, vector<128x128xbf16>
    %cst_52 = arith.constant dense<0.000000e+00> : vector<512x128xf32>
    %37 = tpu.matmul %35, %36, %cst_52 {dimension_numbers = #tpu.dot_dimension_numbers<[1], [0], [0], [1], [0, 0, 1, 1], [], []>} : vector<512x128xbf16>, vector<128x128xbf16>, vector<512x128xf32> -> vector<512x128xf32>
    %38 = arith.addf %32, %37 : vector<512x128xf32>
    %c0_53 = arith.constant 0 : index
    %c1_54 = arith.constant 1 : index
    %c2_55 = arith.constant 2 : index
    %c0_56 = arith.constant 0 : index
    %39 = vector.load %arg8[%c0_53, %c1_54, %c2_55, %c0_56] : memref<2x18x18x128xf32, #tpu.memory_space<vmem>>, vector<2x16x16x128xf32>
    %40 = vector.shape_cast %39 : vector<2x16x16x128xf32> to vector<512x128xf32>
    %41 = arith.truncf %40 : vector<512x128xf32> to vector<512x128xbf16>
    %c640 = arith.constant 640 : index
    %c0_57 = arith.constant 0 : index
    %42 = vector.load %arg1[%c640, %c0_57] : memref<1152x128xbf16, #tpu.memory_space<vmem>>, vector<128x128xbf16>
    %cst_58 = arith.constant dense<0.000000e+00> : vector<512x128xf32>
    %43 = tpu.matmul %41, %42, %cst_58 {dimension_numbers = #tpu.dot_dimension_numbers<[1], [0], [0], [1], [0, 0, 1, 1], [], []>} : vector<512x128xbf16>, vector<128x128xbf16>, vector<512x128xf32> -> vector<512x128xf32>
    %44 = arith.addf %38, %43 : vector<512x128xf32>
    %c0_59 = arith.constant 0 : index
    %c2_60 = arith.constant 2 : index
    %c0_61 = arith.constant 0 : index
    %c0_62 = arith.constant 0 : index
    %45 = vector.load %arg8[%c0_59, %c2_60, %c0_61, %c0_62] : memref<2x18x18x128xf32, #tpu.memory_space<vmem>>, vector<2x16x16x128xf32>
    %46 = vector.shape_cast %45 : vector<2x16x16x128xf32> to vector<512x128xf32>
    %47 = arith.truncf %46 : vector<512x128xf32> to vector<512x128xbf16>
    %c768 = arith.constant 768 : index
    %c0_63 = arith.constant 0 : index
    %48 = vector.load %arg1[%c768, %c0_63] : memref<1152x128xbf16, #tpu.memory_space<vmem>>, vector<128x128xbf16>
    %cst_64 = arith.constant dense<0.000000e+00> : vector<512x128xf32>
    %49 = tpu.matmul %47, %48, %cst_64 {dimension_numbers = #tpu.dot_dimension_numbers<[1], [0], [0], [1], [0, 0, 1, 1], [], []>} : vector<512x128xbf16>, vector<128x128xbf16>, vector<512x128xf32> -> vector<512x128xf32>
    %50 = arith.addf %44, %49 : vector<512x128xf32>
    %c0_65 = arith.constant 0 : index
    %c2_66 = arith.constant 2 : index
    %c1_67 = arith.constant 1 : index
    %c0_68 = arith.constant 0 : index
    %51 = vector.load %arg8[%c0_65, %c2_66, %c1_67, %c0_68] : memref<2x18x18x128xf32, #tpu.memory_space<vmem>>, vector<2x16x16x128xf32>
    %52 = vector.shape_cast %51 : vector<2x16x16x128xf32> to vector<512x128xf32>
    %53 = arith.truncf %52 : vector<512x128xf32> to vector<512x128xbf16>
    %c896 = arith.constant 896 : index
    %c0_69 = arith.constant 0 : index
    %54 = vector.load %arg1[%c896, %c0_69] : memref<1152x128xbf16, #tpu.memory_space<vmem>>, vector<128x128xbf16>
    %cst_70 = arith.constant dense<0.000000e+00> : vector<512x128xf32>
    %55 = tpu.matmul %53, %54, %cst_70 {dimension_numbers = #tpu.dot_dimension_numbers<[1], [0], [0], [1], [0, 0, 1, 1], [], []>} : vector<512x128xbf16>, vector<128x128xbf16>, vector<512x128xf32> -> vector<512x128xf32>
    %56 = arith.addf %50, %55 : vector<512x128xf32>
    %c0_71 = arith.constant 0 : index
    %c2_72 = arith.constant 2 : index
    %c2_73 = arith.constant 2 : index
    %c0_74 = arith.constant 0 : index
    %57 = vector.load %arg8[%c0_71, %c2_72, %c2_73, %c0_74] : memref<2x18x18x128xf32, #tpu.memory_space<vmem>>, vector<2x16x16x128xf32>
    %58 = vector.shape_cast %57 : vector<2x16x16x128xf32> to vector<512x128xf32>
    %59 = arith.truncf %58 : vector<512x128xf32> to vector<512x128xbf16>
    %c1024 = arith.constant 1024 : index
    %c0_75 = arith.constant 0 : index
    %60 = vector.load %arg1[%c1024, %c0_75] : memref<1152x128xbf16, #tpu.memory_space<vmem>>, vector<128x128xbf16>
    %cst_76 = arith.constant dense<0.000000e+00> : vector<512x128xf32>
    %61 = tpu.matmul %59, %60, %cst_76 {dimension_numbers = #tpu.dot_dimension_numbers<[1], [0], [0], [1], [0, 0, 1, 1], [], []>} : vector<512x128xbf16>, vector<128x128xbf16>, vector<512x128xf32> -> vector<512x128xf32>
    %62 = arith.addf %56, %61 : vector<512x128xf32>
    %c0_77 = arith.constant 0 : index
    %c0_78 = arith.constant 0 : index
    %63 = vector.load %arg2[%c0_77, %c0_78] : memref<1x128xf32, #tpu.memory_space<vmem>>, vector<1x128xf32>
    %c0_79 = arith.constant 0 : index
    %c0_80 = arith.constant 0 : index
    %64 = vector.load %arg3[%c0_79, %c0_80] : memref<1x128xf32, #tpu.memory_space<vmem>>, vector<1x128xf32>
    %cst_81 = arith.constant dense<0.000000e+00> : vector<128xf32>
    %65 = vector.multi_reduction <add>, %62, %cst_81 [0] : vector<512x128xf32> to vector<128xf32>
    %66 = vector.shape_cast %65 : vector<128xf32> to vector<1x128xf32>
    %cst_82 = arith.constant 0.001953125 : f32
    %67 = vector.broadcast %cst_82 : f32 to vector<1x128xf32>
    %68 = arith.mulf %66, %67 : vector<1x128xf32>
    %69 = vector.broadcast %68 : vector<1x128xf32> to vector<512x128xf32>
    %70 = arith.subf %62, %69 : vector<512x128xf32>
    %71 = arith.mulf %70, %70 : vector<512x128xf32>
    %cst_83 = arith.constant dense<0.000000e+00> : vector<128xf32>
    %72 = vector.multi_reduction <add>, %71, %cst_83 [0] : vector<512x128xf32> to vector<128xf32>
    %73 = vector.shape_cast %72 : vector<128xf32> to vector<1x128xf32>
    %cst_84 = arith.constant 0.001953125 : f32
    %74 = vector.broadcast %cst_84 : f32 to vector<1x128xf32>
    %75 = arith.mulf %73, %74 : vector<1x128xf32>
    %cst_85 = arith.constant 9.99999974E-6 : f32
    %76 = vector.broadcast %cst_85 : f32 to vector<1x128xf32>
    %77 = arith.addf %75, %76 : vector<1x128xf32>
    %78 = math.rsqrt %77 : vector<1x128xf32>
    %79 = arith.mulf %63, %78 : vector<1x128xf32>
    %80 = vector.broadcast %79 : vector<1x128xf32> to vector<512x128xf32>
    %81 = arith.mulf %70, %80 : vector<512x128xf32>
    %82 = vector.broadcast %64 : vector<1x128xf32> to vector<512x128xf32>
    %83 = arith.addf %81, %82 : vector<512x128xf32>
    %cst_86 = arith.constant 0.000000e+00 : f32
    %84 = vector.broadcast %cst_86 : f32 to vector<512x128xf32>
    %85 = arith.maximumf %83, %84 : vector<512x128xf32>
    %86 = vector.shape_cast %85 : vector<512x128xf32> to vector<2x16x16x128xf32>
    %c0_87 = arith.constant 0 : index
    %c1_88 = arith.constant 1 : index
    %c1_89 = arith.constant 1 : index
    %c0_90 = arith.constant 0 : index
    %87 = vector.load %arg8[%c0_87, %c1_88, %c1_89, %c0_90] : memref<2x18x18x128xf32, #tpu.memory_space<vmem>>, vector<2x16x16x128xf32>
    tpu.vector_store %arg8[%c0_87, %c1_88, %c1_89, %c0_90], %86 {strides = array<i32>} : memref<2x18x18x128xf32, #tpu.memory_space<vmem>>, vector<2x16x16x128xf32>,
    %cst_91 = arith.constant 0.000000e+00 : f32
    %88 = vector.broadcast %cst_91 : f32 to vector<512x128xf32>
    %c0_92 = arith.constant 0 : index
    %c0_93 = arith.constant 0 : index
    %c0_94 = arith.constant 0 : index
    %c0_95 = arith.constant 0 : index
    %89 = vector.load %arg8[%c0_92, %c0_93, %c0_94, %c0_95] : memref<2x18x18x128xf32, #tpu.memory_space<vmem>>, vector<2x16x16x128xf32>
    %90 = vector.shape_cast %89 : vector<2x16x16x128xf32> to vector<512x128xf32>
    %91 = arith.truncf %90 : vector<512x128xf32> to vector<512x128xbf16>
    %c0_96 = arith.constant 0 : index
    %c0_97 = arith.constant 0 : index
    %92 = vector.load %arg4[%c0_96, %c0_97] : memref<1152x128xbf16, #tpu.memory_space<vmem>>, vector<128x128xbf16>
    %cst_98 = arith.constant dense<0.000000e+00> : vector<512x128xf32>
    %93 = tpu.matmul %91, %92, %cst_98 {dimension_numbers = #tpu.dot_dimension_numbers<[1], [0], [0], [1], [0, 0, 1, 1], [], []>} : vector<512x128xbf16>, vector<128x128xbf16>, vector<512x128xf32> -> vector<512x128xf32>
    %94 = arith.addf %88, %93 : vector<512x128xf32>
    %c0_99 = arith.constant 0 : index
    %c0_100 = arith.constant 0 : index
    %c1_101 = arith.constant 1 : index
    %c0_102 = arith.constant 0 : index
    %95 = vector.load %arg8[%c0_99, %c0_100, %c1_101, %c0_102] : memref<2x18x18x128xf32, #tpu.memory_space<vmem>>, vector<2x16x16x128xf32>
    %96 = vector.shape_cast %95 : vector<2x16x16x128xf32> to vector<512x128xf32>
    %97 = arith.truncf %96 : vector<512x128xf32> to vector<512x128xbf16>
    %c128_103 = arith.constant 128 : index
    %c0_104 = arith.constant 0 : index
    %98 = vector.load %arg4[%c128_103, %c0_104] : memref<1152x128xbf16, #tpu.memory_space<vmem>>, vector<128x128xbf16>
    %cst_105 = arith.constant dense<0.000000e+00> : vector<512x128xf32>
    %99 = tpu.matmul %97, %98, %cst_105 {dimension_numbers = #tpu.dot_dimension_numbers<[1], [0], [0], [1], [0, 0, 1, 1], [], []>} : vector<512x128xbf16>, vector<128x128xbf16>, vector<512x128xf32> -> vector<512x128xf32>
    %100 = arith.addf %94, %99 : vector<512x128xf32>
    %c0_106 = arith.constant 0 : index
    %c0_107 = arith.constant 0 : index
    %c2_108 = arith.constant 2 : index
    %c0_109 = arith.constant 0 : index
    %101 = vector.load %arg8[%c0_106, %c0_107, %c2_108, %c0_109] : memref<2x18x18x128xf32, #tpu.memory_space<vmem>>, vector<2x16x16x128xf32>
    %102 = vector.shape_cast %101 : vector<2x16x16x128xf32> to vector<512x128xf32>
    %103 = arith.truncf %102 : vector<512x128xf32> to vector<512x128xbf16>
    %c256_110 = arith.constant 256 : index
    %c0_111 = arith.constant 0 : index
    %104 = vector.load %arg4[%c256_110, %c0_111] : memref<1152x128xbf16, #tpu.memory_space<vmem>>, vector<128x128xbf16>
    %cst_112 = arith.constant dense<0.000000e+00> : vector<512x128xf32>
    %105 = tpu.matmul %103, %104, %cst_112 {dimension_numbers = #tpu.dot_dimension_numbers<[1], [0], [0], [1], [0, 0, 1, 1], [], []>} : vector<512x128xbf16>, vector<128x128xbf16>, vector<512x128xf32> -> vector<512x128xf32>
    %106 = arith.addf %100, %105 : vector<512x128xf32>
    %c0_113 = arith.constant 0 : index
    %c1_114 = arith.constant 1 : index
    %c0_115 = arith.constant 0 : index
    %c0_116 = arith.constant 0 : index
    %107 = vector.load %arg8[%c0_113, %c1_114, %c0_115, %c0_116] : memref<2x18x18x128xf32, #tpu.memory_space<vmem>>, vector<2x16x16x128xf32>
    %108 = vector.shape_cast %107 : vector<2x16x16x128xf32> to vector<512x128xf32>
    %109 = arith.truncf %108 : vector<512x128xf32> to vector<512x128xbf16>
    %c384_117 = arith.constant 384 : index
    %c0_118 = arith.constant 0 : index
    %110 = vector.load %arg4[%c384_117, %c0_118] : memref<1152x128xbf16, #tpu.memory_space<vmem>>, vector<128x128xbf16>
    %cst_119 = arith.constant dense<0.000000e+00> : vector<512x128xf32>
    %111 = tpu.matmul %109, %110, %cst_119 {dimension_numbers = #tpu.dot_dimension_numbers<[1], [0], [0], [1], [0, 0, 1, 1], [], []>} : vector<512x128xbf16>, vector<128x128xbf16>, vector<512x128xf32> -> vector<512x128xf32>
    %112 = arith.addf %106, %111 : vector<512x128xf32>
    %c0_120 = arith.constant 0 : index
    %c1_121 = arith.constant 1 : index
    %c1_122 = arith.constant 1 : index
    %c0_123 = arith.constant 0 : index
    %113 = vector.load %arg8[%c0_120, %c1_121, %c1_122, %c0_123] : memref<2x18x18x128xf32, #tpu.memory_space<vmem>>, vector<2x16x16x128xf32>
    %114 = vector.shape_cast %113 : vector<2x16x16x128xf32> to vector<512x128xf32>
    %115 = arith.truncf %114 : vector<512x128xf32> to vector<512x128xbf16>
    %c512_124 = arith.constant 512 : index
    %c0_125 = arith.constant 0 : index
    %116 = vector.load %arg4[%c512_124, %c0_125] : memref<1152x128xbf16, #tpu.memory_space<vmem>>, vector<128x128xbf16>
    %cst_126 = arith.constant dense<0.000000e+00> : vector<512x128xf32>
    %117 = tpu.matmul %115, %116, %cst_126 {dimension_numbers = #tpu.dot_dimension_numbers<[1], [0], [0], [1], [0, 0, 1, 1], [], []>} : vector<512x128xbf16>, vector<128x128xbf16>, vector<512x128xf32> -> vector<512x128xf32>
    %118 = arith.addf %112, %117 : vector<512x128xf32>
    %c0_127 = arith.constant 0 : index
    %c1_128 = arith.constant 1 : index
    %c2_129 = arith.constant 2 : index
    %c0_130 = arith.constant 0 : index
    %119 = vector.load %arg8[%c0_127, %c1_128, %c2_129, %c0_130] : memref<2x18x18x128xf32, #tpu.memory_space<vmem>>, vector<2x16x16x128xf32>
    %120 = vector.shape_cast %119 : vector<2x16x16x128xf32> to vector<512x128xf32>
    %121 = arith.truncf %120 : vector<512x128xf32> to vector<512x128xbf16>
    %c640_131 = arith.constant 640 : index
    %c0_132 = arith.constant 0 : index
    %122 = vector.load %arg4[%c640_131, %c0_132] : memref<1152x128xbf16, #tpu.memory_space<vmem>>, vector<128x128xbf16>
    %cst_133 = arith.constant dense<0.000000e+00> : vector<512x128xf32>
    %123 = tpu.matmul %121, %122, %cst_133 {dimension_numbers = #tpu.dot_dimension_numbers<[1], [0], [0], [1], [0, 0, 1, 1], [], []>} : vector<512x128xbf16>, vector<128x128xbf16>, vector<512x128xf32> -> vector<512x128xf32>
    %124 = arith.addf %118, %123 : vector<512x128xf32>
    %c0_134 = arith.constant 0 : index
    %c2_135 = arith.constant 2 : index
    %c0_136 = arith.constant 0 : index
    %c0_137 = arith.constant 0 : index
    %125 = vector.load %arg8[%c0_134, %c2_135, %c0_136, %c0_137] : memref<2x18x18x128xf32, #tpu.memory_space<vmem>>, vector<2x16x16x128xf32>
    %126 = vector.shape_cast %125 : vector<2x16x16x128xf32> to vector<512x128xf32>
    %127 = arith.truncf %126 : vector<512x128xf32> to vector<512x128xbf16>
    %c768_138 = arith.constant 768 : index
    %c0_139 = arith.constant 0 : index
    %128 = vector.load %arg4[%c768_138, %c0_139] : memref<1152x128xbf16, #tpu.memory_space<vmem>>, vector<128x128xbf16>
    %cst_140 = arith.constant dense<0.000000e+00> : vector<512x128xf32>
    %129 = tpu.matmul %127, %128, %cst_140 {dimension_numbers = #tpu.dot_dimension_numbers<[1], [0], [0], [1], [0, 0, 1, 1], [], []>} : vector<512x128xbf16>, vector<128x128xbf16>, vector<512x128xf32> -> vector<512x128xf32>
    %130 = arith.addf %124, %129 : vector<512x128xf32>
    %c0_141 = arith.constant 0 : index
    %c2_142 = arith.constant 2 : index
    %c1_143 = arith.constant 1 : index
    %c0_144 = arith.constant 0 : index
    %131 = vector.load %arg8[%c0_141, %c2_142, %c1_143, %c0_144] : memref<2x18x18x128xf32, #tpu.memory_space<vmem>>, vector<2x16x16x128xf32>
    %132 = vector.shape_cast %131 : vector<2x16x16x128xf32> to vector<512x128xf32>
    %133 = arith.truncf %132 : vector<512x128xf32> to vector<512x128xbf16>
    %c896_145 = arith.constant 896 : index
    %c0_146 = arith.constant 0 : index
    %134 = vector.load %arg4[%c896_145, %c0_146] : memref<1152x128xbf16, #tpu.memory_space<vmem>>, vector<128x128xbf16>
    %cst_147 = arith.constant dense<0.000000e+00> : vector<512x128xf32>
    %135 = tpu.matmul %133, %134, %cst_147 {dimension_numbers = #tpu.dot_dimension_numbers<[1], [0], [0], [1], [0, 0, 1, 1], [], []>} : vector<512x128xbf16>, vector<128x128xbf16>, vector<512x128xf32> -> vector<512x128xf32>
    %136 = arith.addf %130, %135 : vector<512x128xf32>
    %c0_148 = arith.constant 0 : index
    %c2_149 = arith.constant 2 : index
    %c2_150 = arith.constant 2 : index
    %c0_151 = arith.constant 0 : index
    %137 = vector.load %arg8[%c0_148, %c2_149, %c2_150, %c0_151] : memref<2x18x18x128xf32, #tpu.memory_space<vmem>>, vector<2x16x16x128xf32>
    %138 = vector.shape_cast %137 : vector<2x16x16x128xf32> to vector<512x128xf32>
    %139 = arith.truncf %138 : vector<512x128xf32> to vector<512x128xbf16>
    %c1024_152 = arith.constant 1024 : index
    %c0_153 = arith.constant 0 : index
    %140 = vector.load %arg4[%c1024_152, %c0_153] : memref<1152x128xbf16, #tpu.memory_space<vmem>>, vector<128x128xbf16>
    %cst_154 = arith.constant dense<0.000000e+00> : vector<512x128xf32>
    %141 = tpu.matmul %139, %140, %cst_154 {dimension_numbers = #tpu.dot_dimension_numbers<[1], [0], [0], [1], [0, 0, 1, 1], [], []>} : vector<512x128xbf16>, vector<128x128xbf16>, vector<512x128xf32> -> vector<512x128xf32>
    %142 = arith.addf %136, %141 : vector<512x128xf32>
    %c0_155 = arith.constant 0 : index
    %c0_156 = arith.constant 0 : index
    %143 = vector.load %arg5[%c0_155, %c0_156] : memref<1x128xf32, #tpu.memory_space<vmem>>, vector<1x128xf32>
    %c0_157 = arith.constant 0 : index
    %c0_158 = arith.constant 0 : index
    %144 = vector.load %arg6[%c0_157, %c0_158] : memref<1x128xf32, #tpu.memory_space<vmem>>, vector<1x128xf32>
    %cst_159 = arith.constant dense<0.000000e+00> : vector<128xf32>
    %145 = vector.multi_reduction <add>, %142, %cst_159 [0] : vector<512x128xf32> to vector<128xf32>
    %146 = vector.shape_cast %145 : vector<128xf32> to vector<1x128xf32>
    %cst_160 = arith.constant 0.001953125 : f32
    %147 = vector.broadcast %cst_160 : f32 to vector<1x128xf32>
    %148 = arith.mulf %146, %147 : vector<1x128xf32>
    %149 = vector.broadcast %148 : vector<1x128xf32> to vector<512x128xf32>
    %150 = arith.subf %142, %149 : vector<512x128xf32>
    %151 = arith.mulf %150, %150 : vector<512x128xf32>
    %cst_161 = arith.constant dense<0.000000e+00> : vector<128xf32>
    %152 = vector.multi_reduction <add>, %151, %cst_161 [0] : vector<512x128xf32> to vector<128xf32>
    %153 = vector.shape_cast %152 : vector<128xf32> to vector<1x128xf32>
    %cst_162 = arith.constant 0.001953125 : f32
    %154 = vector.broadcast %cst_162 : f32 to vector<1x128xf32>
    %155 = arith.mulf %153, %154 : vector<1x128xf32>
    %cst_163 = arith.constant 9.99999974E-6 : f32
    %156 = vector.broadcast %cst_163 : f32 to vector<1x128xf32>
    %157 = arith.addf %155, %156 : vector<1x128xf32>
    %158 = math.rsqrt %157 : vector<1x128xf32>
    %159 = arith.mulf %143, %158 : vector<1x128xf32>
    %160 = vector.broadcast %159 : vector<1x128xf32> to vector<512x128xf32>
    %161 = arith.mulf %150, %160 : vector<512x128xf32>
    %162 = vector.broadcast %144 : vector<1x128xf32> to vector<512x128xf32>
    %163 = arith.addf %161, %162 : vector<512x128xf32>
    %164 = vector.shape_cast %6 : vector<2x16x16x128xf32> to vector<512x128xf32>
    %165 = arith.addf %163, %164 : vector<512x128xf32>
    %cst_164 = arith.constant 0.000000e+00 : f32
    %166 = vector.broadcast %cst_164 : f32 to vector<512x128xf32>
    %167 = arith.maximumf %165, %166 : vector<512x128xf32>
    %168 = vector.shape_cast %167 : vector<512x128xf32> to vector<2x16x16x128xf32>
    %c0_165 = arith.constant 0 : index
    %c0_166 = arith.constant 0 : index
    %c0_167 = arith.constant 0 : index
    %c0_168 = arith.constant 0 : index
    %169 = vector.load %arg7[%c0_165, %c0_166, %c0_167, %c0_168] : memref<2x16x16x128xf32, #tpu.memory_space<vmem>>, vector<2x16x16x128xf32>
    tpu.vector_store %arg7[%c0_165, %c0_166, %c0_167, %c0_168], %168 {strides = array<i32>} : memref<2x16x16x128xf32, #tpu.memory_space<vmem>>, vector<2x16x16x128xf32>,
    return
  }
}

</mosaic_0001>

<llo_original>
// kernel: tpu_custom_call.1
$region0: #{tpu_custom_call.1}
  #allocation0 [shape = 'u32[]', space=smem, size = 0x4, offset = 0x4, fixed_abs, tag = 'smem constant byte address 0x4 - core index']
  #allocation1 [shape = 'u32[144,128]{1,0:T(1,128)}', space=vmem, size = 0x12000, scoped, tag = 'internal scratch']
  #allocation2 [shape = 'f32[2,18,18,128]{3,2,1,0:T(8,128)}', space=vmem, size = 0x6c000, scoped, tag = 'scratch operand']
  %s0 = inlined_call_operand.hbm [shape: f32[2,16,16,128], index: 0, kind: input, shape index: {}]
  %s1 = inlined_call_operand.hbm [shape: bf16[1152,128], index: 1, kind: input, shape index: {}]
  %s2 = inlined_call_operand.vmem [shape: f32[1,128], index: 2, kind: input, shape index: {}]
  %s3 = inlined_call_operand.vmem [shape: f32[1,128], index: 3, kind: input, shape index: {}]
  %s4 = inlined_call_operand.hbm [shape: bf16[1152,128], index: 4, kind: input, shape index: {}]
  %s5 = inlined_call_operand.vmem [shape: f32[1,128], index: 5, kind: input, shape index: {}]
  %s6 = inlined_call_operand.vmem [shape: f32[1,128], index: 6, kind: input, shape index: {}]
  %s7 = inlined_call_operand.hbm [shape: f32[2,16,16,128], index: 7, kind: output, shape index: {}]
  %s8 = sld [smem:[#allocation0]]
  $region50: #{tpu_custom_call.1} parent=0
    _
  %s10 = ssub.s32 1, %s8
  %s11 = scalar_select 0, %s10, %s8
  $region1: #{tpu_custom_call.1} parent=0
    #allocation3 [shape = 'u8[262144]{0}', space=vmem, size = 0x40000, scoped, tag = 'input window, operand 0, single buffered']
    #allocation4 [shape = 's32[1]{0}', space=sflag, size = 0x4, scoped, tag = 'scoped memory for tpu_custom_call.1']
    #allocation5 [shape = 's32[1]{0}', space=sflag, size = 0x4, scoped, tag = 'scoped memory for tpu_custom_call.1']
    #allocation6 [shape = 'u8[294912]{0}', space=vmem, size = 0x48000, scoped, tag = 'input window, operand 1, single buffered']
    #allocation7 [shape = 's32[1]{0}', space=sflag, size = 0x4, scoped, tag = 'scoped memory for tpu_custom_call.1']
    #allocation8 [shape = 'u8[294912]{0}', space=vmem, size = 0x48000, scoped, tag = 'input window, operand 4, single buffered']
    #allocation9 [shape = 'u8[262144]{0}', space=vmem, size = 0x40000, scoped, tag = 'output window, operand 0, single buffered']
    %12 = vsyncpa [#allocation4], 0
    %13 = vsyncpa [#allocation7], 0
    %14 = vsyncpa [#allocation5], 0
    // Predicated region
    $region2: #{tpu_custom_call.1} parent=1 // pred_check
      _
    $region3: #{tpu_custom_call.1} parent=1 // pred_check_branch
      %16 = sbr.rel (0) target = $region5
    $region4: #{tpu_custom_call.1} parent=1 // pred_region
      %s18 = ssub.s32 8192, 8192
      %19 = vsyncadd [#allocation4], %s18
      %s20 = sshll.u32 [#allocation3], 4
      %s21 = int_to_ptr.vmem [resolvable:$true] %s20
      %26 = dma.hbm_to_vmem [thread:$0]  %s0, 8192, %s21, [#allocation4], 128, 128, 8
    $region5: #{tpu_custom_call.1} parent=1 // pred_fallthru
      _
    // Predicated region
    $region6: #{tpu_custom_call.1} parent=1 // pred_check
      _
    $region7: #{tpu_custom_call.1} parent=1 // pred_check_branch
      %28 = sbr.rel (0) target = $region9
    $region8: #{tpu_custom_call.1} parent=1 // pred_region
      %s30 = ssub.s32 9216, 9216
      %31 = vsyncadd [#allocation7], %s30
      %s32 = sshll.u32 [#allocation6], 4
      %s33 = int_to_ptr.vmem [resolvable:$true] %s32
      %38 = dma.hbm_to_vmem [thread:$0]  %s1, 9216, %s33, [#allocation7], 64, 64, 4
    $region9: #{tpu_custom_call.1} parent=1 // pred_fallthru
      _
    // Predicated region
    $region10: #{tpu_custom_call.1} parent=1 // pred_check
      _
    $region11: #{tpu_custom_call.1} parent=1 // pred_check_branch
      %40 = sbr.rel (0) target = $region13
    $region12: #{tpu_custom_call.1} parent=1 // pred_region
      _
    $region13: #{tpu_custom_call.1} parent=1 // pred_fallthru
      _
    // Predicated region
    $region14: #{tpu_custom_call.1} parent=1 // pred_check
      _
    $region15: #{tpu_custom_call.1} parent=1 // pred_check_branch
      %42 = sbr.rel (0) target = $region17
    $region16: #{tpu_custom_call.1} parent=1 // pred_region
      _
    $region17: #{tpu_custom_call.1} parent=1 // pred_fallthru
      _
    // Predicated region
    $region18: #{tpu_custom_call.1} parent=1 // pred_check
      _
    $region19: #{tpu_custom_call.1} parent=1 // pred_check_branch
      %44 = sbr.rel (0) target = $region21
    $region20: #{tpu_custom_call.1} parent=1 // pred_region
      %s46 = ssub.s32 9216, 9216
      %47 = vsyncadd [#allocation7], %s46
      %s48 = sshll.u32 [#allocation8], 4
      %s49 = int_to_ptr.vmem [resolvable:$true] %s48
      %54 = dma.hbm_to_vmem [thread:$0]  %s4, 9216, %s49, [#allocation7], 64, 64, 4
    $region21: #{tpu_custom_call.1} parent=1 // pred_fallthru
      _
    // Predicated region
    $region22: #{tpu_custom_call.1} parent=1 // pred_check
      _
    $region23: #{tpu_custom_call.1} parent=1 // pred_check_branch
      %56 = sbr.rel (0) target = $region25
    $region24: #{tpu_custom_call.1} parent=1 // pred_region
      _
    $region25: #{tpu_custom_call.1} parent=1 // pred_fallthru
      _
    // Predicated region
    $region26: #{tpu_custom_call.1} parent=1 // pred_check
      _
    $region27: #{tpu_custom_call.1} parent=1 // pred_check_branch
      %58 = sbr.rel (0) target = $region29
    $region28: #{tpu_custom_call.1} parent=1 // pred_region
      _
    $region29: #{tpu_custom_call.1} parent=1 // pred_fallthru
      _
    // Predicated region
    $region30: #{tpu_custom_call.1} parent=1 // pred_check
      _
    $region31: #{tpu_custom_call.1} parent=1 // pred_check_branch
      %60 = sbr.rel (0) target = $region33
    $region32: #{tpu_custom_call.1} parent=1 // pred_region
      %61 = dma.done [#allocation4], 8192
    $region33: #{tpu_custom_call.1} parent=1 // pred_fallthru
      _
    // Predicated region
    $region34: #{tpu_custom_call.1} parent=1 // pred_check
      _
    $region35: #{tpu_custom_call.1} parent=1 // pred_check_branch
      %63 = sbr.rel (0) target = $region37
    $region36: #{tpu_custom_call.1} parent=1 // pred_region
      %64 = dma.done [#allocation7], 9216
    $region37: #{tpu_custom_call.1} parent=1 // pred_fallthru
      _
    // Predicated region
    $region38: #{tpu_custom_call.1} parent=1 // pred_check
      _
    $region39: #{tpu_custom_call.1} parent=1 // pred_check_branch
      %66 = sbr.rel (0) target = $region41
    $region40: #{tpu_custom_call.1} parent=1 // pred_region
      %67 = dma.done [#allocation7], 9216
    $region41: #{tpu_custom_call.1} parent=1 // pred_fallthru
      _
    %69 = vst [vmem:[#allocation2] sm:$0x1] 0.0
    %70 = vst [vmem:[#allocation2 + $0x18] sm:$0x1] 0.0
    %71 = vst [vmem:[#allocation2 + $0x30] sm:$0x1] 0.0
    %72 = vst [vmem:[#allocation2 + $0x48] sm:$0x1] 0.0
    %73 = vst [vmem:[#allocation2 + $0x60] sm:$0x1] 0.0
    %74 = vst [vmem:[#allocation2 + $0x78] sm:$0x1] 0.0
    %75 = vst [vmem:[#allocation2 + $0x90] sm:$0x1] 0.0
    %76 = vst [vmem:[#allocation2 + $0xa8] sm:$0x1] 0.0
    %77 = vst [vmem:[#allocation2 + $0xc0] sm:$0x1] 0.0
    %78 = vst [vmem:[#allocation2 + $0xd8] sm:$0x1] 0.0
    %79 = vst [vmem:[#allocation2 + $0xf0] sm:$0x1] 0.0
    %80 = vst [vmem:[#allocation2 + $0x108] sm:$0x1] 0.0
    %81 = vst [vmem:[#allocation2 + $0x120] sm:$0x1] 0.0
    %82 = vst [vmem:[#allocation2 + $0x138] sm:$0x1] 0.0
    %83 = vst [vmem:[#allocation2 + $0x150] sm:$0x1] 0.0
    %84 = vst [vmem:[#allocation2 + $0x168] sm:$0x1] 0.0
    %85 = vst [vmem:[#allocation2 + $0x180] sm:$0x1] 0.0
    %86 = vst [vmem:[#allocation2 + $0x198] sm:$0x1] 0.0
    %87 = vst [vmem:[#allocation2 + $0x1b0] sm:$0x1] 0.0
    %88 = vst [vmem:[#allocation2 + $0x1c8] sm:$0x1] 0.0
    %89 = vst [vmem:[#allocation2 + $0x1e0] sm:$0x1] 0.0
    %90 = vst [vmem:[#allocation2 + $0x1f8] sm:$0x1] 0.0
    %91 = vst [vmem:[#allocation2 + $0x210] sm:$0x1] 0.0
    %92 = vst [vmem:[#allocation2 + $0x228] sm:$0x1] 0.0
    %93 = vst [vmem:[#allocation2 + $0x240] sm:$0x1] 0.0
    %94 = vst [vmem:[#allocation2 + $0x258] sm:$0x1] 0.0
    %95 = vst [vmem:[#allocation2 + $0x270] sm:$0x1] 0.0
    %96 = vst [vmem:[#allocation2 + $0x288] sm:$0x1] 0.0
    %97 = vst [vmem:[#allocation2 + $0x2a0] sm:$0x1] 0.0
    %98 = vst [vmem:[#allocation2 + $0x2b8] sm:$0x1] 0.0
    %99 = vst [vmem:[#allocation2 + $0x2d0] sm:$0x1] 0.0
    %100 = vst [vmem:[#allocation2 + $0x2e8] sm:$0x1] 0.0
    %101 = vst [vmem:[#allocation2 + $0x300] sm:$0x1] 0.0
    %102 = vst [vmem:[#allocation2 + $0x318] sm:$0x1] 0.0
    %103 = vst [vmem:[#allocation2 + $0x330] sm:$0x1] 0.0
    %104 = vst [vmem:[#allocation2 + $0x348] sm:$0x1] 0.0
    %105 = vst [vmem:[#allocation2 + $0x11] sm:$0x1] 0.0
    %106 = vst [vmem:[#allocation2 + $0x29] sm:$0x1] 0.0
    %107 = vst [vmem:[#allocation2 + $0x41] sm:$0x1] 0.0
    %108 = vst [vmem:[#allocation2 + $0x59] sm:$0x1] 0.0
    %109 = vst [vmem:[#allocation2 + $0x71] sm:$0x1] 0.0
    %110 = vst [vmem:[#allocation2 + $0x89] sm:$0x1] 0.0
    %111 = vst [vmem:[#allocation2 + $0xa1] sm:$0x1] 0.0
    %112 = vst [vmem:[#allocation2 + $0xb9] sm:$0x1] 0.0
    %113 = vst [vmem:[#allocation2 + $0xd1] sm:$0x1] 0.0
    %114 = vst [vmem:[#allocation2 + $0xe9] sm:$0x1] 0.0
    %115 = vst [vmem:[#allocation2 + $0x101] sm:$0x1] 0.0
    %116 = vst [vmem:[#allocation2 + $0x119] sm:$0x1] 0.0
    %117 = vst [vmem:[#allocation2 + $0x131] sm:$0x1] 0.0
    %118 = vst [vmem:[#allocation2 + $0x149] sm:$0x1] 0.0
    %119 = vst [vmem:[#allocation2 + $0x161] sm:$0x1] 0.0
    %120 = vst [vmem:[#allocation2 + $0x179] sm:$0x1] 0.0
    %121 = vst [vmem:[#allocation2 + $0x191] sm:$0x1] 0.0
    %122 = vst [vmem:[#allocation2 + $0x1a9] sm:$0x1] 0.0
    %123 = vst [vmem:[#allocation2 + $0x1c1] sm:$0x1] 0.0
    %124 = vst [vmem:[#allocation2 + $0x1d9] sm:$0x1] 0.0
    %125 = vst [vmem:[#allocation2 + $0x1f1] sm:$0x1] 0.0
    %126 = vst [vmem:[#allocation2 + $0x209] sm:$0x1] 0.0
    %127 = vst [vmem:[#allocation2 + $0x221] sm:$0x1] 0.0
    %128 = vst [vmem:[#allocation2 + $0x239] sm:$0x1] 0.0
    %129 = vst [vmem:[#allocation2 + $0x251] sm:$0x1] 0.0
    %130 = vst [vmem:[#allocation2 + $0x269] sm:$0x1] 0.0
    %131 = vst [vmem:[#allocation2 + $0x281] sm:$0x1] 0.0
    %132 = vst [vmem:[#allocation2 + $0x299] sm:$0x1] 0.0
    %133 = vst [vmem:[#allocation2 + $0x2b1] sm:$0x1] 0.0
    %134 = vst [vmem:[#allocation2 + $0x2c9] sm:$0x1] 0.0
    %135 = vst [vmem:[#allocation2 + $0x2e1] sm:$0x1] 0.0
    %136 = vst [vmem:[#allocation2 + $0x2f9] sm:$0x1] 0.0
    %137 = vst [vmem:[#allocation2 + $0x311] sm:$0x1] 0.0
    %138 = vst [vmem:[#allocation2 + $0x329] sm:$0x1] 0.0
    %139 = vst [vmem:[#allocation2 + $0x341] sm:$0x1] 0.0
    %140 = vst [vmem:[#allocation2 + $0x359] sm:$0x1] 0.0
    %141 = vst [vmem:[#allocation2] sm:$0xff] 0.0
    %142 = vst [vmem:[#allocation2 + $0x8] sm:$0xff] 0.0
    %143 = vst [vmem:[#allocation2 + $0x10] sm:$0x3] 0.0
    %144 = vst [vmem:[#allocation2 + $0x1b0] sm:$0xff] 0.0
    %145 = vst [vmem:[#allocation2 + $0x1b8] sm:$0xff] 0.0
    %146 = vst [vmem:[#allocation2 + $0x1c0] sm:$0x3] 0.0
    %s147 = scalar_lea.vmem [#allocation2], 408
    %148 = vst [vmem:[%s147] sm:$0xff] 0.0
    %149 = vst [vmem:[%s147 + $0x8] sm:$0xff] 0.0
    %150 = vst [vmem:[%s147 + $0x10] sm:$0x3] 0.0
    %151 = vst [vmem:[%s147 + $0x1b0] sm:$0xff] 0.0
    %152 = vst [vmem:[%s147 + $0x1b8] sm:$0xff] 0.0
    %153 = vst [vmem:[%s147 + $0x1c0] sm:$0x3] 0.0
    %v154 = vld [vmem:[#allocation3] sm:$0xff]
    %v155 = vld [vmem:[#allocation3 + $0x8] sm:$0xff]
    %v156 = vld [vmem:[#allocation3 + $0x10] sm:$0xff]
    %v157 = vld [vmem:[#allocation3 + $0x18] sm:$0xff]
    %v158 = vld [vmem:[#allocation3 + $0x20] sm:$0xff]
    %v159 = vld [vmem:[#allocation3 + $0x28] sm:$0xff]
    %v160 = vld [vmem:[#allocation3 + $0x30] sm:$0xff]
    %v161 = vld [vmem:[#allocation3 + $0x38] sm:$0xff]
    %v162 = vld [vmem:[#allocation3 + $0x40] sm:$0xff]
    %v163 = vld [vmem:[#allocation3 + $0x48] sm:$0xff]
    %v164 = vld [vmem:[#allocation3 + $0x50] sm:$0xff]
    %v165 = vld [vmem:[#allocation3 + $0x58] sm:$0xff]
    %v166 = vld [vmem:[#allocation3 + $0x60] sm:$0xff]
    %v167 = vld [vmem:[#allocation3 + $0x68] sm:$0xff]
    %v168 = vld [vmem:[#allocation3 + $0x70] sm:$0xff]
    %v169 = vld [vmem:[#allocation3 + $0x78] sm:$0xff]
    %v170 = vld [vmem:[#allocation3 + $0x80] sm:$0xff]
    %v171 = vld [vmem:[#allocation3 + $0x88] sm:$0xff]
    %v172 = vld [vmem:[#allocation3 + $0x90] sm:$0xff]
    %v173 = vld [vmem:[#allocation3 + $0x98] sm:$0xff]
    %v174 = vld [vmem:[#allocation3 + $0xa0] sm:$0xff]
    %v175 = vld [vmem:[#allocation3 + $0xa8] sm:$0xff]
    %v176 = vld [vmem:[#allocation3 + $0xb0] sm:$0xff]
    %v177 = vld [vmem:[#allocation3 + $0xb8] sm:$0xff]
    %v178 = vld [vmem:[#allocation3 + $0xc0] sm:$0xff]
    %v179 = vld [vmem:[#allocation3 + $0xc8] sm:$0xff]
    %v180 = vld [vmem:[#allocation3 + $0xd0] sm:$0xff]
    %v181 = vld [vmem:[#allocation3 + $0xd8] sm:$0xff]
    %v182 = vld [vmem:[#allocation3 + $0xe0] sm:$0xff]
    %v183 = vld [vmem:[#allocation3 + $0xe8] sm:$0xff]
    %v184 = vld [vmem:[#allocation3 + $0xf0] sm:$0xff]
    %v185 = vld [vmem:[#allocation3 + $0xf8] sm:$0xff]
    %v186 = vld [vmem:[#allocation3 + $0x100] sm:$0xff]
    %v187 = vld [vmem:[#allocation3 + $0x108] sm:$0xff]
    %v188 = vld [vmem:[#allocation3 + $0x110] sm:$0xff]
    %v189 = vld [vmem:[#allocation3 + $0x118] sm:$0xff]
    %v190 = vld [vmem:[#allocation3 + $0x120] sm:$0xff]
    %v191 = vld [vmem:[#allocation3 + $0x128] sm:$0xff]
    %v192 = vld [vmem:[#allocation3 + $0x130] sm:$0xff]
    %v193 = vld [vmem:[#allocation3 + $0x138] sm:$0xff]
    %v194 = vld [vmem:[#allocation3 + $0x140] sm:$0xff]
    %v195 = vld [vmem:[#allocation3 + $0x148] sm:$0xff]
    %v196 = vld [vmem:[#allocation3 + $0x150] sm:$0xff]
    %v197 = vld [vmem:[#allocation3 + $0x158] sm:$0xff]
    %v198 = vld [vmem:[#allocation3 + $0x160] sm:$0xff]
    %v199 = vld [vmem:[#allocation3 + $0x168] sm:$0xff]
    %v200 = vld [vmem:[#allocation3 + $0x170] sm:$0xff]
    %v201 = vld [vmem:[#allocation3 + $0x178] sm:$0xff]
    %v202 = vld [vmem:[#allocation3 + $0x180] sm:$0xff]
    %v203 = vld [vmem:[#allocation3 + $0x188] sm:$0xff]
    %v204 = vld [vmem:[#allocation3 + $0x190] sm:$0xff]
    %v205 = vld [vmem:[#allocation3 + $0x198] sm:$0xff]
    %v206 = vld [vmem:[#allocation3 + $0x1a0] sm:$0xff]
    %v207 = vld [vmem:[#allocation3 + $0x1a8] sm:$0xff]
    %v208 = vld [vmem:[#allocation3 + $0x1b0] sm:$0xff]
    %v209 = vld [vmem:[#allocation3 + $0x1b8] sm:$0xff]
    %v210 = vld [vmem:[#allocation3 + $0x1c0] sm:$0xff]
    %v211 = vld [vmem:[#allocation3 + $0x1c8] sm:$0xff]
    %v212 = vld [vmem:[#allocation3 + $0x1d0] sm:$0xff]
    %v213 = vld [vmem:[#allocation3 + $0x1d8] sm:$0xff]
    %v214 = vld [vmem:[#allocation3 + $0x1e0] sm:$0xff]
    %v215 = vld [vmem:[#allocation3 + $0x1e8] sm:$0xff]
    %v216 = vld [vmem:[#allocation3 + $0x1f0] sm:$0xff]
    %v217 = vld [vmem:[#allocation3 + $0x1f8] sm:$0xff]
    %s218 = scalar_lea.vmem [#allocation2], 24
    %219 = vst [vmem:[%s218 + $0x1] sm:$0xff] %v154
    %220 = vst [vmem:[%s218 + $0x9] sm:$0xff] %v155
    %221 = vst [vmem:[%s218 + $0x19] sm:$0xff] %v156
    %222 = vst [vmem:[%s218 + $0x21] sm:$0xff] %v157
    %223 = vst [vmem:[%s218 + $0x31] sm:$0xff] %v158
    %224 = vst [vmem:[%s218 + $0x39] sm:$0xff] %v159
    %225 = vst [vmem:[%s218 + $0x49] sm:$0xff] %v160
    %226 = vst [vmem:[%s218 + $0x51] sm:$0xff] %v161
    %227 = vst [vmem:[%s218 + $0x61] sm:$0xff] %v162
    %228 = vst [vmem:[%s218 + $0x69] sm:$0xff] %v163
    %229 = vst [vmem:[%s218 + $0x79] sm:$0xff] %v164
    %230 = vst [vmem:[%s218 + $0x81] sm:$0xff] %v165
    %231 = vst [vmem:[%s218 + $0x91] sm:$0xff] %v166
    %232 = vst [vmem:[%s218 + $0x99] sm:$0xff] %v167
    %233 = vst [vmem:[%s218 + $0xa9] sm:$0xff] %v168
    %234 = vst [vmem:[%s218 + $0xb1] sm:$0xff] %v169
    %235 = vst [vmem:[%s218 + $0xc1] sm:$0xff] %v170
    %236 = vst [vmem:[%s218 + $0xc9] sm:$0xff] %v171
    %237 = vst [vmem:[%s218 + $0xd9] sm:$0xff] %v172
    %238 = vst [vmem:[%s218 + $0xe1] sm:$0xff] %v173
    %239 = vst [vmem:[%s218 + $0xf1] sm:$0xff] %v174
    %240 = vst [vmem:[%s218 + $0xf9] sm:$0xff] %v175
    %241 = vst [vmem:[%s218 + $0x109] sm:$0xff] %v176
    %242 = vst [vmem:[%s218 + $0x111] sm:$0xff] %v177
    %243 = vst [vmem:[%s218 + $0x121] sm:$0xff] %v178
    %244 = vst [vmem:[%s218 + $0x129] sm:$0xff] %v179
    %245 = vst [vmem:[%s218 + $0x139] sm:$0xff] %v180
    %246 = vst [vmem:[%s218 + $0x141] sm:$0xff] %v181
    %247 = vst [vmem:[%s218 + $0x151] sm:$0xff] %v182
    %248 = vst [vmem:[%s218 + $0x159] sm:$0xff] %v183
    %249 = vst [vmem:[%s218 + $0x169] sm:$0xff] %v184
    %250 = vst [vmem:[%s218 + $0x171] sm:$0xff] %v185
    %251 = vst [vmem:[%s218 + $0x1b1] sm:$0xff] %v186
    %252 = vst [vmem:[%s218 + $0x1b9] sm:$0xff] %v187
    %253 = vst [vmem:[%s218 + $0x1c9] sm:$0xff] %v188
    %254 = vst [vmem:[%s218 + $0x1d1] sm:$0xff] %v189
    %255 = vst [vmem:[%s218 + $0x1e1] sm:$0xff] %v190
    %256 = vst [vmem:[%s218 + $0x1e9] sm:$0xff] %v191
    %257 = vst [vmem:[%s218 + $0x1f9] sm:$0xff] %v192
    %258 = vst [vmem:[%s218 + $0x201] sm:$0xff] %v193
    %259 = vst [vmem:[%s218 + $0x211] sm:$0xff] %v194
    %260 = vst [vmem:[%s218 + $0x219] sm:$0xff] %v195
    %261 = vst [vmem:[%s218 + $0x229] sm:$0xff] %v196
    %262 = vst [vmem:[%s218 + $0x231] sm:$0xff] %v197
    %263 = vst [vmem:[%s218 + $0x241] sm:$0xff] %v198
    %264 = vst [vmem:[%s218 + $0x249] sm:$0xff] %v199
    %265 = vst [vmem:[%s218 + $0x259] sm:$0xff] %v200
    %266 = vst [vmem:[%s218 + $0x261] sm:$0xff] %v201
    %267 = vst [vmem:[%s218 + $0x271] sm:$0xff] %v202
    %268 = vst [vmem:[%s218 + $0x279] sm:$0xff] %v203
    %269 = vst [vmem:[%s218 + $0x289] sm:$0xff] %v204
    %270 = vst [vmem:[%s218 + $0x291] sm:$0xff] %v205
    %271 = vst [vmem:[%s218 + $0x2a1] sm:$0xff] %v206
    %272 = vst [vmem:[%s218 + $0x2a9] sm:$0xff] %v207
    %273 = vst [vmem:[%s218 + $0x2b9] sm:$0xff] %v208
    %274 = vst [vmem:[%s218 + $0x2c1] sm:$0xff] %v209
    %275 = vst [vmem:[%s218 + $0x2d1] sm:$0xff] %v210
    %276 = vst [vmem:[%s218 + $0x2d9] sm:$0xff] %v211
    %277 = vst [vmem:[%s218 + $0x2e9] sm:$0xff] %v212
    %278 = vst [vmem:[%s218 + $0x2f1] sm:$0xff] %v213
    %279 = vst [vmem:[%s218 + $0x301] sm:$0xff] %v214
    %280 = vst [vmem:[%s218 + $0x309] sm:$0xff] %v215
    %281 = vst [vmem:[%s218 + $0x319] sm:$0xff] %v216
    %282 = vst [vmem:[%s218 + $0x321] sm:$0xff] %v217
    %v283 = vld [vmem:[#allocation2] sm:$0xff]
    %v284 = vld [vmem:[#allocation2 + $0x8] sm:$0xff]
    %v285 = vld [vmem:[#allocation2 + $0x18] sm:$0xff]
    %v286 = vld [vmem:[#allocation2 + $0x20] sm:$0xff]
    %v287 = vld [vmem:[#allocation2 + $0x30] sm:$0xff]
    %v288 = vld [vmem:[#allocation2 + $0x38] sm:$0xff]
    %v289 = vld [vmem:[#allocation2 + $0x48] sm:$0xff]
    %v290 = vld [vmem:[#allocation2 + $0x50] sm:$0xff]
    %v291 = vld [vmem:[#allocation2 + $0x60] sm:$0xff]
    %v292 = vld [vmem:[#allocation2 + $0x68] sm:$0xff]
    %v293 = vld [vmem:[#allocation2 + $0x78] sm:$0xff]
    %v294 = vld [vmem:[#allocation2 + $0x80] sm:$0xff]
    %v295 = vld [vmem:[#allocation2 + $0x90] sm:$0xff]
    %v296 = vld [vmem:[#allocation2 + $0x98] sm:$0xff]
    %v297 = vld [vmem:[#allocation2 + $0xa8] sm:$0xff]
    %v298 = vld [vmem:[#allocation2 + $0xb0] sm:$0xff]
    %v299 = vld [vmem:[#allocation2 + $0xc0] sm:$0xff]
    %v300 = vld [vmem:[#allocation2 + $0xc8] sm:$0xff]
    %v301 = vld [vmem:[#allocation2 + $0xd8] sm:$0xff]
    %v302 = vld [vmem:[#allocation2 + $0xe0] sm:$0xff]
    %v303 = vld [vmem:[#allocation2 + $0xf0] sm:$0xff]
    %v304 = vld [vmem:[#allocation2 + $0xf8] sm:$0xff]
    %v305 = vld [vmem:[#allocation2 + $0x108] sm:$0xff]
    %v306 = vld [vmem:[#allocation2 + $0x110] sm:$0xff]
    %v307 = vld [vmem:[#allocation2 + $0x120] sm:$0xff]
    %v308 = vld [vmem:[#allocation2 + $0x128] sm:$0xff]
    %v309 = vld [vmem:[#allocation2 + $0x138] sm:$0xff]
    %v310 = vld [vmem:[#allocation2 + $0x140] sm:$0xff]
    %v311 = vld [vmem:[#allocation2 + $0x150] sm:$0xff]
    %v312 = vld [vmem:[#allocation2 + $0x158] sm:$0xff]
    %v313 = vld [vmem:[#allocation2 + $0x168] sm:$0xff]
    %v314 = vld [vmem:[#allocation2 + $0x170] sm:$0xff]
    %v315 = vld [vmem:[#allocation2 + $0x1b0] sm:$0xff]
    %v316 = vld [vmem:[#allocation2 + $0x1b8] sm:$0xff]
    %v317 = vld [vmem:[#allocation2 + $0x1c8] sm:$0xff]
    %v318 = vld [vmem:[#allocation2 + $0x1d0] sm:$0xff]
    %v319 = vld [vmem:[#allocation2 + $0x1e0] sm:$0xff]
    %v320 = vld [vmem:[#allocation2 + $0x1e8] sm:$0xff]
    %v321 = vld [vmem:[#allocation2 + $0x1f8] sm:$0xff]
    %v322 = vld [vmem:[#allocation2 + $0x200] sm:$0xff]
    %v323 = vld [vmem:[#allocation2 + $0x210] sm:$0xff]
    %v324 = vld [vmem:[#allocation2 + $0x218] sm:$0xff]
    %v325 = vld [vmem:[#allocation2 + $0x228] sm:$0xff]
    %v326 = vld [vmem:[#allocation2 + $0x230] sm:$0xff]
    %v327 = vld [vmem:[#allocation2 + $0x240] sm:$0xff]
    %v328 = vld [vmem:[#allocation2 + $0x248] sm:$0xff]
    %v329 = vld [vmem:[#allocation2 + $0x258] sm:$0xff]
    %v330 = vld [vmem:[#allocation2 + $0x260] sm:$0xff]
    %v331 = vld [vmem:[#allocation2 + $0x270] sm:$0xff]
    %v332 = vld [vmem:[#allocation2 + $0x278] sm:$0xff]
    %v333 = vld [vmem:[#allocation2 + $0x288] sm:$0xff]
    %v334 = vld [vmem:[#allocation2 + $0x290] sm:$0xff]
    %v335 = vld [vmem:[#allocation2 + $0x2a0] sm:$0xff]
    %v336 = vld [vmem:[#allocation2 + $0x2a8] sm:$0xff]
    %v337 = vld [vmem:[#allocation2 + $0x2b8] sm:$0xff]
    %v338 = vld [vmem:[#allocation2 + $0x2c0] sm:$0xff]
    %v339 = vld [vmem:[#allocation2 + $0x2d0] sm:$0xff]
    %v340 = vld [vmem:[#allocation2 + $0x2d8] sm:$0xff]
    %v341 = vld [vmem:[#allocation2 + $0x2e8] sm:$0xff]
    %v342 = vld [vmem:[#allocation2 + $0x2f0] sm:$0xff]
    %v343 = vld [vmem:[#allocation2 + $0x300] sm:$0xff]
    %v344 = vld [vmem:[#allocation2 + $0x308] sm:$0xff]
    %v345 = vld [vmem:[#allocation2 + $0x318] sm:$0xff]
    %v346 = vld [vmem:[#allocation2 + $0x320] sm:$0xff]
    %v347 = vpack.c.bf16 %v284, %v283
    %v348 = vpack.c.bf16 %v286, %v285
    %v349 = vpack.c.bf16 %v288, %v287
    %v350 = vpack.c.bf16 %v290, %v289
    %v351 = vpack.c.bf16 %v292, %v291
    %v352 = vpack.c.bf16 %v294, %v293
    %v353 = vpack.c.bf16 %v296, %v295
    %v354 = vpack.c.bf16 %v298, %v297
    %v355 = vpack.c.bf16 %v300, %v299
    %v356 = vpack.c.bf16 %v302, %v301
    %v357 = vpack.c.bf16 %v304, %v303
    %v358 = vpack.c.bf16 %v306, %v305
    %v359 = vpack.c.bf16 %v308, %v307
    %v360 = vpack.c.bf16 %v310, %v309
    %v361 = vpack.c.bf16 %v312, %v311
    %v362 = vpack.c.bf16 %v314, %v313
    %v363 = vpack.c.bf16 %v316, %v315
    %v364 = vpack.c.bf16 %v318, %v317
    %v365 = vpack.c.bf16 %v320, %v319
    %v366 = vpack.c.bf16 %v322, %v321
    %v367 = vpack.c.bf16 %v324, %v323
    %v368 = vpack.c.bf16 %v326, %v325
    %v369 = vpack.c.bf16 %v328, %v327
    %v370 = vpack.c.bf16 %v330, %v329
    %v371 = vpack.c.bf16 %v332, %v331
    %v372 = vpack.c.bf16 %v334, %v333
    %v373 = vpack.c.bf16 %v336, %v335
    %v374 = vpack.c.bf16 %v338, %v337
    %v375 = vpack.c.bf16 %v340, %v339
    %v376 = vpack.c.bf16 %v342, %v341
    %v377 = vpack.c.bf16 %v344, %v343
    %v378 = vpack.c.bf16 %v346, %v345
    %v379 = vld [vmem:[#allocation6] sm:$0xf]
    %v380 = vld [vmem:[#allocation6 + $0x4] sm:$0xf]
    %v381 = vld [vmem:[#allocation6 + $0x8] sm:$0xf]
    %v382 = vld [vmem:[#allocation6 + $0xc] sm:$0xf]
    %v383 = vld [vmem:[#allocation6 + $0x10] sm:$0xf]
    %v384 = vld [vmem:[#allocation6 + $0x14] sm:$0xf]
    %v385 = vld [vmem:[#allocation6 + $0x18] sm:$0xf]
    %v386 = vld [vmem:[#allocation6 + $0x1c] sm:$0xf]
    %v387 = vld [vmem:[#allocation6 + $0x20] sm:$0xf]
    %v388 = vld [vmem:[#allocation6 + $0x24] sm:$0xf]
    %v389 = vld [vmem:[#allocation6 + $0x28] sm:$0xf]
    %v390 = vld [vmem:[#allocation6 + $0x2c] sm:$0xf]
    %v391 = vld [vmem:[#allocation6 + $0x30] sm:$0xf]
    %v392 = vld [vmem:[#allocation6 + $0x34] sm:$0xf]
    %v393 = vld [vmem:[#allocation6 + $0x38] sm:$0xf]
    %v394 = vld [vmem:[#allocation6 + $0x3c] sm:$0xf]
    %v395 = vld [vmem:[#allocation2 + $0x1] sm:$0xff]
    %v396 = vld [vmem:[#allocation2 + $0x9] sm:$0xff]
    %v397 = vld [vmem:[#allocation2 + $0x19] sm:$0xff]
    %v398 = vld [vmem:[#allocation2 + $0x21] sm:$0xff]
    %v399 = vld [vmem:[#allocation2 + $0x31] sm:$0xff]
    %v400 = vld [vmem:[#allocation2 + $0x39] sm:$0xff]
    %v401 = vld [vmem:[#allocation2 + $0x49] sm:$0xff]
    %v402 = vld [vmem:[#allocation2 + $0x51] sm:$0xff]
    %v403 = vld [vmem:[#allocation2 + $0x61] sm:$0xff]
    %v404 = vld [vmem:[#allocation2 + $0x69] sm:$0xff]
    %v405 = vld [vmem:[#allocation2 + $0x79] sm:$0xff]
    %v406 = vld [vmem:[#allocation2 + $0x81] sm:$0xff]
    %v407 = vld [vmem:[#allocation2 + $0x91] sm:$0xff]
    %v408 = vld [vmem:[#allocation2 + $0x99] sm:$0xff]
    %v409 = vld [vmem:[#allocation2 + $0xa9] sm:$0xff]
    %v410 = vld [vmem:[#allocation2 + $0xb1] sm:$0xff]
    %v411 = vld [vmem:[#allocation2 + $0xc1] sm:$0xff]
    %v412 = vld [vmem:[#allocation2 + $0xc9] sm:$0xff]
    %v413 = vld [vmem:[#allocation2 + $0xd9] sm:$0xff]
    %v414 = vld [vmem:[#allocation2 + $0xe1] sm:$0xff]
    %v415 = vld [vmem:[#allocation2 + $0xf1] sm:$0xff]
    %v416 = vld [vmem:[#allocation2 + $0xf9] sm:$0xff]
    %v417 = vld [vmem:[#allocation2 + $0x109] sm:$0xff]
    %v418 = vld [vmem:[#allocation2 + $0x111] sm:$0xff]
    %v419 = vld [vmem:[#allocation2 + $0x121] sm:$0xff]
    %v420 = vld [vmem:[#allocation2 + $0x129] sm:$0xff]
    %v421 = vld [vmem:[#allocation2 + $0x139] sm:$0xff]
    %v422 = vld [vmem:[#allocation2 + $0x141] sm:$0xff]
    %v423 = vld [vmem:[#allocation2 + $0x151] sm:$0xff]
    %v424 = vld [vmem:[#allocation2 + $0x159] sm:$0xff]
    %v425 = vld [vmem:[#allocation2 + $0x169] sm:$0xff]
    %v426 = vld [vmem:[#allocation2 + $0x171] sm:$0xff]
    %v427 = vld [vmem:[#allocation2 + $0x1b1] sm:$0xff]
    %v428 = vld [vmem:[#allocation2 + $0x1b9] sm:$0xff]
    %v429 = vld [vmem:[#allocation2 + $0x1c9] sm:$0xff]
    %v430 = vld [vmem:[#allocation2 + $0x1d1] sm:$0xff]
    %v431 = vld [vmem:[#allocation2 + $0x1e1] sm:$0xff]
    %v432 = vld [vmem:[#allocation2 + $0x1e9] sm:$0xff]
    %v433 = vld [vmem:[#allocation2 + $0x1f9] sm:$0xff]
    %v434 = vld [vmem:[#allocation2 + $0x201] sm:$0xff]
    %v435 = vld [vmem:[#allocation2 + $0x211] sm:$0xff]
    %v436 = vld [vmem:[#allocation2 + $0x219] sm:$0xff]
    %v437 = vld [vmem:[#allocation2 + $0x229] sm:$0xff]
    %v438 = vld [vmem:[#allocation2 + $0x231] sm:$0xff]
    %v439 = vld [vmem:[#allocation2 + $0x241] sm:$0xff]
    %v440 = vld [vmem:[#allocation2 + $0x249] sm:$0xff]
    %v441 = vld [vmem:[#allocation2 + $0x259] sm:$0xff]
    %v442 = vld [vmem:[#allocation2 + $0x261] sm:$0xff]
    %v443 = vld [vmem:[#allocation2 + $0x271] sm:$0xff]
    %v444 = vld [vmem:[#allocation2 + $0x279] sm:$0xff]
    %v445 = vld [vmem:[#allocation2 + $0x289] sm:$0xff]
    %v446 = vld [vmem:[#allocation2 + $0x291] sm:$0xff]
    %v447 = vld [vmem:[#allocation2 + $0x2a1] sm:$0xff]
    %v448 = vld [vmem:[#allocation2 + $0x2a9] sm:$0xff]
    %v449 = vld [vmem:[#allocation2 + $0x2b9] sm:$0xff]
    %v450 = vld [vmem:[#allocation2 + $0x2c1] sm:$0xff]
    %v451 = vld [vmem:[#allocation2 + $0x2d1] sm:$0xff]
    %v452 = vld [vmem:[#allocation2 + $0x2d9] sm:$0xff]
    %v453 = vld [vmem:[#allocation2 + $0x2e9] sm:$0xff]
    %v454 = vld [vmem:[#allocation2 + $0x2f1] sm:$0xff]
    %v455 = vld [vmem:[#allocation2 + $0x301] sm:$0xff]
    %v456 = vld [vmem:[#allocation2 + $0x309] sm:$0xff]
    %v457 = vld [vmem:[#allocation2 + $0x319] sm:$0xff]
    %v458 = vld [vmem:[#allocation2 + $0x321] sm:$0xff]
    %v459 = vpack.c.bf16 %v396, %v395
    %v460 = vpack.c.bf16 %v398, %v397
    %v461 = vpack.c.bf16 %v400, %v399
    %v462 = vpack.c.bf16 %v402, %v401
    %v463 = vpack.c.bf16 %v404, %v403
    %v464 = vpack.c.bf16 %v406, %v405
    %v465 = vpack.c.bf16 %v408, %v407
    %v466 = vpack.c.bf16 %v410, %v409
    %v467 = vpack.c.bf16 %v412, %v411
    %v468 = vpack.c.bf16 %v414, %v413
    %v469 = vpack.c.bf16 %v416, %v415
    %v470 = vpack.c.bf16 %v418, %v417
    %v471 = vpack.c.bf16 %v420, %v419
    %v472 = vpack.c.bf16 %v422, %v421
    %v473 = vpack.c.bf16 %v424, %v423
    %v474 = vpack.c.bf16 %v426, %v425
    %v475 = vpack.c.bf16 %v428, %v427
    %v476 = vpack.c.bf16 %v430, %v429
    %v477 = vpack.c.bf16 %v432, %v431
    %v478 = vpack.c.bf16 %v434, %v433
    %v479 = vpack.c.bf16 %v436, %v435
    %v480 = vpack.c.bf16 %v438, %v437
    %v481 = vpack.c.bf16 %v440, %v439
    %v482 = vpack.c.bf16 %v442, %v441
    %v483 = vpack.c.bf16 %v444, %v443
    %v484 = vpack.c.bf16 %v446, %v445
    %v485 = vpack.c.bf16 %v448, %v447
    %v486 = vpack.c.bf16 %v450, %v449
    %v487 = vpack.c.bf16 %v452, %v451
    %v488 = vpack.c.bf16 %v454, %v453
    %v489 = vpack.c.bf16 %v456, %v455
    %v490 = vpack.c.bf16 %v458, %v457
    %v491 = vld [vmem:[#allocation6 + $0x40] sm:$0xf]
    %v492 = vld [vmem:[#allocation6 + $0x44] sm:$0xf]
    %v493 = vld [vmem:[#allocation6 + $0x48] sm:$0xf]
    %v494 = vld [vmem:[#allocation6 + $0x4c] sm:$0xf]
    %v495 = vld [vmem:[#allocation6 + $0x50] sm:$0xf]
    %v496 = vld [vmem:[#allocation6 + $0x54] sm:$0xf]
    %v497 = vld [vmem:[#allocation6 + $0x58] sm:$0xf]
    %v498 = vld [vmem:[#allocation6 + $0x5c] sm:$0xf]
    %v499 = vld [vmem:[#allocation6 + $0x60] sm:$0xf]
    %v500 = vld [vmem:[#allocation6 + $0x64] sm:$0xf]
    %v501 = vld [vmem:[#allocation6 + $0x68] sm:$0xf]
    %v502 = vld [vmem:[#allocation6 + $0x6c] sm:$0xf]
    %v503 = vld [vmem:[#allocation6 + $0x70] sm:$0xf]
    %v504 = vld [vmem:[#allocation6 + $0x74] sm:$0xf]
    %v505 = vld [vmem:[#allocation6 + $0x78] sm:$0xf]
    %v506 = vld [vmem:[#allocation6 + $0x7c] sm:$0xf]
    %v523 = vunpack.c.l.b16 %v491
    %v524 = vunpack.c.l.b16 %v492
    %v525 = vunpack.c.l.b16 %v493
    %v526 = vunpack.c.l.b16 %v494
    %v527 = vunpack.c.l.b16 %v495
    %v528 = vunpack.c.l.b16 %v496
    %v529 = vunpack.c.l.b16 %v497
    %v530 = vunpack.c.l.b16 %v498
    %v531 = vunpack.c.l.b16 %v499
    %v532 = vunpack.c.l.b16 %v500
    %v533 = vunpack.c.l.b16 %v501
    %v534 = vunpack.c.l.b16 %v502
    %v535 = vunpack.c.l.b16 %v503
    %v536 = vunpack.c.l.b16 %v504
    %v537 = vunpack.c.l.b16 %v505
    %v538 = vunpack.c.l.b16 %v506
    %v539 = vpack.c.b16 %v524, %v523
    %v540 = vpack.c.b16 %v526, %v525
    %v541 = vpack.c.b16 %v528, %v527
    %v542 = vpack.c.b16 %v530, %v529
    %v543 = vpack.c.b16 %v532, %v531
    %v544 = vpack.c.b16 %v534, %v533
    %v545 = vpack.c.b16 %v536, %v535
    %v546 = vpack.c.b16 %v538, %v537
    %555 = vmatprep.subr.bf16.mxu0 0
    %556 = vmatpush1.bf16.msra.mxu0 %v539
    %557 = vmatprep.subr.bf16.mxu0 0
    %558 = vmatpush1.bf16.msra.mxu0 %v540
    %559 = vmatprep.subr.bf16.mxu0 0
    %560 = vmatpush1.bf16.msra.mxu0 %v541
    %561 = vmatprep.subr.bf16.mxu0 0
    %562 = vmatpush1.bf16.msra.mxu0 %v542
    %563 = vmatprep.subr.bf16.mxu0 0
    %564 = vmatpush1.bf16.msra.mxu0 %v543
    %565 = vmatprep.subr.bf16.mxu0 0
    %566 = vmatpush1.bf16.msra.mxu0 %v544
    %567 = vmatprep.subr.bf16.mxu0 0
    %568 = vmatpush1.bf16.msra.mxu0 %v545
    %569 = vmatprep.subr.bf16.mxu0 0
    %570 = vmatpush1.bf16.msra.mxu0 %v546
    %571 = vmatprep.subr.bf16.mxu0 0
    %572 = vmatpush1.bf16.msra.mxu0 0
    %573 = vmatprep.subr.bf16.mxu0 0
    %574 = vmatpush1.bf16.msra.mxu0 0
    %575 = vmatprep.subr.bf16.mxu0 0
    %576 = vmatpush1.bf16.msra.mxu0 0
    %577 = vmatprep.subr.bf16.mxu0 0
    %578 = vmatpush1.bf16.msra.mxu0 0
    %579 = vmatprep.subr.bf16.mxu0 0
    %580 = vmatpush1.bf16.msra.mxu0 0
    %581 = vmatprep.subr.bf16.mxu0 0
    %582 = vmatpush1.bf16.msra.mxu0 0
    %583 = vmatprep.subr.bf16.mxu0 0
    %584 = vmatpush1.bf16.msra.mxu0 0
    %585 = vmatprep.subr.bf16.mxu0 0
    %586 = vmatpush1.bf16.msra.mxu0 0
    %587 = vmatprep.mubr.bf16.mxu0 0
    %588 = vmatmul.mubr.bf16.gmra.mrb[0].mxu0 %v459
    %v589 = vpop.f32.mrb[0].mxu0
    %v590 = vadd.f32 0.0, %v589
    %v591 = vpop.f32.mrb[0].mxu0
    %v592 = vpop.f32.mrb[0].mxu0
    %v593 = vadd.f32 0.0, %v592
    %v594 = vpop.f32.mrb[0].mxu0
    %595 = vmatprep.mubr.bf16.mxu0 0
    %596 = vmatmul.mubr.bf16.gmra.mrb[0].mxu0 %v460
    %v597 = vpop.f32.mrb[0].mxu0
    %v598 = vadd.f32 0.0, %v597
    %v599 = vpop.f32.mrb[0].mxu0
    %v600 = vpop.f32.mrb[0].mxu0
    %v601 = vadd.f32 0.0, %v600
    %v602 = vpop.f32.mrb[0].mxu0
    %603 = vmatprep.mubr.bf16.mxu0 0
    %604 = vmatmul.mubr.bf16.gmra.mrb[0].mxu0 %v461
    %v605 = vpop.f32.mrb[0].mxu0
    %v606 = vadd.f32 0.0, %v605
    %v607 = vpop.f32.mrb[0].mxu0
    %v608 = vpop.f32.mrb[0].mxu0
    %v609 = vadd.f32 0.0, %v608
    %v610 = vpop.f32.mrb[0].mxu0
    %611 = vmatprep.mubr.bf16.mxu0 0
    %612 = vmatmul.mubr.bf16.gmra.mrb[0].mxu0 %v462
    %v613 = vpop.f32.mrb[0].mxu0
    %v614 = vadd.f32 0.0, %v613
    %v615 = vpop.f32.mrb[0].mxu0
    %v616 = vpop.f32.mrb[0].mxu0
    %v617 = vadd.f32 0.0, %v616
    %v618 = vpop.f32.mrb[0].mxu0
    %619 = vmatprep.mubr.bf16.mxu0 0
    %620 = vmatmul.mubr.bf16.gmra.mrb[0].mxu0 %v463
    %v621 = vpop.f32.mrb[0].mxu0
    %v622 = vadd.f32 0.0, %v621
    %v623 = vpop.f32.mrb[0].mxu0
    %v624 = vpop.f32.mrb[0].mxu0
    %v625 = vadd.f32 0.0, %v624
    %v626 = vpop.f32.mrb[0].mxu0
    %627 = vmatprep.mubr.bf16.mxu0 0
    %628 = vmatmul.mubr.bf16.gmra.mrb[0].mxu0 %v464
    %v629 = vpop.f32.mrb[0].mxu0
    %v630 = vadd.f32 0.0, %v629
    %v631 = vpop.f32.mrb[0].mxu0
    %v632 = vpop.f32.mrb[0].mxu0
    %v633 = vadd.f32 0.0, %v632
    %v634 = vpop.f32.mrb[0].mxu0
    %635 = vmatprep.mubr.bf16.mxu0 0
    %636 = vmatmul.mubr.bf16.gmra.mrb[0].mxu0 %v465
    %v637 = vpop.f32.mrb[0].mxu0
    %v638 = vadd.f32 0.0, %v637
    %v639 = vpop.f32.mrb[0].mxu0
    %v640 = vpop.f32.mrb[0].mxu0
    %v641 = vadd.f32 0.0, %v640
    %v642 = vpop.f32.mrb[0].mxu0
    %643 = vmatprep.mubr.bf16.mxu0 0
    %644 = vmatmul.mubr.bf16.gmra.mrb[0].mxu0 %v466
    %v645 = vpop.f32.mrb[0].mxu0
    %v646 = vadd.f32 0.0, %v645
    %v647 = vpop.f32.mrb[0].mxu0
    %v648 = vpop.f32.mrb[0].mxu0
    %v649 = vadd.f32 0.0, %v648
    %v650 = vpop.f32.mrb[0].mxu0
    %651 = vmatprep.mubr.bf16.mxu0 0
    %652 = vmatmul.mubr.bf16.gmra.mrb[0].mxu0 %v467
    %v653 = vpop.f32.mrb[0].mxu0
    %v654 = vadd.f32 0.0, %v653
    %v655 = vpop.f32.mrb[0].mxu0
    %v656 = vpop.f32.mrb[0].mxu0
    %v657 = vadd.f32 0.0, %v656
    %v658 = vpop.f32.mrb[0].mxu0
    %659 = vmatprep.mubr.bf16.mxu0 0
    %660 = vmatmul.mubr.bf16.gmra.mrb[0].mxu0 %v468
    %v661 = vpop.f32.mrb[0].mxu0
    %v662 = vadd.f32 0.0, %v661
    %v663 = vpop.f32.mrb[0].mxu0
    %v664 = vpop.f32.mrb[0].mxu0
    %v665 = vadd.f32 0.0, %v664
    %v666 = vpop.f32.mrb[0].mxu0
    %667 = vmatprep.mubr.bf16.mxu0 0
    %668 = vmatmul.mubr.bf16.gmra.mrb[0].mxu0 %v469
    %v669 = vpop.f32.mrb[0].mxu0
    %v670 = vadd.f32 0.0, %v669
    %v671 = vpop.f32.mrb[0].mxu0
    %v672 = vpop.f32.mrb[0].mxu0
    %v673 = vadd.f32 0.0, %v672
    %v674 = vpop.f32.mrb[0].mxu0
    %675 = vmatprep.mubr.bf16.mxu0 0
    %676 = vmatmul.mubr.bf16.gmra.mrb[0].mxu0 %v470
    %v677 = vpop.f32.mrb[0].mxu0
    %v678 = vadd.f32 0.0, %v677
    %v679 = vpop.f32.mrb[0].mxu0
    %v680 = vpop.f32.mrb[0].mxu0
    %v681 = vadd.f32 0.0, %v680
    %v682 = vpop.f32.mrb[0].mxu0
    %683 = vmatprep.mubr.bf16.mxu0 0
    %684 = vmatmul.mubr.bf16.gmra.mrb[0].mxu0 %v471
    %v685 = vpop.f32.mrb[0].mxu0
    %v686 = vadd.f32 0.0, %v685
    %v687 = vpop.f32.mrb[0].mxu0
    %v688 = vpop.f32.mrb[0].mxu0
    %v689 = vadd.f32 0.0, %v688
    %v690 = vpop.f32.mrb[0].mxu0
    %691 = vmatprep.mubr.bf16.mxu0 0
    %692 = vmatmul.mubr.bf16.gmra.mrb[0].mxu0 %v472
    %v693 = vpop.f32.mrb[0].mxu0
    %v694 = vadd.f32 0.0, %v693
    %v695 = vpop.f32.mrb[0].mxu0
    %v696 = vpop.f32.mrb[0].mxu0
    %v697 = vadd.f32 0.0, %v696
    %v698 = vpop.f32.mrb[0].mxu0
    %699 = vmatprep.mubr.bf16.mxu0 0
    %700 = vmatmul.mubr.bf16.gmra.mrb[0].mxu0 %v473
    %v701 = vpop.f32.mrb[0].mxu0
    %v702 = vadd.f32 0.0, %v701
    %v703 = vpop.f32.mrb[0].mxu0
    %v704 = vpop.f32.mrb[0].mxu0
    %v705 = vadd.f32 0.0, %v704
    %v706 = vpop.f32.mrb[0].mxu0
    %707 = vmatprep.mubr.bf16.mxu0 0
    %708 = vmatmul.mubr.bf16.gmra.mrb[0].mxu0 %v474
    %v709 = vpop.f32.mrb[0].mxu0
    %v710 = vadd.f32 0.0, %v709
    %v711 = vpop.f32.mrb[0].mxu0
    %v712 = vpop.f32.mrb[0].mxu0
    %v713 = vadd.f32 0.0, %v712
    %v714 = vpop.f32.mrb[0].mxu0
    %715 = vmatprep.mubr.bf16.mxu0 0
    %716 = vmatmul.mubr.bf16.gmra.mrb[0].mxu0 %v475
    %v717 = vpop.f32.mrb[0].mxu0
    %v718 = vadd.f32 0.0, %v717
    %v719 = vpop.f32.mrb[0].mxu0
    %v720 = vpop.f32.mrb[0].mxu0
    %v721 = vadd.f32 0.0, %v720
    %v722 = vpop.f32.mrb[0].mxu0
    %723 = vmatprep.mubr.bf16.mxu0 0
    %724 = vmatmul.mubr.bf16.gmra.mrb[0].mxu0 %v476
    %v725 = vpop.f32.mrb[0].mxu0
    %v726 = vadd.f32 0.0, %v725
    %v727 = vpop.f32.mrb[0].mxu0
    %v728 = vpop.f32.mrb[0].mxu0
    %v729 = vadd.f32 0.0, %v728
    %v730 = vpop.f32.mrb[0].mxu0
    %731 = vmatprep.mubr.bf16.mxu0 0
    %732 = vmatmul.mubr.bf16.gmra.mrb[0].mxu0 %v477
    %v733 = vpop.f32.mrb[0].mxu0
    %v734 = vadd.f32 0.0, %v733
    %v735 = vpop.f32.mrb[0].mxu0
    %v736 = vpop.f32.mrb[0].mxu0
    %v737 = vadd.f32 0.0, %v736
    %v738 = vpop.f32.mrb[0].mxu0
    %739 = vmatprep.mubr.bf16.mxu0 0
    %740 = vmatmul.mubr.bf16.gmra.mrb[0].mxu0 %v478
    %v741 = vpop.f32.mrb[0].mxu0
    %v742 = vadd.f32 0.0, %v741
    %v743 = vpop.f32.mrb[0].mxu0
    %v744 = vpop.f32.mrb[0].mxu0
    %v745 = vadd.f32 0.0, %v744
    %v746 = vpop.f32.mrb[0].mxu0
    %747 = vmatprep.mubr.bf16.mxu0 0
    %748 = vmatmul.mubr.bf16.gmra.mrb[0].mxu0 %v479
    %v749 = vpop.f32.mrb[0].mxu0
    %v750 = vadd.f32 0.0, %v749
    %v751 = vpop.f32.mrb[0].mxu0
    %v752 = vpop.f32.mrb[0].mxu0
    %v753 = vadd.f32 0.0, %v752
    %v754 = vpop.f32.mrb[0].mxu0
    %755 = vmatprep.mubr.bf16.mxu0 0
    %756 = vmatmul.mubr.bf16.gmra.mrb[0].mxu0 %v480
    %v757 = vpop.f32.mrb[0].mxu0
    %v758 = vadd.f32 0.0, %v757
    %v759 = vpop.f32.mrb[0].mxu0
    %v760 = vpop.f32.mrb[0].mxu0
    %v761 = vadd.f32 0.0, %v760
    %v762 = vpop.f32.mrb[0].mxu0
    %763 = vmatprep.mubr.bf16.mxu0 0
    %764 = vmatmul.mubr.bf16.gmra.mrb[0].mxu0 %v481
    %v765 = vpop.f32.mrb[0].mxu0
    %v766 = vadd.f32 0.0, %v765
    %v767 = vpop.f32.mrb[0].mxu0
    %v768 = vpop.f32.mrb[0].mxu0
    %v769 = vadd.f32 0.0, %v768
    %v770 = vpop.f32.mrb[0].mxu0
    %771 = vmatprep.mubr.bf16.mxu0 0
    %772 = vmatmul.mubr.bf16.gmra.mrb[0].mxu0 %v482
    %v773 = vpop.f32.mrb[0].mxu0
    %v774 = vadd.f32 0.0, %v773
    %v775 = vpop.f32.mrb[0].mxu0
    %v776 = vpop.f32.mrb[0].mxu0
    %v777 = vadd.f32 0.0, %v776
    %v778 = vpop.f32.mrb[0].mxu0
    %779 = vmatprep.mubr.bf16.mxu0 0
    %780 = vmatmul.mubr.bf16.gmra.mrb[0].mxu0 %v483
    %v781 = vpop.f32.mrb[0].mxu0
    %v782 = vadd.f32 0.0, %v781
    %v783 = vpop.f32.mrb[0].mxu0
    %v784 = vpop.f32.mrb[0].mxu0
    %v785 = vadd.f32 0.0, %v784
    %v786 = vpop.f32.mrb[0].mxu0
    %787 = vmatprep.mubr.bf16.mxu0 0
    %788 = vmatmul.mubr.bf16.gmra.mrb[0].mxu0 %v484
    %v789 = vpop.f32.mrb[0].mxu0
    %v790 = vadd.f32 0.0, %v789
    %v791 = vpop.f32.mrb[0].mxu0
    %v792 = vpop.f32.mrb[0].mxu0
    %v793 = vadd.f32 0.0, %v792
    %v794 = vpop.f32.mrb[0].mxu0
    %795 = vmatprep.mubr.bf16.mxu0 0
    %796 = vmatmul.mubr.bf16.gmra.mrb[0].mxu0 %v485
    %v797 = vpop.f32.mrb[0].mxu0
    %v798 = vadd.f32 0.0, %v797
    %v799 = vpop.f32.mrb[0].mxu0
    %v800 = vpop.f32.mrb[0].mxu0
    %v801 = vadd.f32 0.0, %v800
    %v802 = vpop.f32.mrb[0].mxu0
    %803 = vmatprep.mubr.bf16.mxu0 0
    %804 = vmatmul.mubr.bf16.gmra.mrb[0].mxu0 %v486
    %v805 = vpop.f32.mrb[0].mxu0
    %v806 = vadd.f32 0.0, %v805
    %v807 = vpop.f32.mrb[0].mxu0
    %v808 = vpop.f32.mrb[0].mxu0
    %v809 = vadd.f32 0.0, %v808
    %v810 = vpop.f32.mrb[0].mxu0
    %811 = vmatprep.mubr.bf16.mxu0 0
    %812 = vmatmul.mubr.bf16.gmra.mrb[0].mxu0 %v487
    %v813 = vpop.f32.mrb[0].mxu0
    %v814 = vadd.f32 0.0, %v813
    %v815 = vpop.f32.mrb[0].mxu0
    %v816 = vpop.f32.mrb[0].mxu0
    %v817 = vadd.f32 0.0, %v816
    %v818 = vpop.f32.mrb[0].mxu0
    %819 = vmatprep.mubr.bf16.mxu0 0
    %820 = vmatmul.mubr.bf16.gmra.mrb[0].mxu0 %v488
    %v821 = vpop.f32.mrb[0].mxu0
    %v822 = vadd.f32 0.0, %v821
    %v823 = vpop.f32.mrb[0].mxu0
    %v824 = vpop.f32.mrb[0].mxu0
    %v825 = vadd.f32 0.0, %v824
    %v826 = vpop.f32.mrb[0].mxu0
    %827 = vmatprep.mubr.bf16.mxu0 0
    %828 = vmatmul.mubr.bf16.gmra.mrb[0].mxu0 %v489
    %v829 = vpop.f32.mrb[0].mxu0
    %v830 = vadd.f32 0.0, %v829
    %v831 = vpop.f32.mrb[0].mxu0
    %v832 = vpop.f32.mrb[0].mxu0
    %v833 = vadd.f32 0.0, %v832
    %v834 = vpop.f32.mrb[0].mxu0
    %835 = vmatprep.mubr.bf16.mxu0 0
    %836 = vmatmul.mubr.bf16.gmra.mrb[0].mxu0 %v490
    %v837 = vpop.f32.mrb[0].mxu0
    %v838 = vadd.f32 0.0, %v837
    %v839 = vpop.f32.mrb[0].mxu0
    %v840 = vpop.f32.mrb[0].mxu0
    %v841 = vadd.f32 0.0, %v840
    %v842 = vpop.f32.mrb[0].mxu0
    %843 = vdwg.mxu0
    %v860 = vunpack.c.l.b16 %v379
    %v861 = vunpack.c.l.b16 %v380
    %v862 = vunpack.c.l.b16 %v381
    %v863 = vunpack.c.l.b16 %v382
    %v864 = vunpack.c.l.b16 %v383
    %v865 = vunpack.c.l.b16 %v384
    %v866 = vunpack.c.l.b16 %v385
    %v867 = vunpack.c.l.b16 %v386
    %v868 = vunpack.c.l.b16 %v387
    %v869 = vunpack.c.l.b16 %v388
    %v870 = vunpack.c.l.b16 %v389
    %v871 = vunpack.c.l.b16 %v390
    %v872 = vunpack.c.l.b16 %v391
    %v873 = vunpack.c.l.b16 %v392
    %v874 = vunpack.c.l.b16 %v393
    %v875 = vunpack.c.l.b16 %v394
    %v876 = vpack.c.b16 %v861, %v860
    %v877 = vpack.c.b16 %v863, %v862
    %v878 = vpack.c.b16 %v865, %v864
    %v879 = vpack.c.b16 %v867, %v866
    %v880 = vpack.c.b16 %v869, %v868
    %v881 = vpack.c.b16 %v871, %v870
    %v882 = vpack.c.b16 %v873, %v872
    %v883 = vpack.c.b16 %v875, %v874
    %892 = vmatprep.subr.bf16.mxu0 0
    %893 = vmatpush1.bf16.msra.mxu0 %v876
    %894 = vmatprep.subr.bf16.mxu0 0
    %895 = vmatpush1.bf16.msra.mxu0 %v877
    %896 = vmatprep.subr.bf16.mxu0 0
    %897 = vmatpush1.bf16.msra.mxu0 %v878
    %898 = vmatprep.subr.bf16.mxu0 0
    %899 = vmatpush1.bf16.msra.mxu0 %v879
    %900 = vmatprep.subr.bf16.mxu0 0
    %901 = vmatpush1.bf16.msra.mxu0 %v880
    %902 = vmatprep.subr.bf16.mxu0 0
    %903 = vmatpush1.bf16.msra.mxu0 %v881
    %904 = vmatprep.subr.bf16.mxu0 0
    %905 = vmatpush1.bf16.msra.mxu0 %v882
    %906 = vmatprep.subr.bf16.mxu0 0
    %907 = vmatpush1.bf16.msra.mxu0 %v883
    %908 = vmatprep.subr.bf16.mxu0 0
    %909 = vmatpush1.bf16.msra.mxu0 0
    %910 = vmatprep.subr.bf16.mxu0 0
    %911 = vmatpush1.bf16.msra.mxu0 0
    %912 = vmatprep.subr.bf16.mxu0 0
    %913 = vmatpush1.bf16.msra.mxu0 0
    %914 = vmatprep.subr.bf16.mxu0 0
    %915 = vmatpush1.bf16.msra.mxu0 0
    %916 = vmatprep.subr.bf16.mxu0 0
    %917 = vmatpush1.bf16.msra.mxu0 0
    %918 = vmatprep.subr.bf16.mxu0 0
    %919 = vmatpush1.bf16.msra.mxu0 0
    %920 = vmatprep.subr.bf16.mxu0 0
    %921 = vmatpush1.bf16.msra.mxu0 0
    %922 = vmatprep.subr.bf16.mxu0 0
    %923 = vmatpush1.bf16.msra.mxu0 0
    %924 = vmatprep.mubr.bf16.mxu0 0
    %925 = vmatmul.mubr.bf16.gmra.mrb[0].mxu0 %v347
    %v926 = vpop.f32.mrb[0].mxu0
    %v927 = vadd.f32 %v590, %v926
    %v928 = vpop.f32.mrb[0].mxu0
    %v929 = vpop.f32.mrb[0].mxu0
    %v930 = vadd.f32 %v593, %v929
    %v931 = vpop.f32.mrb[0].mxu0
    %932 = vmatprep.mubr.bf16.mxu0 0
    %933 = vmatmul.mubr.bf16.gmra.mrb[0].mxu0 %v348
    %v934 = vpop.f32.mrb[0].mxu0
    %v935 = vadd.f32 %v598, %v934
    %v936 = vpop.f32.mrb[0].mxu0
    %v937 = vpop.f32.mrb[0].mxu0
    %v938 = vadd.f32 %v601, %v937
    %v939 = vpop.f32.mrb[0].mxu0
    %940 = vmatprep.mubr.bf16.mxu0 0
    %941 = vmatmul.mubr.bf16.gmra.mrb[0].mxu0 %v349
    %v942 = vpop.f32.mrb[0].mxu0
    %v943 = vadd.f32 %v606, %v942
    %v944 = vpop.f32.mrb[0].mxu0
    %v945 = vpop.f32.mrb[0].mxu0
    %v946 = vadd.f32 %v609, %v945
    %v947 = vpop.f32.mrb[0].mxu0
    %948 = vmatprep.mubr.bf16.mxu0 0
    %949 = vmatmul.mubr.bf16.gmra.mrb[0].mxu0 %v350
    %v950 = vpop.f32.mrb[0].mxu0
    %v951 = vadd.f32 %v614, %v950
    %v952 = vpop.f32.mrb[0].mxu0
    %v953 = vpop.f32.mrb[0].mxu0
    %v954 = vadd.f32 %v617, %v953
    %v955 = vpop.f32.mrb[0].mxu0
    %956 = vmatprep.mubr.bf16.mxu0 0
    %957 = vmatmul.mubr.bf16.gmra.mrb[0].mxu0 %v351
    %v958 = vpop.f32.mrb[0].mxu0
    %v959 = vadd.f32 %v622, %v958
    %v960 = vpop.f32.mrb[0].mxu0
    %v961 = vpop.f32.mrb[0].mxu0
    %v962 = vadd.f32 %v625, %v961
    %v963 = vpop.f32.mrb[0].mxu0
    %964 = vmatprep.mubr.bf16.mxu0 0
    %965 = vmatmul.mubr.bf16.gmra.mrb[0].mxu0 %v352
    %v966 = vpop.f32.mrb[0].mxu0
    %v967 = vadd.f32 %v630, %v966
    %v968 = vpop.f32.mrb[0].mxu0
    %v969 = vpop.f32.mrb[0].mxu0
    %v970 = vadd.f32 %v633, %v969
    %v971 = vpop.f32.mrb[0].mxu0
    %972 = vmatprep.mubr.bf16.mxu0 0
    %973 = vmatmul.mubr.bf16.gmra.mrb[0].mxu0 %v353
    %v974 = vpop.f32.mrb[0].mxu0
    %v975 = vadd.f32 %v638, %v974
    %v976 = vpop.f32.mrb[0].mxu0
    %v977 = vpop.f32.mrb[0].mxu0
    %v978 = vadd.f32 %v641, %v977
    %v979 = vpop.f32.mrb[0].mxu0
    %980 = vmatprep.mubr.bf16.mxu0 0
    %981 = vmatmul.mubr.bf16.gmra.mrb[0].mxu0 %v354
    %v982 = vpop.f32.mrb[0].mxu0
    %v983 = vadd.f32 %v646, %v982
    %v984 = vpop.f32.mrb[0].mxu0
    %v985 = vpop.f32.mrb[0].mxu0
    %v986 = vadd.f32 %v649, %v985
    %v987 = vpop.f32.mrb[0].mxu0
    %988 = vmatprep.mubr.bf16.mxu0 0
    %989 = vmatmul.mubr.bf16.gmra.mrb[0].mxu0 %v355
    %v990 = vpop.f32.mrb[0].mxu0
    %v991 = vadd.f32 %v654, %v990
    %v992 = vpop.f32.mrb[0].mxu0
    %v993 = vpop.f32.mrb[0].mxu0
    %v994 = vadd.f32 %v657, %v993
    %v995 = vpop.f32.mrb[0].mxu0
    %996 = vmatprep.mubr.bf16.mxu0 0
    %997 = vmatmul.mubr.bf16.gmra.mrb[0].mxu0 %v356
    %v998 = vpop.f32.mrb[0].mxu0
    %v999 = vadd.f32 %v662, %v998
    %v1000 = vpop.f32.mrb[0].mxu0
    %v1001 = vpop.f32.mrb[0].mxu0
    %v1002 = vadd.f32 %v665, %v1001
    %v1003 = vpop.f32.mrb[0].mxu0
    %1004 = vmatprep.mubr.bf16.mxu0 0
    %1005 = vmatmul.mubr.bf16.gmra.mrb[0].mxu0 %v357
    %v1006 = vpop.f32.mrb[0].mxu0
    %v1007 = vadd.f32 %v670, %v1006
    %v1008 = vpop.f32.mrb[0].mxu0
    %v1009 = vpop.f32.mrb[0].mxu0
    %v1010 = vadd.f32 %v673, %v1009
    %v1011 = vpop.f32.mrb[0].mxu0
    %1012 = vmatprep.mubr.bf16.mxu0 0
    %1013 = vmatmul.mubr.bf16.gmra.mrb[0].mxu0 %v358
    %v1014 = vpop.f32.mrb[0].mxu0
    %v1015 = vadd.f32 %v678, %v1014
    %v1016 = vpop.f32.mrb[0].mxu0
    %v1017 = vpop.f32.mrb[0].mxu0
    %v1018 = vadd.f32 %v681, %v1017
    %v1019 = vpop.f32.mrb[0].mxu0
    %1020 = vmatprep.mubr.bf16.mxu0 0
    %1021 = vmatmul.mubr.bf16.gmra.mrb[0].mxu0 %v359
    %v1022 = vpop.f32.mrb[0].mxu0
    %v1023 = vadd.f32 %v686, %v1022
    %v1024 = vpop.f32.mrb[0].mxu0
    %v1025 = vpop.f32.mrb[0].mxu0
    %v1026 = vadd.f32 %v689, %v1025
    %v1027 = vpop.f32.mrb[0].mxu0
    %1028 = vmatprep.mubr.bf16.mxu0 0
    %1029 = vmatmul.mubr.bf16.gmra.mrb[0].mxu0 %v360
    %v1030 = vpop.f32.mrb[0].mxu0
    %v1031 = vadd.f32 %v694, %v1030
    %v1032 = vpop.f32.mrb[0].mxu0
    %v1033 = vpop.f32.mrb[0].mxu0
    %v1034 = vadd.f32 %v697, %v1033
    %v1035 = vpop.f32.mrb[0].mxu0
    %1036 = vmatprep.mubr.bf16.mxu0 0
    %1037 = vmatmul.mubr.bf16.gmra.mrb[0].mxu0 %v361
    %v1038 = vpop.f32.mrb[0].mxu0
    %v1039 = vadd.f32 %v702, %v1038
    %v1040 = vpop.f32.mrb[0].mxu0
    %v1041 = vpop.f32.mrb[0].mxu0
    %v1042 = vadd.f32 %v705, %v1041
    %v1043 = vpop.f32.mrb[0].mxu0
    %1044 = vmatprep.mubr.bf16.mxu0 0
    %1045 = vmatmul.mubr.bf16.gmra.mrb[0].mxu0 %v362
    %v1046 = vpop.f32.mrb[0].mxu0
    %v1047 = vadd.f32 %v710, %v1046
    %v1048 = vpop.f32.mrb[0].mxu0
    %v1049 = vpop.f32.mrb[0].mxu0
    %v1050 = vadd.f32 %v713, %v1049
    %v1051 = vpop.f32.mrb[0].mxu0
    %1052 = vmatprep.mubr.bf16.mxu0 0
    %1053 = vmatmul.mubr.bf16.gmra.mrb[0].mxu0 %v363
    %v1054 = vpop.f32.mrb[0].mxu0
    %v1055 = vadd.f32 %v718, %v1054
    %v1056 = vpop.f32.mrb[0].mxu0
    %v1057 = vpop.f32.mrb[0].mxu0
    %v1058 = vadd.f32 %v721, %v1057
    %v1059 = vpop.f32.mrb[0].mxu0
    %1060 = vmatprep.mubr.bf16.mxu0 0
    %1061 = vmatmul.mubr.bf16.gmra.mrb[0].mxu0 %v364
    %v1062 = vpop.f32.mrb[0].mxu0
    %v1063 = vadd.f32 %v726, %v1062
    %v1064 = vpop.f32.mrb[0].mxu0
    %v1065 = vpop.f32.mrb[0].mxu0
    %v1066 = vadd.f32 %v729, %v1065
    %v1067 = vpop.f32.mrb[0].mxu0
    %1068 = vmatprep.mubr.bf16.mxu0 0
    %1069 = vmatmul.mubr.bf16.gmra.mrb[0].mxu0 %v365
    %v1070 = vpop.f32.mrb[0].mxu0
    %v1071 = vadd.f32 %v734, %v1070
    %v1072 = vpop.f32.mrb[0].mxu0
    %v1073 = vpop.f32.mrb[0].mxu0
    %v1074 = vadd.f32 %v737, %v1073
    %v1075 = vpop.f32.mrb[0].mxu0
    %1076 = vmatprep.mubr.bf16.mxu0 0
    %1077 = vmatmul.mubr.bf16.gmra.mrb[0].mxu0 %v366
    %v1078 = vpop.f32.mrb[0].mxu0
    %v1079 = vadd.f32 %v742, %v1078
    %v1080 = vpop.f32.mrb[0].mxu0
    %v1081 = vpop.f32.mrb[0].mxu0
    %v1082 = vadd.f32 %v745, %v1081
    %v1083 = vpop.f32.mrb[0].mxu0
    %1084 = vmatprep.mubr.bf16.mxu0 0
    %1085 = vmatmul.mubr.bf16.gmra.mrb[0].mxu0 %v367
    %v1086 = vpop.f32.mrb[0].mxu0
    %v1087 = vadd.f32 %v750, %v1086
    %v1088 = vpop.f32.mrb[0].mxu0
    %v1089 = vpop.f32.mrb[0].mxu0
    %v1090 = vadd.f32 %v753, %v1089
    %v1091 = vpop.f32.mrb[0].mxu0
    %1092 = vmatprep.mubr.bf16.mxu0 0
    %1093 = vmatmul.mubr.bf16.gmra.mrb[0].mxu0 %v368
    %v1094 = vpop.f32.mrb[0].mxu0
    %v1095 = vadd.f32 %v758, %v1094
    %v1096 = vpop.f32.mrb[0].mxu0
    %v1097 = vpop.f32.mrb[0].mxu0
    %v1098 = vadd.f32 %v761, %v1097
    %v1099 = vpop.f32.mrb[0].mxu0
    %1100 = vmatprep.mubr.bf16.mxu0 0
    %1101 = vmatmul.mubr.bf16.gmra.mrb[0].mxu0 %v369
    %v1102 = vpop.f32.mrb[0].mxu0
    %v1103 = vadd.f32 %v766, %v1102
    %v1104 = vpop.f32.mrb[0].mxu0
    %v1105 = vpop.f32.mrb[0].mxu0
    %v1106 = vadd.f32 %v769, %v1105
    %v1107 = vpop.f32.mrb[0].mxu0
    %1108 = vmatprep.mubr.bf16.mxu0 0
    %1109 = vmatmul.mubr.bf16.gmra.mrb[0].mxu0 %v370
    %v1110 = vpop.f32.mrb[0].mxu0
    %v1111 = vadd.f32 %v774, %v1110
    %v1112 = vpop.f32.mrb[0].mxu0
    %v1113 = vpop.f32.mrb[0].mxu0
    %v1114 = vadd.f32 %v777, %v1113
    %v1115 = vpop.f32.mrb[0].mxu0
    %1116 = vmatprep.mubr.bf16.mxu0 0
    %1117 = vmatmul.mubr.bf16.gmra.mrb[0].mxu0 %v371
    %v1118 = vpop.f32.mrb[0].mxu0
    %v1119 = vadd.f32 %v782, %v1118
    %v1120 = vpop.f32.mrb[0].mxu0
    %v1121 = vpop.f32.mrb[0].mxu0
    %v1122 = vadd.f32 %v785, %v1121
    %v1123 = vpop.f32.mrb[0].mxu0
    %1124 = vmatprep.mubr.bf16.mxu0 0
    %1125 = vmatmul.mubr.bf16.gmra.mrb[0].mxu0 %v372
    %v1126 = vpop.f32.mrb[0].mxu0
    %v1127 = vadd.f32 %v790, %v1126
    %v1128 = vpop.f32.mrb[0].mxu0
    %v1129 = vpop.f32.mrb[0].mxu0
    %v1130 = vadd.f32 %v793, %v1129
    %v1131 = vpop.f32.mrb[0].mxu0
    %1132 = vmatprep.mubr.bf16.mxu0 0
    %1133 = vmatmul.mubr.bf16.gmra.mrb[0].mxu0 %v373
    %v1134 = vpop.f32.mrb[0].mxu0
    %v1135 = vadd.f32 %v798, %v1134
    %v1136 = vpop.f32.mrb[0].mxu0
    %v1137 = vpop.f32.mrb[0].mxu0
    %v1138 = vadd.f32 %v801, %v1137
    %v1139 = vpop.f32.mrb[0].mxu0
    %1140 = vmatprep.mubr.bf16.mxu0 0
    %1141 = vmatmul.mubr.bf16.gmra.mrb[0].mxu0 %v374
    %v1142 = vpop.f32.mrb[0].mxu0
    %v1143 = vadd.f32 %v806, %v1142
    %v1144 = vpop.f32.mrb[0].mxu0
    %v1145 = vpop.f32.mrb[0].mxu0
    %v1146 = vadd.f32 %v809, %v1145
    %v1147 = vpop.f32.mrb[0].mxu0
    %1148 = vmatprep.mubr.bf16.mxu0 0
    %1149 = vmatmul.mubr.bf16.gmra.mrb[0].mxu0 %v375
    %v1150 = vpop.f32.mrb[0].mxu0
    %v1151 = vadd.f32 %v814, %v1150
    %v1152 = vpop.f32.mrb[0].mxu0
    %v1153 = vpop.f32.mrb[0].mxu0
    %v1154 = vadd.f32 %v817, %v1153
    %v1155 = vpop.f32.mrb[0].mxu0
    %1156 = vmatprep.mubr.bf16.mxu0 0
    %1157 = vmatmul.mubr.bf16.gmra.mrb[0].mxu0 %v376
    %v1158 = vpop.f32.mrb[0].mxu0
    %v1159 = vadd.f32 %v822, %v1158
    %v1160 = vpop.f32.mrb[0].mxu0
    %v1161 = vpop.f32.mrb[0].mxu0
    %v1162 = vadd.f32 %v825, %v1161
    %v1163 = vpop.f32.mrb[0].mxu0
    %1164 = vmatprep.mubr.bf16.mxu0 0
    %1165 = vmatmul.mubr.bf16.gmra.mrb[0].mxu0 %v377
    %v1166 = vpop.f32.mrb[0].mxu0
    %v1167 = vadd.f32 %v830, %v1166
    %v1168 = vpop.f32.mrb[0].mxu0
    %v1169 = vpop.f32.mrb[0].mxu0
    %v1170 = vadd.f32 %v833, %v1169
    %v1171 = vpop.f32.mrb[0].mxu0
    %1172 = vmatprep.mubr.bf16.mxu0 0
    %1173 = vmatmul.mubr.bf16.gmra.mrb[0].mxu0 %v378
    %v1174 = vpop.f32.mrb[0].mxu0
    %v1175 = vadd.f32 %v838, %v1174
    %v1176 = vpop.f32.mrb[0].mxu0
    %v1177 = vpop.f32.mrb[0].mxu0
    %v1178 = vadd.f32 %v841, %v1177
    %v1179 = vpop.f32.mrb[0].mxu0
    %1180 = vdwg.mxu0
    %v1181 = vld [vmem:[#allocation2 + $0x2] sm:$0xff]
    %v1182 = vld [vmem:[#allocation2 + $0xa] sm:$0xff]
    %v1183 = vld [vmem:[#allocation2 + $0x1a] sm:$0xff]
    %v1184 = vld [vmem:[#allocation2 + $0x22] sm:$0xff]
    %v1185 = vld [vmem:[#allocation2 + $0x32] sm:$0xff]
    %v1186 = vld [vmem:[#allocation2 + $0x3a] sm:$0xff]
    %v1187 = vld [vmem:[#allocation2 + $0x4a] sm:$0xff]
    %v1188 = vld [vmem:[#allocation2 + $0x52] sm:$0xff]
    %v1189 = vld [vmem:[#allocation2 + $0x62] sm:$0xff]
    %v1190 = vld [vmem:[#allocation2 + $0x6a] sm:$0xff]
    %v1191 = vld [vmem:[#allocation2 + $0x7a] sm:$0xff]
    %v1192 = vld [vmem:[#allocation2 + $0x82] sm:$0xff]
    %v1193 = vld [vmem:[#allocation2 + $0x92] sm:$0xff]
    %v1194 = vld [vmem:[#allocation2 + $0x9a] sm:$0xff]
    %v1195 = vld [vmem:[#allocation2 + $0xaa] sm:$0xff]
    %v1196 = vld [vmem:[#allocation2 + $0xb2] sm:$0xff]
    %v1197 = vld [vmem:[#allocation2 + $0xc2] sm:$0xff]
    %v1198 = vld [vmem:[#allocation2 + $0xca] sm:$0xff]
    %v1199 = vld [vmem:[#allocation2 + $0xda] sm:$0xff]
    %v1200 = vld [vmem:[#allocation2 + $0xe2] sm:$0xff]
    %v1201 = vld [vmem:[#allocation2 + $0xf2] sm:$0xff]
    %v1202 = vld [vmem:[#allocation2 + $0xfa] sm:$0xff]
    %v1203 = vld [vmem:[#allocation2 + $0x10a] sm:$0xff]
    %v1204 = vld [vmem:[#allocation2 + $0x112] sm:$0xff]
    %v1205 = vld [vmem:[#allocation2 + $0x122] sm:$0xff]
    %v1206 = vld [vmem:[#allocation2 + $0x12a] sm:$0xff]
    %v1207 = vld [vmem:[#allocation2 + $0x13a] sm:$0xff]
    %v1208 = vld [vmem:[#allocation2 + $0x142] sm:$0xff]
    %v1209 = vld [vmem:[#allocation2 + $0x152] sm:$0xff]
    %v1210 = vld [vmem:[#allocation2 + $0x15a] sm:$0xff]
    %v1211 = vld [vmem:[#allocation2 + $0x16a] sm:$0xff]
    %v1212 = vld [vmem:[#allocation2 + $0x172] sm:$0xff]
    %v1213 = vld [vmem:[#allocation2 + $0x1b2] sm:$0xff]
    %v1214 = vld [vmem:[#allocation2 + $0x1ba] sm:$0xff]
    %v1215 = vld [vmem:[#allocation2 + $0x1ca] sm:$0xff]
    %v1216 = vld [vmem:[#allocation2 + $0x1d2] sm:$0xff]
    %v1217 = vld [vmem:[#allocation2 + $0x1e2] sm:$0xff]
    %v1218 = vld [vmem:[#allocation2 + $0x1ea] sm:$0xff]
    %v1219 = vld [vmem:[#allocation2 + $0x1fa] sm:$0xff]
    %v1220 = vld [vmem:[#allocation2 + $0x202] sm:$0xff]
    %v1221 = vld [vmem:[#allocation2 + $0x212] sm:$0xff]
    %v1222 = vld [vmem:[#allocation2 + $0x21a] sm:$0xff]
    %v1223 = vld [vmem:[#allocation2 + $0x22a] sm:$0xff]
    %v1224 = vld [vmem:[#allocation2 + $0x232] sm:$0xff]
    %v1225 = vld [vmem:[#allocation2 + $0x242] sm:$0xff]
    %v1226 = vld [vmem:[#allocation2 + $0x24a] sm:$0xff]
    %v1227 = vld [vmem:[#allocation2 + $0x25a] sm:$0xff]
    %v1228 = vld [vmem:[#allocation2 + $0x262] sm:$0xff]
    %v1229 = vld [vmem:[#allocation2 + $0x272] sm:$0xff]
    %v1230 = vld [vmem:[#allocation2 + $0x27a] sm:$0xff]
    %v1231 = vld [vmem:[#allocation2 + $0x28a] sm:$0xff]
    %v1232 = vld [vmem:[#allocation2 + $0x292] sm:$0xff]
    %v1233 = vld [vmem:[#allocation2 + $0x2a2] sm:$0xff]
    %v1234 = vld [vmem:[#allocation2 + $0x2aa] sm:$0xff]
    %v1235 = vld [vmem:[#allocation2 + $0x2ba] sm:$0xff]
    %v1236 = vld [vmem:[#allocation2 + $0x2c2] sm:$0xff]
    %v1237 = vld [vmem:[#allocation2 + $0x2d2] sm:$0xff]
    %v1238 = vld [vmem:[#allocation2 + $0x2da] sm:$0xff]
    %v1239 = vld [vmem:[#allocation2 + $0x2ea] sm:$0xff]
    %v1240 = vld [vmem:[#allocation2 + $0x2f2] sm:$0xff]
    %v1241 = vld [vmem:[#allocation2 + $0x302] sm:$0xff]
    %v1242 = vld [vmem:[#allocation2 + $0x30a] sm:$0xff]
    %v1243 = vld [vmem:[#allocation2 + $0x31a] sm:$0xff]
    %v1244 = vld [vmem:[#allocation2 + $0x322] sm:$0xff]
    %v1245 = vpack.c.bf16 %v1182, %v1181
    %v1246 = vpack.c.bf16 %v1184, %v1183
    %v1247 = vpack.c.bf16 %v1186, %v1185
    %v1248 = vpack.c.bf16 %v1188, %v1187
    %v1249 = vpack.c.bf16 %v1190, %v1189
    %v1250 = vpack.c.bf16 %v1192, %v1191
    %v1251 = vpack.c.bf16 %v1194, %v1193
    %v1252 = vpack.c.bf16 %v1196, %v1195
    %v1253 = vpack.c.bf16 %v1198, %v1197
    %v1254 = vpack.c.bf16 %v1200, %v1199
    %v1255 = vpack.c.bf16 %v1202, %v1201
    %v1256 = vpack.c.bf16 %v1204, %v1203
    %v1257 = vpack.c.bf16 %v1206, %v1205
    %v1258 = vpack.c.bf16 %v1208, %v1207
    %v1259 = vpack.c.bf16 %v1210, %v1209
    %v1260 = vpack.c.bf16 %v1212, %v1211
    %v1261 = vpack.c.bf16 %v1214, %v1213
    %v1262 = vpack.c.bf16 %v1216, %v1215
    %v1263 = vpack.c.bf16 %v1218, %v1217
    %v1264 = vpack.c.bf16 %v1220, %v1219
    %v1265 = vpack.c.bf16 %v1222, %v1221
    %v1266 = vpack.c.bf16 %v1224, %v1223
    %v1267 = vpack.c.bf16 %v1226, %v1225
    %v1268 = vpack.c.bf16 %v1228, %v1227
    %v1269 = vpack.c.bf16 %v1230, %v1229
    %v1270 = vpack.c.bf16 %v1232, %v1231
    %v1271 = vpack.c.bf16 %v1234, %v1233
    %v1272 = vpack.c.bf16 %v1236, %v1235
    %v1273 = vpack.c.bf16 %v1238, %v1237
    %v1274 = vpack.c.bf16 %v1240, %v1239
    %v1275 = vpack.c.bf16 %v1242, %v1241
    %v1276 = vpack.c.bf16 %v1244, %v1243
    %v1277 = vld [vmem:[#allocation6 + $0x80] sm:$0xf]
    %v1278 = vld [vmem:[#allocation6 + $0x84] sm:$0xf]
    %v1279 = vld [vmem:[#allocation6 + $0x88] sm:$0xf]
    %v1280 = vld [vmem:[#allocation6 + $0x8c] sm:$0xf]
    %v1281 = vld [vmem:[#allocation6 + $0x90] sm:$0xf]
    %v1282 = vld [vmem:[#allocation6 + $0x94] sm:$0xf]
    %v1283 = vld [vmem:[#allocation6 + $0x98] sm:$0xf]
    %v1284 = vld [vmem:[#allocation6 + $0x9c] sm:$0xf]
    %v1285 = vld [vmem:[#allocation6 + $0xa0] sm:$0xf]
    %v1286 = vld [vmem:[#allocation6 + $0xa4] sm:$0xf]
    %v1287 = vld [vmem:[#allocation6 + $0xa8] sm:$0xf]
    %v1288 = vld [vmem:[#allocation6 + $0xac] sm:$0xf]
    %v1289 = vld [vmem:[#allocation6 + $0xb0] sm:$0xf]
    %v1290 = vld [vmem:[#allocation6 + $0xb4] sm:$0xf]
    %v1291 = vld [vmem:[#allocation6 + $0xb8] sm:$0xf]
    %v1292 = vld [vmem:[#allocation6 + $0xbc] sm:$0xf]
    %v1309 = vunpack.c.l.b16 %v1277
    %v1310 = vunpack.c.l.b16 %v1278
    %v1311 = vunpack.c.l.b16 %v1279
    %v1312 = vunpack.c.l.b16 %v1280
    %v1313 = vunpack.c.l.b16 %v1281
    %v1314 = vunpack.c.l.b16 %v1282
    %v1315 = vunpack.c.l.b16 %v1283
    %v1316 = vunpack.c.l.b16 %v1284
    %v1317 = vunpack.c.l.b16 %v1285
    %v1318 = vunpack.c.l.b16 %v1286
    %v1319 = vunpack.c.l.b16 %v1287
    %v1320 = vunpack.c.l.b16 %v1288
    %v1321 = vunpack.c.l.b16 %v1289
    %v1322 = vunpack.c.l.b16 %v1290
    %v1323 = vunpack.c.l.b16 %v1291
    %v1324 = vunpack.c.l.b16 %v1292
    %v1325 = vpack.c.b16 %v1310, %v1309
    %v1326 = vpack.c.b16 %v1312, %v1311
    %v1327 = vpack.c.b16 %v1314, %v1313
    %v1328 = vpack.c.b16 %v1316, %v1315
    %v1329 = vpack.c.b16 %v1318, %v1317
    %v1330 = vpack.c.b16 %v1320, %v1319
    %v1331 = vpack.c.b16 %v1322, %v1321
    %v1332 = vpack.c.b16 %v1324, %v1323
    %1341 = vmatprep.subr.bf16.mxu0 0
    %1342 = vmatpush1.bf16.msra.mxu0 %v1325
    %1343 = vmatprep.subr.bf16.mxu0 0
    %1344 = vmatpush1.bf16.msra.mxu0 %v1326
    %1345 = vmatprep.subr.bf16.mxu0 0
    %1346 = vmatpush1.bf16.msra.mxu0 %v1327
    %1347 = vmatprep.subr.bf16.mxu0 0
    %1348 = vmatpush1.bf16.msra.mxu0 %v1328
    %1349 = vmatprep.subr.bf16.mxu0 0
    %1350 = vmatpush1.bf16.msra.mxu0 %v1329
    %1351 = vmatprep.subr.bf16.mxu0 0
    %1352 = vmatpush1.bf16.msra.mxu0 %v1330
    %1353 = vmatprep.subr.bf16.mxu0 0
    %1354 = vmatpush1.bf16.msra.mxu0 %v1331
    %1355 = vmatprep.subr.bf16.mxu0 0
    %1356 = vmatpush1.bf16.msra.mxu0 %v1332
    %1357 = vmatprep.subr.bf16.mxu0 0
    %1358 = vmatpush1.bf16.msra.mxu0 0
    %1359 = vmatprep.subr.bf16.mxu0 0
    %1360 = vmatpush1.bf16.msra.mxu0 0
    %1361 = vmatprep.subr.bf16.mxu0 0
    %1362 = vmatpush1.bf16.msra.mxu0 0
    %1363 = vmatprep.subr.bf16.mxu0 0
    %1364 = vmatpush1.bf16.msra.mxu0 0
    %1365 = vmatprep.subr.bf16.mxu0 0
    %1366 = vmatpush1.bf16.msra.mxu0 0
    %1367 = vmatprep.subr.bf16.mxu0 0
    %1368 = vmatpush1.bf16.msra.mxu0 0
    %1369 = vmatprep.subr.bf16.mxu0 0
    %1370 = vmatpush1.bf16.msra.mxu0 0
    %1371 = vmatprep.subr.bf16.mxu0 0
    %1372 = vmatpush1.bf16.msra.mxu0 0
    %1373 = vmatprep.mubr.bf16.mxu0 0
    %1374 = vmatmul.mubr.bf16.gmra.mrb[0].mxu0 %v1245
    %v1375 = vpop.f32.mrb[0].mxu0
    %v1376 = vadd.f32 0.0, %v1375
    %v1377 = vpop.f32.mrb[0].mxu0
    %v1378 = vpop.f32.mrb[0].mxu0
    %v1379 = vadd.f32 0.0, %v1378
    %v1380 = vpop.f32.mrb[0].mxu0
    %1381 = vmatprep.mubr.bf16.mxu0 0
    %1382 = vmatmul.mubr.bf16.gmra.mrb[0].mxu0 %v1246
    %v1383 = vpop.f32.mrb[0].mxu0
    %v1384 = vadd.f32 0.0, %v1383
    %v1385 = vpop.f32.mrb[0].mxu0
    %v1386 = vpop.f32.mrb[0].mxu0
    %v1387 = vadd.f32 0.0, %v1386
    %v1388 = vpop.f32.mrb[0].mxu0
    %1389 = vmatprep.mubr.bf16.mxu0 0
    %1390 = vmatmul.mubr.bf16.gmra.mrb[0].mxu0 %v1247
    %v1391 = vpop.f32.mrb[0].mxu0
    %v1392 = vadd.f32 0.0, %v1391
    %v1393 = vpop.f32.mrb[0].mxu0
    %v1394 = vpop.f32.mrb[0].mxu0
    %v1395 = vadd.f32 0.0, %v1394
    %v1396 = vpop.f32.mrb[0].mxu0
    %1397 = vmatprep.mubr.bf16.mxu0 0
    %1398 = vmatmul.mubr.bf16.gmra.mrb[0].mxu0 %v1248
    %v1399 = vpop.f32.mrb[0].mxu0
    %v1400 = vadd.f32 0.0, %v1399
    %v1401 = vpop.f32.mrb[0].mxu0
    %v1402 = vpop.f32.mrb[0].mxu0
    %v1403 = vadd.f32 0.0, %v1402
    %v1404 = vpop.f32.mrb[0].mxu0
    %1405 = vmatprep.mubr.bf16.mxu0 0
    %1406 = vmatmul.mubr.bf16.gmra.mrb[0].mxu0 %v1249
    %v1407 = vpop.f32.mrb[0].mxu0
    %v1408 = vadd.f32 0.0, %v1407
    %v1409 = vpop.f32.mrb[0].mxu0
    %v1410 = vpop.f32.mrb[0].mxu0
    %v1411 = vadd.f32 0.0, %v1410
    %v1412 = vpop.f32.mrb[0].mxu0
    %1413 = vmatprep.mubr.bf16.mxu0 0
    %1414 = vmatmul.mubr.bf16.gmra.mrb[0].mxu0 %v1250
    %v1415 = vpop.f32.mrb[0].mxu0
    %v1416 = vadd.f32 0.0, %v1415
    %v1417 = vpop.f32.mrb[0].mxu0
    %v1418 = vpop.f32.mrb[0].mxu0
    %v1419 = vadd.f32 0.0, %v1418
    %v1420 = vpop.f32.mrb[0].mxu0
    %1421 = vmatprep.mubr.bf16.mxu0 0
    %1422 = vmatmul.mubr.bf16.gmra.mrb[0].mxu0 %v1251
    %v1423 = vpop.f32.mrb[0].mxu0
    %v1424 = vadd.f32 0.0, %v1423
    %v1425 = vpop.f32.mrb[0].mxu0
    %v1426 = vpop.f32.mrb[0].mxu0
    %v1427 = vadd.f32 0.0, %v1426
    %v1428 = vpop.f32.mrb[0].mxu0
    %1429 = vmatprep.mubr.bf16.mxu0 0
    %1430 = vmatmul.mubr.bf16.gmra.mrb[0].mxu0 %v1252
    %v1431 = vpop.f32.mrb[0].mxu0
    %v1432 = vadd.f32 0.0, %v1431
    %v1433 = vpop.f32.mrb[0].mxu0
    %v1434 = vpop.f32.mrb[0].mxu0
    %v1435 = vadd.f32 0.0, %v1434
    %v1436 = vpop.f32.mrb[0].mxu0
    %1437 = vmatprep.mubr.bf16.mxu0 0
    %1438 = vmatmul.mubr.bf16.gmra.mrb[0].mxu0 %v1253
    %v1439 = vpop.f32.mrb[0].mxu0
    %v1440 = vadd.f32 0.0, %v1439
    %v1441 = vpop.f32.mrb[0].mxu0
    %v1442 = vpop.f32.mrb[0].mxu0
    %v1443 = vadd.f32 0.0, %v1442
    %v1444 = vpop.f32.mrb[0].mxu0
    %1445 = vmatprep.mubr.bf16.mxu0 0
    %1446 = vmatmul.mubr.bf16.gmra.mrb[0].mxu0 %v1254
    %v1447 = vpop.f32.mrb[0].mxu0
    %v1448 = vadd.f32 0.0, %v1447
    %v1449 = vpop.f32.mrb[0].mxu0
    %v1450 = vpop.f32.mrb[0].mxu0
    %v1451 = vadd.f32 0.0, %v1450
    %v1452 = vpop.f32.mrb[0].mxu0
    %1453 = vmatprep.mubr.bf16.mxu0 0
    %1454 = vmatmul.mubr.bf16.gmra.mrb[0].mxu0 %v1255
    %v1455 = vpop.f32.mrb[0].mxu0
    %v1456 = vadd.f32 0.0, %v1455
    %v1457 = vpop.f32.mrb[0].mxu0
    %v1458 = vpop.f32.mrb[0].mxu0
    %v1459 = vadd.f32 0.0, %v1458
    %v1460 = vpop.f32.mrb[0].mxu0
    %1461 = vmatprep.mubr.bf16.mxu0 0
    %1462 = vmatmul.mubr.bf16.gmra.mrb[0].mxu0 %v1256
    %v1463 = vpop.f32.mrb[0].mxu0
    %v1464 = vadd.f32 0.0, %v1463
    %v1465 = vpop.f32.mrb[0].mxu0
    %v1466 = vpop.f32.mrb[0].mxu0
    %v1467 = vadd.f32 0.0, %v1466
    %v1468 = vpop.f32.mrb[0].mxu0
    %1469 = vmatprep.mubr.bf16.mxu0 0
    %1470 = vmatmul.mubr.bf16.gmra.mrb[0].mxu0 %v1257
    %v1471 = vpop.f32.mrb[0].mxu0
    %v1472 = vadd.f32 0.0, %v1471
    %v1473 = vpop.f32.mrb[0].mxu0
    %v1474 = vpop.f32.mrb[0].mxu0
    %v1475 = vadd.f32 0.0, %v1474
    %v1476 = vpop.f32.mrb[0].mxu0
    %1477 = vmatprep.mubr.bf16.mxu0 0
    %1478 = vmatmul.mubr.bf16.gmra.mrb[0].mxu0 %v1258
    %v1479 = vpop.f32.mrb[0].mxu0
    %v1480 = vadd.f32 0.0, %v1479
    %v1481 = vpop.f32.mrb[0].mxu0
    %v1482 = vpop.f32.mrb[0].mxu0
    %v1483 = vadd.f32 0.0, %v1482
    %v1484 = vpop.f32.mrb[0].mxu0
    %1485 = vmatprep.mubr.bf16.mxu0 0
    %1486 = vmatmul.mubr.bf16.gmra.mrb[0].mxu0 %v1259
    %v1487 = vpop.f32.mrb[0].mxu0
    %v1488 = vadd.f32 0.0, %v1487
    %v1489 = vpop.f32.mrb[0].mxu0
    %v1490 = vpop.f32.mrb[0].mxu0
    %v1491 = vadd.f32 0.0, %v1490
    %v1492 = vpop.f32.mrb[0].mxu0
    %1493 = vmatprep.mubr.bf16.mxu0 0
    %1494 = vmatmul.mubr.bf16.gmra.mrb[0].mxu0 %v1260
    %v1495 = vpop.f32.mrb[0].mxu0
    %v1496 = vadd.f32 0.0, %v1495
    %v1497 = vpop.f32.mrb[0].mxu0
    %v1498 = vpop.f32.mrb[0].mxu0
    %v1499 = vadd.f32 0.0, %v1498
    %v1500 = vpop.f32.mrb[0].mxu0
    %1501 = vmatprep.mubr.bf16.mxu0 0
    %1502 = vmatmul.mubr.bf16.gmra.mrb[0].mxu0 %v1261
    %v1503 = vpop.f32.mrb[0].mxu0
    %v1504 = vadd.f32 0.0, %v1503
    %v1505 = vpop.f32.mrb[0].mxu0
    %v1506 = vpop.f32.mrb[0].mxu0
    %v1507 = vadd.f32 0.0, %v1506
    %v1508 = vpop.f32.mrb[0].mxu0
    %1509 = vmatprep.mubr.bf16.mxu0 0
    %1510 = vmatmul.mubr.bf16.gmra.mrb[0].mxu0 %v1262
    %v1511 = vpop.f32.mrb[0].mxu0
    %v1512 = vadd.f32 0.0, %v1511
    %v1513 = vpop.f32.mrb[0].mxu0
    %v1514 = vpop.f32.mrb[0].mxu0
    %v1515 = vadd.f32 0.0, %v1514
    %v1516 = vpop.f32.mrb[0].mxu0
    %1517 = vmatprep.mubr.bf16.mxu0 0
    %1518 = vmatmul.mubr.bf16.gmra.mrb[0].mxu0 %v1263
    %v1519 = vpop.f32.mrb[0].mxu0
    %v1520 = vadd.f32 0.0, %v1519
    %v1521 = vpop.f32.mrb[0].mxu0
    %v1522 = vpop.f32.mrb[0].mxu0
    %v1523 = vadd.f32 0.0, %v1522
    %v1524 = vpop.f32.mrb[0].mxu0
    %1525 = vmatprep.mubr.bf16.mxu0 0
    %1526 = vmatmul.mubr.bf16.gmra.mrb[0].mxu0 %v1264
    %v1527 = vpop.f32.mrb[0].mxu0
    %v1528 = vadd.f32 0.0, %v1527
    %v1529 = vpop.f32.mrb[0].mxu0
    %v1530 = vpop.f32.mrb[0].mxu0
    %v1531 = vadd.f32 0.0, %v1530
    %v1532 = vpop.f32.mrb[0].mxu0
    %1533 = vmatprep.mubr.bf16.mxu0 0
    %1534 = vmatmul.mubr.bf16.gmra.mrb[0].mxu0 %v1265
    %v1535 = vpop.f32.mrb[0].mxu0
    %v1536 = vadd.f32 0.0, %v1535
    %v1537 = vpop.f32.mrb[0].mxu0
    %v1538 = vpop.f32.mrb[0].mxu0
    %v1539 = vadd.f32 0.0, %v1538
    %v1540 = vpop.f32.mrb[0].mxu0
    %1541 = vmatprep.mubr.bf16.mxu0 0
    %1542 = vmatmul.mubr.bf16.gmra.mrb[0].mxu0 %v1266
    %v1543 = vpop.f32.mrb[0].mxu0
    %v1544 = vadd.f32 0.0, %v1543
    %v1545 = vpop.f32.mrb[0].mxu0
    %v1546 = vpop.f32.mrb[0].mxu0
    %v1547 = vadd.f32 0.0, %v1546
    %v1548 = vpop.f32.mrb[0].mxu0
    %1549 = vmatprep.mubr.bf16.mxu0 0
    %1550 = vmatmul.mubr.bf16.gmra.mrb[0].mxu0 %v1267
    %v1551 = vpop.f32.mrb[0].mxu0
    %v1552 = vadd.f32 0.0, %v1551
    %v1553 = vpop.f32.mrb[0].mxu0
    %v1554 = vpop.f32.mrb[0].mxu0
    %v1555 = vadd.f32 0.0, %v1554
    %v1556 = vpop.f32.mrb[0].mxu0
    %1557 = vmatprep.mubr.bf16.mxu0 0
    %1558 = vmatmul.mubr.bf16.gmra.mrb[0].mxu0 %v1268
    %v1559 = vpop.f32.mrb[0].mxu0
    %v1560 = vadd.f32 0.0, %v1559
    %v1561 = vpop.f32.mrb[0].mxu0
    %v1562 = vpop.f32.mrb[0].mxu0
    %v1563 = vadd.f32 0.0, %v1562
    %v1564 = vpop.f32.mrb[0].mxu0
    %1565 = vmatprep.mubr.bf16.mxu0 0
    %1566 = vmatmul.mubr.bf16.gmra.mrb[0].mxu0 %v1269
    %v1567 = vpop.f32.mrb[0].mxu0
    %v1568 = vadd.f32 0.0, %v1567
    %v1569 = vpop.f32.mrb[0].mxu0
    %v1570 = vpop.f32.mrb[0].mxu0
    %v1571 = vadd.f32 0.0, %v1570
    %v1572 = vpop.f32.mrb[0].mxu0
    %1573 = vmatprep.mubr.bf16.mxu0 0
    %1574 = vmatmul.mubr.bf16.gmra.mrb[0].mxu0 %v1270
    %v1575 = vpop.f32.mrb[0].mxu0
    %v1576 = vadd.f32 0.0, %v1575
    %v1577 = vpop.f32.mrb[0].mxu0
    %v1578 = vpop.f32.mrb[0].mxu0
    %v1579 = vadd.f32 0.0, %v1578
    %v1580 = vpop.f32.mrb[0].mxu0
    %1581 = vmatprep.mubr.bf16.mxu0 0
    %1582 = vmatmul.mubr.bf16.gmra.mrb[0].mxu0 %v1271
    %v1583 = vpop.f32.mrb[0].mxu0
    %v1584 = vadd.f32 0.0, %v1583
    %v1585 = vpop.f32.mrb[0].mxu0
    %v1586 = vpop.f32.mrb[0].mxu0
    %v1587 = vadd.f32 0.0, %v1586
    %v1588 = vpop.f32.mrb[0].mxu0
    %1589 = vmatprep.mubr.bf16.mxu0 0
    %1590 = vmatmul.mubr.bf16.gmra.mrb[0].mxu0 %v1272
    %v1591 = vpop.f32.mrb[0].mxu0
    %v1592 = vadd.f32 0.0, %v1591
    %v1593 = vpop.f32.mrb[0].mxu0
    %v1594 = vpop.f32.mrb[0].mxu0
    %v1595 = vadd.f32 0.0, %v1594
    %v1596 = vpop.f32.mrb[0].mxu0
    %1597 = vmatprep.mubr.bf16.mxu0 0
    %1598 = vmatmul.mubr.bf16.gmra.mrb[0].mxu0 %v1273
    %v1599 = vpop.f32.mrb[0].mxu0
    %v1600 = vadd.f32 0.0, %v1599
    %v1601 = vpop.f32.mrb[0].mxu0
    %v1602 = vpop.f32.mrb[0].mxu0
    %v1603 = vadd.f32 0.0, %v1602
    %v1604 = vpop.f32.mrb[0].mxu0
    %1605 = vmatprep.mubr.bf16.mxu0 0
    %1606 = vmatmul.mubr.bf16.gmra.mrb[0].mxu0 %v1274
    %v1607 = vpop.f32.mrb[0].mxu0
    %v1608 = vadd.f32 0.0, %v1607
    %v1609 = vpop.f32.mrb[0].mxu0
    %v1610 = vpop.f32.mrb[0].mxu0
    %v1611 = vadd.f32 0.0, %v1610
    %v1612 = vpop.f32.mrb[0].mxu0
    %1613 = vmatprep.mubr.bf16.mxu0 0
    %1614 = vmatmul.mubr.bf16.gmra.mrb[0].mxu0 %v1275
    %v1615 = vpop.f32.mrb[0].mxu0
    %v1616 = vadd.f32 0.0, %v1615
    %v1617 = vpop.f32.mrb[0].mxu0
    %v1618 = vpop.f32.mrb[0].mxu0
    %v1619 = vadd.f32 0.0, %v1618
    %v1620 = vpop.f32.mrb[0].mxu0
    %1621 = vmatprep.mubr.bf16.mxu0 0
    %1622 = vmatmul.mubr.bf16.gmra.mrb[0].mxu0 %v1276
    %v1623 = vpop.f32.mrb[0].mxu0
    %v1624 = vadd.f32 0.0, %v1623
    %v1625 = vpop.f32.mrb[0].mxu0
    %v1626 = vpop.f32.mrb[0].mxu0
    %v1627 = vadd.f32 0.0, %v1626
    %v1628 = vpop.f32.mrb[0].mxu0
    %1629 = vdwg.mxu0
    %v1630 = vadd.f32 %v927, %v1376
    %v1631 = vadd.f32 %v930, %v1379
    %v1632 = vadd.f32 %v935, %v1384
    %v1633 = vadd.f32 %v938, %v1387
    %v1634 = vadd.f32 %v943, %v1392
    %v1635 = vadd.f32 %v946, %v1395
    %v1636 = vadd.f32 %v951, %v1400
    %v1637 = vadd.f32 %v954, %v1403
    %v1638 = vadd.f32 %v959, %v1408
    %v1639 = vadd.f32 %v962, %v1411
    %v1640 = vadd.f32 %v967, %v1416
    %v1641 = vadd.f32 %v970, %v1419
    %v1642 = vadd.f32 %v975, %v1424
    %v1643 = vadd.f32 %v978, %v1427
    %v1644 = vadd.f32 %v983, %v1432
    %v1645 = vadd.f32 %v986, %v1435
    %v1646 = vadd.f32 %v991, %v1440
    %v1647 = vadd.f32 %v994, %v1443
    %v1648 = vadd.f32 %v999, %v1448
    %v1649 = vadd.f32 %v1002, %v1451
    %v1650 = vadd.f32 %v1007, %v1456
    %v1651 = vadd.f32 %v1010, %v1459
    %v1652 = vadd.f32 %v1015, %v1464
    %v1653 = vadd.f32 %v1018, %v1467
    %v1654 = vadd.f32 %v1023, %v1472
    %v1655 = vadd.f32 %v1026, %v1475
    %v1656 = vadd.f32 %v1031, %v1480
    %v1657 = vadd.f32 %v1034, %v1483
    %v1658 = vadd.f32 %v1039, %v1488
    %v1659 = vadd.f32 %v1042, %v1491
    %v1660 = vadd.f32 %v1047, %v1496
    %v1661 = vadd.f32 %v1050, %v1499
    %v1662 = vadd.f32 %v1055, %v1504
    %v1663 = vadd.f32 %v1058, %v1507
    %v1664 = vadd.f32 %v1063, %v1512
    %v1665 = vadd.f32 %v1066, %v1515
    %v1666 = vadd.f32 %v1071, %v1520
    %v1667 = vadd.f32 %v1074, %v1523
    %v1668 = vadd.f32 %v1079, %v1528
    %v1669 = vadd.f32 %v1082, %v1531
    %v1670 = vadd.f32 %v1087, %v1536
    %v1671 = vadd.f32 %v1090, %v1539
    %v1672 = vadd.f32 %v1095, %v1544
    %v1673 = vadd.f32 %v1098, %v1547
    %v1674 = vadd.f32 %v1103, %v1552
    %v1675 = vadd.f32 %v1106, %v1555
    %v1676 = vadd.f32 %v1111, %v1560
    %v1677 = vadd.f32 %v1114, %v1563
    %v1678 = vadd.f32 %v1119, %v1568
    %v1679 = vadd.f32 %v1122, %v1571
    %v1680 = vadd.f32 %v1127, %v1576
    %v1681 = vadd.f32 %v1130, %v1579
    %v1682 = vadd.f32 %v1135, %v1584
    %v1683 = vadd.f32 %v1138, %v1587
    %v1684 = vadd.f32 %v1143, %v1592
    %v1685 = vadd.f32 %v1146, %v1595
    %v1686 = vadd.f32 %v1151, %v1600
    %v1687 = vadd.f32 %v1154, %v1603
    %v1688 = vadd.f32 %v1159, %v1608
    %v1689 = vadd.f32 %v1162, %v1611
    %v1690 = vadd.f32 %v1167, %v1616
    %v1691 = vadd.f32 %v1170, %v1619
    %v1692 = vadd.f32 %v1175, %v1624
    %v1693 = vadd.f32 %v1178, %v1627
    %v1694 = vld [vmem:[%s218] sm:$0xff]
    %v1695 = vld [vmem:[%s218 + $0x8] sm:$0xff]
    %v1696 = vld [vmem:[%s218 + $0x18] sm:$0xff]
    %v1697 = vld [vmem:[%s218 + $0x20] sm:$0xff]
    %v1698 = vld [vmem:[%s218 + $0x30] sm:$0xff]
    %v1699 = vld [vmem:[%s218 + $0x38] sm:$0xff]
    %v1700 = vld [vmem:[%s218 + $0x48] sm:$0xff]
    %v1701 = vld [vmem:[%s218 + $0x50] sm:$0xff]
    %v1702 = vld [vmem:[%s218 + $0x60] sm:$0xff]
    %v1703 = vld [vmem:[%s218 + $0x68] sm:$0xff]
    %v1704 = vld [vmem:[%s218 + $0x78] sm:$0xff]
    %v1705 = vld [vmem:[%s218 + $0x80] sm:$0xff]
    %v1706 = vld [vmem:[%s218 + $0x90] sm:$0xff]
    %v1707 = vld [vmem:[%s218 + $0x98] sm:$0xff]
    %v1708 = vld [vmem:[%s218 + $0xa8] sm:$0xff]
    %v1709 = vld [vmem:[%s218 + $0xb0] sm:$0xff]
    %v1710 = vld [vmem:[%s218 + $0xc0] sm:$0xff]
    %v1711 = vld [vmem:[%s218 + $0xc8] sm:$0xff]
    %v1712 = vld [vmem:[%s218 + $0xd8] sm:$0xff]
    %v1713 = vld [vmem:[%s218 + $0xe0] sm:$0xff]
    %v1714 = vld [vmem:[%s218 + $0xf0] sm:$0xff]
    %v1715 = vld [vmem:[%s218 + $0xf8] sm:$0xff]
    %v1716 = vld [vmem:[%s218 + $0x108] sm:$0xff]
    %v1717 = vld [vmem:[%s218 + $0x110] sm:$0xff]
    %v1718 = vld [vmem:[%s218 + $0x120] sm:$0xff]
    %v1719 = vld [vmem:[%s218 + $0x128] sm:$0xff]
    %v1720 = vld [vmem:[%s218 + $0x138] sm:$0xff]
    %v1721 = vld [vmem:[%s218 + $0x140] sm:$0xff]
    %v1722 = vld [vmem:[%s218 + $0x150] sm:$0xff]
    %v1723 = vld [vmem:[%s218 + $0x158] sm:$0xff]
    %v1724 = vld [vmem:[%s218 + $0x168] sm:$0xff]
    %v1725 = vld [vmem:[%s218 + $0x170] sm:$0xff]
    %v1726 = vld [vmem:[%s218 + $0x1b0] sm:$0xff]
    %v1727 = vld [vmem:[%s218 + $0x1b8] sm:$0xff]
    %v1728 = vld [vmem:[%s218 + $0x1c8] sm:$0xff]
    %v1729 = vld [vmem:[%s218 + $0x1d0] sm:$0xff]
    %v1730 = vld [vmem:[%s218 + $0x1e0] sm:$0xff]
    %v1731 = vld [vmem:[%s218 + $0x1e8] sm:$0xff]
    %v1732 = vld [vmem:[%s218 + $0x1f8] sm:$0xff]
    %v1733 = vld [vmem:[%s218 + $0x200] sm:$0xff]
    %v1734 = vld [vmem:[%s218 + $0x210] sm:$0xff]
    %v1735 = vld [vmem:[%s218 + $0x218] sm:$0xff]
    %v1736 = vld [vmem:[%s218 + $0x228] sm:$0xff]
    %v1737 = vld [vmem:[%s218 + $0x230] sm:$0xff]
    %v1738 = vld [vmem:[%s218 + $0x240] sm:$0xff]
    %v1739 = vld [vmem:[%s218 + $0x248] sm:$0xff]
    %v1740 = vld [vmem:[%s218 + $0x258] sm:$0xff]
    %v1741 = vld [vmem:[%s218 + $0x260] sm:$0xff]
    %v1742 = vld [vmem:[%s218 + $0x270] sm:$0xff]
    %v1743 = vld [vmem:[%s218 + $0x278] sm:$0xff]
    %v1744 = vld [vmem:[%s218 + $0x288] sm:$0xff]
    %v1745 = vld [vmem:[%s218 + $0x290] sm:$0xff]
    %v1746 = vld [vmem:[%s218 + $0x2a0] sm:$0xff]
    %v1747 = vld [vmem:[%s218 + $0x2a8] sm:$0xff]
    %v1748 = vld [vmem:[%s218 + $0x2b8] sm:$0xff]
    %v1749 = vld [vmem:[%s218 + $0x2c0] sm:$0xff]
    %v1750 = vld [vmem:[%s218 + $0x2d0] sm:$0xff]
    %v1751 = vld [vmem:[%s218 + $0x2d8] sm:$0xff]
    %v1752 = vld [vmem:[%s218 + $0x2e8] sm:$0xff]
    %v1753 = vld [vmem:[%s218 + $0x2f0] sm:$0xff]
    %v1754 = vld [vmem:[%s218 + $0x300] sm:$0xff]
    %v1755 = vld [vmem:[%s218 + $0x308] sm:$0xff]
    %v1756 = vld [vmem:[%s218 + $0x318] sm:$0xff]
    %v1757 = vld [vmem:[%s218 + $0x320] sm:$0xff]
    %v1758 = vpack.c.bf16 %v1695, %v1694
    %v1759 = vpack.c.bf16 %v1697, %v1696
    %v1760 = vpack.c.bf16 %v1699, %v1698
    %v1761 = vpack.c.bf16 %v1701, %v1700
    %v1762 = vpack.c.bf16 %v1703, %v1702
    %v1763 = vpack.c.bf16 %v1705, %v1704
    %v1764 = vpack.c.bf16 %v1707, %v1706
    %v1765 = vpack.c.bf16 %v1709, %v1708
    %v1766 = vpack.c.bf16 %v1711, %v1710
    %v1767 = vpack.c.bf16 %v1713, %v1712
    %v1768 = vpack.c.bf16 %v1715, %v1714
    %v1769 = vpack.c.bf16 %v1717, %v1716
    %v1770 = vpack.c.bf16 %v1719, %v1718
    %v1771 = vpack.c.bf16 %v1721, %v1720
    %v1772 = vpack.c.bf16 %v1723, %v1722
    %v1773 = vpack.c.bf16 %v1725, %v1724
    %v1774 = vpack.c.bf16 %v1727, %v1726
    %v1775 = vpack.c.bf16 %v1729, %v1728
    %v1776 = vpack.c.bf16 %v1731, %v1730
    %v1777 = vpack.c.bf16 %v1733, %v1732
    %v1778 = vpack.c.bf16 %v1735, %v1734
    %v1779 = vpack.c.bf16 %v1737, %v1736
    %v1780 = vpack.c.bf16 %v1739, %v1738
    %v1781 = vpack.c.bf16 %v1741, %v1740
    %v1782 = vpack.c.bf16 %v1743, %v1742
    %v1783 = vpack.c.bf16 %v1745, %v1744
    %v1784 = vpack.c.bf16 %v1747, %v1746
    %v1785 = vpack.c.bf16 %v1749, %v1748
    %v1786 = vpack.c.bf16 %v1751, %v1750
    %v1787 = vpack.c.bf16 %v1753, %v1752
    %v1788 = vpack.c.bf16 %v1755, %v1754
    %v1789 = vpack.c.bf16 %v1757, %v1756
    %v1790 = vld [vmem:[#allocation6 + $0xc0] sm:$0xf]
    %v1791 = vld [vmem:[#allocation6 + $0xc4] sm:$0xf]
    %v1792 = vld [vmem:[#allocation6 + $0xc8] sm:$0xf]
    %v1793 = vld [vmem:[#allocation6 + $0xcc] sm:$0xf]
    %v1794 = vld [vmem:[#allocation6 + $0xd0] sm:$0xf]
    %v1795 = vld [vmem:[#allocation6 + $0xd4] sm:$0xf]
    %v1796 = vld [vmem:[#allocation6 + $0xd8] sm:$0xf]
    %v1797 = vld [vmem:[#allocation6 + $0xdc] sm:$0xf]
    %v1798 = vld [vmem:[#allocation6 + $0xe0] sm:$0xf]
    %v1799 = vld [vmem:[#allocation6 + $0xe4] sm:$0xf]
    %v1800 = vld [vmem:[#allocation6 + $0xe8] sm:$0xf]
    %v1801 = vld [vmem:[#allocation6 + $0xec] sm:$0xf]
    %v1802 = vld [vmem:[#allocation6 + $0xf0] sm:$0xf]
    %v1803 = vld [vmem:[#allocation6 + $0xf4] sm:$0xf]
    %v1804 = vld [vmem:[#allocation6 + $0xf8] sm:$0xf]
    %v1805 = vld [vmem:[#allocation6 + $0xfc] sm:$0xf]
    %v1822 = vunpack.c.l.b16 %v1790
    %v1823 = vunpack.c.l.b16 %v1791
    %v1824 = vunpack.c.l.b16 %v1792
    %v1825 = vunpack.c.l.b16 %v1793
    %v1826 = vunpack.c.l.b16 %v1794
    %v1827 = vunpack.c.l.b16 %v1795
    %v1828 = vunpack.c.l.b16 %v1796
    %v1829 = vunpack.c.l.b16 %v1797
    %v1830 = vunpack.c.l.b16 %v1798
    %v1831 = vunpack.c.l.b16 %v1799
    %v1832 = vunpack.c.l.b16 %v1800
    %v1833 = vunpack.c.l.b16 %v1801
    %v1834 = vunpack.c.l.b16 %v1802
    %v1835 = vunpack.c.l.b16 %v1803
    %v1836 = vunpack.c.l.b16 %v1804
    %v1837 = vunpack.c.l.b16 %v1805
    %v1838 = vpack.c.b16 %v1823, %v1822
    %v1839 = vpack.c.b16 %v1825, %v1824
    %v1840 = vpack.c.b16 %v1827, %v1826
    %v1841 = vpack.c.b16 %v1829, %v1828
    %v1842 = vpack.c.b16 %v1831, %v1830
    %v1843 = vpack.c.b16 %v1833, %v1832
    %v1844 = vpack.c.b16 %v1835, %v1834
    %v1845 = vpack.c.b16 %v1837, %v1836
    %1854 = vmatprep.subr.bf16.mxu0 0
    %1855 = vmatpush1.bf16.msra.mxu0 %v1838
    %1856 = vmatprep.subr.bf16.mxu0 0
    %1857 = vmatpush1.bf16.msra.mxu0 %v1839
    %1858 = vmatprep.subr.bf16.mxu0 0
    %1859 = vmatpush1.bf16.msra.mxu0 %v1840
    %1860 = vmatprep.subr.bf16.mxu0 0
    %1861 = vmatpush1.bf16.msra.mxu0 %v1841
    %1862 = vmatprep.subr.bf16.mxu0 0
    %1863 = vmatpush1.bf16.msra.mxu0 %v1842
    %1864 = vmatprep.subr.bf16.mxu0 0
    %1865 = vmatpush1.bf16.msra.mxu0 %v1843
    %1866 = vmatprep.subr.bf16.mxu0 0
    %1867 = vmatpush1.bf16.msra.mxu0 %v1844
    %1868 = vmatprep.subr.bf16.mxu0 0
    %1869 = vmatpush1.bf16.msra.mxu0 %v1845
    %1870 = vmatprep.subr.bf16.mxu0 0
    %1871 = vmatpush1.bf16.msra.mxu0 0
    %1872 = vmatprep.subr.bf16.mxu0 0
    %1873 = vmatpush1.bf16.msra.mxu0 0
    %1874 = vmatprep.subr.bf16.mxu0 0
    %1875 = vmatpush1.bf16.msra.mxu0 0
    %1876 = vmatprep.subr.bf16.mxu0 0
    %1877 = vmatpush1.bf16.msra.mxu0 0
    %1878 = vmatprep.subr.bf16.mxu0 0
    %1879 = vmatpush1.bf16.msra.mxu0 0
    %1880 = vmatprep.subr.bf16.mxu0 0
    %1881 = vmatpush1.bf16.msra.mxu0 0
    %1882 = vmatprep.subr.bf16.mxu0 0
    %1883 = vmatpush1.bf16.msra.mxu0 0
    %1884 = vmatprep.subr.bf16.mxu0 0
    %1885 = vmatpush1.bf16.msra.mxu0 0
    %1886 = vmatprep.mubr.bf16.mxu0 0
    %1887 = vmatmul.mubr.bf16.gmra.mrb[0].mxu0 %v1758
    %v1888 = vpop.f32.mrb[0].mxu0
    %v1889 = vadd.f32 0.0, %v1888
    %v1890 = vpop.f32.mrb[0].mxu0
    %v1891 = vpop.f32.mrb[0].mxu0
    %v1892 = vadd.f32 0.0, %v1891
    %v1893 = vpop.f32.mrb[0].mxu0
    %1894 = vmatprep.mubr.bf16.mxu0 0
    %1895 = vmatmul.mubr.bf16.gmra.mrb[0].mxu0 %v1759
    %v1896 = vpop.f32.mrb[0].mxu0
    %v1897 = vadd.f32 0.0, %v1896
    %v1898 = vpop.f32.mrb[0].mxu0
    %v1899 = vpop.f32.mrb[0].mxu0
    %v1900 = vadd.f32 0.0, %v1899
    %v1901 = vpop.f32.mrb[0].mxu0
    %1902 = vmatprep.mubr.bf16.mxu0 0
    %1903 = vmatmul.mubr.bf16.gmra.mrb[0].mxu0 %v1760
    %v1904 = vpop.f32.mrb[0].mxu0
    %v1905 = vadd.f32 0.0, %v1904
    %v1906 = vpop.f32.mrb[0].mxu0
    %v1907 = vpop.f32.mrb[0].mxu0
    %v1908 = vadd.f32 0.0, %v1907
    %v1909 = vpop.f32.mrb[0].mxu0
    %1910 = vmatprep.mubr.bf16.mxu0 0
    %1911 = vmatmul.mubr.bf16.gmra.mrb[0].mxu0 %v1761
    %v1912 = vpop.f32.mrb[0].mxu0
    %v1913 = vadd.f32 0.0, %v1912
    %v1914 = vpop.f32.mrb[0].mxu0
    %v1915 = vpop.f32.mrb[0].mxu0
    %v1916 = vadd.f32 0.0, %v1915
    %v1917 = vpop.f32.mrb[0].mxu0
    %1918 = vmatprep.mubr.bf16.mxu0 0
    %1919 = vmatmul.mubr.bf16.gmra.mrb[0].mxu0 %v1762
    %v1920 = vpop.f32.mrb[0].mxu0
    %v1921 = vadd.f32 0.0, %v1920
    %v1922 = vpop.f32.mrb[0].mxu0
    %v1923 = vpop.f32.mrb[0].mxu0
    %v1924 = vadd.f32 0.0, %v1923
    %v1925 = vpop.f32.mrb[0].mxu0
    %1926 = vmatprep.mubr.bf16.mxu0 0
    %1927 = vmatmul.mubr.bf16.gmra.mrb[0].mxu0 %v1763
    %v1928 = vpop.f32.mrb[0].mxu0
    %v1929 = vadd.f32 0.0, %v1928
    %v1930 = vpop.f32.mrb[0].mxu0
    %v1931 = vpop.f32.mrb[0].mxu0
    %v1932 = vadd.f32 0.0, %v1931
    %v1933 = vpop.f32.mrb[0].mxu0
    %1934 = vmatprep.mubr.bf16.mxu0 0
    %1935 = vmatmul.mubr.bf16.gmra.mrb[0].mxu0 %v1764
    %v1936 = vpop.f32.mrb[0].mxu0
    %v1937 = vadd.f32 0.0, %v1936
    %v1938 = vpop.f32.mrb[0].mxu0
    %v1939 = vpop.f32.mrb[0].mxu0
    %v1940 = vadd.f32 0.0, %v1939
    %v1941 = vpop.f32.mrb[0].mxu0
    %1942 = vmatprep.mubr.bf16.mxu0 0
    %1943 = vmatmul.mubr.bf16.gmra.mrb[0].mxu0 %v1765
    %v1944 = vpop.f32.mrb[0].mxu0
    %v1945 = vadd.f32 0.0, %v1944
    %v1946 = vpop.f32.mrb[0].mxu0
    %v1947 = vpop.f32.mrb[0].mxu0
    %v1948 = vadd.f32 0.0, %v1947
    %v1949 = vpop.f32.mrb[0].mxu0
    %1950 = vmatprep.mubr.bf16.mxu0 0
    %1951 = vmatmul.mubr.bf16.gmra.mrb[0].mxu0 %v1766
    %v1952 = vpop.f32.mrb[0].mxu0
    %v1953 = vadd.f32 0.0, %v1952
    %v1954 = vpop.f32.mrb[0].mxu0
    %v1955 = vpop.f32.mrb[0].mxu0
    %v1956 = vadd.f32 0.0, %v1955
    %v1957 = vpop.f32.mrb[0].mxu0
    %1958 = vmatprep.mubr.bf16.mxu0 0
    %1959 = vmatmul.mubr.bf16.gmra.mrb[0].mxu0 %v1767
    %v1960 = vpop.f32.mrb[0].mxu0
    %v1961 = vadd.f32 0.0, %v1960
    %v1962 = vpop.f32.mrb[0].mxu0
    %v1963 = vpop.f32.mrb[0].mxu0
    %v1964 = vadd.f32 0.0, %v1963
    %v1965 = vpop.f32.mrb[0].mxu0
    %1966 = vmatprep.mubr.bf16.mxu0 0
    %1967 = vmatmul.mubr.bf16.gmra.mrb[0].mxu0 %v1768
    %v1968 = vpop.f32.mrb[0].mxu0
    %v1969 = vadd.f32 0.0, %v1968
    %v1970 = vpop.f32.mrb[0].mxu0
    %v1971 = vpop.f32.mrb[0].mxu0
    %v1972 = vadd.f32 0.0, %v1971
    %v1973 = vpop.f32.mrb[0].mxu0
    %1974 = vmatprep.mubr.bf16.mxu0 0
    %1975 = vmatmul.mubr.bf16.gmra.mrb[0].mxu0 %v1769
    %v1976 = vpop.f32.mrb[0].mxu0
    %v1977 = vadd.f32 0.0, %v1976
    %v1978 = vpop.f32.mrb[0].mxu0
    %v1979 = vpop.f32.mrb[0].mxu0
    %v1980 = vadd.f32 0.0, %v1979
    %v1981 = vpop.f32.mrb[0].mxu0
    %1982 = vmatprep.mubr.bf16.mxu0 0
    %1983 = vmatmul.mubr.bf16.gmra.mrb[0].mxu0 %v1770
    %v1984 = vpop.f32.mrb[0].mxu0
    %v1985 = vadd.f32 0.0, %v1984
    %v1986 = vpop.f32.mrb[0].mxu0
    %v1987 = vpop.f32.mrb[0].mxu0
    %v1988 = vadd.f32 0.0, %v1987
    %v1989 = vpop.f32.mrb[0].mxu0
    %1990 = vmatprep.mubr.bf16.mxu0 0
    %1991 = vmatmul.mubr.bf16.gmra.mrb[0].mxu0 %v1771
    %v1992 = vpop.f32.mrb[0].mxu0
    %v1993 = vadd.f32 0.0, %v1992
    %v1994 = vpop.f32.mrb[0].mxu0
    %v1995 = vpop.f32.mrb[0].mxu0
    %v1996 = vadd.f32 0.0, %v1995
    %v1997 = vpop.f32.mrb[0].mxu0
    %1998 = vmatprep.mubr.bf16.mxu0 0
    %1999 = vmatmul.mubr.bf16.gmra.mrb[0].mxu0 %v1772
    %v2000 = vpop.f32.mrb[0].mxu0
    %v2001 = vadd.f32 0.0, %v2000
    %v2002 = vpop.f32.mrb[0].mxu0
    %v2003 = vpop.f32.mrb[0].mxu0
    %v2004 = vadd.f32 0.0, %v2003
    %v2005 = vpop.f32.mrb[0].mxu0
    %2006 = vmatprep.mubr.bf16.mxu0 0
    %2007 = vmatmul.mubr.bf16.gmra.mrb[0].mxu0 %v1773
    %v2008 = vpop.f32.mrb[0].mxu0
    %v2009 = vadd.f32 0.0, %v2008
    %v2010 = vpop.f32.mrb[0].mxu0
    %v2011 = vpop.f32.mrb[0].mxu0
    %v2012 = vadd.f32 0.0, %v2011
    %v2013 = vpop.f32.mrb[0].mxu0
    %2014 = vmatprep.mubr.bf16.mxu0 0
    %2015 = vmatmul.mubr.bf16.gmra.mrb[0].mxu0 %v1774
    %v2016 = vpop.f32.mrb[0].mxu0
    %v2017 = vadd.f32 0.0, %v2016
    %v2018 = vpop.f32.mrb[0].mxu0
    %v2019 = vpop.f32.mrb[0].mxu0
    %v2020 = vadd.f32 0.0, %v2019
    %v2021 = vpop.f32.mrb[0].mxu0
    %2022 = vmatprep.mubr.bf16.mxu0 0
    %2023 = vmatmul.mubr.bf16.gmra.mrb[0].mxu0 %v1775
    %v2024 = vpop.f32.mrb[0].mxu0
    %v2025 = vadd.f32 0.0, %v2024
    %v2026 = vpop.f32.mrb[0].mxu0
    %v2027 = vpop.f32.mrb[0].mxu0
    %v2028 = vadd.f32 0.0, %v2027
    %v2029 = vpop.f32.mrb[0].mxu0
    %2030 = vmatprep.mubr.bf16.mxu0 0
    %2031 = vmatmul.mubr.bf16.gmra.mrb[0].mxu0 %v1776
    %v2032 = vpop.f32.mrb[0].mxu0
    %v2033 = vadd.f32 0.0, %v2032
    %v2034 = vpop.f32.mrb[0].mxu0
    %v2035 = vpop.f32.mrb[0].mxu0
    %v2036 = vadd.f32 0.0, %v2035
    %v2037 = vpop.f32.mrb[0].mxu0
    %2038 = vmatprep.mubr.bf16.mxu0 0
    %2039 = vmatmul.mubr.bf16.gmra.mrb[0].mxu0 %v1777
    %v2040 = vpop.f32.mrb[0].mxu0
    %v2041 = vadd.f32 0.0, %v2040
    %v2042 = vpop.f32.mrb[0].mxu0
    %v2043 = vpop.f32.mrb[0].mxu0
    %v2044 = vadd.f32 0.0, %v2043
    %v2045 = vpop.f32.mrb[0].mxu0
    %2046 = vmatprep.mubr.bf16.mxu0 0
    %2047 = vmatmul.mubr.bf16.gmra.mrb[0].mxu0 %v1778
    %v2048 = vpop.f32.mrb[0].mxu0
    %v2049 = vadd.f32 0.0, %v2048
    %v2050 = vpop.f32.mrb[0].mxu0
    %v2051 = vpop.f32.mrb[0].mxu0
    %v2052 = vadd.f32 0.0, %v2051
    %v2053 = vpop.f32.mrb[0].mxu0
    %2054 = vmatprep.mubr.bf16.mxu0 0
    %2055 = vmatmul.mubr.bf16.gmra.mrb[0].mxu0 %v1779
    %v2056 = vpop.f32.mrb[0].mxu0
    %v2057 = vadd.f32 0.0, %v2056
    %v2058 = vpop.f32.mrb[0].mxu0
    %v2059 = vpop.f32.mrb[0].mxu0
    %v2060 = vadd.f32 0.0, %v2059
    %v2061 = vpop.f32.mrb[0].mxu0
    %2062 = vmatprep.mubr.bf16.mxu0 0
    %2063 = vmatmul.mubr.bf16.gmra.mrb[0].mxu0 %v1780
    %v2064 = vpop.f32.mrb[0].mxu0
    %v2065 = vadd.f32 0.0, %v2064
    %v2066 = vpop.f32.mrb[0].mxu0
    %v2067 = vpop.f32.mrb[0].mxu0
    %v2068 = vadd.f32 0.0, %v2067
    %v2069 = vpop.f32.mrb[0].mxu0
    %2070 = vmatprep.mubr.bf16.mxu0 0
    %2071 = vmatmul.mubr.bf16.gmra.mrb[0].mxu0 %v1781
    %v2072 = vpop.f32.mrb[0].mxu0
    %v2073 = vadd.f32 0.0, %v2072
    %v2074 = vpop.f32.mrb[0].mxu0
    %v2075 = vpop.f32.mrb[0].mxu0
    %v2076 = vadd.f32 0.0, %v2075
    %v2077 = vpop.f32.mrb[0].mxu0
    %2078 = vmatprep.mubr.bf16.mxu0 0
    %2079 = vmatmul.mubr.bf16.gmra.mrb[0].mxu0 %v1782
    %v2080 = vpop.f32.mrb[0].mxu0
    %v2081 = vadd.f32 0.0, %v2080
    %v2082 = vpop.f32.mrb[0].mxu0
    %v2083 = vpop.f32.mrb[0].mxu0
    %v2084 = vadd.f32 0.0, %v2083
    %v2085 = vpop.f32.mrb[0].mxu0
    %2086 = vmatprep.mubr.bf16.mxu0 0
    %2087 = vmatmul.mubr.bf16.gmra.mrb[0].mxu0 %v1783
    %v2088 = vpop.f32.mrb[0].mxu0
    %v2089 = vadd.f32 0.0, %v2088
    %v2090 = vpop.f32.mrb[0].mxu0
    %v2091 = vpop.f32.mrb[0].mxu0
    %v2092 = vadd.f32 0.0, %v2091
    %v2093 = vpop.f32.mrb[0].mxu0
    %2094 = vmatprep.mubr.bf16.mxu0 0
    %2095 = vmatmul.mubr.bf16.gmra.mrb[0].mxu0 %v1784
    %v2096 = vpop.f32.mrb[0].mxu0
    %v2097 = vadd.f32 0.0, %v2096
    %v2098 = vpop.f32.mrb[0].mxu0
    %v2099 = vpop.f32.mrb[0].mxu0
    %v2100 = vadd.f32 0.0, %v2099
    %v2101 = vpop.f32.mrb[0].mxu0
    %2102 = vmatprep.mubr.bf16.mxu0 0
    %2103 = vmatmul.mubr.bf16.gmra.mrb[0].mxu0 %v1785
    %v2104 = vpop.f32.mrb[0].mxu0
    %v2105 = vadd.f32 0.0, %v2104
    %v2106 = vpop.f32.mrb[0].mxu0
    %v2107 = vpop.f32.mrb[0].mxu0
    %v2108 = vadd.f32 0.0, %v2107
    %v2109 = vpop.f32.mrb[0].mxu0
    %2110 = vmatprep.mubr.bf16.mxu0 0
    %2111 = vmatmul.mubr.bf16.gmra.mrb[0].mxu0 %v1786
    %v2112 = vpop.f32.mrb[0].mxu0
    %v2113 = vadd.f32 0.0, %v2112
    %v2114 = vpop.f32.mrb[0].mxu0
    %v2115 = vpop.f32.mrb[0].mxu0
    %v2116 = vadd.f32 0.0, %v2115
    %v2117 = vpop.f32.mrb[0].mxu0
    %2118 = vmatprep.mubr.bf16.mxu0 0
    %2119 = vmatmul.mubr.bf16.gmra.mrb[0].mxu0 %v1787
    %v2120 = vpop.f32.mrb[0].mxu0
    %v2121 = vadd.f32 0.0, %v2120
    %v2122 = vpop.f32.mrb[0].mxu0
    %v2123 = vpop.f32.mrb[0].mxu0
    %v2124 = vadd.f32 0.0, %v2123
    %v2125 = vpop.f32.mrb[0].mxu0
    %2126 = vmatprep.mubr.bf16.mxu0 0
    %2127 = vmatmul.mubr.bf16.gmra.mrb[0].mxu0 %v1788
    %v2128 = vpop.f32.mrb[0].mxu0
    %v2129 = vadd.f32 0.0, %v2128
    %v2130 = vpop.f32.mrb[0].mxu0
    %v2131 = vpop.f32.mrb[0].mxu0
    %v2132 = vadd.f32 0.0, %v2131
    %v2133 = vpop.f32.mrb[0].mxu0
    %2134 = vmatprep.mubr.bf16.mxu0 0
    %2135 = vmatmul.mubr.bf16.gmra.mrb[0].mxu0 %v1789
    %v2136 = vpop.f32.mrb[0].mxu0
    %v2137 = vadd.f32 0.0, %v2136
    %v2138 = vpop.f32.mrb[0].mxu0
    %v2139 = vpop.f32.mrb[0].mxu0
    %v2140 = vadd.f32 0.0, %v2139
    %v2141 = vpop.f32.mrb[0].mxu0
    %2142 = vdwg.mxu0
    %v2143 = vadd.f32 %v1630, %v1889
    %v2144 = vadd.f32 %v1631, %v1892
    %v2145 = vadd.f32 %v1632, %v1897
    %v2146 = vadd.f32 %v1633, %v1900
    %v2147 = vadd.f32 %v1634, %v1905
    %v2148 = vadd.f32 %v1635, %v1908
    %v2149 = vadd.f32 %v1636, %v1913
    %v2150 = vadd.f32 %v1637, %v1916
    %v2151 = vadd.f32 %v1638, %v1921
    %v2152 = vadd.f32 %v1639, %v1924
    %v2153 = vadd.f32 %v1640, %v1929
    %v2154 = vadd.f32 %v1641, %v1932
    %v2155 = vadd.f32 %v1642, %v1937
    %v2156 = vadd.f32 %v1643, %v1940
    %v2157 = vadd.f32 %v1644, %v1945
    %v2158 = vadd.f32 %v1645, %v1948
    %v2159 = vadd.f32 %v1646, %v1953
    %v2160 = vadd.f32 %v1647, %v1956
    %v2161 = vadd.f32 %v1648, %v1961
    %v2162 = vadd.f32 %v1649, %v1964
    %v2163 = vadd.f32 %v1650, %v1969
    %v2164 = vadd.f32 %v1651, %v1972
    %v2165 = vadd.f32 %v1652, %v1977
    %v2166 = vadd.f32 %v1653, %v1980
    %v2167 = vadd.f32 %v1654, %v1985
    %v2168 = vadd.f32 %v1655, %v1988
    %v2169 = vadd.f32 %v1656, %v1993
    %v2170 = vadd.f32 %v1657, %v1996
    %v2171 = vadd.f32 %v1658, %v2001
    %v2172 = vadd.f32 %v1659, %v2004
    %v2173 = vadd.f32 %v1660, %v2009
    %v2174 = vadd.f32 %v1661, %v2012
    %v2175 = vadd.f32 %v1662, %v2017
    %v2176 = vadd.f32 %v1663, %v2020
    %v2177 = vadd.f32 %v1664, %v2025
    %v2178 = vadd.f32 %v1665, %v2028
    %v2179 = vadd.f32 %v1666, %v2033
    %v2180 = vadd.f32 %v1667, %v2036
    %v2181 = vadd.f32 %v1668, %v2041
    %v2182 = vadd.f32 %v1669, %v2044
    %v2183 = vadd.f32 %v1670, %v2049
    %v2184 = vadd.f32 %v1671, %v2052
    %v2185 = vadd.f32 %v1672, %v2057
    %v2186 = vadd.f32 %v1673, %v2060
    %v2187 = vadd.f32 %v1674, %v2065
    %v2188 = vadd.f32 %v1675, %v2068
    %v2189 = vadd.f32 %v1676, %v2073
    %v2190 = vadd.f32 %v1677, %v2076
    %v2191 = vadd.f32 %v1678, %v2081
    %v2192 = vadd.f32 %v1679, %v2084
    %v2193 = vadd.f32 %v1680, %v2089
    %v2194 = vadd.f32 %v1681, %v2092
    %v2195 = vadd.f32 %v1682, %v2097
    %v2196 = vadd.f32 %v1683, %v2100
    %v2197 = vadd.f32 %v1684, %v2105
    %v2198 = vadd.f32 %v1685, %v2108
    %v2199 = vadd.f32 %v1686, %v2113
    %v2200 = vadd.f32 %v1687, %v2116
    %v2201 = vadd.f32 %v1688, %v2121
    %v2202 = vadd.f32 %v1689, %v2124
    %v2203 = vadd.f32 %v1690, %v2129
    %v2204 = vadd.f32 %v1691, %v2132
    %v2205 = vadd.f32 %v1692, %v2137
    %v2206 = vadd.f32 %v1693, %v2140
    %v2207 = vld [vmem:[%s218 + $0x1] sm:$0xff]
    %v2208 = vld [vmem:[%s218 + $0x9] sm:$0xff]
    %v2209 = vld [vmem:[%s218 + $0x19] sm:$0xff]
    %v2210 = vld [vmem:[%s218 + $0x21] sm:$0xff]
    %v2211 = vld [vmem:[%s218 + $0x31] sm:$0xff]
    %v2212 = vld [vmem:[%s218 + $0x39] sm:$0xff]
    %v2213 = vld [vmem:[%s218 + $0x49] sm:$0xff]
    %v2214 = vld [vmem:[%s218 + $0x51] sm:$0xff]
    %v2215 = vld [vmem:[%s218 + $0x61] sm:$0xff]
    %v2216 = vld [vmem:[%s218 + $0x69] sm:$0xff]
    %v2217 = vld [vmem:[%s218 + $0x79] sm:$0xff]
    %v2218 = vld [vmem:[%s218 + $0x81] sm:$0xff]
    %v2219 = vld [vmem:[%s218 + $0x91] sm:$0xff]
    %v2220 = vld [vmem:[%s218 + $0x99] sm:$0xff]
    %v2221 = vld [vmem:[%s218 + $0xa9] sm:$0xff]
    %v2222 = vld [vmem:[%s218 + $0xb1] sm:$0xff]
    %v2223 = vld [vmem:[%s218 + $0xc1] sm:$0xff]
    %v2224 = vld [vmem:[%s218 + $0xc9] sm:$0xff]
    %v2225 = vld [vmem:[%s218 + $0xd9] sm:$0xff]
    %v2226 = vld [vmem:[%s218 + $0xe1] sm:$0xff]
    %v2227 = vld [vmem:[%s218 + $0xf1] sm:$0xff]
    %v2228 = vld [vmem:[%s218 + $0xf9] sm:$0xff]
    %v2229 = vld [vmem:[%s218 + $0x109] sm:$0xff]
    %v2230 = vld [vmem:[%s218 + $0x111] sm:$0xff]
    %v2231 = vld [vmem:[%s218 + $0x121] sm:$0xff]
    %v2232 = vld [vmem:[%s218 + $0x129] sm:$0xff]
    %v2233 = vld [vmem:[%s218 + $0x139] sm:$0xff]
    %v2234 = vld [vmem:[%s218 + $0x141] sm:$0xff]
    %v2235 = vld [vmem:[%s218 + $0x151] sm:$0xff]
    %v2236 = vld [vmem:[%s218 + $0x159] sm:$0xff]
    %v2237 = vld [vmem:[%s218 + $0x169] sm:$0xff]
    %v2238 = vld [vmem:[%s218 + $0x171] sm:$0xff]
    %v2239 = vld [vmem:[%s218 + $0x1b1] sm:$0xff]
    %v2240 = vld [vmem:[%s218 + $0x1b9] sm:$0xff]
    %v2241 = vld [vmem:[%s218 + $0x1c9] sm:$0xff]
    %v2242 = vld [vmem:[%s218 + $0x1d1] sm:$0xff]
    %v2243 = vld [vmem:[%s218 + $0x1e1] sm:$0xff]
    %v2244 = vld [vmem:[%s218 + $0x1e9] sm:$0xff]
    %v2245 = vld [vmem:[%s218 + $0x1f9] sm:$0xff]
    %v2246 = vld [vmem:[%s218 + $0x201] sm:$0xff]
    %v2247 = vld [vmem:[%s218 + $0x211] sm:$0xff]
    %v2248 = vld [vmem:[%s218 + $0x219] sm:$0xff]
    %v2249 = vld [vmem:[%s218 + $0x229] sm:$0xff]
    %v2250 = vld [vmem:[%s218 + $0x231] sm:$0xff]
    %v2251 = vld [vmem:[%s218 + $0x241] sm:$0xff]
    %v2252 = vld [vmem:[%s218 + $0x249] sm:$0xff]
    %v2253 = vld [vmem:[%s218 + $0x259] sm:$0xff]
    %v2254 = vld [vmem:[%s218 + $0x261] sm:$0xff]
    %v2255 = vld [vmem:[%s218 + $0x271] sm:$0xff]
    %v2256 = vld [vmem:[%s218 + $0x279] sm:$0xff]
    %v2257 = vld [vmem:[%s218 + $0x289] sm:$0xff]
    %v2258 = vld [vmem:[%s218 + $0x291] sm:$0xff]
    %v2259 = vld [vmem:[%s218 + $0x2a1] sm:$0xff]
    %v2260 = vld [vmem:[%s218 + $0x2a9] sm:$0xff]
    %v2261 = vld [vmem:[%s218 + $0x2b9] sm:$0xff]
    %v2262 = vld [vmem:[%s218 + $0x2c1] sm:$0xff]
    %v2263 = vld [vmem:[%s218 + $0x2d1] sm:$0xff]
    %v2264 = vld [vmem:[%s218 + $0x2d9] sm:$0xff]
    %v2265 = vld [vmem:[%s218 + $0x2e9] sm:$0xff]
    %v2266 = vld [vmem:[%s218 + $0x2f1] sm:$0xff]
    %v2267 = vld [vmem:[%s218 + $0x301] sm:$0xff]
    %v2268 = vld [vmem:[%s218 + $0x309] sm:$0xff]
    %v2269 = vld [vmem:[%s218 + $0x319] sm:$0xff]
    %v2270 = vld [vmem:[%s218 + $0x321] sm:$0xff]
    %v2271 = vpack.c.bf16 %v2208, %v2207
    %v2272 = vpack.c.bf16 %v2210, %v2209
    %v2273 = vpack.c.bf16 %v2212, %v2211
    %v2274 = vpack.c.bf16 %v2214, %v2213
    %v2275 = vpack.c.bf16 %v2216, %v2215
    %v2276 = vpack.c.bf16 %v2218, %v2217
    %v2277 = vpack.c.bf16 %v2220, %v2219
    %v2278 = vpack.c.bf16 %v2222, %v2221
    %v2279 = vpack.c.bf16 %v2224, %v2223
    %v2280 = vpack.c.bf16 %v2226, %v2225
    %v2281 = vpack.c.bf16 %v2228, %v2227
    %v2282 = vpack.c.bf16 %v2230, %v2229
    %v2283 = vpack.c.bf16 %v2232, %v2231
    %v2284 = vpack.c.bf16 %v2234, %v2233
    %v2285 = vpack.c.bf16 %v2236, %v2235
    %v2286 = vpack.c.bf16 %v2238, %v2237
    %v2287 = vpack.c.bf16 %v2240, %v2239
    %v2288 = vpack.c.bf16 %v2242, %v2241
    %v2289 = vpack.c.bf16 %v2244, %v2243
    %v2290 = vpack.c.bf16 %v2246, %v2245
    %v2291 = vpack.c.bf16 %v2248, %v2247
    %v2292 = vpack.c.bf16 %v2250, %v2249
    %v2293 = vpack.c.bf16 %v2252, %v2251
    %v2294 = vpack.c.bf16 %v2254, %v2253
    %v2295 = vpack.c.bf16 %v2256, %v2255
    %v2296 = vpack.c.bf16 %v2258, %v2257
    %v2297 = vpack.c.bf16 %v2260, %v2259
    %v2298 = vpack.c.bf16 %v2262, %v2261
    %v2299 = vpack.c.bf16 %v2264, %v2263
    %v2300 = vpack.c.bf16 %v2266, %v2265
    %v2301 = vpack.c.bf16 %v2268, %v2267
    %v2302 = vpack.c.bf16 %v2270, %v2269
    %v2303 = vld [vmem:[#allocation6 + $0x100] sm:$0xf]
    %v2304 = vld [vmem:[#allocation6 + $0x104] sm:$0xf]
    %v2305 = vld [vmem:[#allocation6 + $0x108] sm:$0xf]
    %v2306 = vld [vmem:[#allocation6 + $0x10c] sm:$0xf]
    %v2307 = vld [vmem:[#allocation6 + $0x110] sm:$0xf]
    %v2308 = vld [vmem:[#allocation6 + $0x114] sm:$0xf]
    %v2309 = vld [vmem:[#allocation6 + $0x118] sm:$0xf]
    %v2310 = vld [vmem:[#allocation6 + $0x11c] sm:$0xf]
    %v2311 = vld [vmem:[#allocation6 + $0x120] sm:$0xf]
    %v2312 = vld [vmem:[#allocation6 + $0x124] sm:$0xf]
    %v2313 = vld [vmem:[#allocation6 + $0x128] sm:$0xf]
    %v2314 = vld [vmem:[#allocation6 + $0x12c] sm:$0xf]
    %v2315 = vld [vmem:[#allocation6 + $0x130] sm:$0xf]
    %v2316 = vld [vmem:[#allocation6 + $0x134] sm:$0xf]
    %v2317 = vld [vmem:[#allocation6 + $0x138] sm:$0xf]
    %v2318 = vld [vmem:[#allocation6 + $0x13c] sm:$0xf]
    %v2335 = vunpack.c.l.b16 %v2303
    %v2336 = vunpack.c.l.b16 %v2304
    %v2337 = vunpack.c.l.b16 %v2305
    %v2338 = vunpack.c.l.b16 %v2306
    %v2339 = vunpack.c.l.b16 %v2307
    %v2340 = vunpack.c.l.b16 %v2308
    %v2341 = vunpack.c.l.b16 %v2309
    %v2342 = vunpack.c.l.b16 %v2310
    %v2343 = vunpack.c.l.b16 %v2311
    %v2344 = vunpack.c.l.b16 %v2312
    %v2345 = vunpack.c.l.b16 %v2313
    %v2346 = vunpack.c.l.b16 %v2314
    %v2347 = vunpack.c.l.b16 %v2315
    %v2348 = vunpack.c.l.b16 %v2316
    %v2349 = vunpack.c.l.b16 %v2317
    %v2350 = vunpack.c.l.b16 %v2318
    %v2351 = vpack.c.b16 %v2336, %v2335
    %v2352 = vpack.c.b16 %v2338, %v2337
    %v2353 = vpack.c.b16 %v2340, %v2339
    %v2354 = vpack.c.b16 %v2342, %v2341
    %v2355 = vpack.c.b16 %v2344, %v2343
    %v2356 = vpack.c.b16 %v2346, %v2345
    %v2357 = vpack.c.b16 %v2348, %v2347
    %v2358 = vpack.c.b16 %v2350, %v2349
    %2367 = vmatprep.subr.bf16.mxu0 0
    %2368 = vmatpush1.bf16.msra.mxu0 %v2351
    %2369 = vmatprep.subr.bf16.mxu0 0
    %2370 = vmatpush1.bf16.msra.mxu0 %v2352
    %2371 = vmatprep.subr.bf16.mxu0 0
    %2372 = vmatpush1.bf16.msra.mxu0 %v2353
    %2373 = vmatprep.subr.bf16.mxu0 0
    %2374 = vmatpush1.bf16.msra.mxu0 %v2354
    %2375 = vmatprep.subr.bf16.mxu0 0
    %2376 = vmatpush1.bf16.msra.mxu0 %v2355
    %2377 = vmatprep.subr.bf16.mxu0 0
    %2378 = vmatpush1.bf16.msra.mxu0 %v2356
    %2379 = vmatprep.subr.bf16.mxu0 0
    %2380 = vmatpush1.bf16.msra.mxu0 %v2357
    %2381 = vmatprep.subr.bf16.mxu0 0
    %2382 = vmatpush1.bf16.msra.mxu0 %v2358
    %2383 = vmatprep.subr.bf16.mxu0 0
    %2384 = vmatpush1.bf16.msra.mxu0 0
    %2385 = vmatprep.subr.bf16.mxu0 0
    %2386 = vmatpush1.bf16.msra.mxu0 0
    %2387 = vmatprep.subr.bf16.mxu0 0
    %2388 = vmatpush1.bf16.msra.mxu0 0
    %2389 = vmatprep.subr.bf16.mxu0 0
    %2390 = vmatpush1.bf16.msra.mxu0 0
    %2391 = vmatprep.subr.bf16.mxu0 0
    %2392 = vmatpush1.bf16.msra.mxu0 0
    %2393 = vmatprep.subr.bf16.mxu0 0
    %2394 = vmatpush1.bf16.msra.mxu0 0
    %2395 = vmatprep.subr.bf16.mxu0 0
    %2396 = vmatpush1.bf16.msra.mxu0 0
    %2397 = vmatprep.subr.bf16.mxu0 0
    %2398 = vmatpush1.bf16.msra.mxu0 0
    %2399 = vmatprep.mubr.bf16.mxu0 0
    %2400 = vmatmul.mubr.bf16.gmra.mrb[0].mxu0 %v2271
    %v2401 = vpop.f32.mrb[0].mxu0
    %v2402 = vadd.f32 0.0, %v2401
    %v2403 = vpop.f32.mrb[0].mxu0
    %v2404 = vpop.f32.mrb[0].mxu0
    %v2405 = vadd.f32 0.0, %v2404
    %v2406 = vpop.f32.mrb[0].mxu0
    %2407 = vmatprep.mubr.bf16.mxu0 0
    %2408 = vmatmul.mubr.bf16.gmra.mrb[0].mxu0 %v2272
    %v2409 = vpop.f32.mrb[0].mxu0
    %v2410 = vadd.f32 0.0, %v2409
    %v2411 = vpop.f32.mrb[0].mxu0
    %v2412 = vpop.f32.mrb[0].mxu0
    %v2413 = vadd.f32 0.0, %v2412
    %v2414 = vpop.f32.mrb[0].mxu0
    %2415 = vmatprep.mubr.bf16.mxu0 0
    %2416 = vmatmul.mubr.bf16.gmra.mrb[0].mxu0 %v2273
    %v2417 = vpop.f32.mrb[0].mxu0
    %v2418 = vadd.f32 0.0, %v2417
    %v2419 = vpop.f32.mrb[0].mxu0
    %v2420 = vpop.f32.mrb[0].mxu0
    %v2421 = vadd.f32 0.0, %v2420
    %v2422 = vpop.f32.mrb[0].mxu0
    %2423 = vmatprep.mubr.bf16.mxu0 0
    %2424 = vmatmul.mubr.bf16.gmra.mrb[0].mxu0 %v2274
    %v2425 = vpop.f32.mrb[0].mxu0
    %v2426 = vadd.f32 0.0, %v2425
    %v2427 = vpop.f32.mrb[0].mxu0
    %v2428 = vpop.f32.mrb[0].mxu0
    %v2429 = vadd.f32 0.0, %v2428
    %v2430 = vpop.f32.mrb[0].mxu0
    %2431 = vmatprep.mubr.bf16.mxu0 0
    %2432 = vmatmul.mubr.bf16.gmra.mrb[0].mxu0 %v2275
    %v2433 = vpop.f32.mrb[0].mxu0
    %v2434 = vadd.f32 0.0, %v2433
    %v2435 = vpop.f32.mrb[0].mxu0
    %v2436 = vpop.f32.mrb[0].mxu0
    %v2437 = vadd.f32 0.0, %v2436
    %v2438 = vpop.f32.mrb[0].mxu0
    %2439 = vmatprep.mubr.bf16.mxu0 0
    %2440 = vmatmul.mubr.bf16.gmra.mrb[0].mxu0 %v2276
    %v2441 = vpop.f32.mrb[0].mxu0
    %v2442 = vadd.f32 0.0, %v2441
    %v2443 = vpop.f32.mrb[0].mxu0
    %v2444 = vpop.f32.mrb[0].mxu0
    %v2445 = vadd.f32 0.0, %v2444
    %v2446 = vpop.f32.mrb[0].mxu0
    %2447 = vmatprep.mubr.bf16.mxu0 0
    %2448 = vmatmul.mubr.bf16.gmra.mrb[0].mxu0 %v2277
    %v2449 = vpop.f32.mrb[0].mxu0
    %v2450 = vadd.f32 0.0, %v2449
    %v2451 = vpop.f32.mrb[0].mxu0
    %v2452 = vpop.f32.mrb[0].mxu0
    %v2453 = vadd.f32 0.0, %v2452
    %v2454 = vpop.f32.mrb[0].mxu0
    %2455 = vmatprep.mubr.bf16.mxu0 0
    %2456 = vmatmul.mubr.bf16.gmra.mrb[0].mxu0 %v2278
    %v2457 = vpop.f32.mrb[0].mxu0
    %v2458 = vadd.f32 0.0, %v2457
    %v2459 = vpop.f32.mrb[0].mxu0
    %v2460 = vpop.f32.mrb[0].mxu0
    %v2461 = vadd.f32 0.0, %v2460
    %v2462 = vpop.f32.mrb[0].mxu0
    %2463 = vmatprep.mubr.bf16.mxu0 0
    %2464 = vmatmul.mubr.bf16.gmra.mrb[0].mxu0 %v2279
    %v2465 = vpop.f32.mrb[0].mxu0
    %v2466 = vadd.f32 0.0, %v2465
    %v2467 = vpop.f32.mrb[0].mxu0
    %v2468 = vpop.f32.mrb[0].mxu0
    %v2469 = vadd.f32 0.0, %v2468
    %v2470 = vpop.f32.mrb[0].mxu0
    %2471 = vmatprep.mubr.bf16.mxu0 0
    %2472 = vmatmul.mubr.bf16.gmra.mrb[0].mxu0 %v2280
    %v2473 = vpop.f32.mrb[0].mxu0
    %v2474 = vadd.f32 0.0, %v2473
    %v2475 = vpop.f32.mrb[0].mxu0
    %v2476 = vpop.f32.mrb[0].mxu0
    %v2477 = vadd.f32 0.0, %v2476
    %v2478 = vpop.f32.mrb[0].mxu0
    %2479 = vmatprep.mubr.bf16.mxu0 0
    %2480 = vmatmul.mubr.bf16.gmra.mrb[0].mxu0 %v2281
    %v2481 = vpop.f32.mrb[0].mxu0
    %v2482 = vadd.f32 0.0, %v2481
    %v2483 = vpop.f32.mrb[0].mxu0
    %v2484 = vpop.f32.mrb[0].mxu0
    %v2485 = vadd.f32 0.0, %v2484
    %v2486 = vpop.f32.mrb[0].mxu0
    %2487 = vmatprep.mubr.bf16.mxu0 0
    %2488 = vmatmul.mubr.bf16.gmra.mrb[0].mxu0 %v2282
    %v2489 = vpop.f32.mrb[0].mxu0
    %v2490 = vadd.f32 0.0, %v2489
    %v2491 = vpop.f32.mrb[0].mxu0
    %v2492 = vpop.f32.mrb[0].mxu0
    %v2493 = vadd.f32 0.0, %v2492
    %v2494 = vpop.f32.mrb[0].mxu0
    %2495 = vmatprep.mubr.bf16.mxu0 0
    %2496 = vmatmul.mubr.bf16.gmra.mrb[0].mxu0 %v2283
    %v2497 = vpop.f32.mrb[0].mxu0
    %v2498 = vadd.f32 0.0, %v2497
    %v2499 = vpop.f32.mrb[0].mxu0
    %v2500 = vpop.f32.mrb[0].mxu0
    %v2501 = vadd.f32 0.0, %v2500
    %v2502 = vpop.f32.mrb[0].mxu0
    %2503 = vmatprep.mubr.bf16.mxu0 0
    %2504 = vmatmul.mubr.bf16.gmra.mrb[0].mxu0 %v2284
    %v2505 = vpop.f32.mrb[0].mxu0
    %v2506 = vadd.f32 0.0, %v2505
    %v2507 = vpop.f32.mrb[0].mxu0
    %v2508 = vpop.f32.mrb[0].mxu0
    %v2509 = vadd.f32 0.0, %v2508
    %v2510 = vpop.f32.mrb[0].mxu0
    %2511 = vmatprep.mubr.bf16.mxu0 0
    %2512 = vmatmul.mubr.bf16.gmra.mrb[0].mxu0 %v2285
    %v2513 = vpop.f32.mrb[0].mxu0
    %v2514 = vadd.f32 0.0, %v2513
    %v2515 = vpop.f32.mrb[0].mxu0
    %v2516 = vpop.f32.mrb[0].mxu0
    %v2517 = vadd.f32 0.0, %v2516
    %v2518 = vpop.f32.mrb[0].mxu0
    %2519 = vmatprep.mubr.bf16.mxu0 0
    %2520 = vmatmul.mubr.bf16.gmra.mrb[0].mxu0 %v2286
    %v2521 = vpop.f32.mrb[0].mxu0
    %v2522 = vadd.f32 0.0, %v2521
    %v2523 = vpop.f32.mrb[0].mxu0
    %v2524 = vpop.f32.mrb[0].mxu0
    %v2525 = vadd.f32 0.0, %v2524
    %v2526 = vpop.f32.mrb[0].mxu0
    %2527 = vmatprep.mubr.bf16.mxu0 0
    %2528 = vmatmul.mubr.bf16.gmra.mrb[0].mxu0 %v2287
    %v2529 = vpop.f32.mrb[0].mxu0
    %v2530 = vadd.f32 0.0, %v2529
    %v2531 = vpop.f32.mrb[0].mxu0
    %v2532 = vpop.f32.mrb[0].mxu0
    %v2533 = vadd.f32 0.0, %v2532
    %v2534 = vpop.f32.mrb[0].mxu0
    %2535 = vmatprep.mubr.bf16.mxu0 0
    %2536 = vmatmul.mubr.bf16.gmra.mrb[0].mxu0 %v2288
    %v2537 = vpop.f32.mrb[0].mxu0
    %v2538 = vadd.f32 0.0, %v2537
    %v2539 = vpop.f32.mrb[0].mxu0
    %v2540 = vpop.f32.mrb[0].mxu0
    %v2541 = vadd.f32 0.0, %v2540
    %v2542 = vpop.f32.mrb[0].mxu0
    %2543 = vmatprep.mubr.bf16.mxu0 0
    %2544 = vmatmul.mubr.bf16.gmra.mrb[0].mxu0 %v2289
    %v2545 = vpop.f32.mrb[0].mxu0
    %v2546 = vadd.f32 0.0, %v2545
    %v2547 = vpop.f32.mrb[0].mxu0
    %v2548 = vpop.f32.mrb[0].mxu0
    %v2549 = vadd.f32 0.0, %v2548
    %v2550 = vpop.f32.mrb[0].mxu0
    %2551 = vmatprep.mubr.bf16.mxu0 0
    %2552 = vmatmul.mubr.bf16.gmra.mrb[0].mxu0 %v2290
    %v2553 = vpop.f32.mrb[0].mxu0
    %v2554 = vadd.f32 0.0, %v2553
    %v2555 = vpop.f32.mrb[0].mxu0
    %v2556 = vpop.f32.mrb[0].mxu0
    %v2557 = vadd.f32 0.0, %v2556
    %v2558 = vpop.f32.mrb[0].mxu0
    %2559 = vmatprep.mubr.bf16.mxu0 0
    %2560 = vmatmul.mubr.bf16.gmra.mrb[0].mxu0 %v2291
    %v2561 = vpop.f32.mrb[0].mxu0
    %v2562 = vadd.f32 0.0, %v2561
    %v2563 = vpop.f32.mrb[0].mxu0
    %v2564 = vpop.f32.mrb[0].mxu0
    %v2565 = vadd.f32 0.0, %v2564
    %v2566 = vpop.f32.mrb[0].mxu0
    %2567 = vmatprep.mubr.bf16.mxu0 0
    %2568 = vmatmul.mubr.bf16.gmra.mrb[0].mxu0 %v2292
    %v2569 = vpop.f32.mrb[0].mxu0
    %v2570 = vadd.f32 0.0, %v2569
    %v2571 = vpop.f32.mrb[0].mxu0
    %v2572 = vpop.f32.mrb[0].mxu0
    %v2573 = vadd.f32 0.0, %v2572
    %v2574 = vpop.f32.mrb[0].mxu0
    %2575 = vmatprep.mubr.bf16.mxu0 0
    %2576 = vmatmul.mubr.bf16.gmra.mrb[0].mxu0 %v2293
    %v2577 = vpop.f32.mrb[0].mxu0
    %v2578 = vadd.f32 0.0, %v2577
    %v2579 = vpop.f32.mrb[0].mxu0
    %v2580 = vpop.f32.mrb[0].mxu0
    %v2581 = vadd.f32 0.0, %v2580
    %v2582 = vpop.f32.mrb[0].mxu0
    %2583 = vmatprep.mubr.bf16.mxu0 0
    %2584 = vmatmul.mubr.bf16.gmra.mrb[0].mxu0 %v2294
    %v2585 = vpop.f32.mrb[0].mxu0
    %v2586 = vadd.f32 0.0, %v2585
    %v2587 = vpop.f32.mrb[0].mxu0
    %v2588 = vpop.f32.mrb[0].mxu0
    %v2589 = vadd.f32 0.0, %v2588
    %v2590 = vpop.f32.mrb[0].mxu0
    %2591 = vmatprep.mubr.bf16.mxu0 0
    %2592 = vmatmul.mubr.bf16.gmra.mrb[0].mxu0 %v2295
    %v2593 = vpop.f32.mrb[0].mxu0
    %v2594 = vadd.f32 0.0, %v2593
    %v2595 = vpop.f32.mrb[0].mxu0
    %v2596 = vpop.f32.mrb[0].mxu0
    %v2597 = vadd.f32 0.0, %v2596
    %v2598 = vpop.f32.mrb[0].mxu0
    %2599 = vmatprep.mubr.bf16.mxu0 0
    %2600 = vmatmul.mubr.bf16.gmra.mrb[0].mxu0 %v2296
    %v2601 = vpop.f32.mrb[0].mxu0
    %v2602 = vadd.f32 0.0, %v2601
    %v2603 = vpop.f32.mrb[0].mxu0
    %v2604 = vpop.f32.mrb[0].mxu0
    %v2605 = vadd.f32 0.0, %v2604
    %v2606 = vpop.f32.mrb[0].mxu0
    %2607 = vmatprep.mubr.bf16.mxu0 0
    %2608 = vmatmul.mubr.bf16.gmra.mrb[0].mxu0 %v2297
    %v2609 = vpop.f32.mrb[0].mxu0
    %v2610 = vadd.f32 0.0, %v2609
    %v2611 = vpop.f32.mrb[0].mxu0
    %v2612 = vpop.f32.mrb[0].mxu0
    %v2613 = vadd.f32 0.0, %v2612
    %v2614 = vpop.f32.mrb[0].mxu0
    %2615 = vmatprep.mubr.bf16.mxu0 0
    %2616 = vmatmul.mubr.bf16.gmra.mrb[0].mxu0 %v2298
    %v2617 = vpop.f32.mrb[0].mxu0
    %v2618 = vadd.f32 0.0, %v2617
    %v2619 = vpop.f32.mrb[0].mxu0
    %v2620 = vpop.f32.mrb[0].mxu0
    %v2621 = vadd.f32 0.0, %v2620
    %v2622 = vpop.f32.mrb[0].mxu0
    %2623 = vmatprep.mubr.bf16.mxu0 0
    %2624 = vmatmul.mubr.bf16.gmra.mrb[0].mxu0 %v2299
    %v2625 = vpop.f32.mrb[0].mxu0
    %v2626 = vadd.f32 0.0, %v2625
    %v2627 = vpop.f32.mrb[0].mxu0
    %v2628 = vpop.f32.mrb[0].mxu0
    %v2629 = vadd.f32 0.0, %v2628
    %v2630 = vpop.f32.mrb[0].mxu0
    %2631 = vmatprep.mubr.bf16.mxu0 0
    %2632 = vmatmul.mubr.bf16.gmra.mrb[0].mxu0 %v2300
    %v2633 = vpop.f32.mrb[0].mxu0
    %v2634 = vadd.f32 0.0, %v2633
    %v2635 = vpop.f32.mrb[0].mxu0
    %v2636 = vpop.f32.mrb[0].mxu0
    %v2637 = vadd.f32 0.0, %v2636
    %v2638 = vpop.f32.mrb[0].mxu0
    %2639 = vmatprep.mubr.bf16.mxu0 0
    %2640 = vmatmul.mubr.bf16.gmra.mrb[0].mxu0 %v2301
    %v2641 = vpop.f32.mrb[0].mxu0
    %v2642 = vadd.f32 0.0, %v2641
    %v2643 = vpop.f32.mrb[0].mxu0
    %v2644 = vpop.f32.mrb[0].mxu0
    %v2645 = vadd.f32 0.0, %v2644
    %v2646 = vpop.f32.mrb[0].mxu0
    %2647 = vmatprep.mubr.bf16.mxu0 0
    %2648 = vmatmul.mubr.bf16.gmra.mrb[0].mxu0 %v2302
    %v2649 = vpop.f32.mrb[0].mxu0
    %v2650 = vadd.f32 0.0, %v2649
    %v2651 = vpop.f32.mrb[0].mxu0
    %v2652 = vpop.f32.mrb[0].mxu0
    %v2653 = vadd.f32 0.0, %v2652
    %v2654 = vpop.f32.mrb[0].mxu0
    %2655 = vdwg.mxu0
    %v2656 = vadd.f32 %v2143, %v2402
    %v2657 = vadd.f32 %v2144, %v2405
    %v2658 = vadd.f32 %v2145, %v2410
    %v2659 = vadd.f32 %v2146, %v2413
    %v2660 = vadd.f32 %v2147, %v2418
    %v2661 = vadd.f32 %v2148, %v2421
    %v2662 = vadd.f32 %v2149, %v2426
    %v2663 = vadd.f32 %v2150, %v2429
    %v2664 = vadd.f32 %v2151, %v2434
    %v2665 = vadd.f32 %v2152, %v2437
    %v2666 = vadd.f32 %v2153, %v2442
    %v2667 = vadd.f32 %v2154, %v2445
    %v2668 = vadd.f32 %v2155, %v2450
    %v2669 = vadd.f32 %v2156, %v2453
    %v2670 = vadd.f32 %v2157, %v2458
    %v2671 = vadd.f32 %v2158, %v2461
    %v2672 = vadd.f32 %v2159, %v2466
    %v2673 = vadd.f32 %v2160, %v2469
    %v2674 = vadd.f32 %v2161, %v2474
    %v2675 = vadd.f32 %v2162, %v2477
    %v2676 = vadd.f32 %v2163, %v2482
    %v2677 = vadd.f32 %v2164, %v2485
    %v2678 = vadd.f32 %v2165, %v2490
    %v2679 = vadd.f32 %v2166, %v2493
    %v2680 = vadd.f32 %v2167, %v2498
    %v2681 = vadd.f32 %v2168, %v2501
    %v2682 = vadd.f32 %v2169, %v2506
    %v2683 = vadd.f32 %v2170, %v2509
    %v2684 = vadd.f32 %v2171, %v2514
    %v2685 = vadd.f32 %v2172, %v2517
    %v2686 = vadd.f32 %v2173, %v2522
    %v2687 = vadd.f32 %v2174, %v2525
    %v2688 = vadd.f32 %v2175, %v2530
    %v2689 = vadd.f32 %v2176, %v2533
    %v2690 = vadd.f32 %v2177, %v2538
    %v2691 = vadd.f32 %v2178, %v2541
    %v2692 = vadd.f32 %v2179, %v2546
    %v2693 = vadd.f32 %v2180, %v2549
    %v2694 = vadd.f32 %v2181, %v2554
    %v2695 = vadd.f32 %v2182, %v2557
    %v2696 = vadd.f32 %v2183, %v2562
    %v2697 = vadd.f32 %v2184, %v2565
    %v2698 = vadd.f32 %v2185, %v2570
    %v2699 = vadd.f32 %v2186, %v2573
    %v2700 = vadd.f32 %v2187, %v2578
    %v2701 = vadd.f32 %v2188, %v2581
    %v2702 = vadd.f32 %v2189, %v2586
    %v2703 = vadd.f32 %v2190, %v2589
    %v2704 = vadd.f32 %v2191, %v2594
    %v2705 = vadd.f32 %v2192, %v2597
    %v2706 = vadd.f32 %v2193, %v2602
    %v2707 = vadd.f32 %v2194, %v2605
    %v2708 = vadd.f32 %v2195, %v2610
    %v2709 = vadd.f32 %v2196, %v2613
    %v2710 = vadd.f32 %v2197, %v2618
    %v2711 = vadd.f32 %v2198, %v2621
    %v2712 = vadd.f32 %v2199, %v2626
    %v2713 = vadd.f32 %v2200, %v2629
    %v2714 = vadd.f32 %v2201, %v2634
    %v2715 = vadd.f32 %v2202, %v2637
    %v2716 = vadd.f32 %v2203, %v2642
    %v2717 = vadd.f32 %v2204, %v2645
    %v2718 = vadd.f32 %v2205, %v2650
    %v2719 = vadd.f32 %v2206, %v2653
    %v2720 = vld [vmem:[%s218 + $0x2] sm:$0xff]
    %v2721 = vld [vmem:[%s218 + $0xa] sm:$0xff]
    %v2722 = vld [vmem:[%s218 + $0x1a] sm:$0xff]
    %v2723 = vld [vmem:[%s218 + $0x22] sm:$0xff]
    %v2724 = vld [vmem:[%s218 + $0x32] sm:$0xff]
    %v2725 = vld [vmem:[%s218 + $0x3a] sm:$0xff]
    %v2726 = vld [vmem:[%s218 + $0x4a] sm:$0xff]
    %v2727 = vld [vmem:[%s218 + $0x52] sm:$0xff]
    %v2728 = vld [vmem:[%s218 + $0x62] sm:$0xff]
    %v2729 = vld [vmem:[%s218 + $0x6a] sm:$0xff]
    %v2730 = vld [vmem:[%s218 + $0x7a] sm:$0xff]
    %v2731 = vld [vmem:[%s218 + $0x82] sm:$0xff]
    %v2732 = vld [vmem:[%s218 + $0x92] sm:$0xff]
    %v2733 = vld [vmem:[%s218 + $0x9a] sm:$0xff]
    %v2734 = vld [vmem:[%s218 + $0xaa] sm:$0xff]
    %v2735 = vld [vmem:[%s218 + $0xb2] sm:$0xff]
    %v2736 = vld [vmem:[%s218 + $0xc2] sm:$0xff]
    %v2737 = vld [vmem:[%s218 + $0xca] sm:$0xff]
    %v2738 = vld [vmem:[%s218 + $0xda] sm:$0xff]
    %v2739 = vld [vmem:[%s218 + $0xe2] sm:$0xff]
    %v2740 = vld [vmem:[%s218 + $0xf2] sm:$0xff]
    %v2741 = vld [vmem:[%s218 + $0xfa] sm:$0xff]
    %v2742 = vld [vmem:[%s218 + $0x10a] sm:$0xff]
    %v2743 = vld [vmem:[%s218 + $0x112] sm:$0xff]
    %v2744 = vld [vmem:[%s218 + $0x122] sm:$0xff]
    %v2745 = vld [vmem:[%s218 + $0x12a] sm:$0xff]
    %v2746 = vld [vmem:[%s218 + $0x13a] sm:$0xff]
    %v2747 = vld [vmem:[%s218 + $0x142] sm:$0xff]
    %v2748 = vld [vmem:[%s218 + $0x152] sm:$0xff]
    %v2749 = vld [vmem:[%s218 + $0x15a] sm:$0xff]
    %v2750 = vld [vmem:[%s218 + $0x16a] sm:$0xff]
    %v2751 = vld [vmem:[%s218 + $0x172] sm:$0xff]
    %v2752 = vld [vmem:[%s218 + $0x1b2] sm:$0xff]
    %v2753 = vld [vmem:[%s218 + $0x1ba] sm:$0xff]
    %v2754 = vld [vmem:[%s218 + $0x1ca] sm:$0xff]
    %v2755 = vld [vmem:[%s218 + $0x1d2] sm:$0xff]
    %v2756 = vld [vmem:[%s218 + $0x1e2] sm:$0xff]
    %v2757 = vld [vmem:[%s218 + $0x1ea] sm:$0xff]
    %v2758 = vld [vmem:[%s218 + $0x1fa] sm:$0xff]
    %v2759 = vld [vmem:[%s218 + $0x202] sm:$0xff]
    %v2760 = vld [vmem:[%s218 + $0x212] sm:$0xff]
    %v2761 = vld [vmem:[%s218 + $0x21a] sm:$0xff]
    %v2762 = vld [vmem:[%s218 + $0x22a] sm:$0xff]
    %v2763 = vld [vmem:[%s218 + $0x232] sm:$0xff]
    %v2764 = vld [vmem:[%s218 + $0x242] sm:$0xff]
    %v2765 = vld [vmem:[%s218 + $0x24a] sm:$0xff]
    %v2766 = vld [vmem:[%s218 + $0x25a] sm:$0xff]
    %v2767 = vld [vmem:[%s218 + $0x262] sm:$0xff]
    %v2768 = vld [vmem:[%s218 + $0x272] sm:$0xff]
    %v2769 = vld [vmem:[%s218 + $0x27a] sm:$0xff]
    %v2770 = vld [vmem:[%s218 + $0x28a] sm:$0xff]
    %v2771 = vld [vmem:[%s218 + $0x292] sm:$0xff]
    %v2772 = vld [vmem:[%s218 + $0x2a2] sm:$0xff]
    %v2773 = vld [vmem:[%s218 + $0x2aa] sm:$0xff]
    %v2774 = vld [vmem:[%s218 + $0x2ba] sm:$0xff]
    %v2775 = vld [vmem:[%s218 + $0x2c2] sm:$0xff]
    %v2776 = vld [vmem:[%s218 + $0x2d2] sm:$0xff]
    %v2777 = vld [vmem:[%s218 + $0x2da] sm:$0xff]
    %v2778 = vld [vmem:[%s218 + $0x2ea] sm:$0xff]
    %v2779 = vld [vmem:[%s218 + $0x2f2] sm:$0xff]
    %v2780 = vld [vmem:[%s218 + $0x302] sm:$0xff]
    %v2781 = vld [vmem:[%s218 + $0x30a] sm:$0xff]
    %v2782 = vld [vmem:[%s218 + $0x31a] sm:$0xff]
    %v2783 = vld [vmem:[%s218 + $0x322] sm:$0xff]
    %v2784 = vpack.c.bf16 %v2721, %v2720
    %v2785 = vpack.c.bf16 %v2723, %v2722
    %v2786 = vpack.c.bf16 %v2725, %v2724
    %v2787 = vpack.c.bf16 %v2727, %v2726
    %v2788 = vpack.c.bf16 %v2729, %v2728
    %v2789 = vpack.c.bf16 %v2731, %v2730
    %v2790 = vpack.c.bf16 %v2733, %v2732
    %v2791 = vpack.c.bf16 %v2735, %v2734
    %v2792 = vpack.c.bf16 %v2737, %v2736
    %v2793 = vpack.c.bf16 %v2739, %v2738
    %v2794 = vpack.c.bf16 %v2741, %v2740
    %v2795 = vpack.c.bf16 %v2743, %v2742
    %v2796 = vpack.c.bf16 %v2745, %v2744
    %v2797 = vpack.c.bf16 %v2747, %v2746
    %v2798 = vpack.c.bf16 %v2749, %v2748
    %v2799 = vpack.c.bf16 %v2751, %v2750
    %v2800 = vpack.c.bf16 %v2753, %v2752
    %v2801 = vpack.c.bf16 %v2755, %v2754
    %v2802 = vpack.c.bf16 %v2757, %v2756
    %v2803 = vpack.c.bf16 %v2759, %v2758
    %v2804 = vpack.c.bf16 %v2761, %v2760
    %v2805 = vpack.c.bf16 %v2763, %v2762
    %v2806 = vpack.c.bf16 %v2765, %v2764
    %v2807 = vpack.c.bf16 %v2767, %v2766
    %v2808 = vpack.c.bf16 %v2769, %v2768
    %v2809 = vpack.c.bf16 %v2771, %v2770
    %v2810 = vpack.c.bf16 %v2773, %v2772
    %v2811 = vpack.c.bf16 %v2775, %v2774
    %v2812 = vpack.c.bf16 %v2777, %v2776
    %v2813 = vpack.c.bf16 %v2779, %v2778
    %v2814 = vpack.c.bf16 %v2781, %v2780
    %v2815 = vpack.c.bf16 %v2783, %v2782
    %v2816 = vld [vmem:[#allocation6 + $0x140] sm:$0xf]
    %v2817 = vld [vmem:[#allocation6 + $0x144] sm:$0xf]
    %v2818 = vld [vmem:[#allocation6 + $0x148] sm:$0xf]
    %v2819 = vld [vmem:[#allocation6 + $0x14c] sm:$0xf]
    %v2820 = vld [vmem:[#allocation6 + $0x150] sm:$0xf]
    %v2821 = vld [vmem:[#allocation6 + $0x154] sm:$0xf]
    %v2822 = vld [vmem:[#allocation6 + $0x158] sm:$0xf]
    %v2823 = vld [vmem:[#allocation6 + $0x15c] sm:$0xf]
    %v2824 = vld [vmem:[#allocation6 + $0x160] sm:$0xf]
    %v2825 = vld [vmem:[#allocation6 + $0x164] sm:$0xf]
    %v2826 = vld [vmem:[#allocation6 + $0x168] sm:$0xf]
    %v2827 = vld [vmem:[#allocation6 + $0x16c] sm:$0xf]
    %v2828 = vld [vmem:[#allocation6 + $0x170] sm:$0xf]
    %v2829 = vld [vmem:[#allocation6 + $0x174] sm:$0xf]
    %v2830 = vld [vmem:[#allocation6 + $0x178] sm:$0xf]
    %v2831 = vld [vmem:[#allocation6 + $0x17c] sm:$0xf]
    %v2848 = vunpack.c.l.b16 %v2816
    %v2849 = vunpack.c.l.b16 %v2817
    %v2850 = vunpack.c.l.b16 %v2818
    %v2851 = vunpack.c.l.b16 %v2819
    %v2852 = vunpack.c.l.b16 %v2820
    %v2853 = vunpack.c.l.b16 %v2821
    %v2854 = vunpack.c.l.b16 %v2822
    %v2855 = vunpack.c.l.b16 %v2823
    %v2856 = vunpack.c.l.b16 %v2824
    %v2857 = vunpack.c.l.b16 %v2825
    %v2858 = vunpack.c.l.b16 %v2826
    %v2859 = vunpack.c.l.b16 %v2827
    %v2860 = vunpack.c.l.b16 %v2828
    %v2861 = vunpack.c.l.b16 %v2829
    %v2862 = vunpack.c.l.b16 %v2830
    %v2863 = vunpack.c.l.b16 %v2831
    %v2864 = vpack.c.b16 %v2849, %v2848
    %v2865 = vpack.c.b16 %v2851, %v2850
    %v2866 = vpack.c.b16 %v2853, %v2852
    %v2867 = vpack.c.b16 %v2855, %v2854
    %v2868 = vpack.c.b16 %v2857, %v2856
    %v2869 = vpack.c.b16 %v2859, %v2858
    %v2870 = vpack.c.b16 %v2861, %v2860
    %v2871 = vpack.c.b16 %v2863, %v2862
    %2880 = vmatprep.subr.bf16.mxu0 0
    %2881 = vmatpush1.bf16.msra.mxu0 %v2864
    %2882 = vmatprep.subr.bf16.mxu0 0
    %2883 = vmatpush1.bf16.msra.mxu0 %v2865
    %2884 = vmatprep.subr.bf16.mxu0 0
    %2885 = vmatpush1.bf16.msra.mxu0 %v2866
    %2886 = vmatprep.subr.bf16.mxu0 0
    %2887 = vmatpush1.bf16.msra.mxu0 %v2867
    %2888 = vmatprep.subr.bf16.mxu0 0
    %2889 = vmatpush1.bf16.msra.mxu0 %v2868
    %2890 = vmatprep.subr.bf16.mxu0 0
    %2891 = vmatpush1.bf16.msra.mxu0 %v2869
    %2892 = vmatprep.subr.bf16.mxu0 0
    %2893 = vmatpush1.bf16.msra.mxu0 %v2870
    %2894 = vmatprep.subr.bf16.mxu0 0
    %2895 = vmatpush1.bf16.msra.mxu0 %v2871
    %2896 = vmatprep.subr.bf16.mxu0 0
    %2897 = vmatpush1.bf16.msra.mxu0 0
    %2898 = vmatprep.subr.bf16.mxu0 0
    %2899 = vmatpush1.bf16.msra.mxu0 0
    %2900 = vmatprep.subr.bf16.mxu0 0
    %2901 = vmatpush1.bf16.msra.mxu0 0
    %2902 = vmatprep.subr.bf16.mxu0 0
    %2903 = vmatpush1.bf16.msra.mxu0 0
    %2904 = vmatprep.subr.bf16.mxu0 0
    %2905 = vmatpush1.bf16.msra.mxu0 0
    %2906 = vmatprep.subr.bf16.mxu0 0
    %2907 = vmatpush1.bf16.msra.mxu0 0
    %2908 = vmatprep.subr.bf16.mxu0 0
    %2909 = vmatpush1.bf16.msra.mxu0 0
    %2910 = vmatprep.subr.bf16.mxu0 0
    %2911 = vmatpush1.bf16.msra.mxu0 0
    %2912 = vmatprep.mubr.bf16.mxu0 0
    %2913 = vmatmul.mubr.bf16.gmra.mrb[0].mxu0 %v2784
    %v2914 = vpop.f32.mrb[0].mxu0
    %v2915 = vadd.f32 0.0, %v2914
    %v2916 = vpop.f32.mrb[0].mxu0
    %v2917 = vpop.f32.mrb[0].mxu0
    %v2918 = vadd.f32 0.0, %v2917
    %v2919 = vpop.f32.mrb[0].mxu0
    %2920 = vmatprep.mubr.bf16.mxu0 0
    %2921 = vmatmul.mubr.bf16.gmra.mrb[0].mxu0 %v2785
    %v2922 = vpop.f32.mrb[0].mxu0
    %v2923 = vadd.f32 0.0, %v2922
    %v2924 = vpop.f32.mrb[0].mxu0
    %v2925 = vpop.f32.mrb[0].mxu0
    %v2926 = vadd.f32 0.0, %v2925
    %v2927 = vpop.f32.mrb[0].mxu0
    %2928 = vmatprep.mubr.bf16.mxu0 0
    %2929 = vmatmul.mubr.bf16.gmra.mrb[0].mxu0 %v2786
    %v2930 = vpop.f32.mrb[0].mxu0
    %v2931 = vadd.f32 0.0, %v2930
    %v2932 = vpop.f32.mrb[0].mxu0
    %v2933 = vpop.f32.mrb[0].mxu0
    %v2934 = vadd.f32 0.0, %v2933
    %v2935 = vpop.f32.mrb[0].mxu0
    %2936 = vmatprep.mubr.bf16.mxu0 0
    %2937 = vmatmul.mubr.bf16.gmra.mrb[0].mxu0 %v2787
    %v2938 = vpop.f32.mrb[0].mxu0
    %v2939 = vadd.f32 0.0, %v2938
    %v2940 = vpop.f32.mrb[0].mxu0
    %v2941 = vpop.f32.mrb[0].mxu0
    %v2942 = vadd.f32 0.0, %v2941
    %v2943 = vpop.f32.mrb[0].mxu0
    %2944 = vmatprep.mubr.bf16.mxu0 0
    %2945 = vmatmul.mubr.bf16.gmra.mrb[0].mxu0 %v2788
    %v2946 = vpop.f32.mrb[0].mxu0
    %v2947 = vadd.f32 0.0, %v2946
    %v2948 = vpop.f32.mrb[0].mxu0
    %v2949 = vpop.f32.mrb[0].mxu0
    %v2950 = vadd.f32 0.0, %v2949
    %v2951 = vpop.f32.mrb[0].mxu0
    %2952 = vmatprep.mubr.bf16.mxu0 0
    %2953 = vmatmul.mubr.bf16.gmra.mrb[0].mxu0 %v2789
    %v2954 = vpop.f32.mrb[0].mxu0
    %v2955 = vadd.f32 0.0, %v2954
    %v2956 = vpop.f32.mrb[0].mxu0
    %v2957 = vpop.f32.mrb[0].mxu0
    %v2958 = vadd.f32 0.0, %v2957
    %v2959 = vpop.f32.mrb[0].mxu0
    %2960 = vmatprep.mubr.bf16.mxu0 0
    %2961 = vmatmul.mubr.bf16.gmra.mrb[0].mxu0 %v2790
    %v2962 = vpop.f32.mrb[0].mxu0
    %v2963 = vadd.f32 0.0, %v2962
    %v2964 = vpop.f32.mrb[0].mxu0
    %v2965 = vpop.f32.mrb[0].mxu0
    %v2966 = vadd.f32 0.0, %v2965
    %v2967 = vpop.f32.mrb[0].mxu0
    %2968 = vmatprep.mubr.bf16.mxu0 0
    %2969 = vmatmul.mubr.bf16.gmra.mrb[0].mxu0 %v2791
    %v2970 = vpop.f32.mrb[0].mxu0
    %v2971 = vadd.f32 0.0, %v2970
    %v2972 = vpop.f32.mrb[0].mxu0
    %v2973 = vpop.f32.mrb[0].mxu0
    %v2974 = vadd.f32 0.0, %v2973
    %v2975 = vpop.f32.mrb[0].mxu0
    %2976 = vmatprep.mubr.bf16.mxu0 0
    %2977 = vmatmul.mubr.bf16.gmra.mrb[0].mxu0 %v2792
    %v2978 = vpop.f32.mrb[0].mxu0
    %v2979 = vadd.f32 0.0, %v2978
    %v2980 = vpop.f32.mrb[0].mxu0
    %v2981 = vpop.f32.mrb[0].mxu0
    %v2982 = vadd.f32 0.0, %v2981
    %v2983 = vpop.f32.mrb[0].mxu0
    %2984 = vmatprep.mubr.bf16.mxu0 0
    %2985 = vmatmul.mubr.bf16.gmra.mrb[0].mxu0 %v2793
    %v2986 = vpop.f32.mrb[0].mxu0
    %v2987 = vadd.f32 0.0, %v2986
    %v2988 = vpop.f32.mrb[0].mxu0
    %v2989 = vpop.f32.mrb[0].mxu0
    %v2990 = vadd.f32 0.0, %v2989
    %v2991 = vpop.f32.mrb[0].mxu0
    %2992 = vmatprep.mubr.bf16.mxu0 0
    %2993 = vmatmul.mubr.bf16.gmra.mrb[0].mxu0 %v2794
    %v2994 = vpop.f32.mrb[0].mxu0
    %v2995 = vadd.f32 0.0, %v2994
    %v2996 = vpop.f32.mrb[0].mxu0
    %v2997 = vpop.f32.mrb[0].mxu0
    %v2998 = vadd.f32 0.0, %v2997
    %v2999 = vpop.f32.mrb[0].mxu0
    %3000 = vmatprep.mubr.bf16.mxu0 0
    %3001 = vmatmul.mubr.bf16.gmra.mrb[0].mxu0 %v2795
    %v3002 = vpop.f32.mrb[0].mxu0
    %v3003 = vadd.f32 0.0, %v3002
    %v3004 = vpop.f32.mrb[0].mxu0
    %v3005 = vpop.f32.mrb[0].mxu0
    %v3006 = vadd.f32 0.0, %v3005
    %v3007 = vpop.f32.mrb[0].mxu0
    %3008 = vmatprep.mubr.bf16.mxu0 0
    %3009 = vmatmul.mubr.bf16.gmra.mrb[0].mxu0 %v2796
    %v3010 = vpop.f32.mrb[0].mxu0
    %v3011 = vadd.f32 0.0, %v3010
    %v3012 = vpop.f32.mrb[0].mxu0
    %v3013 = vpop.f32.mrb[0].mxu0
    %v3014 = vadd.f32 0.0, %v3013
    %v3015 = vpop.f32.mrb[0].mxu0
    %3016 = vmatprep.mubr.bf16.mxu0 0
    %3017 = vmatmul.mubr.bf16.gmra.mrb[0].mxu0 %v2797
    %v3018 = vpop.f32.mrb[0].mxu0
    %v3019 = vadd.f32 0.0, %v3018
    %v3020 = vpop.f32.mrb[0].mxu0
    %v3021 = vpop.f32.mrb[0].mxu0
    %v3022 = vadd.f32 0.0, %v3021
    %v3023 = vpop.f32.mrb[0].mxu0
    %3024 = vmatprep.mubr.bf16.mxu0 0
    %3025 = vmatmul.mubr.bf16.gmra.mrb[0].mxu0 %v2798
    %v3026 = vpop.f32.mrb[0].mxu0
    %v3027 = vadd.f32 0.0, %v3026
    %v3028 = vpop.f32.mrb[0].mxu0
    %v3029 = vpop.f32.mrb[0].mxu0
    %v3030 = vadd.f32 0.0, %v3029
    %v3031 = vpop.f32.mrb[0].mxu0
    %3032 = vmatprep.mubr.bf16.mxu0 0
    %3033 = vmatmul.mubr.bf16.gmra.mrb[0].mxu0 %v2799
    %v3034 = vpop.f32.mrb[0].mxu0
    %v3035 = vadd.f32 0.0, %v3034
    %v3036 = vpop.f32.mrb[0].mxu0
    %v3037 = vpop.f32.mrb[0].mxu0
    %v3038 = vadd.f32 0.0, %v3037
    %v3039 = vpop.f32.mrb[0].mxu0
    %3040 = vmatprep.mubr.bf16.mxu0 0
    %3041 = vmatmul.mubr.bf16.gmra.mrb[0].mxu0 %v2800
    %v3042 = vpop.f32.mrb[0].mxu0
    %v3043 = vadd.f32 0.0, %v3042
    %v3044 = vpop.f32.mrb[0].mxu0
    %v3045 = vpop.f32.mrb[0].mxu0
    %v3046 = vadd.f32 0.0, %v3045
    %v3047 = vpop.f32.mrb[0].mxu0
    %3048 = vmatprep.mubr.bf16.mxu0 0
    %3049 = vmatmul.mubr.bf16.gmra.mrb[0].mxu0 %v2801
    %v3050 = vpop.f32.mrb[0].mxu0
    %v3051 = vadd.f32 0.0, %v3050
    %v3052 = vpop.f32.mrb[0].mxu0
    %v3053 = vpop.f32.mrb[0].mxu0
    %v3054 = vadd.f32 0.0, %v3053
    %v3055 = vpop.f32.mrb[0].mxu0
    %3056 = vmatprep.mubr.bf16.mxu0 0
    %3057 = vmatmul.mubr.bf16.gmra.mrb[0].mxu0 %v2802
    %v3058 = vpop.f32.mrb[0].mxu0
    %v3059 = vadd.f32 0.0, %v3058
    %v3060 = vpop.f32.mrb[0].mxu0
    %v3061 = vpop.f32.mrb[0].mxu0
    %v3062 = vadd.f32 0.0, %v3061
    %v3063 = vpop.f32.mrb[0].mxu0
    %3064 = vmatprep.mubr.bf16.mxu0 0
    %3065 = vmatmul.mubr.bf16.gmra.mrb[0].mxu0 %v2803
    %v3066 = vpop.f32.mrb[0].mxu0
    %v3067 = vadd.f32 0.0, %v3066
    %v3068 = vpop.f32.mrb[0].mxu0
    %v3069 = vpop.f32.mrb[0].mxu0
    %v3070 = vadd.f32 0.0, %v3069
    %v3071 = vpop.f32.mrb[0].mxu0
    %3072 = vmatprep.mubr.bf16.mxu0 0
    %3073 = vmatmul.mubr.bf16.gmra.mrb[0].mxu0 %v2804
    %v3074 = vpop.f32.mrb[0].mxu0
    %v3075 = vadd.f32 0.0, %v3074
    %v3076 = vpop.f32.mrb[0].mxu0
    %v3077 = vpop.f32.mrb[0].mxu0
    %v3078 = vadd.f32 0.0, %v3077
    %v3079 = vpop.f32.mrb[0].mxu0
    %3080 = vmatprep.mubr.bf16.mxu0 0
    %3081 = vmatmul.mubr.bf16.gmra.mrb[0].mxu0 %v2805
    %v3082 = vpop.f32.mrb[0].mxu0
    %v3083 = vadd.f32 0.0, %v3082
    %v3084 = vpop.f32.mrb[0].mxu0
    %v3085 = vpop.f32.mrb[0].mxu0
    %v3086 = vadd.f32 0.0, %v3085
    %v3087 = vpop.f32.mrb[0].mxu0
    %3088 = vmatprep.mubr.bf16.mxu0 0
    %3089 = vmatmul.mubr.bf16.gmra.mrb[0].mxu0 %v2806
    %v3090 = vpop.f32.mrb[0].mxu0
    %v3091 = vadd.f32 0.0, %v3090
    %v3092 = vpop.f32.mrb[0].mxu0
    %v3093 = vpop.f32.mrb[0].mxu0
    %v3094 = vadd.f32 0.0, %v3093
    %v3095 = vpop.f32.mrb[0].mxu0
    %3096 = vmatprep.mubr.bf16.mxu0 0
    %3097 = vmatmul.mubr.bf16.gmra.mrb[0].mxu0 %v2807
    %v3098 = vpop.f32.mrb[0].mxu0
    %v3099 = vadd.f32 0.0, %v3098
    %v3100 = vpop.f32.mrb[0].mxu0
    %v3101 = vpop.f32.mrb[0].mxu0
    %v3102 = vadd.f32 0.0, %v3101
    %v3103 = vpop.f32.mrb[0].mxu0
    %3104 = vmatprep.mubr.bf16.mxu0 0
    %3105 = vmatmul.mubr.bf16.gmra.mrb[0].mxu0 %v2808
    %v3106 = vpop.f32.mrb[0].mxu0
    %v3107 = vadd.f32 0.0, %v3106
    %v3108 = vpop.f32.mrb[0].mxu0
    %v3109 = vpop.f32.mrb[0].mxu0
    %v3110 = vadd.f32 0.0, %v3109
    %v3111 = vpop.f32.mrb[0].mxu0
    %3112 = vmatprep.mubr.bf16.mxu0 0
    %3113 = vmatmul.mubr.bf16.gmra.mrb[0].mxu0 %v2809
    %v3114 = vpop.f32.mrb[0].mxu0
    %v3115 = vadd.f32 0.0, %v3114
    %v3116 = vpop.f32.mrb[0].mxu0
    %v3117 = vpop.f32.mrb[0].mxu0
    %v3118 = vadd.f32 0.0, %v3117
    %v3119 = vpop.f32.mrb[0].mxu0
    %3120 = vmatprep.mubr.bf16.mxu0 0
    %3121 = vmatmul.mubr.bf16.gmra.mrb[0].mxu0 %v2810
    %v3122 = vpop.f32.mrb[0].mxu0
    %v3123 = vadd.f32 0.0, %v3122
    %v3124 = vpop.f32.mrb[0].mxu0
    %v3125 = vpop.f32.mrb[0].mxu0
    %v3126 = vadd.f32 0.0, %v3125
    %v3127 = vpop.f32.mrb[0].mxu0
    %3128 = vmatprep.mubr.bf16.mxu0 0
    %3129 = vmatmul.mubr.bf16.gmra.mrb[0].mxu0 %v2811
    %v3130 = vpop.f32.mrb[0].mxu0
    %v3131 = vadd.f32 0.0, %v3130
    %v3132 = vpop.f32.mrb[0].mxu0
    %v3133 = vpop.f32.mrb[0].mxu0
    %v3134 = vadd.f32 0.0, %v3133
    %v3135 = vpop.f32.mrb[0].mxu0
    %3136 = vmatprep.mubr.bf16.mxu0 0
    %3137 = vmatmul.mubr.bf16.gmra.mrb[0].mxu0 %v2812
    %v3138 = vpop.f32.mrb[0].mxu0
    %v3139 = vadd.f32 0.0, %v3138
    %v3140 = vpop.f32.mrb[0].mxu0
    %v3141 = vpop.f32.mrb[0].mxu0
    %v3142 = vadd.f32 0.0, %v3141
    %v3143 = vpop.f32.mrb[0].mxu0
    %3144 = vmatprep.mubr.bf16.mxu0 0
    %3145 = vmatmul.mubr.bf16.gmra.mrb[0].mxu0 %v2813
    %v3146 = vpop.f32.mrb[0].mxu0
    %v3147 = vadd.f32 0.0, %v3146
    %v3148 = vpop.f32.mrb[0].mxu0
    %v3149 = vpop.f32.mrb[0].mxu0
    %v3150 = vadd.f32 0.0, %v3149
    %v3151 = vpop.f32.mrb[0].mxu0
    %3152 = vmatprep.mubr.bf16.mxu0 0
    %3153 = vmatmul.mubr.bf16.gmra.mrb[0].mxu0 %v2814
    %v3154 = vpop.f32.mrb[0].mxu0
    %v3155 = vadd.f32 0.0, %v3154
    %v3156 = vpop.f32.mrb[0].mxu0
    %v3157 = vpop.f32.mrb[0].mxu0
    %v3158 = vadd.f32 0.0, %v3157
    %v3159 = vpop.f32.mrb[0].mxu0
    %3160 = vmatprep.mubr.bf16.mxu0 0
    %3161 = vmatmul.mubr.bf16.gmra.mrb[0].mxu0 %v2815
    %v3162 = vpop.f32.mrb[0].mxu0
    %v3163 = vadd.f32 0.0, %v3162
    %v3164 = vpop.f32.mrb[0].mxu0
    %v3165 = vpop.f32.mrb[0].mxu0
    %v3166 = vadd.f32 0.0, %v3165
    %v3167 = vpop.f32.mrb[0].mxu0
    %3168 = vdwg.mxu0
    %v3169 = vadd.f32 %v2656, %v2915
    %v3170 = vadd.f32 %v2657, %v2918
    %v3171 = vadd.f32 %v2658, %v2923
    %v3172 = vadd.f32 %v2659, %v2926
    %v3173 = vadd.f32 %v2660, %v2931
    %v3174 = vadd.f32 %v2661, %v2934
    %v3175 = vadd.f32 %v2662, %v2939
    %v3176 = vadd.f32 %v2663, %v2942
    %v3177 = vadd.f32 %v2664, %v2947
    %v3178 = vadd.f32 %v2665, %v2950
    %v3179 = vadd.f32 %v2666, %v2955
    %v3180 = vadd.f32 %v2667, %v2958
    %v3181 = vadd.f32 %v2668, %v2963
    %v3182 = vadd.f32 %v2669, %v2966
    %v3183 = vadd.f32 %v2670, %v2971
    %v3184 = vadd.f32 %v2671, %v2974
    %v3185 = vadd.f32 %v2672, %v2979
    %v3186 = vadd.f32 %v2673, %v2982
    %v3187 = vadd.f32 %v2674, %v2987
    %v3188 = vadd.f32 %v2675, %v2990
    %v3189 = vadd.f32 %v2676, %v2995
    %v3190 = vadd.f32 %v2677, %v2998
    %v3191 = vadd.f32 %v2678, %v3003
    %v3192 = vadd.f32 %v2679, %v3006
    %v3193 = vadd.f32 %v2680, %v3011
    %v3194 = vadd.f32 %v2681, %v3014
    %v3195 = vadd.f32 %v2682, %v3019
    %v3196 = vadd.f32 %v2683, %v3022
    %v3197 = vadd.f32 %v2684, %v3027
    %v3198 = vadd.f32 %v2685, %v3030
    %v3199 = vadd.f32 %v2686, %v3035
    %v3200 = vadd.f32 %v2687, %v3038
    %v3201 = vadd.f32 %v2688, %v3043
    %v3202 = vadd.f32 %v2689, %v3046
    %v3203 = vadd.f32 %v2690, %v3051
    %v3204 = vadd.f32 %v2691, %v3054
    %v3205 = vadd.f32 %v2692, %v3059
    %v3206 = vadd.f32 %v2693, %v3062
    %v3207 = vadd.f32 %v2694, %v3067
    %v3208 = vadd.f32 %v2695, %v3070
    %v3209 = vadd.f32 %v2696, %v3075
    %v3210 = vadd.f32 %v2697, %v3078
    %v3211 = vadd.f32 %v2698, %v3083
    %v3212 = vadd.f32 %v2699, %v3086
    %v3213 = vadd.f32 %v2700, %v3091
    %v3214 = vadd.f32 %v2701, %v3094
    %v3215 = vadd.f32 %v2702, %v3099
    %v3216 = vadd.f32 %v2703, %v3102
    %v3217 = vadd.f32 %v2704, %v3107
    %v3218 = vadd.f32 %v2705, %v3110
    %v3219 = vadd.f32 %v2706, %v3115
    %v3220 = vadd.f32 %v2707, %v3118
    %v3221 = vadd.f32 %v2708, %v3123
    %v3222 = vadd.f32 %v2709, %v3126
    %v3223 = vadd.f32 %v2710, %v3131
    %v3224 = vadd.f32 %v2711, %v3134
    %v3225 = vadd.f32 %v2712, %v3139
    %v3226 = vadd.f32 %v2713, %v3142
    %v3227 = vadd.f32 %v2714, %v3147
    %v3228 = vadd.f32 %v2715, %v3150
    %v3229 = vadd.f32 %v2716, %v3155
    %v3230 = vadd.f32 %v2717, %v3158
    %v3231 = vadd.f32 %v2718, %v3163
    %v3232 = vadd.f32 %v2719, %v3166
    %s3233 = scalar_lea.vmem [#allocation2], 48
    %v3234 = vld [vmem:[%s3233] sm:$0xff]
    %v3235 = vld [vmem:[%s3233 + $0x8] sm:$0xff]
    %v3236 = vld [vmem:[%s3233 + $0x18] sm:$0xff]
    %v3237 = vld [vmem:[%s3233 + $0x20] sm:$0xff]
    %v3238 = vld [vmem:[%s3233 + $0x30] sm:$0xff]
    %v3239 = vld [vmem:[%s3233 + $0x38] sm:$0xff]
    %v3240 = vld [vmem:[%s3233 + $0x48] sm:$0xff]
    %v3241 = vld [vmem:[%s3233 + $0x50] sm:$0xff]
    %v3242 = vld [vmem:[%s3233 + $0x60] sm:$0xff]
    %v3243 = vld [vmem:[%s3233 + $0x68] sm:$0xff]
    %v3244 = vld [vmem:[%s3233 + $0x78] sm:$0xff]
    %v3245 = vld [vmem:[%s3233 + $0x80] sm:$0xff]
    %v3246 = vld [vmem:[%s3233 + $0x90] sm:$0xff]
    %v3247 = vld [vmem:[%s3233 + $0x98] sm:$0xff]
    %v3248 = vld [vmem:[%s3233 + $0xa8] sm:$0xff]
    %v3249 = vld [vmem:[%s3233 + $0xb0] sm:$0xff]
    %v3250 = vld [vmem:[%s3233 + $0xc0] sm:$0xff]
    %v3251 = vld [vmem:[%s3233 + $0xc8] sm:$0xff]
    %v3252 = vld [vmem:[%s3233 + $0xd8] sm:$0xff]
    %v3253 = vld [vmem:[%s3233 + $0xe0] sm:$0xff]
    %v3254 = vld [vmem:[%s3233 + $0xf0] sm:$0xff]
    %v3255 = vld [vmem:[%s3233 + $0xf8] sm:$0xff]
    %v3256 = vld [vmem:[%s3233 + $0x108] sm:$0xff]
    %v3257 = vld [vmem:[%s3233 + $0x110] sm:$0xff]
    %v3258 = vld [vmem:[%s3233 + $0x120] sm:$0xff]
    %v3259 = vld [vmem:[%s3233 + $0x128] sm:$0xff]
    %v3260 = vld [vmem:[%s3233 + $0x138] sm:$0xff]
    %v3261 = vld [vmem:[%s3233 + $0x140] sm:$0xff]
    %v3262 = vld [vmem:[%s3233 + $0x150] sm:$0xff]
    %v3263 = vld [vmem:[%s3233 + $0x158] sm:$0xff]
    %v3264 = vld [vmem:[%s3233 + $0x168] sm:$0xff]
    %v3265 = vld [vmem:[%s3233 + $0x170] sm:$0xff]
    %v3266 = vld [vmem:[%s3233 + $0x1b0] sm:$0xff]
    %v3267 = vld [vmem:[%s3233 + $0x1b8] sm:$0xff]
    %v3268 = vld [vmem:[%s3233 + $0x1c8] sm:$0xff]
    %v3269 = vld [vmem:[%s3233 + $0x1d0] sm:$0xff]
    %v3270 = vld [vmem:[%s3233 + $0x1e0] sm:$0xff]
    %v3271 = vld [vmem:[%s3233 + $0x1e8] sm:$0xff]
    %v3272 = vld [vmem:[%s3233 + $0x1f8] sm:$0xff]
    %v3273 = vld [vmem:[%s3233 + $0x200] sm:$0xff]
    %v3274 = vld [vmem:[%s3233 + $0x210] sm:$0xff]
    %v3275 = vld [vmem:[%s3233 + $0x218] sm:$0xff]
    %v3276 = vld [vmem:[%s3233 + $0x228] sm:$0xff]
    %v3277 = vld [vmem:[%s3233 + $0x230] sm:$0xff]
    %v3278 = vld [vmem:[%s3233 + $0x240] sm:$0xff]
    %v3279 = vld [vmem:[%s3233 + $0x248] sm:$0xff]
    %v3280 = vld [vmem:[%s3233 + $0x258] sm:$0xff]
    %v3281 = vld [vmem:[%s3233 + $0x260] sm:$0xff]
    %v3282 = vld [vmem:[%s3233 + $0x270] sm:$0xff]
    %v3283 = vld [vmem:[%s3233 + $0x278] sm:$0xff]
    %v3284 = vld [vmem:[%s3233 + $0x288] sm:$0xff]
    %v3285 = vld [vmem:[%s3233 + $0x290] sm:$0xff]
    %v3286 = vld [vmem:[%s3233 + $0x2a0] sm:$0xff]
    %v3287 = vld [vmem:[%s3233 + $0x2a8] sm:$0xff]
    %v3288 = vld [vmem:[%s3233 + $0x2b8] sm:$0xff]
    %v3289 = vld [vmem:[%s3233 + $0x2c0] sm:$0xff]
    %v3290 = vld [vmem:[%s3233 + $0x2d0] sm:$0xff]
    %v3291 = vld [vmem:[%s3233 + $0x2d8] sm:$0xff]
    %v3292 = vld [vmem:[%s3233 + $0x2e8] sm:$0xff]
    %v3293 = vld [vmem:[%s3233 + $0x2f0] sm:$0xff]
    %v3294 = vld [vmem:[%s3233 + $0x300] sm:$0xff]
    %v3295 = vld [vmem:[%s3233 + $0x308] sm:$0xff]
    %v3296 = vld [vmem:[%s3233 + $0x318] sm:$0xff]
    %v3297 = vld [vmem:[%s3233 + $0x320] sm:$0xff]
    %v3298 = vpack.c.bf16 %v3235, %v3234
    %v3299 = vpack.c.bf16 %v3237, %v3236
    %v3300 = vpack.c.bf16 %v3239, %v3238
    %v3301 = vpack.c.bf16 %v3241, %v3240
    %v3302 = vpack.c.bf16 %v3243, %v3242
    %v3303 = vpack.c.bf16 %v3245, %v3244
    %v3304 = vpack.c.bf16 %v3247, %v3246
    %v3305 = vpack.c.bf16 %v3249, %v3248
    %v3306 = vpack.c.bf16 %v3251, %v3250
    %v3307 = vpack.c.bf16 %v3253, %v3252
    %v3308 = vpack.c.bf16 %v3255, %v3254
    %v3309 = vpack.c.bf16 %v3257, %v3256
    %v3310 = vpack.c.bf16 %v3259, %v3258
    %v3311 = vpack.c.bf16 %v3261, %v3260
    %v3312 = vpack.c.bf16 %v3263, %v3262
    %v3313 = vpack.c.bf16 %v3265, %v3264
    %v3314 = vpack.c.bf16 %v3267, %v3266
    %v3315 = vpack.c.bf16 %v3269, %v3268
    %v3316 = vpack.c.bf16 %v3271, %v3270
    %v3317 = vpack.c.bf16 %v3273, %v3272
    %v3318 = vpack.c.bf16 %v3275, %v3274
    %v3319 = vpack.c.bf16 %v3277, %v3276
    %v3320 = vpack.c.bf16 %v3279, %v3278
    %v3321 = vpack.c.bf16 %v3281, %v3280
    %v3322 = vpack.c.bf16 %v3283, %v3282
    %v3323 = vpack.c.bf16 %v3285, %v3284
    %v3324 = vpack.c.bf16 %v3287, %v3286
    %v3325 = vpack.c.bf16 %v3289, %v3288
    %v3326 = vpack.c.bf16 %v3291, %v3290
    %v3327 = vpack.c.bf16 %v3293, %v3292
    %v3328 = vpack.c.bf16 %v3295, %v3294
    %v3329 = vpack.c.bf16 %v3297, %v3296
    %v3330 = vld [vmem:[#allocation6 + $0x180] sm:$0xf]
    %v3331 = vld [vmem:[#allocation6 + $0x184] sm:$0xf]
    %v3332 = vld [vmem:[#allocation6 + $0x188] sm:$0xf]
    %v3333 = vld [vmem:[#allocation6 + $0x18c] sm:$0xf]
    %v3334 = vld [vmem:[#allocation6 + $0x190] sm:$0xf]
    %v3335 = vld [vmem:[#allocation6 + $0x194] sm:$0xf]
    %v3336 = vld [vmem:[#allocation6 + $0x198] sm:$0xf]
    %v3337 = vld [vmem:[#allocation6 + $0x19c] sm:$0xf]
    %v3338 = vld [vmem:[#allocation6 + $0x1a0] sm:$0xf]
    %v3339 = vld [vmem:[#allocation6 + $0x1a4] sm:$0xf]
    %v3340 = vld [vmem:[#allocation6 + $0x1a8] sm:$0xf]
    %v3341 = vld [vmem:[#allocation6 + $0x1ac] sm:$0xf]
    %v3342 = vld [vmem:[#allocation6 + $0x1b0] sm:$0xf]
    %v3343 = vld [vmem:[#allocation6 + $0x1b4] sm:$0xf]
    %v3344 = vld [vmem:[#allocation6 + $0x1b8] sm:$0xf]
    %v3345 = vld [vmem:[#allocation6 + $0x1bc] sm:$0xf]
    %v3362 = vunpack.c.l.b16 %v3330
    %v3363 = vunpack.c.l.b16 %v3331
    %v3364 = vunpack.c.l.b16 %v3332
    %v3365 = vunpack.c.l.b16 %v3333
    %v3366 = vunpack.c.l.b16 %v3334
    %v3367 = vunpack.c.l.b16 %v3335
    %v3368 = vunpack.c.l.b16 %v3336
    %v3369 = vunpack.c.l.b16 %v3337
    %v3370 = vunpack.c.l.b16 %v3338
    %v3371 = vunpack.c.l.b16 %v3339
    %v3372 = vunpack.c.l.b16 %v3340
    %v3373 = vunpack.c.l.b16 %v3341
    %v3374 = vunpack.c.l.b16 %v3342
    %v3375 = vunpack.c.l.b16 %v3343
    %v3376 = vunpack.c.l.b16 %v3344
    %v3377 = vunpack.c.l.b16 %v3345
    %v3378 = vpack.c.b16 %v3363, %v3362
    %v3379 = vpack.c.b16 %v3365, %v3364
    %v3380 = vpack.c.b16 %v3367, %v3366
    %v3381 = vpack.c.b16 %v3369, %v3368
    %v3382 = vpack.c.b16 %v3371, %v3370
    %v3383 = vpack.c.b16 %v3373, %v3372
    %v3384 = vpack.c.b16 %v3375, %v3374
    %v3385 = vpack.c.b16 %v3377, %v3376
    %3394 = vmatprep.subr.bf16.mxu0 0
    %3395 = vmatpush1.bf16.msra.mxu0 %v3378
    %3396 = vmatprep.subr.bf16.mxu0 0
    %3397 = vmatpush1.bf16.msra.mxu0 %v3379
    %3398 = vmatprep.subr.bf16.mxu0 0
    %3399 = vmatpush1.bf16.msra.mxu0 %v3380
    %3400 = vmatprep.subr.bf16.mxu0 0
    %3401 = vmatpush1.bf16.msra.mxu0 %v3381
    %3402 = vmatprep.subr.bf16.mxu0 0
    %3403 = vmatpush1.bf16.msra.mxu0 %v3382
    %3404 = vmatprep.subr.bf16.mxu0 0
    %3405 = vmatpush1.bf16.msra.mxu0 %v3383
    %3406 = vmatprep.subr.bf16.mxu0 0
    %3407 = vmatpush1.bf16.msra.mxu0 %v3384
    %3408 = vmatprep.subr.bf16.mxu0 0
    %3409 = vmatpush1.bf16.msra.mxu0 %v3385
    %3410 = vmatprep.subr.bf16.mxu0 0
    %3411 = vmatpush1.bf16.msra.mxu0 0
    %3412 = vmatprep.subr.bf16.mxu0 0
    %3413 = vmatpush1.bf16.msra.mxu0 0
    %3414 = vmatprep.subr.bf16.mxu0 0
    %3415 = vmatpush1.bf16.msra.mxu0 0
    %3416 = vmatprep.subr.bf16.mxu0 0
    %3417 = vmatpush1.bf16.msra.mxu0 0
    %3418 = vmatprep.subr.bf16.mxu0 0
    %3419 = vmatpush1.bf16.msra.mxu0 0
    %3420 = vmatprep.subr.bf16.mxu0 0
    %3421 = vmatpush1.bf16.msra.mxu0 0
    %3422 = vmatprep.subr.bf16.mxu0 0
    %3423 = vmatpush1.bf16.msra.mxu0 0
    %3424 = vmatprep.subr.bf16.mxu0 0
    %3425 = vmatpush1.bf16.msra.mxu0 0
    %3426 = vmatprep.mubr.bf16.mxu0 0
    %3427 = vmatmul.mubr.bf16.gmra.mrb[0].mxu0 %v3298
    %v3428 = vpop.f32.mrb[0].mxu0
    %v3429 = vadd.f32 0.0, %v3428
    %v3430 = vpop.f32.mrb[0].mxu0
    %v3431 = vpop.f32.mrb[0].mxu0
    %v3432 = vadd.f32 0.0, %v3431
    %v3433 = vpop.f32.mrb[0].mxu0
    %3434 = vmatprep.mubr.bf16.mxu0 0
    %3435 = vmatmul.mubr.bf16.gmra.mrb[0].mxu0 %v3299
    %v3436 = vpop.f32.mrb[0].mxu0
    %v3437 = vadd.f32 0.0, %v3436
    %v3438 = vpop.f32.mrb[0].mxu0
    %v3439 = vpop.f32.mrb[0].mxu0
    %v3440 = vadd.f32 0.0, %v3439
    %v3441 = vpop.f32.mrb[0].mxu0
    %3442 = vmatprep.mubr.bf16.mxu0 0
    %3443 = vmatmul.mubr.bf16.gmra.mrb[0].mxu0 %v3300
    %v3444 = vpop.f32.mrb[0].mxu0
    %v3445 = vadd.f32 0.0, %v3444
    %v3446 = vpop.f32.mrb[0].mxu0
    %v3447 = vpop.f32.mrb[0].mxu0
    %v3448 = vadd.f32 0.0, %v3447
    %v3449 = vpop.f32.mrb[0].mxu0
    %3450 = vmatprep.mubr.bf16.mxu0 0
    %3451 = vmatmul.mubr.bf16.gmra.mrb[0].mxu0 %v3301
    %v3452 = vpop.f32.mrb[0].mxu0
    %v3453 = vadd.f32 0.0, %v3452
    %v3454 = vpop.f32.mrb[0].mxu0
    %v3455 = vpop.f32.mrb[0].mxu0
    %v3456 = vadd.f32 0.0, %v3455
    %v3457 = vpop.f32.mrb[0].mxu0
    %3458 = vmatprep.mubr.bf16.mxu0 0
    %3459 = vmatmul.mubr.bf16.gmra.mrb[0].mxu0 %v3302
    %v3460 = vpop.f32.mrb[0].mxu0
    %v3461 = vadd.f32 0.0, %v3460
    %v3462 = vpop.f32.mrb[0].mxu0
    %v3463 = vpop.f32.mrb[0].mxu0
    %v3464 = vadd.f32 0.0, %v3463
    %v3465 = vpop.f32.mrb[0].mxu0
    %3466 = vmatprep.mubr.bf16.mxu0 0
    %3467 = vmatmul.mubr.bf16.gmra.mrb[0].mxu0 %v3303
    %v3468 = vpop.f32.mrb[0].mxu0
    %v3469 = vadd.f32 0.0, %v3468
    %v3470 = vpop.f32.mrb[0].mxu0
    %v3471 = vpop.f32.mrb[0].mxu0
    %v3472 = vadd.f32 0.0, %v3471
    %v3473 = vpop.f32.mrb[0].mxu0
    %3474 = vmatprep.mubr.bf16.mxu0 0
    %3475 = vmatmul.mubr.bf16.gmra.mrb[0].mxu0 %v3304
    %v3476 = vpop.f32.mrb[0].mxu0
    %v3477 = vadd.f32 0.0, %v3476
    %v3478 = vpop.f32.mrb[0].mxu0
    %v3479 = vpop.f32.mrb[0].mxu0
    %v3480 = vadd.f32 0.0, %v3479
    %v3481 = vpop.f32.mrb[0].mxu0
    %3482 = vmatprep.mubr.bf16.mxu0 0
    %3483 = vmatmul.mubr.bf16.gmra.mrb[0].mxu0 %v3305
    %v3484 = vpop.f32.mrb[0].mxu0
    %v3485 = vadd.f32 0.0, %v3484
    %v3486 = vpop.f32.mrb[0].mxu0
    %v3487 = vpop.f32.mrb[0].mxu0
    %v3488 = vadd.f32 0.0, %v3487
    %v3489 = vpop.f32.mrb[0].mxu0
    %3490 = vmatprep.mubr.bf16.mxu0 0
    %3491 = vmatmul.mubr.bf16.gmra.mrb[0].mxu0 %v3306
    %v3492 = vpop.f32.mrb[0].mxu0
    %v3493 = vadd.f32 0.0, %v3492
    %v3494 = vpop.f32.mrb[0].mxu0
    %v3495 = vpop.f32.mrb[0].mxu0
    %v3496 = vadd.f32 0.0, %v3495
    %v3497 = vpop.f32.mrb[0].mxu0
    %3498 = vmatprep.mubr.bf16.mxu0 0
    %3499 = vmatmul.mubr.bf16.gmra.mrb[0].mxu0 %v3307
    %v3500 = vpop.f32.mrb[0].mxu0
    %v3501 = vadd.f32 0.0, %v3500
    %v3502 = vpop.f32.mrb[0].mxu0
    %v3503 = vpop.f32.mrb[0].mxu0
    %v3504 = vadd.f32 0.0, %v3503
    %v3505 = vpop.f32.mrb[0].mxu0
    %3506 = vmatprep.mubr.bf16.mxu0 0
    %3507 = vmatmul.mubr.bf16.gmra.mrb[0].mxu0 %v3308
    %v3508 = vpop.f32.mrb[0].mxu0
    %v3509 = vadd.f32 0.0, %v3508
    %v3510 = vpop.f32.mrb[0].mxu0
    %v3511 = vpop.f32.mrb[0].mxu0
    %v3512 = vadd.f32 0.0, %v3511
    %v3513 = vpop.f32.mrb[0].mxu0
    %3514 = vmatprep.mubr.bf16.mxu0 0
    %3515 = vmatmul.mubr.bf16.gmra.mrb[0].mxu0 %v3309
    %v3516 = vpop.f32.mrb[0].mxu0
    %v3517 = vadd.f32 0.0, %v3516
    %v3518 = vpop.f32.mrb[0].mxu0
    %v3519 = vpop.f32.mrb[0].mxu0
    %v3520 = vadd.f32 0.0, %v3519
    %v3521 = vpop.f32.mrb[0].mxu0
    %3522 = vmatprep.mubr.bf16.mxu0 0
    %3523 = vmatmul.mubr.bf16.gmra.mrb[0].mxu0 %v3310
    %v3524 = vpop.f32.mrb[0].mxu0
    %v3525 = vadd.f32 0.0, %v3524
    %v3526 = vpop.f32.mrb[0].mxu0
    %v3527 = vpop.f32.mrb[0].mxu0
    %v3528 = vadd.f32 0.0, %v3527
    %v3529 = vpop.f32.mrb[0].mxu0
    %3530 = vmatprep.mubr.bf16.mxu0 0
    %3531 = vmatmul.mubr.bf16.gmra.mrb[0].mxu0 %v3311
    %v3532 = vpop.f32.mrb[0].mxu0
    %v3533 = vadd.f32 0.0, %v3532
    %v3534 = vpop.f32.mrb[0].mxu0
    %v3535 = vpop.f32.mrb[0].mxu0
    %v3536 = vadd.f32 0.0, %v3535
    %v3537 = vpop.f32.mrb[0].mxu0
    %3538 = vmatprep.mubr.bf16.mxu0 0
    %3539 = vmatmul.mubr.bf16.gmra.mrb[0].mxu0 %v3312
    %v3540 = vpop.f32.mrb[0].mxu0
    %v3541 = vadd.f32 0.0, %v3540
    %v3542 = vpop.f32.mrb[0].mxu0
    %v3543 = vpop.f32.mrb[0].mxu0
    %v3544 = vadd.f32 0.0, %v3543
    %v3545 = vpop.f32.mrb[0].mxu0
    %3546 = vmatprep.mubr.bf16.mxu0 0
    %3547 = vmatmul.mubr.bf16.gmra.mrb[0].mxu0 %v3313
    %v3548 = vpop.f32.mrb[0].mxu0
    %v3549 = vadd.f32 0.0, %v3548
    %v3550 = vpop.f32.mrb[0].mxu0
    %v3551 = vpop.f32.mrb[0].mxu0
    %v3552 = vadd.f32 0.0, %v3551
    %v3553 = vpop.f32.mrb[0].mxu0
    %3554 = vmatprep.mubr.bf16.mxu0 0
    %3555 = vmatmul.mubr.bf16.gmra.mrb[0].mxu0 %v3314
    %v3556 = vpop.f32.mrb[0].mxu0
    %v3557 = vadd.f32 0.0, %v3556
    %v3558 = vpop.f32.mrb[0].mxu0
    %v3559 = vpop.f32.mrb[0].mxu0
    %v3560 = vadd.f32 0.0, %v3559
    %v3561 = vpop.f32.mrb[0].mxu0
    %3562 = vmatprep.mubr.bf16.mxu0 0
    %3563 = vmatmul.mubr.bf16.gmra.mrb[0].mxu0 %v3315
    %v3564 = vpop.f32.mrb[0].mxu0
    %v3565 = vadd.f32 0.0, %v3564
    %v3566 = vpop.f32.mrb[0].mxu0
    %v3567 = vpop.f32.mrb[0].mxu0
    %v3568 = vadd.f32 0.0, %v3567
    %v3569 = vpop.f32.mrb[0].mxu0
    %3570 = vmatprep.mubr.bf16.mxu0 0
    %3571 = vmatmul.mubr.bf16.gmra.mrb[0].mxu0 %v3316
    %v3572 = vpop.f32.mrb[0].mxu0
    %v3573 = vadd.f32 0.0, %v3572
    %v3574 = vpop.f32.mrb[0].mxu0
    %v3575 = vpop.f32.mrb[0].mxu0
    %v3576 = vadd.f32 0.0, %v3575
    %v3577 = vpop.f32.mrb[0].mxu0
    %3578 = vmatprep.mubr.bf16.mxu0 0
    %3579 = vmatmul.mubr.bf16.gmra.mrb[0].mxu0 %v3317
    %v3580 = vpop.f32.mrb[0].mxu0
    %v3581 = vadd.f32 0.0, %v3580
    %v3582 = vpop.f32.mrb[0].mxu0
    %v3583 = vpop.f32.mrb[0].mxu0
    %v3584 = vadd.f32 0.0, %v3583
    %v3585 = vpop.f32.mrb[0].mxu0
    %3586 = vmatprep.mubr.bf16.mxu0 0
    %3587 = vmatmul.mubr.bf16.gmra.mrb[0].mxu0 %v3318
    %v3588 = vpop.f32.mrb[0].mxu0
    %v3589 = vadd.f32 0.0, %v3588
    %v3590 = vpop.f32.mrb[0].mxu0
    %v3591 = vpop.f32.mrb[0].mxu0
    %v3592 = vadd.f32 0.0, %v3591
    %v3593 = vpop.f32.mrb[0].mxu0
    %3594 = vmatprep.mubr.bf16.mxu0 0
    %3595 = vmatmul.mubr.bf16.gmra.mrb[0].mxu0 %v3319
    %v3596 = vpop.f32.mrb[0].mxu0
    %v3597 = vadd.f32 0.0, %v3596
    %v3598 = vpop.f32.mrb[0].mxu0
    %v3599 = vpop.f32.mrb[0].mxu0
    %v3600 = vadd.f32 0.0, %v3599
    %v3601 = vpop.f32.mrb[0].mxu0
    %3602 = vmatprep.mubr.bf16.mxu0 0
    %3603 = vmatmul.mubr.bf16.gmra.mrb[0].mxu0 %v3320
    %v3604 = vpop.f32.mrb[0].mxu0
    %v3605 = vadd.f32 0.0, %v3604
    %v3606 = vpop.f32.mrb[0].mxu0
    %v3607 = vpop.f32.mrb[0].mxu0
    %v3608 = vadd.f32 0.0, %v3607
    %v3609 = vpop.f32.mrb[0].mxu0
    %3610 = vmatprep.mubr.bf16.mxu0 0
    %3611 = vmatmul.mubr.bf16.gmra.mrb[0].mxu0 %v3321
    %v3612 = vpop.f32.mrb[0].mxu0
    %v3613 = vadd.f32 0.0, %v3612
    %v3614 = vpop.f32.mrb[0].mxu0
    %v3615 = vpop.f32.mrb[0].mxu0
    %v3616 = vadd.f32 0.0, %v3615
    %v3617 = vpop.f32.mrb[0].mxu0
    %3618 = vmatprep.mubr.bf16.mxu0 0
    %3619 = vmatmul.mubr.bf16.gmra.mrb[0].mxu0 %v3322
    %v3620 = vpop.f32.mrb[0].mxu0
    %v3621 = vadd.f32 0.0, %v3620
    %v3622 = vpop.f32.mrb[0].mxu0
    %v3623 = vpop.f32.mrb[0].mxu0
    %v3624 = vadd.f32 0.0, %v3623
    %v3625 = vpop.f32.mrb[0].mxu0
    %3626 = vmatprep.mubr.bf16.mxu0 0
    %3627 = vmatmul.mubr.bf16.gmra.mrb[0].mxu0 %v3323
    %v3628 = vpop.f32.mrb[0].mxu0
    %v3629 = vadd.f32 0.0, %v3628
    %v3630 = vpop.f32.mrb[0].mxu0
    %v3631 = vpop.f32.mrb[0].mxu0
    %v3632 = vadd.f32 0.0, %v3631
    %v3633 = vpop.f32.mrb[0].mxu0
    %3634 = vmatprep.mubr.bf16.mxu0 0
    %3635 = vmatmul.mubr.bf16.gmra.mrb[0].mxu0 %v3324
    %v3636 = vpop.f32.mrb[0].mxu0
    %v3637 = vadd.f32 0.0, %v3636
    %v3638 = vpop.f32.mrb[0].mxu0
    %v3639 = vpop.f32.mrb[0].mxu0
    %v3640 = vadd.f32 0.0, %v3639
    %v3641 = vpop.f32.mrb[0].mxu0
    %3642 = vmatprep.mubr.bf16.mxu0 0
    %3643 = vmatmul.mubr.bf16.gmra.mrb[0].mxu0 %v3325
    %v3644 = vpop.f32.mrb[0].mxu0
    %v3645 = vadd.f32 0.0, %v3644
    %v3646 = vpop.f32.mrb[0].mxu0
    %v3647 = vpop.f32.mrb[0].mxu0
    %v3648 = vadd.f32 0.0, %v3647
    %v3649 = vpop.f32.mrb[0].mxu0
    %3650 = vmatprep.mubr.bf16.mxu0 0
    %3651 = vmatmul.mubr.bf16.gmra.mrb[0].mxu0 %v3326
    %v3652 = vpop.f32.mrb[0].mxu0
    %v3653 = vadd.f32 0.0, %v3652
    %v3654 = vpop.f32.mrb[0].mxu0
    %v3655 = vpop.f32.mrb[0].mxu0
    %v3656 = vadd.f32 0.0, %v3655
    %v3657 = vpop.f32.mrb[0].mxu0
    %3658 = vmatprep.mubr.bf16.mxu0 0
    %3659 = vmatmul.mubr.bf16.gmra.mrb[0].mxu0 %v3327
    %v3660 = vpop.f32.mrb[0].mxu0
    %v3661 = vadd.f32 0.0, %v3660
    %v3662 = vpop.f32.mrb[0].mxu0
    %v3663 = vpop.f32.mrb[0].mxu0
    %v3664 = vadd.f32 0.0, %v3663
    %v3665 = vpop.f32.mrb[0].mxu0
    %3666 = vmatprep.mubr.bf16.mxu0 0
    %3667 = vmatmul.mubr.bf16.gmra.mrb[0].mxu0 %v3328
    %v3668 = vpop.f32.mrb[0].mxu0
    %v3669 = vadd.f32 0.0, %v3668
    %v3670 = vpop.f32.mrb[0].mxu0
    %v3671 = vpop.f32.mrb[0].mxu0
    %v3672 = vadd.f32 0.0, %v3671
    %v3673 = vpop.f32.mrb[0].mxu0
    %3674 = vmatprep.mubr.bf16.mxu0 0
    %3675 = vmatmul.mubr.bf16.gmra.mrb[0].mxu0 %v3329
    %v3676 = vpop.f32.mrb[0].mxu0
    %v3677 = vadd.f32 0.0, %v3676
    %v3678 = vpop.f32.mrb[0].mxu0
    %v3679 = vpop.f32.mrb[0].mxu0
    %v3680 = vadd.f32 0.0, %v3679
    %v3681 = vpop.f32.mrb[0].mxu0
    %3682 = vdwg.mxu0
    %v3683 = vadd.f32 %v3169, %v3429
    %v3684 = vadd.f32 %v3170, %v3432
    %v3685 = vadd.f32 %v3171, %v3437
    %v3686 = vadd.f32 %v3172, %v3440
    %v3687 = vadd.f32 %v3173, %v3445
    %v3688 = vadd.f32 %v3174, %v3448
    %v3689 = vadd.f32 %v3175, %v3453
    %v3690 = vadd.f32 %v3176, %v3456
    %v3691 = vadd.f32 %v3177, %v3461
    %v3692 = vadd.f32 %v3178, %v3464
    %v3693 = vadd.f32 %v3179, %v3469
    %v3694 = vadd.f32 %v3180, %v3472
    %v3695 = vadd.f32 %v3181, %v3477
    %v3696 = vadd.f32 %v3182, %v3480
    %v3697 = vadd.f32 %v3183, %v3485
    %v3698 = vadd.f32 %v3184, %v3488
    %v3699 = vadd.f32 %v3185, %v3493
    %v3700 = vadd.f32 %v3186, %v3496
    %v3701 = vadd.f32 %v3187, %v3501
    %v3702 = vadd.f32 %v3188, %v3504
    %v3703 = vadd.f32 %v3189, %v3509
    %v3704 = vadd.f32 %v3190, %v3512
    %v3705 = vadd.f32 %v3191, %v3517
    %v3706 = vadd.f32 %v3192, %v3520
    %v3707 = vadd.f32 %v3193, %v3525
    %v3708 = vadd.f32 %v3194, %v3528
    %v3709 = vadd.f32 %v3195, %v3533
    %v3710 = vadd.f32 %v3196, %v3536
    %v3711 = vadd.f32 %v3197, %v3541
    %v3712 = vadd.f32 %v3198, %v3544
    %v3713 = vadd.f32 %v3199, %v3549
    %v3714 = vadd.f32 %v3200, %v3552
    %v3715 = vadd.f32 %v3201, %v3557
    %v3716 = vadd.f32 %v3202, %v3560
    %v3717 = vadd.f32 %v3203, %v3565
    %v3718 = vadd.f32 %v3204, %v3568
    %v3719 = vadd.f32 %v3205, %v3573
    %v3720 = vadd.f32 %v3206, %v3576
    %v3721 = vadd.f32 %v3207, %v3581
    %v3722 = vadd.f32 %v3208, %v3584
    %v3723 = vadd.f32 %v3209, %v3589
    %v3724 = vadd.f32 %v3210, %v3592
    %v3725 = vadd.f32 %v3211, %v3597
    %v3726 = vadd.f32 %v3212, %v3600
    %v3727 = vadd.f32 %v3213, %v3605
    %v3728 = vadd.f32 %v3214, %v3608
    %v3729 = vadd.f32 %v3215, %v3613
    %v3730 = vadd.f32 %v3216, %v3616
    %v3731 = vadd.f32 %v3217, %v3621
    %v3732 = vadd.f32 %v3218, %v3624
    %v3733 = vadd.f32 %v3219, %v3629
    %v3734 = vadd.f32 %v3220, %v3632
    %v3735 = vadd.f32 %v3221, %v3637
    %v3736 = vadd.f32 %v3222, %v3640
    %v3737 = vadd.f32 %v3223, %v3645
    %v3738 = vadd.f32 %v3224, %v3648
    %v3739 = vadd.f32 %v3225, %v3653
    %v3740 = vadd.f32 %v3226, %v3656
    %v3741 = vadd.f32 %v3227, %v3661
    %v3742 = vadd.f32 %v3228, %v3664
    %v3743 = vadd.f32 %v3229, %v3669
    %v3744 = vadd.f32 %v3230, %v3672
    %v3745 = vadd.f32 %v3231, %v3677
    %v3746 = vadd.f32 %v3232, %v3680
    %v3747 = vld [vmem:[%s3233 + $0x1] sm:$0xff]
    %v3748 = vld [vmem:[%s3233 + $0x9] sm:$0xff]
    %v3749 = vld [vmem:[%s3233 + $0x19] sm:$0xff]
    %v3750 = vld [vmem:[%s3233 + $0x21] sm:$0xff]
    %v3751 = vld [vmem:[%s3233 + $0x31] sm:$0xff]
    %v3752 = vld [vmem:[%s3233 + $0x39] sm:$0xff]
    %v3753 = vld [vmem:[%s3233 + $0x49] sm:$0xff]
    %v3754 = vld [vmem:[%s3233 + $0x51] sm:$0xff]
    %v3755 = vld [vmem:[%s3233 + $0x61] sm:$0xff]
    %v3756 = vld [vmem:[%s3233 + $0x69] sm:$0xff]
    %v3757 = vld [vmem:[%s3233 + $0x79] sm:$0xff]
    %v3758 = vld [vmem:[%s3233 + $0x81] sm:$0xff]
    %v3759 = vld [vmem:[%s3233 + $0x91] sm:$0xff]
    %v3760 = vld [vmem:[%s3233 + $0x99] sm:$0xff]
    %v3761 = vld [vmem:[%s3233 + $0xa9] sm:$0xff]
    %v3762 = vld [vmem:[%s3233 + $0xb1] sm:$0xff]
    %v3763 = vld [vmem:[%s3233 + $0xc1] sm:$0xff]
    %v3764 = vld [vmem:[%s3233 + $0xc9] sm:$0xff]
    %v3765 = vld [vmem:[%s3233 + $0xd9] sm:$0xff]
    %v3766 = vld [vmem:[%s3233 + $0xe1] sm:$0xff]
    %v3767 = vld [vmem:[%s3233 + $0xf1] sm:$0xff]
    %v3768 = vld [vmem:[%s3233 + $0xf9] sm:$0xff]
    %v3769 = vld [vmem:[%s3233 + $0x109] sm:$0xff]
    %v3770 = vld [vmem:[%s3233 + $0x111] sm:$0xff]
    %v3771 = vld [vmem:[%s3233 + $0x121] sm:$0xff]
    %v3772 = vld [vmem:[%s3233 + $0x129] sm:$0xff]
    %v3773 = vld [vmem:[%s3233 + $0x139] sm:$0xff]
    %v3774 = vld [vmem:[%s3233 + $0x141] sm:$0xff]
    %v3775 = vld [vmem:[%s3233 + $0x151] sm:$0xff]
    %v3776 = vld [vmem:[%s3233 + $0x159] sm:$0xff]
    %v3777 = vld [vmem:[%s3233 + $0x169] sm:$0xff]
    %v3778 = vld [vmem:[%s3233 + $0x171] sm:$0xff]
    %v3779 = vld [vmem:[%s3233 + $0x1b1] sm:$0xff]
    %v3780 = vld [vmem:[%s3233 + $0x1b9] sm:$0xff]
    %v3781 = vld [vmem:[%s3233 + $0x1c9] sm:$0xff]
    %v3782 = vld [vmem:[%s3233 + $0x1d1] sm:$0xff]
    %v3783 = vld [vmem:[%s3233 + $0x1e1] sm:$0xff]
    %v3784 = vld [vmem:[%s3233 + $0x1e9] sm:$0xff]
    %v3785 = vld [vmem:[%s3233 + $0x1f9] sm:$0xff]
    %v3786 = vld [vmem:[%s3233 + $0x201] sm:$0xff]
    %v3787 = vld [vmem:[%s3233 + $0x211] sm:$0xff]
    %v3788 = vld [vmem:[%s3233 + $0x219] sm:$0xff]
    %v3789 = vld [vmem:[%s3233 + $0x229] sm:$0xff]
    %v3790 = vld [vmem:[%s3233 + $0x231] sm:$0xff]
    %v3791 = vld [vmem:[%s3233 + $0x241] sm:$0xff]
    %v3792 = vld [vmem:[%s3233 + $0x249] sm:$0xff]
    %v3793 = vld [vmem:[%s3233 + $0x259] sm:$0xff]
    %v3794 = vld [vmem:[%s3233 + $0x261] sm:$0xff]
    %v3795 = vld [vmem:[%s3233 + $0x271] sm:$0xff]
    %v3796 = vld [vmem:[%s3233 + $0x279] sm:$0xff]
    %v3797 = vld [vmem:[%s3233 + $0x289] sm:$0xff]
    %v3798 = vld [vmem:[%s3233 + $0x291] sm:$0xff]
    %v3799 = vld [vmem:[%s3233 + $0x2a1] sm:$0xff]
    %v3800 = vld [vmem:[%s3233 + $0x2a9] sm:$0xff]
    %v3801 = vld [vmem:[%s3233 + $0x2b9] sm:$0xff]
    %v3802 = vld [vmem:[%s3233 + $0x2c1] sm:$0xff]
    %v3803 = vld [vmem:[%s3233 + $0x2d1] sm:$0xff]
    %v3804 = vld [vmem:[%s3233 + $0x2d9] sm:$0xff]
    %v3805 = vld [vmem:[%s3233 + $0x2e9] sm:$0xff]
    %v3806 = vld [vmem:[%s3233 + $0x2f1] sm:$0xff]
    %v3807 = vld [vmem:[%s3233 + $0x301] sm:$0xff]
    %v3808 = vld [vmem:[%s3233 + $0x309] sm:$0xff]
    %v3809 = vld [vmem:[%s3233 + $0x319] sm:$0xff]
    %v3810 = vld [vmem:[%s3233 + $0x321] sm:$0xff]
    %v3811 = vpack.c.bf16 %v3748, %v3747
    %v3812 = vpack.c.bf16 %v3750, %v3749
    %v3813 = vpack.c.bf16 %v3752, %v3751
    %v3814 = vpack.c.bf16 %v3754, %v3753
    %v3815 = vpack.c.bf16 %v3756, %v3755
    %v3816 = vpack.c.bf16 %v3758, %v3757
    %v3817 = vpack.c.bf16 %v3760, %v3759
    %v3818 = vpack.c.bf16 %v3762, %v3761
    %v3819 = vpack.c.bf16 %v3764, %v3763
    %v3820 = vpack.c.bf16 %v3766, %v3765
    %v3821 = vpack.c.bf16 %v3768, %v3767
    %v3822 = vpack.c.bf16 %v3770, %v3769
    %v3823 = vpack.c.bf16 %v3772, %v3771
    %v3824 = vpack.c.bf16 %v3774, %v3773
    %v3825 = vpack.c.bf16 %v3776, %v3775
    %v3826 = vpack.c.bf16 %v3778, %v3777
    %v3827 = vpack.c.bf16 %v3780, %v3779
    %v3828 = vpack.c.bf16 %v3782, %v3781
    %v3829 = vpack.c.bf16 %v3784, %v3783
    %v3830 = vpack.c.bf16 %v3786, %v3785
    %v3831 = vpack.c.bf16 %v3788, %v3787
    %v3832 = vpack.c.bf16 %v3790, %v3789
    %v3833 = vpack.c.bf16 %v3792, %v3791
    %v3834 = vpack.c.bf16 %v3794, %v3793
    %v3835 = vpack.c.bf16 %v3796, %v3795
    %v3836 = vpack.c.bf16 %v3798, %v3797
    %v3837 = vpack.c.bf16 %v3800, %v3799
    %v3838 = vpack.c.bf16 %v3802, %v3801
    %v3839 = vpack.c.bf16 %v3804, %v3803
    %v3840 = vpack.c.bf16 %v3806, %v3805
    %v3841 = vpack.c.bf16 %v3808, %v3807
    %v3842 = vpack.c.bf16 %v3810, %v3809
    %v3843 = vld [vmem:[#allocation6 + $0x1c0] sm:$0xf]
    %v3844 = vld [vmem:[#allocation6 + $0x1c4] sm:$0xf]
    %v3845 = vld [vmem:[#allocation6 + $0x1c8] sm:$0xf]
    %v3846 = vld [vmem:[#allocation6 + $0x1cc] sm:$0xf]
    %v3847 = vld [vmem:[#allocation6 + $0x1d0] sm:$0xf]
    %v3848 = vld [vmem:[#allocation6 + $0x1d4] sm:$0xf]
    %v3849 = vld [vmem:[#allocation6 + $0x1d8] sm:$0xf]
    %v3850 = vld [vmem:[#allocation6 + $0x1dc] sm:$0xf]
    %v3851 = vld [vmem:[#allocation6 + $0x1e0] sm:$0xf]
    %v3852 = vld [vmem:[#allocation6 + $0x1e4] sm:$0xf]
    %v3853 = vld [vmem:[#allocation6 + $0x1e8] sm:$0xf]
    %v3854 = vld [vmem:[#allocation6 + $0x1ec] sm:$0xf]
    %v3855 = vld [vmem:[#allocation6 + $0x1f0] sm:$0xf]
    %v3856 = vld [vmem:[#allocation6 + $0x1f4] sm:$0xf]
    %v3857 = vld [vmem:[#allocation6 + $0x1f8] sm:$0xf]
    %v3858 = vld [vmem:[#allocation6 + $0x1fc] sm:$0xf]
    %v3875 = vunpack.c.l.b16 %v3843
    %v3876 = vunpack.c.l.b16 %v3844
    %v3877 = vunpack.c.l.b16 %v3845
    %v3878 = vunpack.c.l.b16 %v3846
    %v3879 = vunpack.c.l.b16 %v3847
    %v3880 = vunpack.c.l.b16 %v3848
    %v3881 = vunpack.c.l.b16 %v3849
    %v3882 = vunpack.c.l.b16 %v3850
    %v3883 = vunpack.c.l.b16 %v3851
    %v3884 = vunpack.c.l.b16 %v3852
    %v3885 = vunpack.c.l.b16 %v3853
    %v3886 = vunpack.c.l.b16 %v3854
    %v3887 = vunpack.c.l.b16 %v3855
    %v3888 = vunpack.c.l.b16 %v3856
    %v3889 = vunpack.c.l.b16 %v3857
    %v3890 = vunpack.c.l.b16 %v3858
    %v3891 = vpack.c.b16 %v3876, %v3875
    %v3892 = vpack.c.b16 %v3878, %v3877
    %v3893 = vpack.c.b16 %v3880, %v3879
    %v3894 = vpack.c.b16 %v3882, %v3881
    %v3895 = vpack.c.b16 %v3884, %v3883
    %v3896 = vpack.c.b16 %v3886, %v3885
    %v3897 = vpack.c.b16 %v3888, %v3887
    %v3898 = vpack.c.b16 %v3890, %v3889
    %3907 = vmatprep.subr.bf16.mxu0 0
    %3908 = vmatpush1.bf16.msra.mxu0 %v3891
    %3909 = vmatprep.subr.bf16.mxu0 0
    %3910 = vmatpush1.bf16.msra.mxu0 %v3892
    %3911 = vmatprep.subr.bf16.mxu0 0
    %3912 = vmatpush1.bf16.msra.mxu0 %v3893
    %3913 = vmatprep.subr.bf16.mxu0 0
    %3914 = vmatpush1.bf16.msra.mxu0 %v3894
    %3915 = vmatprep.subr.bf16.mxu0 0
    %3916 = vmatpush1.bf16.msra.mxu0 %v3895
    %3917 = vmatprep.subr.bf16.mxu0 0
    %3918 = vmatpush1.bf16.msra.mxu0 %v3896
    %3919 = vmatprep.subr.bf16.mxu0 0
    %3920 = vmatpush1.bf16.msra.mxu0 %v3897
    %3921 = vmatprep.subr.bf16.mxu0 0
    %3922 = vmatpush1.bf16.msra.mxu0 %v3898
    %3923 = vmatprep.subr.bf16.mxu0 0
    %3924 = vmatpush1.bf16.msra.mxu0 0
    %3925 = vmatprep.subr.bf16.mxu0 0
    %3926 = vmatpush1.bf16.msra.mxu0 0
    %3927 = vmatprep.subr.bf16.mxu0 0
    %3928 = vmatpush1.bf16.msra.mxu0 0
    %3929 = vmatprep.subr.bf16.mxu0 0
    %3930 = vmatpush1.bf16.msra.mxu0 0
    %3931 = vmatprep.subr.bf16.mxu0 0
    %3932 = vmatpush1.bf16.msra.mxu0 0
    %3933 = vmatprep.subr.bf16.mxu0 0
    %3934 = vmatpush1.bf16.msra.mxu0 0
    %3935 = vmatprep.subr.bf16.mxu0 0
    %3936 = vmatpush1.bf16.msra.mxu0 0
    %3937 = vmatprep.subr.bf16.mxu0 0
    %3938 = vmatpush1.bf16.msra.mxu0 0
    %3939 = vmatprep.mubr.bf16.mxu0 0
    %3940 = vmatmul.mubr.bf16.gmra.mrb[0].mxu0 %v3811
    %v3941 = vpop.f32.mrb[0].mxu0
    %v3942 = vadd.f32 0.0, %v3941
    %v3943 = vpop.f32.mrb[0].mxu0
    %v3944 = vpop.f32.mrb[0].mxu0
    %v3945 = vadd.f32 0.0, %v3944
    %v3946 = vpop.f32.mrb[0].mxu0
    %3947 = vmatprep.mubr.bf16.mxu0 0
    %3948 = vmatmul.mubr.bf16.gmra.mrb[0].mxu0 %v3812
    %v3949 = vpop.f32.mrb[0].mxu0
    %v3950 = vadd.f32 0.0, %v3949
    %v3951 = vpop.f32.mrb[0].mxu0
    %v3952 = vpop.f32.mrb[0].mxu0
    %v3953 = vadd.f32 0.0, %v3952
    %v3954 = vpop.f32.mrb[0].mxu0
    %3955 = vmatprep.mubr.bf16.mxu0 0
    %3956 = vmatmul.mubr.bf16.gmra.mrb[0].mxu0 %v3813
    %v3957 = vpop.f32.mrb[0].mxu0
    %v3958 = vadd.f32 0.0, %v3957
    %v3959 = vpop.f32.mrb[0].mxu0
    %v3960 = vpop.f32.mrb[0].mxu0
    %v3961 = vadd.f32 0.0, %v3960
    %v3962 = vpop.f32.mrb[0].mxu0
    %3963 = vmatprep.mubr.bf16.mxu0 0
    %3964 = vmatmul.mubr.bf16.gmra.mrb[0].mxu0 %v3814
    %v3965 = vpop.f32.mrb[0].mxu0
    %v3966 = vadd.f32 0.0, %v3965
    %v3967 = vpop.f32.mrb[0].mxu0
    %v3968 = vpop.f32.mrb[0].mxu0
    %v3969 = vadd.f32 0.0, %v3968
    %v3970 = vpop.f32.mrb[0].mxu0
    %3971 = vmatprep.mubr.bf16.mxu0 0
    %3972 = vmatmul.mubr.bf16.gmra.mrb[0].mxu0 %v3815
    %v3973 = vpop.f32.mrb[0].mxu0
    %v3974 = vadd.f32 0.0, %v3973
    %v3975 = vpop.f32.mrb[0].mxu0
    %v3976 = vpop.f32.mrb[0].mxu0
    %v3977 = vadd.f32 0.0, %v3976
    %v3978 = vpop.f32.mrb[0].mxu0
    %3979 = vmatprep.mubr.bf16.mxu0 0
    %3980 = vmatmul.mubr.bf16.gmra.mrb[0].mxu0 %v3816
    %v3981 = vpop.f32.mrb[0].mxu0
    %v3982 = vadd.f32 0.0, %v3981
    %v3983 = vpop.f32.mrb[0].mxu0
    %v3984 = vpop.f32.mrb[0].mxu0
    %v3985 = vadd.f32 0.0, %v3984
    %v3986 = vpop.f32.mrb[0].mxu0
    %3987 = vmatprep.mubr.bf16.mxu0 0
    %3988 = vmatmul.mubr.bf16.gmra.mrb[0].mxu0 %v3817
    %v3989 = vpop.f32.mrb[0].mxu0
    %v3990 = vadd.f32 0.0, %v3989
    %v3991 = vpop.f32.mrb[0].mxu0
    %v3992 = vpop.f32.mrb[0].mxu0
    %v3993 = vadd.f32 0.0, %v3992
    %v3994 = vpop.f32.mrb[0].mxu0
    %3995 = vmatprep.mubr.bf16.mxu0 0
    %3996 = vmatmul.mubr.bf16.gmra.mrb[0].mxu0 %v3818
    %v3997 = vpop.f32.mrb[0].mxu0
    %v3998 = vadd.f32 0.0, %v3997
    %v3999 = vpop.f32.mrb[0].mxu0
    %v4000 = vpop.f32.mrb[0].mxu0
    %v4001 = vadd.f32 0.0, %v4000
    %v4002 = vpop.f32.mrb[0].mxu0
    %4003 = vmatprep.mubr.bf16.mxu0 0
    %4004 = vmatmul.mubr.bf16.gmra.mrb[0].mxu0 %v3819
    %v4005 = vpop.f32.mrb[0].mxu0
    %v4006 = vadd.f32 0.0, %v4005
    %v4007 = vpop.f32.mrb[0].mxu0
    %v4008 = vpop.f32.mrb[0].mxu0
    %v4009 = vadd.f32 0.0, %v4008
    %v4010 = vpop.f32.mrb[0].mxu0
    %4011 = vmatprep.mubr.bf16.mxu0 0
    %4012 = vmatmul.mubr.bf16.gmra.mrb[0].mxu0 %v3820
    %v4013 = vpop.f32.mrb[0].mxu0
    %v4014 = vadd.f32 0.0, %v4013
    %v4015 = vpop.f32.mrb[0].mxu0
    %v4016 = vpop.f32.mrb[0].mxu0
    %v4017 = vadd.f32 0.0, %v4016
    %v4018 = vpop.f32.mrb[0].mxu0
    %4019 = vmatprep.mubr.bf16.mxu0 0
    %4020 = vmatmul.mubr.bf16.gmra.mrb[0].mxu0 %v3821
    %v4021 = vpop.f32.mrb[0].mxu0
    %v4022 = vadd.f32 0.0, %v4021
    %v4023 = vpop.f32.mrb[0].mxu0
    %v4024 = vpop.f32.mrb[0].mxu0
    %v4025 = vadd.f32 0.0, %v4024
    %v4026 = vpop.f32.mrb[0].mxu0
    %4027 = vmatprep.mubr.bf16.mxu0 0
    %4028 = vmatmul.mubr.bf16.gmra.mrb[0].mxu0 %v3822
    %v4029 = vpop.f32.mrb[0].mxu0
    %v4030 = vadd.f32 0.0, %v4029
    %v4031 = vpop.f32.mrb[0].mxu0
    %v4032 = vpop.f32.mrb[0].mxu0
    %v4033 = vadd.f32 0.0, %v4032
    %v4034 = vpop.f32.mrb[0].mxu0
    %4035 = vmatprep.mubr.bf16.mxu0 0
    %4036 = vmatmul.mubr.bf16.gmra.mrb[0].mxu0 %v3823
    %v4037 = vpop.f32.mrb[0].mxu0
    %v4038 = vadd.f32 0.0, %v4037
    %v4039 = vpop.f32.mrb[0].mxu0
    %v4040 = vpop.f32.mrb[0].mxu0
    %v4041 = vadd.f32 0.0, %v4040
    %v4042 = vpop.f32.mrb[0].mxu0
    %4043 = vmatprep.mubr.bf16.mxu0 0
    %4044 = vmatmul.mubr.bf16.gmra.mrb[0].mxu0 %v3824
    %v4045 = vpop.f32.mrb[0].mxu0
    %v4046 = vadd.f32 0.0, %v4045
    %v4047 = vpop.f32.mrb[0].mxu0
    %v4048 = vpop.f32.mrb[0].mxu0
    %v4049 = vadd.f32 0.0, %v4048
    %v4050 = vpop.f32.mrb[0].mxu0
    %4051 = vmatprep.mubr.bf16.mxu0 0
    %4052 = vmatmul.mubr.bf16.gmra.mrb[0].mxu0 %v3825
    %v4053 = vpop.f32.mrb[0].mxu0
    %v4054 = vadd.f32 0.0, %v4053
    %v4055 = vpop.f32.mrb[0].mxu0
    %v4056 = vpop.f32.mrb[0].mxu0
    %v4057 = vadd.f32 0.0, %v4056
    %v4058 = vpop.f32.mrb[0].mxu0
    %4059 = vmatprep.mubr.bf16.mxu0 0
    %4060 = vmatmul.mubr.bf16.gmra.mrb[0].mxu0 %v3826
    %v4061 = vpop.f32.mrb[0].mxu0
    %v4062 = vadd.f32 0.0, %v4061
    %v4063 = vpop.f32.mrb[0].mxu0
    %v4064 = vpop.f32.mrb[0].mxu0
    %v4065 = vadd.f32 0.0, %v4064
    %v4066 = vpop.f32.mrb[0].mxu0
    %4067 = vmatprep.mubr.bf16.mxu0 0
    %4068 = vmatmul.mubr.bf16.gmra.mrb[0].mxu0 %v3827
    %v4069 = vpop.f32.mrb[0].mxu0
    %v4070 = vadd.f32 0.0, %v4069
    %v4071 = vpop.f32.mrb[0].mxu0
    %v4072 = vpop.f32.mrb[0].mxu0
    %v4073 = vadd.f32 0.0, %v4072
    %v4074 = vpop.f32.mrb[0].mxu0
    %4075 = vmatprep.mubr.bf16.mxu0 0
    %4076 = vmatmul.mubr.bf16.gmra.mrb[0].mxu0 %v3828
    %v4077 = vpop.f32.mrb[0].mxu0
    %v4078 = vadd.f32 0.0, %v4077
    %v4079 = vpop.f32.mrb[0].mxu0
    %v4080 = vpop.f32.mrb[0].mxu0
    %v4081 = vadd.f32 0.0, %v4080
    %v4082 = vpop.f32.mrb[0].mxu0
    %4083 = vmatprep.mubr.bf16.mxu0 0
    %4084 = vmatmul.mubr.bf16.gmra.mrb[0].mxu0 %v3829
    %v4085 = vpop.f32.mrb[0].mxu0
    %v4086 = vadd.f32 0.0, %v4085
    %v4087 = vpop.f32.mrb[0].mxu0
    %v4088 = vpop.f32.mrb[0].mxu0
    %v4089 = vadd.f32 0.0, %v4088
    %v4090 = vpop.f32.mrb[0].mxu0
    %4091 = vmatprep.mubr.bf16.mxu0 0
    %4092 = vmatmul.mubr.bf16.gmra.mrb[0].mxu0 %v3830
    %v4093 = vpop.f32.mrb[0].mxu0
    %v4094 = vadd.f32 0.0, %v4093
    %v4095 = vpop.f32.mrb[0].mxu0
    %v4096 = vpop.f32.mrb[0].mxu0
    %v4097 = vadd.f32 0.0, %v4096
    %v4098 = vpop.f32.mrb[0].mxu0
    %4099 = vmatprep.mubr.bf16.mxu0 0
    %4100 = vmatmul.mubr.bf16.gmra.mrb[0].mxu0 %v3831
    %v4101 = vpop.f32.mrb[0].mxu0
    %v4102 = vadd.f32 0.0, %v4101
    %v4103 = vpop.f32.mrb[0].mxu0
    %v4104 = vpop.f32.mrb[0].mxu0
    %v4105 = vadd.f32 0.0, %v4104
    %v4106 = vpop.f32.mrb[0].mxu0
    %4107 = vmatprep.mubr.bf16.mxu0 0
    %4108 = vmatmul.mubr.bf16.gmra.mrb[0].mxu0 %v3832
    %v4109 = vpop.f32.mrb[0].mxu0
    %v4110 = vadd.f32 0.0, %v4109
    %v4111 = vpop.f32.mrb[0].mxu0
    %v4112 = vpop.f32.mrb[0].mxu0
    %v4113 = vadd.f32 0.0, %v4112
    %v4114 = vpop.f32.mrb[0].mxu0
    %4115 = vmatprep.mubr.bf16.mxu0 0
    %4116 = vmatmul.mubr.bf16.gmra.mrb[0].mxu0 %v3833
    %v4117 = vpop.f32.mrb[0].mxu0
    %v4118 = vadd.f32 0.0, %v4117
    %v4119 = vpop.f32.mrb[0].mxu0
    %v4120 = vpop.f32.mrb[0].mxu0
    %v4121 = vadd.f32 0.0, %v4120
    %v4122 = vpop.f32.mrb[0].mxu0
    %4123 = vmatprep.mubr.bf16.mxu0 0
    %4124 = vmatmul.mubr.bf16.gmra.mrb[0].mxu0 %v3834
    %v4125 = vpop.f32.mrb[0].mxu0
    %v4126 = vadd.f32 0.0, %v4125
    %v4127 = vpop.f32.mrb[0].mxu0
    %v4128 = vpop.f32.mrb[0].mxu0
    %v4129 = vadd.f32 0.0, %v4128
    %v4130 = vpop.f32.mrb[0].mxu0
    %4131 = vmatprep.mubr.bf16.mxu0 0
    %4132 = vmatmul.mubr.bf16.gmra.mrb[0].mxu0 %v3835
    %v4133 = vpop.f32.mrb[0].mxu0
    %v4134 = vadd.f32 0.0, %v4133
    %v4135 = vpop.f32.mrb[0].mxu0
    %v4136 = vpop.f32.mrb[0].mxu0
    %v4137 = vadd.f32 0.0, %v4136
    %v4138 = vpop.f32.mrb[0].mxu0
    %4139 = vmatprep.mubr.bf16.mxu0 0
    %4140 = vmatmul.mubr.bf16.gmra.mrb[0].mxu0 %v3836
    %v4141 = vpop.f32.mrb[0].mxu0
    %v4142 = vadd.f32 0.0, %v4141
    %v4143 = vpop.f32.mrb[0].mxu0
    %v4144 = vpop.f32.mrb[0].mxu0
    %v4145 = vadd.f32 0.0, %v4144
    %v4146 = vpop.f32.mrb[0].mxu0
    %4147 = vmatprep.mubr.bf16.mxu0 0
    %4148 = vmatmul.mubr.bf16.gmra.mrb[0].mxu0 %v3837
    %v4149 = vpop.f32.mrb[0].mxu0
    %v4150 = vadd.f32 0.0, %v4149
    %v4151 = vpop.f32.mrb[0].mxu0
    %v4152 = vpop.f32.mrb[0].mxu0
    %v4153 = vadd.f32 0.0, %v4152
    %v4154 = vpop.f32.mrb[0].mxu0
    %4155 = vmatprep.mubr.bf16.mxu0 0
    %4156 = vmatmul.mubr.bf16.gmra.mrb[0].mxu0 %v3838
    %v4157 = vpop.f32.mrb[0].mxu0
    %v4158 = vadd.f32 0.0, %v4157
    %v4159 = vpop.f32.mrb[0].mxu0
    %v4160 = vpop.f32.mrb[0].mxu0
    %v4161 = vadd.f32 0.0, %v4160
    %v4162 = vpop.f32.mrb[0].mxu0
    %4163 = vmatprep.mubr.bf16.mxu0 0
    %4164 = vmatmul.mubr.bf16.gmra.mrb[0].mxu0 %v3839
    %v4165 = vpop.f32.mrb[0].mxu0
    %v4166 = vadd.f32 0.0, %v4165
    %v4167 = vpop.f32.mrb[0].mxu0
    %v4168 = vpop.f32.mrb[0].mxu0
    %v4169 = vadd.f32 0.0, %v4168
    %v4170 = vpop.f32.mrb[0].mxu0
    %4171 = vmatprep.mubr.bf16.mxu0 0
    %4172 = vmatmul.mubr.bf16.gmra.mrb[0].mxu0 %v3840
    %v4173 = vpop.f32.mrb[0].mxu0
    %v4174 = vadd.f32 0.0, %v4173
    %v4175 = vpop.f32.mrb[0].mxu0
    %v4176 = vpop.f32.mrb[0].mxu0
    %v4177 = vadd.f32 0.0, %v4176
    %v4178 = vpop.f32.mrb[0].mxu0
    %4179 = vmatprep.mubr.bf16.mxu0 0
    %4180 = vmatmul.mubr.bf16.gmra.mrb[0].mxu0 %v3841
    %v4181 = vpop.f32.mrb[0].mxu0
    %v4182 = vadd.f32 0.0, %v4181
    %v4183 = vpop.f32.mrb[0].mxu0
    %v4184 = vpop.f32.mrb[0].mxu0
    %v4185 = vadd.f32 0.0, %v4184
    %v4186 = vpop.f32.mrb[0].mxu0
    %4187 = vmatprep.mubr.bf16.mxu0 0
    %4188 = vmatmul.mubr.bf16.gmra.mrb[0].mxu0 %v3842
    %v4189 = vpop.f32.mrb[0].mxu0
    %v4190 = vadd.f32 0.0, %v4189
    %v4191 = vpop.f32.mrb[0].mxu0
    %v4192 = vpop.f32.mrb[0].mxu0
    %v4193 = vadd.f32 0.0, %v4192
    %v4194 = vpop.f32.mrb[0].mxu0
    %4195 = vdwg.mxu0
    %v4196 = vadd.f32 %v3683, %v3942
    %v4197 = vadd.f32 %v3684, %v3945
    %v4198 = vadd.f32 %v3685, %v3950
    %v4199 = vadd.f32 %v3686, %v3953
    %v4200 = vadd.f32 %v3687, %v3958
    %v4201 = vadd.f32 %v3688, %v3961
    %v4202 = vadd.f32 %v3689, %v3966
    %v4203 = vadd.f32 %v3690, %v3969
    %v4204 = vadd.f32 %v3691, %v3974
    %v4205 = vadd.f32 %v3692, %v3977
    %v4206 = vadd.f32 %v3693, %v3982
    %v4207 = vadd.f32 %v3694, %v3985
    %v4208 = vadd.f32 %v3695, %v3990
    %v4209 = vadd.f32 %v3696, %v3993
    %v4210 = vadd.f32 %v3697, %v3998
    %v4211 = vadd.f32 %v3698, %v4001
    %v4212 = vadd.f32 %v3699, %v4006
    %v4213 = vadd.f32 %v3700, %v4009
    %v4214 = vadd.f32 %v3701, %v4014
    %v4215 = vadd.f32 %v3702, %v4017
    %v4216 = vadd.f32 %v3703, %v4022
    %v4217 = vadd.f32 %v3704, %v4025
    %v4218 = vadd.f32 %v3705, %v4030
    %v4219 = vadd.f32 %v3706, %v4033
    %v4220 = vadd.f32 %v3707, %v4038
    %v4221 = vadd.f32 %v3708, %v4041
    %v4222 = vadd.f32 %v3709, %v4046
    %v4223 = vadd.f32 %v3710, %v4049
    %v4224 = vadd.f32 %v3711, %v4054
    %v4225 = vadd.f32 %v3712, %v4057
    %v4226 = vadd.f32 %v3713, %v4062
    %v4227 = vadd.f32 %v3714, %v4065
    %v4228 = vadd.f32 %v3715, %v4070
    %v4229 = vadd.f32 %v3716, %v4073
    %v4230 = vadd.f32 %v3717, %v4078
    %v4231 = vadd.f32 %v3718, %v4081
    %v4232 = vadd.f32 %v3719, %v4086
    %v4233 = vadd.f32 %v3720, %v4089
    %v4234 = vadd.f32 %v3721, %v4094
    %v4235 = vadd.f32 %v3722, %v4097
    %v4236 = vadd.f32 %v3723, %v4102
    %v4237 = vadd.f32 %v3724, %v4105
    %v4238 = vadd.f32 %v3725, %v4110
    %v4239 = vadd.f32 %v3726, %v4113
    %v4240 = vadd.f32 %v3727, %v4118
    %v4241 = vadd.f32 %v3728, %v4121
    %v4242 = vadd.f32 %v3729, %v4126
    %v4243 = vadd.f32 %v3730, %v4129
    %v4244 = vadd.f32 %v3731, %v4134
    %v4245 = vadd.f32 %v3732, %v4137
    %v4246 = vadd.f32 %v3733, %v4142
    %v4247 = vadd.f32 %v3734, %v4145
    %v4248 = vadd.f32 %v3735, %v4150
    %v4249 = vadd.f32 %v3736, %v4153
    %v4250 = vadd.f32 %v3737, %v4158
    %v4251 = vadd.f32 %v3738, %v4161
    %v4252 = vadd.f32 %v3739, %v4166
    %v4253 = vadd.f32 %v3740, %v4169
    %v4254 = vadd.f32 %v3741, %v4174
    %v4255 = vadd.f32 %v3742, %v4177
    %v4256 = vadd.f32 %v3743, %v4182
    %v4257 = vadd.f32 %v3744, %v4185
    %v4258 = vadd.f32 %v3745, %v4190
    %v4259 = vadd.f32 %v3746, %v4193
    %v4260 = vld [vmem:[%s3233 + $0x2] sm:$0xff]
    %v4261 = vld [vmem:[%s3233 + $0xa] sm:$0xff]
    %v4262 = vld [vmem:[%s3233 + $0x1a] sm:$0xff]
    %v4263 = vld [vmem:[%s3233 + $0x22] sm:$0xff]
    %v4264 = vld [vmem:[%s3233 + $0x32] sm:$0xff]
    %v4265 = vld [vmem:[%s3233 + $0x3a] sm:$0xff]
    %v4266 = vld [vmem:[%s3233 + $0x4a] sm:$0xff]
    %v4267 = vld [vmem:[%s3233 + $0x52] sm:$0xff]
    %v4268 = vld [vmem:[%s3233 + $0x62] sm:$0xff]
    %v4269 = vld [vmem:[%s3233 + $0x6a] sm:$0xff]
    %v4270 = vld [vmem:[%s3233 + $0x7a] sm:$0xff]
    %v4271 = vld [vmem:[%s3233 + $0x82] sm:$0xff]
    %v4272 = vld [vmem:[%s3233 + $0x92] sm:$0xff]
    %v4273 = vld [vmem:[%s3233 + $0x9a] sm:$0xff]
    %v4274 = vld [vmem:[%s3233 + $0xaa] sm:$0xff]
    %v4275 = vld [vmem:[%s3233 + $0xb2] sm:$0xff]
    %v4276 = vld [vmem:[%s3233 + $0xc2] sm:$0xff]
    %v4277 = vld [vmem:[%s3233 + $0xca] sm:$0xff]
    %v4278 = vld [vmem:[%s3233 + $0xda] sm:$0xff]
    %v4279 = vld [vmem:[%s3233 + $0xe2] sm:$0xff]
    %v4280 = vld [vmem:[%s3233 + $0xf2] sm:$0xff]
    %v4281 = vld [vmem:[%s3233 + $0xfa] sm:$0xff]
    %v4282 = vld [vmem:[%s3233 + $0x10a] sm:$0xff]
    %v4283 = vld [vmem:[%s3233 + $0x112] sm:$0xff]
    %v4284 = vld [vmem:[%s3233 + $0x122] sm:$0xff]
    %v4285 = vld [vmem:[%s3233 + $0x12a] sm:$0xff]
    %v4286 = vld [vmem:[%s3233 + $0x13a] sm:$0xff]
    %v4287 = vld [vmem:[%s3233 + $0x142] sm:$0xff]
    %v4288 = vld [vmem:[%s3233 + $0x152] sm:$0xff]
    %v4289 = vld [vmem:[%s3233 + $0x15a] sm:$0xff]
    %v4290 = vld [vmem:[%s3233 + $0x16a] sm:$0xff]
    %v4291 = vld [vmem:[%s3233 + $0x172] sm:$0xff]
    %v4292 = vld [vmem:[%s3233 + $0x1b2] sm:$0xff]
    %v4293 = vld [vmem:[%s3233 + $0x1ba] sm:$0xff]
    %v4294 = vld [vmem:[%s3233 + $0x1ca] sm:$0xff]
    %v4295 = vld [vmem:[%s3233 + $0x1d2] sm:$0xff]
    %v4296 = vld [vmem:[%s3233 + $0x1e2] sm:$0xff]
    %v4297 = vld [vmem:[%s3233 + $0x1ea] sm:$0xff]
    %v4298 = vld [vmem:[%s3233 + $0x1fa] sm:$0xff]
    %v4299 = vld [vmem:[%s3233 + $0x202] sm:$0xff]
    %v4300 = vld [vmem:[%s3233 + $0x212] sm:$0xff]
    %v4301 = vld [vmem:[%s3233 + $0x21a] sm:$0xff]
    %v4302 = vld [vmem:[%s3233 + $0x22a] sm:$0xff]
    %v4303 = vld [vmem:[%s3233 + $0x232] sm:$0xff]
    %v4304 = vld [vmem:[%s3233 + $0x242] sm:$0xff]
    %v4305 = vld [vmem:[%s3233 + $0x24a] sm:$0xff]
    %v4306 = vld [vmem:[%s3233 + $0x25a] sm:$0xff]
    %v4307 = vld [vmem:[%s3233 + $0x262] sm:$0xff]
    %v4308 = vld [vmem:[%s3233 + $0x272] sm:$0xff]
    %v4309 = vld [vmem:[%s3233 + $0x27a] sm:$0xff]
    %v4310 = vld [vmem:[%s3233 + $0x28a] sm:$0xff]
    %v4311 = vld [vmem:[%s3233 + $0x292] sm:$0xff]
    %v4312 = vld [vmem:[%s3233 + $0x2a2] sm:$0xff]
    %v4313 = vld [vmem:[%s3233 + $0x2aa] sm:$0xff]
    %v4314 = vld [vmem:[%s3233 + $0x2ba] sm:$0xff]
    %v4315 = vld [vmem:[%s3233 + $0x2c2] sm:$0xff]
    %v4316 = vld [vmem:[%s3233 + $0x2d2] sm:$0xff]
    %v4317 = vld [vmem:[%s3233 + $0x2da] sm:$0xff]
    %v4318 = vld [vmem:[%s3233 + $0x2ea] sm:$0xff]
    %v4319 = vld [vmem:[%s3233 + $0x2f2] sm:$0xff]
    %v4320 = vld [vmem:[%s3233 + $0x302] sm:$0xff]
    %v4321 = vld [vmem:[%s3233 + $0x30a] sm:$0xff]
    %v4322 = vld [vmem:[%s3233 + $0x31a] sm:$0xff]
    %v4323 = vld [vmem:[%s3233 + $0x322] sm:$0xff]
    %v4324 = vpack.c.bf16 %v4261, %v4260
    %v4325 = vpack.c.bf16 %v4263, %v4262
    %v4326 = vpack.c.bf16 %v4265, %v4264
    %v4327 = vpack.c.bf16 %v4267, %v4266
    %v4328 = vpack.c.bf16 %v4269, %v4268
    %v4329 = vpack.c.bf16 %v4271, %v4270
    %v4330 = vpack.c.bf16 %v4273, %v4272
    %v4331 = vpack.c.bf16 %v4275, %v4274
    %v4332 = vpack.c.bf16 %v4277, %v4276
    %v4333 = vpack.c.bf16 %v4279, %v4278
    %v4334 = vpack.c.bf16 %v4281, %v4280
    %v4335 = vpack.c.bf16 %v4283, %v4282
    %v4336 = vpack.c.bf16 %v4285, %v4284
    %v4337 = vpack.c.bf16 %v4287, %v4286
    %v4338 = vpack.c.bf16 %v4289, %v4288
    %v4339 = vpack.c.bf16 %v4291, %v4290
    %v4340 = vpack.c.bf16 %v4293, %v4292
    %v4341 = vpack.c.bf16 %v4295, %v4294
    %v4342 = vpack.c.bf16 %v4297, %v4296
    %v4343 = vpack.c.bf16 %v4299, %v4298
    %v4344 = vpack.c.bf16 %v4301, %v4300
    %v4345 = vpack.c.bf16 %v4303, %v4302
    %v4346 = vpack.c.bf16 %v4305, %v4304
    %v4347 = vpack.c.bf16 %v4307, %v4306
    %v4348 = vpack.c.bf16 %v4309, %v4308
    %v4349 = vpack.c.bf16 %v4311, %v4310
    %v4350 = vpack.c.bf16 %v4313, %v4312
    %v4351 = vpack.c.bf16 %v4315, %v4314
    %v4352 = vpack.c.bf16 %v4317, %v4316
    %v4353 = vpack.c.bf16 %v4319, %v4318
    %v4354 = vpack.c.bf16 %v4321, %v4320
    %v4355 = vpack.c.bf16 %v4323, %v4322
    %v4356 = vld [vmem:[#allocation6 + $0x200] sm:$0xf]
    %v4357 = vld [vmem:[#allocation6 + $0x204] sm:$0xf]
    %v4358 = vld [vmem:[#allocation6 + $0x208] sm:$0xf]
    %v4359 = vld [vmem:[#allocation6 + $0x20c] sm:$0xf]
    %v4360 = vld [vmem:[#allocation6 + $0x210] sm:$0xf]
    %v4361 = vld [vmem:[#allocation6 + $0x214] sm:$0xf]
    %v4362 = vld [vmem:[#allocation6 + $0x218] sm:$0xf]
    %v4363 = vld [vmem:[#allocation6 + $0x21c] sm:$0xf]
    %v4364 = vld [vmem:[#allocation6 + $0x220] sm:$0xf]
    %v4365 = vld [vmem:[#allocation6 + $0x224] sm:$0xf]
    %v4366 = vld [vmem:[#allocation6 + $0x228] sm:$0xf]
    %v4367 = vld [vmem:[#allocation6 + $0x22c] sm:$0xf]
    %v4368 = vld [vmem:[#allocation6 + $0x230] sm:$0xf]
    %v4369 = vld [vmem:[#allocation6 + $0x234] sm:$0xf]
    %v4370 = vld [vmem:[#allocation6 + $0x238] sm:$0xf]
    %v4371 = vld [vmem:[#allocation6 + $0x23c] sm:$0xf]
    %v4388 = vunpack.c.l.b16 %v4356
    %v4389 = vunpack.c.l.b16 %v4357
    %v4390 = vunpack.c.l.b16 %v4358
    %v4391 = vunpack.c.l.b16 %v4359
    %v4392 = vunpack.c.l.b16 %v4360
    %v4393 = vunpack.c.l.b16 %v4361
    %v4394 = vunpack.c.l.b16 %v4362
    %v4395 = vunpack.c.l.b16 %v4363
    %v4396 = vunpack.c.l.b16 %v4364
    %v4397 = vunpack.c.l.b16 %v4365
    %v4398 = vunpack.c.l.b16 %v4366
    %v4399 = vunpack.c.l.b16 %v4367
    %v4400 = vunpack.c.l.b16 %v4368
    %v4401 = vunpack.c.l.b16 %v4369
    %v4402 = vunpack.c.l.b16 %v4370
    %v4403 = vunpack.c.l.b16 %v4371
    %v4404 = vpack.c.b16 %v4389, %v4388
    %v4405 = vpack.c.b16 %v4391, %v4390
    %v4406 = vpack.c.b16 %v4393, %v4392
    %v4407 = vpack.c.b16 %v4395, %v4394
    %v4408 = vpack.c.b16 %v4397, %v4396
    %v4409 = vpack.c.b16 %v4399, %v4398
    %v4410 = vpack.c.b16 %v4401, %v4400
    %v4411 = vpack.c.b16 %v4403, %v4402
    %4420 = vmatprep.subr.bf16.mxu0 0
    %4421 = vmatpush1.bf16.msra.mxu0 %v4404
    %4422 = vmatprep.subr.bf16.mxu0 0
    %4423 = vmatpush1.bf16.msra.mxu0 %v4405
    %4424 = vmatprep.subr.bf16.mxu0 0
    %4425 = vmatpush1.bf16.msra.mxu0 %v4406
    %4426 = vmatprep.subr.bf16.mxu0 0
    %4427 = vmatpush1.bf16.msra.mxu0 %v4407
    %4428 = vmatprep.subr.bf16.mxu0 0
    %4429 = vmatpush1.bf16.msra.mxu0 %v4408
    %4430 = vmatprep.subr.bf16.mxu0 0
    %4431 = vmatpush1.bf16.msra.mxu0 %v4409
    %4432 = vmatprep.subr.bf16.mxu0 0
    %4433 = vmatpush1.bf16.msra.mxu0 %v4410
    %4434 = vmatprep.subr.bf16.mxu0 0
    %4435 = vmatpush1.bf16.msra.mxu0 %v4411
    %4436 = vmatprep.subr.bf16.mxu0 0
    %4437 = vmatpush1.bf16.msra.mxu0 0
    %4438 = vmatprep.subr.bf16.mxu0 0
    %4439 = vmatpush1.bf16.msra.mxu0 0
    %4440 = vmatprep.subr.bf16.mxu0 0
    %4441 = vmatpush1.bf16.msra.mxu0 0
    %4442 = vmatprep.subr.bf16.mxu0 0
    %4443 = vmatpush1.bf16.msra.mxu0 0
    %4444 = vmatprep.subr.bf16.mxu0 0
    %4445 = vmatpush1.bf16.msra.mxu0 0
    %4446 = vmatprep.subr.bf16.mxu0 0
    %4447 = vmatpush1.bf16.msra.mxu0 0
    %4448 = vmatprep.subr.bf16.mxu0 0
    %4449 = vmatpush1.bf16.msra.mxu0 0
    %4450 = vmatprep.subr.bf16.mxu0 0
    %4451 = vmatpush1.bf16.msra.mxu0 0
    %4452 = vmatprep.mubr.bf16.mxu0 0
    %4453 = vmatmul.mubr.bf16.gmra.mrb[0].mxu0 %v4324
    %v4454 = vpop.f32.mrb[0].mxu0
    %v4455 = vadd.f32 0.0, %v4454
    %v4456 = vpop.f32.mrb[0].mxu0
    %v4457 = vpop.f32.mrb[0].mxu0
    %v4458 = vadd.f32 0.0, %v4457
    %v4459 = vpop.f32.mrb[0].mxu0
    %4460 = vmatprep.mubr.bf16.mxu0 0
    %4461 = vmatmul.mubr.bf16.gmra.mrb[0].mxu0 %v4325
    %v4462 = vpop.f32.mrb[0].mxu0
    %v4463 = vadd.f32 0.0, %v4462
    %v4464 = vpop.f32.mrb[0].mxu0
    %v4465 = vpop.f32.mrb[0].mxu0
    %v4466 = vadd.f32 0.0, %v4465
    %v4467 = vpop.f32.mrb[0].mxu0
    %4468 = vmatprep.mubr.bf16.mxu0 0
    %4469 = vmatmul.mubr.bf16.gmra.mrb[0].mxu0 %v4326
    %v4470 = vpop.f32.mrb[0].mxu0
    %v4471 = vadd.f32 0.0, %v4470
    %v4472 = vpop.f32.mrb[0].mxu0
    %v4473 = vpop.f32.mrb[0].mxu0
    %v4474 = vadd.f32 0.0, %v4473
    %v4475 = vpop.f32.mrb[0].mxu0
    %4476 = vmatprep.mubr.bf16.mxu0 0
    %4477 = vmatmul.mubr.bf16.gmra.mrb[0].mxu0 %v4327
    %v4478 = vpop.f32.mrb[0].mxu0
    %v4479 = vadd.f32 0.0, %v4478
    %v4480 = vpop.f32.mrb[0].mxu0
    %v4481 = vpop.f32.mrb[0].mxu0
    %v4482 = vadd.f32 0.0, %v4481
    %v4483 = vpop.f32.mrb[0].mxu0
    %4484 = vmatprep.mubr.bf16.mxu0 0
    %4485 = vmatmul.mubr.bf16.gmra.mrb[0].mxu0 %v4328
    %v4486 = vpop.f32.mrb[0].mxu0
    %v4487 = vadd.f32 0.0, %v4486
    %v4488 = vpop.f32.mrb[0].mxu0
    %v4489 = vpop.f32.mrb[0].mxu0
    %v4490 = vadd.f32 0.0, %v4489
    %v4491 = vpop.f32.mrb[0].mxu0
    %4492 = vmatprep.mubr.bf16.mxu0 0
    %4493 = vmatmul.mubr.bf16.gmra.mrb[0].mxu0 %v4329
    %v4494 = vpop.f32.mrb[0].mxu0
    %v4495 = vadd.f32 0.0, %v4494
    %v4496 = vpop.f32.mrb[0].mxu0
    %v4497 = vpop.f32.mrb[0].mxu0
    %v4498 = vadd.f32 0.0, %v4497
    %v4499 = vpop.f32.mrb[0].mxu0
    %4500 = vmatprep.mubr.bf16.mxu0 0
    %4501 = vmatmul.mubr.bf16.gmra.mrb[0].mxu0 %v4330
    %v4502 = vpop.f32.mrb[0].mxu0
    %v4503 = vadd.f32 0.0, %v4502
    %v4504 = vpop.f32.mrb[0].mxu0
    %v4505 = vpop.f32.mrb[0].mxu0
    %v4506 = vadd.f32 0.0, %v4505
    %v4507 = vpop.f32.mrb[0].mxu0
    %4508 = vmatprep.mubr.bf16.mxu0 0
    %4509 = vmatmul.mubr.bf16.gmra.mrb[0].mxu0 %v4331
    %v4510 = vpop.f32.mrb[0].mxu0
    %v4511 = vadd.f32 0.0, %v4510
    %v4512 = vpop.f32.mrb[0].mxu0
    %v4513 = vpop.f32.mrb[0].mxu0
    %v4514 = vadd.f32 0.0, %v4513
    %v4515 = vpop.f32.mrb[0].mxu0
    %4516 = vmatprep.mubr.bf16.mxu0 0
    %4517 = vmatmul.mubr.bf16.gmra.mrb[0].mxu0 %v4332
    %v4518 = vpop.f32.mrb[0].mxu0
    %v4519 = vadd.f32 0.0, %v4518
    %v4520 = vpop.f32.mrb[0].mxu0
    %v4521 = vpop.f32.mrb[0].mxu0
    %v4522 = vadd.f32 0.0, %v4521
    %v4523 = vpop.f32.mrb[0].mxu0
    %4524 = vmatprep.mubr.bf16.mxu0 0
    %4525 = vmatmul.mubr.bf16.gmra.mrb[0].mxu0 %v4333
    %v4526 = vpop.f32.mrb[0].mxu0
    %v4527 = vadd.f32 0.0, %v4526
    %v4528 = vpop.f32.mrb[0].mxu0
    %v4529 = vpop.f32.mrb[0].mxu0
    %v4530 = vadd.f32 0.0, %v4529
    %v4531 = vpop.f32.mrb[0].mxu0
    %4532 = vmatprep.mubr.bf16.mxu0 0
    %4533 = vmatmul.mubr.bf16.gmra.mrb[0].mxu0 %v4334
    %v4534 = vpop.f32.mrb[0].mxu0
    %v4535 = vadd.f32 0.0, %v4534
    %v4536 = vpop.f32.mrb[0].mxu0
    %v4537 = vpop.f32.mrb[0].mxu0
    %v4538 = vadd.f32 0.0, %v4537
    %v4539 = vpop.f32.mrb[0].mxu0
    %4540 = vmatprep.mubr.bf16.mxu0 0
    %4541 = vmatmul.mubr.bf16.gmra.mrb[0].mxu0 %v4335
    %v4542 = vpop.f32.mrb[0].mxu0
    %v4543 = vadd.f32 0.0, %v4542
    %v4544 = vpop.f32.mrb[0].mxu0
    %v4545 = vpop.f32.mrb[0].mxu0
    %v4546 = vadd.f32 0.0, %v4545
    %v4547 = vpop.f32.mrb[0].mxu0
    %4548 = vmatprep.mubr.bf16.mxu0 0
    %4549 = vmatmul.mubr.bf16.gmra.mrb[0].mxu0 %v4336
    %v4550 = vpop.f32.mrb[0].mxu0
    %v4551 = vadd.f32 0.0, %v4550
    %v4552 = vpop.f32.mrb[0].mxu0
    %v4553 = vpop.f32.mrb[0].mxu0
    %v4554 = vadd.f32 0.0, %v4553
    %v4555 = vpop.f32.mrb[0].mxu0
    %4556 = vmatprep.mubr.bf16.mxu0 0
    %4557 = vmatmul.mubr.bf16.gmra.mrb[0].mxu0 %v4337
    %v4558 = vpop.f32.mrb[0].mxu0
    %v4559 = vadd.f32 0.0, %v4558
    %v4560 = vpop.f32.mrb[0].mxu0
    %v4561 = vpop.f32.mrb[0].mxu0
    %v4562 = vadd.f32 0.0, %v4561
    %v4563 = vpop.f32.mrb[0].mxu0
    %4564 = vmatprep.mubr.bf16.mxu0 0
    %4565 = vmatmul.mubr.bf16.gmra.mrb[0].mxu0 %v4338
    %v4566 = vpop.f32.mrb[0].mxu0
    %v4567 = vadd.f32 0.0, %v4566
    %v4568 = vpop.f32.mrb[0].mxu0
    %v4569 = vpop.f32.mrb[0].mxu0
    %v4570 = vadd.f32 0.0, %v4569
    %v4571 = vpop.f32.mrb[0].mxu0
    %4572 = vmatprep.mubr.bf16.mxu0 0
    %4573 = vmatmul.mubr.bf16.gmra.mrb[0].mxu0 %v4339
    %v4574 = vpop.f32.mrb[0].mxu0
    %v4575 = vadd.f32 0.0, %v4574
    %v4576 = vpop.f32.mrb[0].mxu0
    %v4577 = vpop.f32.mrb[0].mxu0
    %v4578 = vadd.f32 0.0, %v4577
    %v4579 = vpop.f32.mrb[0].mxu0
    %4580 = vmatprep.mubr.bf16.mxu0 0
    %4581 = vmatmul.mubr.bf16.gmra.mrb[0].mxu0 %v4340
    %v4582 = vpop.f32.mrb[0].mxu0
    %v4583 = vadd.f32 0.0, %v4582
    %v4584 = vpop.f32.mrb[0].mxu0
    %v4585 = vpop.f32.mrb[0].mxu0
    %v4586 = vadd.f32 0.0, %v4585
    %v4587 = vpop.f32.mrb[0].mxu0
    %4588 = vmatprep.mubr.bf16.mxu0 0
    %4589 = vmatmul.mubr.bf16.gmra.mrb[0].mxu0 %v4341
    %v4590 = vpop.f32.mrb[0].mxu0
    %v4591 = vadd.f32 0.0, %v4590
    %v4592 = vpop.f32.mrb[0].mxu0
    %v4593 = vpop.f32.mrb[0].mxu0
    %v4594 = vadd.f32 0.0, %v4593
    %v4595 = vpop.f32.mrb[0].mxu0
    %4596 = vmatprep.mubr.bf16.mxu0 0
    %4597 = vmatmul.mubr.bf16.gmra.mrb[0].mxu0 %v4342
    %v4598 = vpop.f32.mrb[0].mxu0
    %v4599 = vadd.f32 0.0, %v4598
    %v4600 = vpop.f32.mrb[0].mxu0
    %v4601 = vpop.f32.mrb[0].mxu0
    %v4602 = vadd.f32 0.0, %v4601
    %v4603 = vpop.f32.mrb[0].mxu0
    %4604 = vmatprep.mubr.bf16.mxu0 0
    %4605 = vmatmul.mubr.bf16.gmra.mrb[0].mxu0 %v4343
    %v4606 = vpop.f32.mrb[0].mxu0
    %v4607 = vadd.f32 0.0, %v4606
    %v4608 = vpop.f32.mrb[0].mxu0
    %v4609 = vpop.f32.mrb[0].mxu0
    %v4610 = vadd.f32 0.0, %v4609
    %v4611 = vpop.f32.mrb[0].mxu0
    %4612 = vmatprep.mubr.bf16.mxu0 0
    %4613 = vmatmul.mubr.bf16.gmra.mrb[0].mxu0 %v4344
    %v4614 = vpop.f32.mrb[0].mxu0
    %v4615 = vadd.f32 0.0, %v4614
    %v4616 = vpop.f32.mrb[0].mxu0
    %v4617 = vpop.f32.mrb[0].mxu0
    %v4618 = vadd.f32 0.0, %v4617
    %v4619 = vpop.f32.mrb[0].mxu0
    %4620 = vmatprep.mubr.bf16.mxu0 0
    %4621 = vmatmul.mubr.bf16.gmra.mrb[0].mxu0 %v4345
    %v4622 = vpop.f32.mrb[0].mxu0
    %v4623 = vadd.f32 0.0, %v4622
    %v4624 = vpop.f32.mrb[0].mxu0
    %v4625 = vpop.f32.mrb[0].mxu0
    %v4626 = vadd.f32 0.0, %v4625
    %v4627 = vpop.f32.mrb[0].mxu0
    %4628 = vmatprep.mubr.bf16.mxu0 0
    %4629 = vmatmul.mubr.bf16.gmra.mrb[0].mxu0 %v4346
    %v4630 = vpop.f32.mrb[0].mxu0
    %v4631 = vadd.f32 0.0, %v4630
    %v4632 = vpop.f32.mrb[0].mxu0
    %v4633 = vpop.f32.mrb[0].mxu0
    %v4634 = vadd.f32 0.0, %v4633
    %v4635 = vpop.f32.mrb[0].mxu0
    %4636 = vmatprep.mubr.bf16.mxu0 0
    %4637 = vmatmul.mubr.bf16.gmra.mrb[0].mxu0 %v4347
    %v4638 = vpop.f32.mrb[0].mxu0
    %v4639 = vadd.f32 0.0, %v4638
    %v4640 = vpop.f32.mrb[0].mxu0
    %v4641 = vpop.f32.mrb[0].mxu0
    %v4642 = vadd.f32 0.0, %v4641
    %v4643 = vpop.f32.mrb[0].mxu0
    %4644 = vmatprep.mubr.bf16.mxu0 0
    %4645 = vmatmul.mubr.bf16.gmra.mrb[0].mxu0 %v4348
    %v4646 = vpop.f32.mrb[0].mxu0
    %v4647 = vadd.f32 0.0, %v4646
    %v4648 = vpop.f32.mrb[0].mxu0
    %v4649 = vpop.f32.mrb[0].mxu0
    %v4650 = vadd.f32 0.0, %v4649
    %v4651 = vpop.f32.mrb[0].mxu0
    %4652 = vmatprep.mubr.bf16.mxu0 0
    %4653 = vmatmul.mubr.bf16.gmra.mrb[0].mxu0 %v4349
    %v4654 = vpop.f32.mrb[0].mxu0
    %v4655 = vadd.f32 0.0, %v4654
    %v4656 = vpop.f32.mrb[0].mxu0
    %v4657 = vpop.f32.mrb[0].mxu0
    %v4658 = vadd.f32 0.0, %v4657
    %v4659 = vpop.f32.mrb[0].mxu0
    %4660 = vmatprep.mubr.bf16.mxu0 0
    %4661 = vmatmul.mubr.bf16.gmra.mrb[0].mxu0 %v4350
    %v4662 = vpop.f32.mrb[0].mxu0
    %v4663 = vadd.f32 0.0, %v4662
    %v4664 = vpop.f32.mrb[0].mxu0
    %v4665 = vpop.f32.mrb[0].mxu0
    %v4666 = vadd.f32 0.0, %v4665
    %v4667 = vpop.f32.mrb[0].mxu0
    %4668 = vmatprep.mubr.bf16.mxu0 0
    %4669 = vmatmul.mubr.bf16.gmra.mrb[0].mxu0 %v4351
    %v4670 = vpop.f32.mrb[0].mxu0
    %v4671 = vadd.f32 0.0, %v4670
    %v4672 = vpop.f32.mrb[0].mxu0
    %v4673 = vpop.f32.mrb[0].mxu0
    %v4674 = vadd.f32 0.0, %v4673
    %v4675 = vpop.f32.mrb[0].mxu0
    %4676 = vmatprep.mubr.bf16.mxu0 0
    %4677 = vmatmul.mubr.bf16.gmra.mrb[0].mxu0 %v4352
    %v4678 = vpop.f32.mrb[0].mxu0
    %v4679 = vadd.f32 0.0, %v4678
    %v4680 = vpop.f32.mrb[0].mxu0
    %v4681 = vpop.f32.mrb[0].mxu0
    %v4682 = vadd.f32 0.0, %v4681
    %v4683 = vpop.f32.mrb[0].mxu0
    %4684 = vmatprep.mubr.bf16.mxu0 0
    %4685 = vmatmul.mubr.bf16.gmra.mrb[0].mxu0 %v4353
    %v4686 = vpop.f32.mrb[0].mxu0
    %v4687 = vadd.f32 0.0, %v4686
    %v4688 = vpop.f32.mrb[0].mxu0
    %v4689 = vpop.f32.mrb[0].mxu0
    %v4690 = vadd.f32 0.0, %v4689
    %v4691 = vpop.f32.mrb[0].mxu0
    %4692 = vmatprep.mubr.bf16.mxu0 0
    %4693 = vmatmul.mubr.bf16.gmra.mrb[0].mxu0 %v4354
    %v4694 = vpop.f32.mrb[0].mxu0
    %v4695 = vadd.f32 0.0, %v4694
    %v4696 = vpop.f32.mrb[0].mxu0
    %v4697 = vpop.f32.mrb[0].mxu0
    %v4698 = vadd.f32 0.0, %v4697
    %v4699 = vpop.f32.mrb[0].mxu0
    %4700 = vmatprep.mubr.bf16.mxu0 0
    %4701 = vmatmul.mubr.bf16.gmra.mrb[0].mxu0 %v4355
    %v4702 = vpop.f32.mrb[0].mxu0
    %v4703 = vadd.f32 0.0, %v4702
    %v4704 = vpop.f32.mrb[0].mxu0
    %v4705 = vpop.f32.mrb[0].mxu0
    %v4706 = vadd.f32 0.0, %v4705
    %v4707 = vpop.f32.mrb[0].mxu0
    %4708 = vdwg.mxu0
    %v4709 = vadd.f32 %v4196, %v4455
    %v4710 = vadd.f32 %v4197, %v4458
    %v4711 = vadd.f32 %v4198, %v4463
    %v4712 = vadd.f32 %v4199, %v4466
    %v4713 = vadd.f32 %v4200, %v4471
    %v4714 = vadd.f32 %v4201, %v4474
    %v4715 = vadd.f32 %v4202, %v4479
    %v4716 = vadd.f32 %v4203, %v4482
    %v4717 = vadd.f32 %v4204, %v4487
    %v4718 = vadd.f32 %v4205, %v4490
    %v4719 = vadd.f32 %v4206, %v4495
    %v4720 = vadd.f32 %v4207, %v4498
    %v4721 = vadd.f32 %v4208, %v4503
    %v4722 = vadd.f32 %v4209, %v4506
    %v4723 = vadd.f32 %v4210, %v4511
    %v4724 = vadd.f32 %v4211, %v4514
    %v4725 = vadd.f32 %v4212, %v4519
    %v4726 = vadd.f32 %v4213, %v4522
    %v4727 = vadd.f32 %v4214, %v4527
    %v4728 = vadd.f32 %v4215, %v4530
    %v4729 = vadd.f32 %v4216, %v4535
    %v4730 = vadd.f32 %v4217, %v4538
    %v4731 = vadd.f32 %v4218, %v4543
    %v4732 = vadd.f32 %v4219, %v4546
    %v4733 = vadd.f32 %v4220, %v4551
    %v4734 = vadd.f32 %v4221, %v4554
    %v4735 = vadd.f32 %v4222, %v4559
    %v4736 = vadd.f32 %v4223, %v4562
    %v4737 = vadd.f32 %v4224, %v4567
    %v4738 = vadd.f32 %v4225, %v4570
    %v4739 = vadd.f32 %v4226, %v4575
    %v4740 = vadd.f32 %v4227, %v4578
    %v4741 = vadd.f32 %v4228, %v4583
    %v4742 = vadd.f32 %v4229, %v4586
    %v4743 = vadd.f32 %v4230, %v4591
    %v4744 = vadd.f32 %v4231, %v4594
    %v4745 = vadd.f32 %v4232, %v4599
    %v4746 = vadd.f32 %v4233, %v4602
    %v4747 = vadd.f32 %v4234, %v4607
    %v4748 = vadd.f32 %v4235, %v4610
    %v4749 = vadd.f32 %v4236, %v4615
    %v4750 = vadd.f32 %v4237, %v4618
    %v4751 = vadd.f32 %v4238, %v4623
    %v4752 = vadd.f32 %v4239, %v4626
    %v4753 = vadd.f32 %v4240, %v4631
    %v4754 = vadd.f32 %v4241, %v4634
    %v4755 = vadd.f32 %v4242, %v4639
    %v4756 = vadd.f32 %v4243, %v4642
    %v4757 = vadd.f32 %v4244, %v4647
    %v4758 = vadd.f32 %v4245, %v4650
    %v4759 = vadd.f32 %v4246, %v4655
    %v4760 = vadd.f32 %v4247, %v4658
    %v4761 = vadd.f32 %v4248, %v4663
    %v4762 = vadd.f32 %v4249, %v4666
    %v4763 = vadd.f32 %v4250, %v4671
    %v4764 = vadd.f32 %v4251, %v4674
    %v4765 = vadd.f32 %v4252, %v4679
    %v4766 = vadd.f32 %v4253, %v4682
    %v4767 = vadd.f32 %v4254, %v4687
    %v4768 = vadd.f32 %v4255, %v4690
    %v4769 = vadd.f32 %v4256, %v4695
    %v4770 = vadd.f32 %v4257, %v4698
    %v4771 = vadd.f32 %v4258, %v4703
    %v4772 = vadd.f32 %v4259, %v4706
    %v4773 = vld [vmem:[%s2] sm:$0x1]
    %v4774 = vld [vmem:[%s3] sm:$0x1]
    %v4775 = vadd.f32 %v4709, %v4710
    %v4776 = vadd.f32 %v4775, %v4711
    %v4777 = vadd.f32 %v4776, %v4712
    %v4778 = vadd.f32 %v4777, %v4713
    %v4779 = vadd.f32 %v4778, %v4714
    %v4780 = vadd.f32 %v4779, %v4715
    %v4781 = vadd.f32 %v4780, %v4716
    %v4782 = vadd.f32 %v4781, %v4717
    %v4783 = vadd.f32 %v4782, %v4718
    %v4784 = vadd.f32 %v4783, %v4719
    %v4785 = vadd.f32 %v4784, %v4720
    %v4786 = vadd.f32 %v4785, %v4721
    %v4787 = vadd.f32 %v4786, %v4722
    %v4788 = vadd.f32 %v4787, %v4723
    %v4789 = vadd.f32 %v4788, %v4724
    %v4790 = vadd.f32 %v4789, %v4725
    %v4791 = vadd.f32 %v4790, %v4726
    %v4792 = vadd.f32 %v4791, %v4727
    %v4793 = vadd.f32 %v4792, %v4728
    %v4794 = vadd.f32 %v4793, %v4729
    %v4795 = vadd.f32 %v4794, %v4730
    %v4796 = vadd.f32 %v4795, %v4731
    %v4797 = vadd.f32 %v4796, %v4732
    %v4798 = vadd.f32 %v4797, %v4733
    %v4799 = vadd.f32 %v4798, %v4734
    %v4800 = vadd.f32 %v4799, %v4735
    %v4801 = vadd.f32 %v4800, %v4736
    %v4802 = vadd.f32 %v4801, %v4737
    %v4803 = vadd.f32 %v4802, %v4738
    %v4804 = vadd.f32 %v4803, %v4739
    %v4805 = vadd.f32 %v4804, %v4740
    %v4806 = vadd.f32 %v4805, %v4741
    %v4807 = vadd.f32 %v4806, %v4742
    %v4808 = vadd.f32 %v4807, %v4743
    %v4809 = vadd.f32 %v4808, %v4744
    %v4810 = vadd.f32 %v4809, %v4745
    %v4811 = vadd.f32 %v4810, %v4746
    %v4812 = vadd.f32 %v4811, %v4747
    %v4813 = vadd.f32 %v4812, %v4748
    %v4814 = vadd.f32 %v4813, %v4749
    %v4815 = vadd.f32 %v4814, %v4750
    %v4816 = vadd.f32 %v4815, %v4751
    %v4817 = vadd.f32 %v4816, %v4752
    %v4818 = vadd.f32 %v4817, %v4753
    %v4819 = vadd.f32 %v4818, %v4754
    %v4820 = vadd.f32 %v4819, %v4755
    %v4821 = vadd.f32 %v4820, %v4756
    %v4822 = vadd.f32 %v4821, %v4757
    %v4823 = vadd.f32 %v4822, %v4758
    %v4824 = vadd.f32 %v4823, %v4759
    %v4825 = vadd.f32 %v4824, %v4760
    %v4826 = vadd.f32 %v4825, %v4761
    %v4827 = vadd.f32 %v4826, %v4762
    %v4828 = vadd.f32 %v4827, %v4763
    %v4829 = vadd.f32 %v4828, %v4764
    %v4830 = vadd.f32 %v4829, %v4765
    %v4831 = vadd.f32 %v4830, %v4766
    %v4832 = vadd.f32 %v4831, %v4767
    %v4833 = vadd.f32 %v4832, %v4768
    %v4834 = vadd.f32 %v4833, %v4769
    %v4835 = vadd.f32 %v4834, %v4770
    %v4836 = vadd.f32 %v4835, %v4771
    %v4837 = vadd.f32 %v4836, %v4772
    %v4838 = vrot.slane %v4837, 4
    %v4839 = vadd.f32 %v4837, %v4838
    %v4840 = vrot.slane %v4839, 2
    %v4841 = vadd.f32 %v4839, %v4840
    %v4842 = vrot.slane %v4841, 1
    %v4843 = vadd.f32 %v4841, %v4842
    %v4844 = vmul.f32 %v4843, 0.001953125
    %v4845 = vsub.f32 %v4709, %v4844
    %v4846 = vsub.f32 %v4710, %v4844
    %v4847 = vsub.f32 %v4711, %v4844
    %v4848 = vsub.f32 %v4712, %v4844
    %v4849 = vsub.f32 %v4713, %v4844
    %v4850 = vsub.f32 %v4714, %v4844
    %v4851 = vsub.f32 %v4715, %v4844
    %v4852 = vsub.f32 %v4716, %v4844
    %v4853 = vsub.f32 %v4717, %v4844
    %v4854 = vsub.f32 %v4718, %v4844
    %v4855 = vsub.f32 %v4719, %v4844
    %v4856 = vsub.f32 %v4720, %v4844
    %v4857 = vsub.f32 %v4721, %v4844
    %v4858 = vsub.f32 %v4722, %v4844
    %v4859 = vsub.f32 %v4723, %v4844
    %v4860 = vsub.f32 %v4724, %v4844
    %v4861 = vsub.f32 %v4725, %v4844
    %v4862 = vsub.f32 %v4726, %v4844
    %v4863 = vsub.f32 %v4727, %v4844
    %v4864 = vsub.f32 %v4728, %v4844
    %v4865 = vsub.f32 %v4729, %v4844
    %v4866 = vsub.f32 %v4730, %v4844
    %v4867 = vsub.f32 %v4731, %v4844
    %v4868 = vsub.f32 %v4732, %v4844
    %v4869 = vsub.f32 %v4733, %v4844
    %v4870 = vsub.f32 %v4734, %v4844
    %v4871 = vsub.f32 %v4735, %v4844
    %v4872 = vsub.f32 %v4736, %v4844
    %v4873 = vsub.f32 %v4737, %v4844
    %v4874 = vsub.f32 %v4738, %v4844
    %v4875 = vsub.f32 %v4739, %v4844
    %v4876 = vsub.f32 %v4740, %v4844
    %v4877 = vsub.f32 %v4741, %v4844
    %v4878 = vsub.f32 %v4742, %v4844
    %v4879 = vsub.f32 %v4743, %v4844
    %v4880 = vsub.f32 %v4744, %v4844
    %v4881 = vsub.f32 %v4745, %v4844
    %v4882 = vsub.f32 %v4746, %v4844
    %v4883 = vsub.f32 %v4747, %v4844
    %v4884 = vsub.f32 %v4748, %v4844
    %v4885 = vsub.f32 %v4749, %v4844
    %v4886 = vsub.f32 %v4750, %v4844
    %v4887 = vsub.f32 %v4751, %v4844
    %v4888 = vsub.f32 %v4752, %v4844
    %v4889 = vsub.f32 %v4753, %v4844
    %v4890 = vsub.f32 %v4754, %v4844
    %v4891 = vsub.f32 %v4755, %v4844
    %v4892 = vsub.f32 %v4756, %v4844
    %v4893 = vsub.f32 %v4757, %v4844
    %v4894 = vsub.f32 %v4758, %v4844
    %v4895 = vsub.f32 %v4759, %v4844
    %v4896 = vsub.f32 %v4760, %v4844
    %v4897 = vsub.f32 %v4761, %v4844
    %v4898 = vsub.f32 %v4762, %v4844
    %v4899 = vsub.f32 %v4763, %v4844
    %v4900 = vsub.f32 %v4764, %v4844
    %v4901 = vsub.f32 %v4765, %v4844
    %v4902 = vsub.f32 %v4766, %v4844
    %v4903 = vsub.f32 %v4767, %v4844
    %v4904 = vsub.f32 %v4768, %v4844
    %v4905 = vsub.f32 %v4769, %v4844
    %v4906 = vsub.f32 %v4770, %v4844
    %v4907 = vsub.f32 %v4771, %v4844
    %v4908 = vsub.f32 %v4772, %v4844
    %v4909 = vmul.f32 %v4845, %v4845
    %v4910 = vmul.f32 %v4846, %v4846
    %v4911 = vmul.f32 %v4847, %v4847
    %v4912 = vmul.f32 %v4848, %v4848
    %v4913 = vmul.f32 %v4849, %v4849
    %v4914 = vmul.f32 %v4850, %v4850
    %v4915 = vmul.f32 %v4851, %v4851
    %v4916 = vmul.f32 %v4852, %v4852
    %v4917 = vmul.f32 %v4853, %v4853
    %v4918 = vmul.f32 %v4854, %v4854
    %v4919 = vmul.f32 %v4855, %v4855
    %v4920 = vmul.f32 %v4856, %v4856
    %v4921 = vmul.f32 %v4857, %v4857
    %v4922 = vmul.f32 %v4858, %v4858
    %v4923 = vmul.f32 %v4859, %v4859
    %v4924 = vmul.f32 %v4860, %v4860
    %v4925 = vmul.f32 %v4861, %v4861
    %v4926 = vmul.f32 %v4862, %v4862
    %v4927 = vmul.f32 %v4863, %v4863
    %v4928 = vmul.f32 %v4864, %v4864
    %v4929 = vmul.f32 %v4865, %v4865
    %v4930 = vmul.f32 %v4866, %v4866
    %v4931 = vmul.f32 %v4867, %v4867
    %v4932 = vmul.f32 %v4868, %v4868
    %v4933 = vmul.f32 %v4869, %v4869
    %v4934 = vmul.f32 %v4870, %v4870
    %v4935 = vmul.f32 %v4871, %v4871
    %v4936 = vmul.f32 %v4872, %v4872
    %v4937 = vmul.f32 %v4873, %v4873
    %v4938 = vmul.f32 %v4874, %v4874
    %v4939 = vmul.f32 %v4875, %v4875
    %v4940 = vmul.f32 %v4876, %v4876
    %v4941 = vmul.f32 %v4877, %v4877
    %v4942 = vmul.f32 %v4878, %v4878
    %v4943 = vmul.f32 %v4879, %v4879
    %v4944 = vmul.f32 %v4880, %v4880
    %v4945 = vmul.f32 %v4881, %v4881
    %v4946 = vmul.f32 %v4882, %v4882
    %v4947 = vmul.f32 %v4883, %v4883
    %v4948 = vmul.f32 %v4884, %v4884
    %v4949 = vmul.f32 %v4885, %v4885
    %v4950 = vmul.f32 %v4886, %v4886
    %v4951 = vmul.f32 %v4887, %v4887
    %v4952 = vmul.f32 %v4888, %v4888
    %v4953 = vmul.f32 %v4889, %v4889
    %v4954 = vmul.f32 %v4890, %v4890
    %v4955 = vmul.f32 %v4891, %v4891
    %v4956 = vmul.f32 %v4892, %v4892
    %v4957 = vmul.f32 %v4893, %v4893
    %v4958 = vmul.f32 %v4894, %v4894
    %v4959 = vmul.f32 %v4895, %v4895
    %v4960 = vmul.f32 %v4896, %v4896
    %v4961 = vmul.f32 %v4897, %v4897
    %v4962 = vmul.f32 %v4898, %v4898
    %v4963 = vmul.f32 %v4899, %v4899
    %v4964 = vmul.f32 %v4900, %v4900
    %v4965 = vmul.f32 %v4901, %v4901
    %v4966 = vmul.f32 %v4902, %v4902
    %v4967 = vmul.f32 %v4903, %v4903
    %v4968 = vmul.f32 %v4904, %v4904
    %v4969 = vmul.f32 %v4905, %v4905
    %v4970 = vmul.f32 %v4906, %v4906
    %v4971 = vmul.f32 %v4907, %v4907
    %v4972 = vmul.f32 %v4908, %v4908
    %v4973 = vadd.f32 %v4909, %v4910
    %v4974 = vadd.f32 %v4973, %v4911
    %v4975 = vadd.f32 %v4974, %v4912
    %v4976 = vadd.f32 %v4975, %v4913
    %v4977 = vadd.f32 %v4976, %v4914
    %v4978 = vadd.f32 %v4977, %v4915
    %v4979 = vadd.f32 %v4978, %v4916
    %v4980 = vadd.f32 %v4979, %v4917
    %v4981 = vadd.f32 %v4980, %v4918
    %v4982 = vadd.f32 %v4981, %v4919
    %v4983 = vadd.f32 %v4982, %v4920
    %v4984 = vadd.f32 %v4983, %v4921
    %v4985 = vadd.f32 %v4984, %v4922
    %v4986 = vadd.f32 %v4985, %v4923
    %v4987 = vadd.f32 %v4986, %v4924
    %v4988 = vadd.f32 %v4987, %v4925
    %v4989 = vadd.f32 %v4988, %v4926
    %v4990 = vadd.f32 %v4989, %v4927
    %v4991 = vadd.f32 %v4990, %v4928
    %v4992 = vadd.f32 %v4991, %v4929
    %v4993 = vadd.f32 %v4992, %v4930
    %v4994 = vadd.f32 %v4993, %v4931
    %v4995 = vadd.f32 %v4994, %v4932
    %v4996 = vadd.f32 %v4995, %v4933
    %v4997 = vadd.f32 %v4996, %v4934
    %v4998 = vadd.f32 %v4997, %v4935
    %v4999 = vadd.f32 %v4998, %v4936
    %v5000 = vadd.f32 %v4999, %v4937
    %v5001 = vadd.f32 %v5000, %v4938
    %v5002 = vadd.f32 %v5001, %v4939
    %v5003 = vadd.f32 %v5002, %v4940
    %v5004 = vadd.f32 %v5003, %v4941
    %v5005 = vadd.f32 %v5004, %v4942
    %v5006 = vadd.f32 %v5005, %v4943
    %v5007 = vadd.f32 %v5006, %v4944
    %v5008 = vadd.f32 %v5007, %v4945
    %v5009 = vadd.f32 %v5008, %v4946
    %v5010 = vadd.f32 %v5009, %v4947
    %v5011 = vadd.f32 %v5010, %v4948
    %v5012 = vadd.f32 %v5011, %v4949
    %v5013 = vadd.f32 %v5012, %v4950
    %v5014 = vadd.f32 %v5013, %v4951
    %v5015 = vadd.f32 %v5014, %v4952
    %v5016 = vadd.f32 %v5015, %v4953
    %v5017 = vadd.f32 %v5016, %v4954
    %v5018 = vadd.f32 %v5017, %v4955
    %v5019 = vadd.f32 %v5018, %v4956
    %v5020 = vadd.f32 %v5019, %v4957
    %v5021 = vadd.f32 %v5020, %v4958
    %v5022 = vadd.f32 %v5021, %v4959
    %v5023 = vadd.f32 %v5022, %v4960
    %v5024 = vadd.f32 %v5023, %v4961
    %v5025 = vadd.f32 %v5024, %v4962
    %v5026 = vadd.f32 %v5025, %v4963
    %v5027 = vadd.f32 %v5026, %v4964
    %v5028 = vadd.f32 %v5027, %v4965
    %v5029 = vadd.f32 %v5028, %v4966
    %v5030 = vadd.f32 %v5029, %v4967
    %v5031 = vadd.f32 %v5030, %v4968
    %v5032 = vadd.f32 %v5031, %v4969
    %v5033 = vadd.f32 %v5032, %v4970
    %v5034 = vadd.f32 %v5033, %v4971
    %v5035 = vadd.f32 %v5034, %v4972
    %v5036 = vrot.slane %v5035, 4
    %v5037 = vadd.f32 %v5035, %v5036
    %v5038 = vrot.slane %v5037, 2
    %v5039 = vadd.f32 %v5037, %v5038
    %v5040 = vrot.slane %v5039, 1
    %v5041 = vadd.f32 %v5039, %v5040
    %v5042 = vmul.f32 %v5041, 0.001953125
    %v5043 = vadd.f32 %v5042, 1e-05
    %v5044 = vrsqrt.pop %v5043
    %v5045 = vmul.f32 %v4773, %v5044
    %v5047 = vlaneseq
    %v5048 = vshrl.u32 %v5047, 7
    %v5049 = vsub.s32 0, %v5048
    %v5050 = vrot.slane %v5045, %v5049
    %v5052 = vmul.f32 %v4845, %v5050
    %v5053 = vmul.f32 %v4846, %v5050
    %v5054 = vmul.f32 %v4847, %v5050
    %v5055 = vmul.f32 %v4848, %v5050
    %v5056 = vmul.f32 %v4849, %v5050
    %v5057 = vmul.f32 %v4850, %v5050
    %v5058 = vmul.f32 %v4851, %v5050
    %v5059 = vmul.f32 %v4852, %v5050
    %v5060 = vmul.f32 %v4853, %v5050
    %v5061 = vmul.f32 %v4854, %v5050
    %v5062 = vmul.f32 %v4855, %v5050
    %v5063 = vmul.f32 %v4856, %v5050
    %v5064 = vmul.f32 %v4857, %v5050
    %v5065 = vmul.f32 %v4858, %v5050
    %v5066 = vmul.f32 %v4859, %v5050
    %v5067 = vmul.f32 %v4860, %v5050
    %v5068 = vmul.f32 %v4861, %v5050
    %v5069 = vmul.f32 %v4862, %v5050
    %v5070 = vmul.f32 %v4863, %v5050
    %v5071 = vmul.f32 %v4864, %v5050
    %v5072 = vmul.f32 %v4865, %v5050
    %v5073 = vmul.f32 %v4866, %v5050
    %v5074 = vmul.f32 %v4867, %v5050
    %v5075 = vmul.f32 %v4868, %v5050
    %v5076 = vmul.f32 %v4869, %v5050
    %v5077 = vmul.f32 %v4870, %v5050
    %v5078 = vmul.f32 %v4871, %v5050
    %v5079 = vmul.f32 %v4872, %v5050
    %v5080 = vmul.f32 %v4873, %v5050
    %v5081 = vmul.f32 %v4874, %v5050
    %v5082 = vmul.f32 %v4875, %v5050
    %v5083 = vmul.f32 %v4876, %v5050
    %v5084 = vmul.f32 %v4877, %v5050
    %v5085 = vmul.f32 %v4878, %v5050
    %v5086 = vmul.f32 %v4879, %v5050
    %v5087 = vmul.f32 %v4880, %v5050
    %v5088 = vmul.f32 %v4881, %v5050
    %v5089 = vmul.f32 %v4882, %v5050
    %v5090 = vmul.f32 %v4883, %v5050
    %v5091 = vmul.f32 %v4884, %v5050
    %v5092 = vmul.f32 %v4885, %v5050
    %v5093 = vmul.f32 %v4886, %v5050
    %v5094 = vmul.f32 %v4887, %v5050
    %v5095 = vmul.f32 %v4888, %v5050
    %v5096 = vmul.f32 %v4889, %v5050
    %v5097 = vmul.f32 %v4890, %v5050
    %v5098 = vmul.f32 %v4891, %v5050
    %v5099 = vmul.f32 %v4892, %v5050
    %v5100 = vmul.f32 %v4893, %v5050
    %v5101 = vmul.f32 %v4894, %v5050
    %v5102 = vmul.f32 %v4895, %v5050
    %v5103 = vmul.f32 %v4896, %v5050
    %v5104 = vmul.f32 %v4897, %v5050
    %v5105 = vmul.f32 %v4898, %v5050
    %v5106 = vmul.f32 %v4899, %v5050
    %v5107 = vmul.f32 %v4900, %v5050
    %v5108 = vmul.f32 %v4901, %v5050
    %v5109 = vmul.f32 %v4902, %v5050
    %v5110 = vmul.f32 %v4903, %v5050
    %v5111 = vmul.f32 %v4904, %v5050
    %v5112 = vmul.f32 %v4905, %v5050
    %v5113 = vmul.f32 %v4906, %v5050
    %v5114 = vmul.f32 %v4907, %v5050
    %v5115 = vmul.f32 %v4908, %v5050
    %v5117 = vlaneseq
    %v5118 = vshrl.u32 %v5117, 7
    %v5119 = vsub.s32 0, %v5118
    %v5120 = vrot.slane %v4774, %v5119
    %v5122 = vadd.f32 %v5052, %v5120
    %v5123 = vadd.f32 %v5053, %v5120
    %v5124 = vadd.f32 %v5054, %v5120
    %v5125 = vadd.f32 %v5055, %v5120
    %v5126 = vadd.f32 %v5056, %v5120
    %v5127 = vadd.f32 %v5057, %v5120
    %v5128 = vadd.f32 %v5058, %v5120
    %v5129 = vadd.f32 %v5059, %v5120
    %v5130 = vadd.f32 %v5060, %v5120
    %v5131 = vadd.f32 %v5061, %v5120
    %v5132 = vadd.f32 %v5062, %v5120
    %v5133 = vadd.f32 %v5063, %v5120
    %v5134 = vadd.f32 %v5064, %v5120
    %v5135 = vadd.f32 %v5065, %v5120
    %v5136 = vadd.f32 %v5066, %v5120
    %v5137 = vadd.f32 %v5067, %v5120
    %v5138 = vadd.f32 %v5068, %v5120
    %v5139 = vadd.f32 %v5069, %v5120
    %v5140 = vadd.f32 %v5070, %v5120
    %v5141 = vadd.f32 %v5071, %v5120
    %v5142 = vadd.f32 %v5072, %v5120
    %v5143 = vadd.f32 %v5073, %v5120
    %v5144 = vadd.f32 %v5074, %v5120
    %v5145 = vadd.f32 %v5075, %v5120
    %v5146 = vadd.f32 %v5076, %v5120
    %v5147 = vadd.f32 %v5077, %v5120
    %v5148 = vadd.f32 %v5078, %v5120
    %v5149 = vadd.f32 %v5079, %v5120
    %v5150 = vadd.f32 %v5080, %v5120
    %v5151 = vadd.f32 %v5081, %v5120
    %v5152 = vadd.f32 %v5082, %v5120
    %v5153 = vadd.f32 %v5083, %v5120
    %v5154 = vadd.f32 %v5084, %v5120
    %v5155 = vadd.f32 %v5085, %v5120
    %v5156 = vadd.f32 %v5086, %v5120
    %v5157 = vadd.f32 %v5087, %v5120
    %v5158 = vadd.f32 %v5088, %v5120
    %v5159 = vadd.f32 %v5089, %v5120
    %v5160 = vadd.f32 %v5090, %v5120
    %v5161 = vadd.f32 %v5091, %v5120
    %v5162 = vadd.f32 %v5092, %v5120
    %v5163 = vadd.f32 %v5093, %v5120
    %v5164 = vadd.f32 %v5094, %v5120
    %v5165 = vadd.f32 %v5095, %v5120
    %v5166 = vadd.f32 %v5096, %v5120
    %v5167 = vadd.f32 %v5097, %v5120
    %v5168 = vadd.f32 %v5098, %v5120
    %v5169 = vadd.f32 %v5099, %v5120
    %v5170 = vadd.f32 %v5100, %v5120
    %v5171 = vadd.f32 %v5101, %v5120
    %v5172 = vadd.f32 %v5102, %v5120
    %v5173 = vadd.f32 %v5103, %v5120
    %v5174 = vadd.f32 %v5104, %v5120
    %v5175 = vadd.f32 %v5105, %v5120
    %v5176 = vadd.f32 %v5106, %v5120
    %v5177 = vadd.f32 %v5107, %v5120
    %v5178 = vadd.f32 %v5108, %v5120
    %v5179 = vadd.f32 %v5109, %v5120
    %v5180 = vadd.f32 %v5110, %v5120
    %v5181 = vadd.f32 %v5111, %v5120
    %v5182 = vadd.f32 %v5112, %v5120
    %v5183 = vadd.f32 %v5113, %v5120
    %v5184 = vadd.f32 %v5114, %v5120
    %v5185 = vadd.f32 %v5115, %v5120
    %v5186 = vmax.f32 %v5122, 0.0
    %v5187 = vmax.f32 %v5123, 0.0
    %v5188 = vmax.f32 %v5124, 0.0
    %v5189 = vmax.f32 %v5125, 0.0
    %v5190 = vmax.f32 %v5126, 0.0
    %v5191 = vmax.f32 %v5127, 0.0
    %v5192 = vmax.f32 %v5128, 0.0
    %v5193 = vmax.f32 %v5129, 0.0
    %v5194 = vmax.f32 %v5130, 0.0
    %v5195 = vmax.f32 %v5131, 0.0
    %v5196 = vmax.f32 %v5132, 0.0
    %v5197 = vmax.f32 %v5133, 0.0
    %v5198 = vmax.f32 %v5134, 0.0
    %v5199 = vmax.f32 %v5135, 0.0
    %v5200 = vmax.f32 %v5136, 0.0
    %v5201 = vmax.f32 %v5137, 0.0
    %v5202 = vmax.f32 %v5138, 0.0
    %v5203 = vmax.f32 %v5139, 0.0
    %v5204 = vmax.f32 %v5140, 0.0
    %v5205 = vmax.f32 %v5141, 0.0
    %v5206 = vmax.f32 %v5142, 0.0
    %v5207 = vmax.f32 %v5143, 0.0
    %v5208 = vmax.f32 %v5144, 0.0
    %v5209 = vmax.f32 %v5145, 0.0
    %v5210 = vmax.f32 %v5146, 0.0
    %v5211 = vmax.f32 %v5147, 0.0
    %v5212 = vmax.f32 %v5148, 0.0
    %v5213 = vmax.f32 %v5149, 0.0
    %v5214 = vmax.f32 %v5150, 0.0
    %v5215 = vmax.f32 %v5151, 0.0
    %v5216 = vmax.f32 %v5152, 0.0
    %v5217 = vmax.f32 %v5153, 0.0
    %v5218 = vmax.f32 %v5154, 0.0
    %v5219 = vmax.f32 %v5155, 0.0
    %v5220 = vmax.f32 %v5156, 0.0
    %v5221 = vmax.f32 %v5157, 0.0
    %v5222 = vmax.f32 %v5158, 0.0
    %v5223 = vmax.f32 %v5159, 0.0
    %v5224 = vmax.f32 %v5160, 0.0
    %v5225 = vmax.f32 %v5161, 0.0
    %v5226 = vmax.f32 %v5162, 0.0
    %v5227 = vmax.f32 %v5163, 0.0
    %v5228 = vmax.f32 %v5164, 0.0
    %v5229 = vmax.f32 %v5165, 0.0
    %v5230 = vmax.f32 %v5166, 0.0
    %v5231 = vmax.f32 %v5167, 0.0
    %v5232 = vmax.f32 %v5168, 0.0
    %v5233 = vmax.f32 %v5169, 0.0
    %v5234 = vmax.f32 %v5170, 0.0
    %v5235 = vmax.f32 %v5171, 0.0
    %v5236 = vmax.f32 %v5172, 0.0
    %v5237 = vmax.f32 %v5173, 0.0
    %v5238 = vmax.f32 %v5174, 0.0
    %v5239 = vmax.f32 %v5175, 0.0
    %v5240 = vmax.f32 %v5176, 0.0
    %v5241 = vmax.f32 %v5177, 0.0
    %v5242 = vmax.f32 %v5178, 0.0
    %v5243 = vmax.f32 %v5179, 0.0
    %v5244 = vmax.f32 %v5180, 0.0
    %v5245 = vmax.f32 %v5181, 0.0
    %v5246 = vmax.f32 %v5182, 0.0
    %v5247 = vmax.f32 %v5183, 0.0
    %v5248 = vmax.f32 %v5184, 0.0
    %v5249 = vmax.f32 %v5185, 0.0
    %5250 = vst [vmem:[%s218 + $0x1] sm:$0xff] %v5186
    %5251 = vst [vmem:[%s218 + $0x9] sm:$0xff] %v5187
    %5252 = vst [vmem:[%s218 + $0x19] sm:$0xff] %v5188
    %5253 = vst [vmem:[%s218 + $0x21] sm:$0xff] %v5189
    %5254 = vst [vmem:[%s218 + $0x31] sm:$0xff] %v5190
    %5255 = vst [vmem:[%s218 + $0x39] sm:$0xff] %v5191
    %5256 = vst [vmem:[%s218 + $0x49] sm:$0xff] %v5192
    %5257 = vst [vmem:[%s218 + $0x51] sm:$0xff] %v5193
    %5258 = vst [vmem:[%s218 + $0x61] sm:$0xff] %v5194
    %5259 = vst [vmem:[%s218 + $0x69] sm:$0xff] %v5195
    %5260 = vst [vmem:[%s218 + $0x79] sm:$0xff] %v5196
    %5261 = vst [vmem:[%s218 + $0x81] sm:$0xff] %v5197
    %5262 = vst [vmem:[%s218 + $0x91] sm:$0xff] %v5198
    %5263 = vst [vmem:[%s218 + $0x99] sm:$0xff] %v5199
    %5264 = vst [vmem:[%s218 + $0xa9] sm:$0xff] %v5200
    %5265 = vst [vmem:[%s218 + $0xb1] sm:$0xff] %v5201
    %5266 = vst [vmem:[%s218 + $0xc1] sm:$0xff] %v5202
    %5267 = vst [vmem:[%s218 + $0xc9] sm:$0xff] %v5203
    %5268 = vst [vmem:[%s218 + $0xd9] sm:$0xff] %v5204
    %5269 = vst [vmem:[%s218 + $0xe1] sm:$0xff] %v5205
    %5270 = vst [vmem:[%s218 + $0xf1] sm:$0xff] %v5206
    %5271 = vst [vmem:[%s218 + $0xf9] sm:$0xff] %v5207
    %5272 = vst [vmem:[%s218 + $0x109] sm:$0xff] %v5208
    %5273 = vst [vmem:[%s218 + $0x111] sm:$0xff] %v5209
    %5274 = vst [vmem:[%s218 + $0x121] sm:$0xff] %v5210
    %5275 = vst [vmem:[%s218 + $0x129] sm:$0xff] %v5211
    %5276 = vst [vmem:[%s218 + $0x139] sm:$0xff] %v5212
    %5277 = vst [vmem:[%s218 + $0x141] sm:$0xff] %v5213
    %5278 = vst [vmem:[%s218 + $0x151] sm:$0xff] %v5214
    %5279 = vst [vmem:[%s218 + $0x159] sm:$0xff] %v5215
    %5280 = vst [vmem:[%s218 + $0x169] sm:$0xff] %v5216
    %5281 = vst [vmem:[%s218 + $0x171] sm:$0xff] %v5217
    %5282 = vst [vmem:[%s218 + $0x1b1] sm:$0xff] %v5218
    %5283 = vst [vmem:[%s218 + $0x1b9] sm:$0xff] %v5219
    %5284 = vst [vmem:[%s218 + $0x1c9] sm:$0xff] %v5220
    %5285 = vst [vmem:[%s218 + $0x1d1] sm:$0xff] %v5221
    %5286 = vst [vmem:[%s218 + $0x1e1] sm:$0xff] %v5222
    %5287 = vst [vmem:[%s218 + $0x1e9] sm:$0xff] %v5223
    %5288 = vst [vmem:[%s218 + $0x1f9] sm:$0xff] %v5224
    %5289 = vst [vmem:[%s218 + $0x201] sm:$0xff] %v5225
    %5290 = vst [vmem:[%s218 + $0x211] sm:$0xff] %v5226
    %5291 = vst [vmem:[%s218 + $0x219] sm:$0xff] %v5227
    %5292 = vst [vmem:[%s218 + $0x229] sm:$0xff] %v5228
    %5293 = vst [vmem:[%s218 + $0x231] sm:$0xff] %v5229
    %5294 = vst [vmem:[%s218 + $0x241] sm:$0xff] %v5230
    %5295 = vst [vmem:[%s218 + $0x249] sm:$0xff] %v5231
    %5296 = vst [vmem:[%s218 + $0x259] sm:$0xff] %v5232
    %5297 = vst [vmem:[%s218 + $0x261] sm:$0xff] %v5233
    %5298 = vst [vmem:[%s218 + $0x271] sm:$0xff] %v5234
    %5299 = vst [vmem:[%s218 + $0x279] sm:$0xff] %v5235
    %5300 = vst [vmem:[%s218 + $0x289] sm:$0xff] %v5236
    %5301 = vst [vmem:[%s218 + $0x291] sm:$0xff] %v5237
    %5302 = vst [vmem:[%s218 + $0x2a1] sm:$0xff] %v5238
    %5303 = vst [vmem:[%s218 + $0x2a9] sm:$0xff] %v5239
    %5304 = vst [vmem:[%s218 + $0x2b9] sm:$0xff] %v5240
    %5305 = vst [vmem:[%s218 + $0x2c1] sm:$0xff] %v5241
    %5306 = vst [vmem:[%s218 + $0x2d1] sm:$0xff] %v5242
    %5307 = vst [vmem:[%s218 + $0x2d9] sm:$0xff] %v5243
    %5308 = vst [vmem:[%s218 + $0x2e9] sm:$0xff] %v5244
    %5309 = vst [vmem:[%s218 + $0x2f1] sm:$0xff] %v5245
    %5310 = vst [vmem:[%s218 + $0x301] sm:$0xff] %v5246
    %5311 = vst [vmem:[%s218 + $0x309] sm:$0xff] %v5247
    %5312 = vst [vmem:[%s218 + $0x319] sm:$0xff] %v5248
    %5313 = vst [vmem:[%s218 + $0x321] sm:$0xff] %v5249
    %v5314 = vld [vmem:[#allocation2] sm:$0xff]
    %v5315 = vld [vmem:[#allocation2 + $0x8] sm:$0xff]
    %v5316 = vld [vmem:[#allocation2 + $0x18] sm:$0xff]
    %v5317 = vld [vmem:[#allocation2 + $0x20] sm:$0xff]
    %v5318 = vld [vmem:[#allocation2 + $0x30] sm:$0xff]
    %v5319 = vld [vmem:[#allocation2 + $0x38] sm:$0xff]
    %v5320 = vld [vmem:[#allocation2 + $0x48] sm:$0xff]
    %v5321 = vld [vmem:[#allocation2 + $0x50] sm:$0xff]
    %v5322 = vld [vmem:[#allocation2 + $0x60] sm:$0xff]
    %v5323 = vld [vmem:[#allocation2 + $0x68] sm:$0xff]
    %v5324 = vld [vmem:[#allocation2 + $0x78] sm:$0xff]
    %v5325 = vld [vmem:[#allocation2 + $0x80] sm:$0xff]
    %v5326 = vld [vmem:[#allocation2 + $0x90] sm:$0xff]
    %v5327 = vld [vmem:[#allocation2 + $0x98] sm:$0xff]
    %v5328 = vld [vmem:[#allocation2 + $0xa8] sm:$0xff]
    %v5329 = vld [vmem:[#allocation2 + $0xb0] sm:$0xff]
    %v5330 = vld [vmem:[#allocation2 + $0xc0] sm:$0xff]
    %v5331 = vld [vmem:[#allocation2 + $0xc8] sm:$0xff]
    %v5332 = vld [vmem:[#allocation2 + $0xd8] sm:$0xff]
    %v5333 = vld [vmem:[#allocation2 + $0xe0] sm:$0xff]
    %v5334 = vld [vmem:[#allocation2 + $0xf0] sm:$0xff]
    %v5335 = vld [vmem:[#allocation2 + $0xf8] sm:$0xff]
    %v5336 = vld [vmem:[#allocation2 + $0x108] sm:$0xff]
    %v5337 = vld [vmem:[#allocation2 + $0x110] sm:$0xff]
    %v5338 = vld [vmem:[#allocation2 + $0x120] sm:$0xff]
    %v5339 = vld [vmem:[#allocation2 + $0x128] sm:$0xff]
    %v5340 = vld [vmem:[#allocation2 + $0x138] sm:$0xff]
    %v5341 = vld [vmem:[#allocation2 + $0x140] sm:$0xff]
    %v5342 = vld [vmem:[#allocation2 + $0x150] sm:$0xff]
    %v5343 = vld [vmem:[#allocation2 + $0x158] sm:$0xff]
    %v5344 = vld [vmem:[#allocation2 + $0x168] sm:$0xff]
    %v5345 = vld [vmem:[#allocation2 + $0x170] sm:$0xff]
    %v5346 = vld [vmem:[#allocation2 + $0x1b0] sm:$0xff]
    %v5347 = vld [vmem:[#allocation2 + $0x1b8] sm:$0xff]
    %v5348 = vld [vmem:[#allocation2 + $0x1c8] sm:$0xff]
    %v5349 = vld [vmem:[#allocation2 + $0x1d0] sm:$0xff]
    %v5350 = vld [vmem:[#allocation2 + $0x1e0] sm:$0xff]
    %v5351 = vld [vmem:[#allocation2 + $0x1e8] sm:$0xff]
    %v5352 = vld [vmem:[#allocation2 + $0x1f8] sm:$0xff]
    %v5353 = vld [vmem:[#allocation2 + $0x200] sm:$0xff]
    %v5354 = vld [vmem:[#allocation2 + $0x210] sm:$0xff]
    %v5355 = vld [vmem:[#allocation2 + $0x218] sm:$0xff]
    %v5356 = vld [vmem:[#allocation2 + $0x228] sm:$0xff]
    %v5357 = vld [vmem:[#allocation2 + $0x230] sm:$0xff]
    %v5358 = vld [vmem:[#allocation2 + $0x240] sm:$0xff]
    %v5359 = vld [vmem:[#allocation2 + $0x248] sm:$0xff]
    %v5360 = vld [vmem:[#allocation2 + $0x258] sm:$0xff]
    %v5361 = vld [vmem:[#allocation2 + $0x260] sm:$0xff]
    %v5362 = vld [vmem:[#allocation2 + $0x270] sm:$0xff]
    %v5363 = vld [vmem:[#allocation2 + $0x278] sm:$0xff]
    %v5364 = vld [vmem:[#allocation2 + $0x288] sm:$0xff]
    %v5365 = vld [vmem:[#allocation2 + $0x290] sm:$0xff]
    %v5366 = vld [vmem:[#allocation2 + $0x2a0] sm:$0xff]
    %v5367 = vld [vmem:[#allocation2 + $0x2a8] sm:$0xff]
    %v5368 = vld [vmem:[#allocation2 + $0x2b8] sm:$0xff]
    %v5369 = vld [vmem:[#allocation2 + $0x2c0] sm:$0xff]
    %v5370 = vld [vmem:[#allocation2 + $0x2d0] sm:$0xff]
    %v5371 = vld [vmem:[#allocation2 + $0x2d8] sm:$0xff]
    %v5372 = vld [vmem:[#allocation2 + $0x2e8] sm:$0xff]
    %v5373 = vld [vmem:[#allocation2 + $0x2f0] sm:$0xff]
    %v5374 = vld [vmem:[#allocation2 + $0x300] sm:$0xff]
    %v5375 = vld [vmem:[#allocation2 + $0x308] sm:$0xff]
    %v5376 = vld [vmem:[#allocation2 + $0x318] sm:$0xff]
    %v5377 = vld [vmem:[#allocation2 + $0x320] sm:$0xff]
    %v5378 = vpack.c.bf16 %v5315, %v5314
    %v5379 = vpack.c.bf16 %v5317, %v5316
    %v5380 = vpack.c.bf16 %v5319, %v5318
    %v5381 = vpack.c.bf16 %v5321, %v5320
    %v5382 = vpack.c.bf16 %v5323, %v5322
    %v5383 = vpack.c.bf16 %v5325, %v5324
    %v5384 = vpack.c.bf16 %v5327, %v5326
    %v5385 = vpack.c.bf16 %v5329, %v5328
    %v5386 = vpack.c.bf16 %v5331, %v5330
    %v5387 = vpack.c.bf16 %v5333, %v5332
    %v5388 = vpack.c.bf16 %v5335, %v5334
    %v5389 = vpack.c.bf16 %v5337, %v5336
    %v5390 = vpack.c.bf16 %v5339, %v5338
    %v5391 = vpack.c.bf16 %v5341, %v5340
    %v5392 = vpack.c.bf16 %v5343, %v5342
    %v5393 = vpack.c.bf16 %v5345, %v5344
    %v5394 = vpack.c.bf16 %v5347, %v5346
    %v5395 = vpack.c.bf16 %v5349, %v5348
    %v5396 = vpack.c.bf16 %v5351, %v5350
    %v5397 = vpack.c.bf16 %v5353, %v5352
    %v5398 = vpack.c.bf16 %v5355, %v5354
    %v5399 = vpack.c.bf16 %v5357, %v5356
    %v5400 = vpack.c.bf16 %v5359, %v5358
    %v5401 = vpack.c.bf16 %v5361, %v5360
    %v5402 = vpack.c.bf16 %v5363, %v5362
    %v5403 = vpack.c.bf16 %v5365, %v5364
    %v5404 = vpack.c.bf16 %v5367, %v5366
    %v5405 = vpack.c.bf16 %v5369, %v5368
    %v5406 = vpack.c.bf16 %v5371, %v5370
    %v5407 = vpack.c.bf16 %v5373, %v5372
    %v5408 = vpack.c.bf16 %v5375, %v5374
    %v5409 = vpack.c.bf16 %v5377, %v5376
    %v5410 = vld [vmem:[#allocation8] sm:$0xf]
    %v5411 = vld [vmem:[#allocation8 + $0x4] sm:$0xf]
    %v5412 = vld [vmem:[#allocation8 + $0x8] sm:$0xf]
    %v5413 = vld [vmem:[#allocation8 + $0xc] sm:$0xf]
    %v5414 = vld [vmem:[#allocation8 + $0x10] sm:$0xf]
    %v5415 = vld [vmem:[#allocation8 + $0x14] sm:$0xf]
    %v5416 = vld [vmem:[#allocation8 + $0x18] sm:$0xf]
    %v5417 = vld [vmem:[#allocation8 + $0x1c] sm:$0xf]
    %v5418 = vld [vmem:[#allocation8 + $0x20] sm:$0xf]
    %v5419 = vld [vmem:[#allocation8 + $0x24] sm:$0xf]
    %v5420 = vld [vmem:[#allocation8 + $0x28] sm:$0xf]
    %v5421 = vld [vmem:[#allocation8 + $0x2c] sm:$0xf]
    %v5422 = vld [vmem:[#allocation8 + $0x30] sm:$0xf]
    %v5423 = vld [vmem:[#allocation8 + $0x34] sm:$0xf]
    %v5424 = vld [vmem:[#allocation8 + $0x38] sm:$0xf]
    %v5425 = vld [vmem:[#allocation8 + $0x3c] sm:$0xf]
    %v5426 = vld [vmem:[#allocation2 + $0x1] sm:$0xff]
    %v5427 = vld [vmem:[#allocation2 + $0x9] sm:$0xff]
    %v5428 = vld [vmem:[#allocation2 + $0x19] sm:$0xff]
    %v5429 = vld [vmem:[#allocation2 + $0x21] sm:$0xff]
    %v5430 = vld [vmem:[#allocation2 + $0x31] sm:$0xff]
    %v5431 = vld [vmem:[#allocation2 + $0x39] sm:$0xff]
    %v5432 = vld [vmem:[#allocation2 + $0x49] sm:$0xff]
    %v5433 = vld [vmem:[#allocation2 + $0x51] sm:$0xff]
    %v5434 = vld [vmem:[#allocation2 + $0x61] sm:$0xff]
    %v5435 = vld [vmem:[#allocation2 + $0x69] sm:$0xff]
    %v5436 = vld [vmem:[#allocation2 + $0x79] sm:$0xff]
    %v5437 = vld [vmem:[#allocation2 + $0x81] sm:$0xff]
    %v5438 = vld [vmem:[#allocation2 + $0x91] sm:$0xff]
    %v5439 = vld [vmem:[#allocation2 + $0x99] sm:$0xff]
    %v5440 = vld [vmem:[#allocation2 + $0xa9] sm:$0xff]
    %v5441 = vld [vmem:[#allocation2 + $0xb1] sm:$0xff]
    %v5442 = vld [vmem:[#allocation2 + $0xc1] sm:$0xff]
    %v5443 = vld [vmem:[#allocation2 + $0xc9] sm:$0xff]
    %v5444 = vld [vmem:[#allocation2 + $0xd9] sm:$0xff]
    %v5445 = vld [vmem:[#allocation2 + $0xe1] sm:$0xff]
    %v5446 = vld [vmem:[#allocation2 + $0xf1] sm:$0xff]
    %v5447 = vld [vmem:[#allocation2 + $0xf9] sm:$0xff]
    %v5448 = vld [vmem:[#allocation2 + $0x109] sm:$0xff]
    %v5449 = vld [vmem:[#allocation2 + $0x111] sm:$0xff]
    %v5450 = vld [vmem:[#allocation2 + $0x121] sm:$0xff]
    %v5451 = vld [vmem:[#allocation2 + $0x129] sm:$0xff]
    %v5452 = vld [vmem:[#allocation2 + $0x139] sm:$0xff]
    %v5453 = vld [vmem:[#allocation2 + $0x141] sm:$0xff]
    %v5454 = vld [vmem:[#allocation2 + $0x151] sm:$0xff]
    %v5455 = vld [vmem:[#allocation2 + $0x159] sm:$0xff]
    %v5456 = vld [vmem:[#allocation2 + $0x169] sm:$0xff]
    %v5457 = vld [vmem:[#allocation2 + $0x171] sm:$0xff]
    %v5458 = vld [vmem:[#allocation2 + $0x1b1] sm:$0xff]
    %v5459 = vld [vmem:[#allocation2 + $0x1b9] sm:$0xff]
    %v5460 = vld [vmem:[#allocation2 + $0x1c9] sm:$0xff]
    %v5461 = vld [vmem:[#allocation2 + $0x1d1] sm:$0xff]
    %v5462 = vld [vmem:[#allocation2 + $0x1e1] sm:$0xff]
    %v5463 = vld [vmem:[#allocation2 + $0x1e9] sm:$0xff]
    %v5464 = vld [vmem:[#allocation2 + $0x1f9] sm:$0xff]
    %v5465 = vld [vmem:[#allocation2 + $0x201] sm:$0xff]
    %v5466 = vld [vmem:[#allocation2 + $0x211] sm:$0xff]
    %v5467 = vld [vmem:[#allocation2 + $0x219] sm:$0xff]
    %v5468 = vld [vmem:[#allocation2 + $0x229] sm:$0xff]
    %v5469 = vld [vmem:[#allocation2 + $0x231] sm:$0xff]
    %v5470 = vld [vmem:[#allocation2 + $0x241] sm:$0xff]
    %v5471 = vld [vmem:[#allocation2 + $0x249] sm:$0xff]
    %v5472 = vld [vmem:[#allocation2 + $0x259] sm:$0xff]
    %v5473 = vld [vmem:[#allocation2 + $0x261] sm:$0xff]
    %v5474 = vld [vmem:[#allocation2 + $0x271] sm:$0xff]
    %v5475 = vld [vmem:[#allocation2 + $0x279] sm:$0xff]
    %v5476 = vld [vmem:[#allocation2 + $0x289] sm:$0xff]
    %v5477 = vld [vmem:[#allocation2 + $0x291] sm:$0xff]
    %v5478 = vld [vmem:[#allocation2 + $0x2a1] sm:$0xff]
    %v5479 = vld [vmem:[#allocation2 + $0x2a9] sm:$0xff]
    %v5480 = vld [vmem:[#allocation2 + $0x2b9] sm:$0xff]
    %v5481 = vld [vmem:[#allocation2 + $0x2c1] sm:$0xff]
    %v5482 = vld [vmem:[#allocation2 + $0x2d1] sm:$0xff]
    %v5483 = vld [vmem:[#allocation2 + $0x2d9] sm:$0xff]
    %v5484 = vld [vmem:[#allocation2 + $0x2e9] sm:$0xff]
    %v5485 = vld [vmem:[#allocation2 + $0x2f1] sm:$0xff]
    %v5486 = vld [vmem:[#allocation2 + $0x301] sm:$0xff]
    %v5487 = vld [vmem:[#allocation2 + $0x309] sm:$0xff]
    %v5488 = vld [vmem:[#allocation2 + $0x319] sm:$0xff]
    %v5489 = vld [vmem:[#allocation2 + $0x321] sm:$0xff]
    %v5490 = vpack.c.bf16 %v5427, %v5426
    %v5491 = vpack.c.bf16 %v5429, %v5428
    %v5492 = vpack.c.bf16 %v5431, %v5430
    %v5493 = vpack.c.bf16 %v5433, %v5432
    %v5494 = vpack.c.bf16 %v5435, %v5434
    %v5495 = vpack.c.bf16 %v5437, %v5436
    %v5496 = vpack.c.bf16 %v5439, %v5438
    %v5497 = vpack.c.bf16 %v5441, %v5440
    %v5498 = vpack.c.bf16 %v5443, %v5442
    %v5499 = vpack.c.bf16 %v5445, %v5444
    %v5500 = vpack.c.bf16 %v5447, %v5446
    %v5501 = vpack.c.bf16 %v5449, %v5448
    %v5502 = vpack.c.bf16 %v5451, %v5450
    %v5503 = vpack.c.bf16 %v5453, %v5452
    %v5504 = vpack.c.bf16 %v5455, %v5454
    %v5505 = vpack.c.bf16 %v5457, %v5456
    %v5506 = vpack.c.bf16 %v5459, %v5458
    %v5507 = vpack.c.bf16 %v5461, %v5460
    %v5508 = vpack.c.bf16 %v5463, %v5462
    %v5509 = vpack.c.bf16 %v5465, %v5464
    %v5510 = vpack.c.bf16 %v5467, %v5466
    %v5511 = vpack.c.bf16 %v5469, %v5468
    %v5512 = vpack.c.bf16 %v5471, %v5470
    %v5513 = vpack.c.bf16 %v5473, %v5472
    %v5514 = vpack.c.bf16 %v5475, %v5474
    %v5515 = vpack.c.bf16 %v5477, %v5476
    %v5516 = vpack.c.bf16 %v5479, %v5478
    %v5517 = vpack.c.bf16 %v5481, %v5480
    %v5518 = vpack.c.bf16 %v5483, %v5482
    %v5519 = vpack.c.bf16 %v5485, %v5484
    %v5520 = vpack.c.bf16 %v5487, %v5486
    %v5521 = vpack.c.bf16 %v5489, %v5488
    %v5522 = vld [vmem:[#allocation8 + $0x40] sm:$0xf]
    %v5523 = vld [vmem:[#allocation8 + $0x44] sm:$0xf]
    %v5524 = vld [vmem:[#allocation8 + $0x48] sm:$0xf]
    %v5525 = vld [vmem:[#allocation8 + $0x4c] sm:$0xf]
    %v5526 = vld [vmem:[#allocation8 + $0x50] sm:$0xf]
    %v5527 = vld [vmem:[#allocation8 + $0x54] sm:$0xf]
    %v5528 = vld [vmem:[#allocation8 + $0x58] sm:$0xf]
    %v5529 = vld [vmem:[#allocation8 + $0x5c] sm:$0xf]
    %v5530 = vld [vmem:[#allocation8 + $0x60] sm:$0xf]
    %v5531 = vld [vmem:[#allocation8 + $0x64] sm:$0xf]
    %v5532 = vld [vmem:[#allocation8 + $0x68] sm:$0xf]
    %v5533 = vld [vmem:[#allocation8 + $0x6c] sm:$0xf]
    %v5534 = vld [vmem:[#allocation8 + $0x70] sm:$0xf]
    %v5535 = vld [vmem:[#allocation8 + $0x74] sm:$0xf]
    %v5536 = vld [vmem:[#allocation8 + $0x78] sm:$0xf]
    %v5537 = vld [vmem:[#allocation8 + $0x7c] sm:$0xf]
    %v5554 = vunpack.c.l.b16 %v5522
    %v5555 = vunpack.c.l.b16 %v5523
    %v5556 = vunpack.c.l.b16 %v5524
    %v5557 = vunpack.c.l.b16 %v5525
    %v5558 = vunpack.c.l.b16 %v5526
    %v5559 = vunpack.c.l.b16 %v5527
    %v5560 = vunpack.c.l.b16 %v5528
    %v5561 = vunpack.c.l.b16 %v5529
    %v5562 = vunpack.c.l.b16 %v5530
    %v5563 = vunpack.c.l.b16 %v5531
    %v5564 = vunpack.c.l.b16 %v5532
    %v5565 = vunpack.c.l.b16 %v5533
    %v5566 = vunpack.c.l.b16 %v5534
    %v5567 = vunpack.c.l.b16 %v5535
    %v5568 = vunpack.c.l.b16 %v5536
    %v5569 = vunpack.c.l.b16 %v5537
    %v5570 = vpack.c.b16 %v5555, %v5554
    %v5571 = vpack.c.b16 %v5557, %v5556
    %v5572 = vpack.c.b16 %v5559, %v5558
    %v5573 = vpack.c.b16 %v5561, %v5560
    %v5574 = vpack.c.b16 %v5563, %v5562
    %v5575 = vpack.c.b16 %v5565, %v5564
    %v5576 = vpack.c.b16 %v5567, %v5566
    %v5577 = vpack.c.b16 %v5569, %v5568
    %5586 = vmatprep.subr.bf16.mxu0 0
    %5587 = vmatpush1.bf16.msra.mxu0 %v5570
    %5588 = vmatprep.subr.bf16.mxu0 0
    %5589 = vmatpush1.bf16.msra.mxu0 %v5571
    %5590 = vmatprep.subr.bf16.mxu0 0
    %5591 = vmatpush1.bf16.msra.mxu0 %v5572
    %5592 = vmatprep.subr.bf16.mxu0 0
    %5593 = vmatpush1.bf16.msra.mxu0 %v5573
    %5594 = vmatprep.subr.bf16.mxu0 0
    %5595 = vmatpush1.bf16.msra.mxu0 %v5574
    %5596 = vmatprep.subr.bf16.mxu0 0
    %5597 = vmatpush1.bf16.msra.mxu0 %v5575
    %5598 = vmatprep.subr.bf16.mxu0 0
    %5599 = vmatpush1.bf16.msra.mxu0 %v5576
    %5600 = vmatprep.subr.bf16.mxu0 0
    %5601 = vmatpush1.bf16.msra.mxu0 %v5577
    %5602 = vmatprep.subr.bf16.mxu0 0
    %5603 = vmatpush1.bf16.msra.mxu0 0
    %5604 = vmatprep.subr.bf16.mxu0 0
    %5605 = vmatpush1.bf16.msra.mxu0 0
    %5606 = vmatprep.subr.bf16.mxu0 0
    %5607 = vmatpush1.bf16.msra.mxu0 0
    %5608 = vmatprep.subr.bf16.mxu0 0
    %5609 = vmatpush1.bf16.msra.mxu0 0
    %5610 = vmatprep.subr.bf16.mxu0 0
    %5611 = vmatpush1.bf16.msra.mxu0 0
    %5612 = vmatprep.subr.bf16.mxu0 0
    %5613 = vmatpush1.bf16.msra.mxu0 0
    %5614 = vmatprep.subr.bf16.mxu0 0
    %5615 = vmatpush1.bf16.msra.mxu0 0
    %5616 = vmatprep.subr.bf16.mxu0 0
    %5617 = vmatpush1.bf16.msra.mxu0 0
    %5618 = vmatprep.mubr.bf16.mxu0 0
    %5619 = vmatmul.mubr.bf16.gmra.mrb[0].mxu0 %v5490
    %v5620 = vpop.f32.mrb[0].mxu0
    %v5621 = vadd.f32 0.0, %v5620
    %v5622 = vpop.f32.mrb[0].mxu0
    %v5623 = vpop.f32.mrb[0].mxu0
    %v5624 = vadd.f32 0.0, %v5623
    %v5625 = vpop.f32.mrb[0].mxu0
    %5626 = vmatprep.mubr.bf16.mxu0 0
    %5627 = vmatmul.mubr.bf16.gmra.mrb[0].mxu0 %v5491
    %v5628 = vpop.f32.mrb[0].mxu0
    %v5629 = vadd.f32 0.0, %v5628
    %v5630 = vpop.f32.mrb[0].mxu0
    %v5631 = vpop.f32.mrb[0].mxu0
    %v5632 = vadd.f32 0.0, %v5631
    %v5633 = vpop.f32.mrb[0].mxu0
    %5634 = vmatprep.mubr.bf16.mxu0 0
    %5635 = vmatmul.mubr.bf16.gmra.mrb[0].mxu0 %v5492
    %v5636 = vpop.f32.mrb[0].mxu0
    %v5637 = vadd.f32 0.0, %v5636
    %v5638 = vpop.f32.mrb[0].mxu0
    %v5639 = vpop.f32.mrb[0].mxu0
    %v5640 = vadd.f32 0.0, %v5639
    %v5641 = vpop.f32.mrb[0].mxu0
    %5642 = vmatprep.mubr.bf16.mxu0 0
    %5643 = vmatmul.mubr.bf16.gmra.mrb[0].mxu0 %v5493
    %v5644 = vpop.f32.mrb[0].mxu0
    %v5645 = vadd.f32 0.0, %v5644
    %v5646 = vpop.f32.mrb[0].mxu0
    %v5647 = vpop.f32.mrb[0].mxu0
    %v5648 = vadd.f32 0.0, %v5647
    %v5649 = vpop.f32.mrb[0].mxu0
    %5650 = vmatprep.mubr.bf16.mxu0 0
    %5651 = vmatmul.mubr.bf16.gmra.mrb[0].mxu0 %v5494
    %v5652 = vpop.f32.mrb[0].mxu0
    %v5653 = vadd.f32 0.0, %v5652
    %v5654 = vpop.f32.mrb[0].mxu0
    %v5655 = vpop.f32.mrb[0].mxu0
    %v5656 = vadd.f32 0.0, %v5655
    %v5657 = vpop.f32.mrb[0].mxu0
    %5658 = vmatprep.mubr.bf16.mxu0 0
    %5659 = vmatmul.mubr.bf16.gmra.mrb[0].mxu0 %v5495
    %v5660 = vpop.f32.mrb[0].mxu0
    %v5661 = vadd.f32 0.0, %v5660
    %v5662 = vpop.f32.mrb[0].mxu0
    %v5663 = vpop.f32.mrb[0].mxu0
    %v5664 = vadd.f32 0.0, %v5663
    %v5665 = vpop.f32.mrb[0].mxu0
    %5666 = vmatprep.mubr.bf16.mxu0 0
    %5667 = vmatmul.mubr.bf16.gmra.mrb[0].mxu0 %v5496
    %v5668 = vpop.f32.mrb[0].mxu0
    %v5669 = vadd.f32 0.0, %v5668
    %v5670 = vpop.f32.mrb[0].mxu0
    %v5671 = vpop.f32.mrb[0].mxu0
    %v5672 = vadd.f32 0.0, %v5671
    %v5673 = vpop.f32.mrb[0].mxu0
    %5674 = vmatprep.mubr.bf16.mxu0 0
    %5675 = vmatmul.mubr.bf16.gmra.mrb[0].mxu0 %v5497
    %v5676 = vpop.f32.mrb[0].mxu0
    %v5677 = vadd.f32 0.0, %v5676
    %v5678 = vpop.f32.mrb[0].mxu0
    %v5679 = vpop.f32.mrb[0].mxu0
    %v5680 = vadd.f32 0.0, %v5679
    %v5681 = vpop.f32.mrb[0].mxu0
    %5682 = vmatprep.mubr.bf16.mxu0 0
    %5683 = vmatmul.mubr.bf16.gmra.mrb[0].mxu0 %v5498
    %v5684 = vpop.f32.mrb[0].mxu0
    %v5685 = vadd.f32 0.0, %v5684
    %v5686 = vpop.f32.mrb[0].mxu0
    %v5687 = vpop.f32.mrb[0].mxu0
    %v5688 = vadd.f32 0.0, %v5687
    %v5689 = vpop.f32.mrb[0].mxu0
    %5690 = vmatprep.mubr.bf16.mxu0 0
    %5691 = vmatmul.mubr.bf16.gmra.mrb[0].mxu0 %v5499
    %v5692 = vpop.f32.mrb[0].mxu0
    %v5693 = vadd.f32 0.0, %v5692
    %v5694 = vpop.f32.mrb[0].mxu0
    %v5695 = vpop.f32.mrb[0].mxu0
    %v5696 = vadd.f32 0.0, %v5695
    %v5697 = vpop.f32.mrb[0].mxu0
    %5698 = vmatprep.mubr.bf16.mxu0 0
    %5699 = vmatmul.mubr.bf16.gmra.mrb[0].mxu0 %v5500
    %v5700 = vpop.f32.mrb[0].mxu0
    %v5701 = vadd.f32 0.0, %v5700
    %v5702 = vpop.f32.mrb[0].mxu0
    %v5703 = vpop.f32.mrb[0].mxu0
    %v5704 = vadd.f32 0.0, %v5703
    %v5705 = vpop.f32.mrb[0].mxu0
    %5706 = vmatprep.mubr.bf16.mxu0 0
    %5707 = vmatmul.mubr.bf16.gmra.mrb[0].mxu0 %v5501
    %v5708 = vpop.f32.mrb[0].mxu0
    %v5709 = vadd.f32 0.0, %v5708
    %v5710 = vpop.f32.mrb[0].mxu0
    %v5711 = vpop.f32.mrb[0].mxu0
    %v5712 = vadd.f32 0.0, %v5711
    %v5713 = vpop.f32.mrb[0].mxu0
    %5714 = vmatprep.mubr.bf16.mxu0 0
    %5715 = vmatmul.mubr.bf16.gmra.mrb[0].mxu0 %v5502
    %v5716 = vpop.f32.mrb[0].mxu0
    %v5717 = vadd.f32 0.0, %v5716
    %v5718 = vpop.f32.mrb[0].mxu0
    %v5719 = vpop.f32.mrb[0].mxu0
    %v5720 = vadd.f32 0.0, %v5719
    %v5721 = vpop.f32.mrb[0].mxu0
    %5722 = vmatprep.mubr.bf16.mxu0 0
    %5723 = vmatmul.mubr.bf16.gmra.mrb[0].mxu0 %v5503
    %v5724 = vpop.f32.mrb[0].mxu0
    %v5725 = vadd.f32 0.0, %v5724
    %v5726 = vpop.f32.mrb[0].mxu0
    %v5727 = vpop.f32.mrb[0].mxu0
    %v5728 = vadd.f32 0.0, %v5727
    %v5729 = vpop.f32.mrb[0].mxu0
    %5730 = vmatprep.mubr.bf16.mxu0 0
    %5731 = vmatmul.mubr.bf16.gmra.mrb[0].mxu0 %v5504
    %v5732 = vpop.f32.mrb[0].mxu0
    %v5733 = vadd.f32 0.0, %v5732
    %v5734 = vpop.f32.mrb[0].mxu0
    %v5735 = vpop.f32.mrb[0].mxu0
    %v5736 = vadd.f32 0.0, %v5735
    %v5737 = vpop.f32.mrb[0].mxu0
    %5738 = vmatprep.mubr.bf16.mxu0 0
    %5739 = vmatmul.mubr.bf16.gmra.mrb[0].mxu0 %v5505
    %v5740 = vpop.f32.mrb[0].mxu0
    %v5741 = vadd.f32 0.0, %v5740
    %v5742 = vpop.f32.mrb[0].mxu0
    %v5743 = vpop.f32.mrb[0].mxu0
    %v5744 = vadd.f32 0.0, %v5743
    %v5745 = vpop.f32.mrb[0].mxu0
    %5746 = vmatprep.mubr.bf16.mxu0 0
    %5747 = vmatmul.mubr.bf16.gmra.mrb[0].mxu0 %v5506
    %v5748 = vpop.f32.mrb[0].mxu0
    %v5749 = vadd.f32 0.0, %v5748
    %v5750 = vpop.f32.mrb[0].mxu0
    %v5751 = vpop.f32.mrb[0].mxu0
    %v5752 = vadd.f32 0.0, %v5751
    %v5753 = vpop.f32.mrb[0].mxu0
    %5754 = vmatprep.mubr.bf16.mxu0 0
    %5755 = vmatmul.mubr.bf16.gmra.mrb[0].mxu0 %v5507
    %v5756 = vpop.f32.mrb[0].mxu0
    %v5757 = vadd.f32 0.0, %v5756
    %v5758 = vpop.f32.mrb[0].mxu0
    %v5759 = vpop.f32.mrb[0].mxu0
    %v5760 = vadd.f32 0.0, %v5759
    %v5761 = vpop.f32.mrb[0].mxu0
    %5762 = vmatprep.mubr.bf16.mxu0 0
    %5763 = vmatmul.mubr.bf16.gmra.mrb[0].mxu0 %v5508
    %v5764 = vpop.f32.mrb[0].mxu0
    %v5765 = vadd.f32 0.0, %v5764
    %v5766 = vpop.f32.mrb[0].mxu0
    %v5767 = vpop.f32.mrb[0].mxu0
    %v5768 = vadd.f32 0.0, %v5767
    %v5769 = vpop.f32.mrb[0].mxu0
    %5770 = vmatprep.mubr.bf16.mxu0 0
    %5771 = vmatmul.mubr.bf16.gmra.mrb[0].mxu0 %v5509
    %v5772 = vpop.f32.mrb[0].mxu0
    %v5773 = vadd.f32 0.0, %v5772
    %v5774 = vpop.f32.mrb[0].mxu0
    %v5775 = vpop.f32.mrb[0].mxu0
    %v5776 = vadd.f32 0.0, %v5775
    %v5777 = vpop.f32.mrb[0].mxu0
    %5778 = vmatprep.mubr.bf16.mxu0 0
    %5779 = vmatmul.mubr.bf16.gmra.mrb[0].mxu0 %v5510
    %v5780 = vpop.f32.mrb[0].mxu0
    %v5781 = vadd.f32 0.0, %v5780
    %v5782 = vpop.f32.mrb[0].mxu0
    %v5783 = vpop.f32.mrb[0].mxu0
    %v5784 = vadd.f32 0.0, %v5783
    %v5785 = vpop.f32.mrb[0].mxu0
    %5786 = vmatprep.mubr.bf16.mxu0 0
    %5787 = vmatmul.mubr.bf16.gmra.mrb[0].mxu0 %v5511
    %v5788 = vpop.f32.mrb[0].mxu0
    %v5789 = vadd.f32 0.0, %v5788
    %v5790 = vpop.f32.mrb[0].mxu0
    %v5791 = vpop.f32.mrb[0].mxu0
    %v5792 = vadd.f32 0.0, %v5791
    %v5793 = vpop.f32.mrb[0].mxu0
    %5794 = vmatprep.mubr.bf16.mxu0 0
    %5795 = vmatmul.mubr.bf16.gmra.mrb[0].mxu0 %v5512
    %v5796 = vpop.f32.mrb[0].mxu0
    %v5797 = vadd.f32 0.0, %v5796
    %v5798 = vpop.f32.mrb[0].mxu0
    %v5799 = vpop.f32.mrb[0].mxu0
    %v5800 = vadd.f32 0.0, %v5799
    %v5801 = vpop.f32.mrb[0].mxu0
    %5802 = vmatprep.mubr.bf16.mxu0 0
    %5803 = vmatmul.mubr.bf16.gmra.mrb[0].mxu0 %v5513
    %v5804 = vpop.f32.mrb[0].mxu0
    %v5805 = vadd.f32 0.0, %v5804
    %v5806 = vpop.f32.mrb[0].mxu0
    %v5807 = vpop.f32.mrb[0].mxu0
    %v5808 = vadd.f32 0.0, %v5807
    %v5809 = vpop.f32.mrb[0].mxu0
    %5810 = vmatprep.mubr.bf16.mxu0 0
    %5811 = vmatmul.mubr.bf16.gmra.mrb[0].mxu0 %v5514
    %v5812 = vpop.f32.mrb[0].mxu0
    %v5813 = vadd.f32 0.0, %v5812
    %v5814 = vpop.f32.mrb[0].mxu0
    %v5815 = vpop.f32.mrb[0].mxu0
    %v5816 = vadd.f32 0.0, %v5815
    %v5817 = vpop.f32.mrb[0].mxu0
    %5818 = vmatprep.mubr.bf16.mxu0 0
    %5819 = vmatmul.mubr.bf16.gmra.mrb[0].mxu0 %v5515
    %v5820 = vpop.f32.mrb[0].mxu0
    %v5821 = vadd.f32 0.0, %v5820
    %v5822 = vpop.f32.mrb[0].mxu0
    %v5823 = vpop.f32.mrb[0].mxu0
    %v5824 = vadd.f32 0.0, %v5823
    %v5825 = vpop.f32.mrb[0].mxu0
    %5826 = vmatprep.mubr.bf16.mxu0 0
    %5827 = vmatmul.mubr.bf16.gmra.mrb[0].mxu0 %v5516
    %v5828 = vpop.f32.mrb[0].mxu0
    %v5829 = vadd.f32 0.0, %v5828
    %v5830 = vpop.f32.mrb[0].mxu0
    %v5831 = vpop.f32.mrb[0].mxu0
    %v5832 = vadd.f32 0.0, %v5831
    %v5833 = vpop.f32.mrb[0].mxu0
    %5834 = vmatprep.mubr.bf16.mxu0 0
    %5835 = vmatmul.mubr.bf16.gmra.mrb[0].mxu0 %v5517
    %v5836 = vpop.f32.mrb[0].mxu0
    %v5837 = vadd.f32 0.0, %v5836
    %v5838 = vpop.f32.mrb[0].mxu0
    %v5839 = vpop.f32.mrb[0].mxu0
    %v5840 = vadd.f32 0.0, %v5839
    %v5841 = vpop.f32.mrb[0].mxu0
    %5842 = vmatprep.mubr.bf16.mxu0 0
    %5843 = vmatmul.mubr.bf16.gmra.mrb[0].mxu0 %v5518
    %v5844 = vpop.f32.mrb[0].mxu0
    %v5845 = vadd.f32 0.0, %v5844
    %v5846 = vpop.f32.mrb[0].mxu0
    %v5847 = vpop.f32.mrb[0].mxu0
    %v5848 = vadd.f32 0.0, %v5847
    %v5849 = vpop.f32.mrb[0].mxu0
    %5850 = vmatprep.mubr.bf16.mxu0 0
    %5851 = vmatmul.mubr.bf16.gmra.mrb[0].mxu0 %v5519
    %v5852 = vpop.f32.mrb[0].mxu0
    %v5853 = vadd.f32 0.0, %v5852
    %v5854 = vpop.f32.mrb[0].mxu0
    %v5855 = vpop.f32.mrb[0].mxu0
    %v5856 = vadd.f32 0.0, %v5855
    %v5857 = vpop.f32.mrb[0].mxu0
    %5858 = vmatprep.mubr.bf16.mxu0 0
    %5859 = vmatmul.mubr.bf16.gmra.mrb[0].mxu0 %v5520
    %v5860 = vpop.f32.mrb[0].mxu0
    %v5861 = vadd.f32 0.0, %v5860
    %v5862 = vpop.f32.mrb[0].mxu0
    %v5863 = vpop.f32.mrb[0].mxu0
    %v5864 = vadd.f32 0.0, %v5863
    %v5865 = vpop.f32.mrb[0].mxu0
    %5866 = vmatprep.mubr.bf16.mxu0 0
    %5867 = vmatmul.mubr.bf16.gmra.mrb[0].mxu0 %v5521
    %v5868 = vpop.f32.mrb[0].mxu0
    %v5869 = vadd.f32 0.0, %v5868
    %v5870 = vpop.f32.mrb[0].mxu0
    %v5871 = vpop.f32.mrb[0].mxu0
    %v5872 = vadd.f32 0.0, %v5871
    %v5873 = vpop.f32.mrb[0].mxu0
    %5874 = vdwg.mxu0
    %v5891 = vunpack.c.l.b16 %v5410
    %v5892 = vunpack.c.l.b16 %v5411
    %v5893 = vunpack.c.l.b16 %v5412
    %v5894 = vunpack.c.l.b16 %v5413
    %v5895 = vunpack.c.l.b16 %v5414
    %v5896 = vunpack.c.l.b16 %v5415
    %v5897 = vunpack.c.l.b16 %v5416
    %v5898 = vunpack.c.l.b16 %v5417
    %v5899 = vunpack.c.l.b16 %v5418
    %v5900 = vunpack.c.l.b16 %v5419
    %v5901 = vunpack.c.l.b16 %v5420
    %v5902 = vunpack.c.l.b16 %v5421
    %v5903 = vunpack.c.l.b16 %v5422
    %v5904 = vunpack.c.l.b16 %v5423
    %v5905 = vunpack.c.l.b16 %v5424
    %v5906 = vunpack.c.l.b16 %v5425
    %v5907 = vpack.c.b16 %v5892, %v5891
    %v5908 = vpack.c.b16 %v5894, %v5893
    %v5909 = vpack.c.b16 %v5896, %v5895
    %v5910 = vpack.c.b16 %v5898, %v5897
    %v5911 = vpack.c.b16 %v5900, %v5899
    %v5912 = vpack.c.b16 %v5902, %v5901
    %v5913 = vpack.c.b16 %v5904, %v5903
    %v5914 = vpack.c.b16 %v5906, %v5905
    %5923 = vmatprep.subr.bf16.mxu0 0
    %5924 = vmatpush1.bf16.msra.mxu0 %v5907
    %5925 = vmatprep.subr.bf16.mxu0 0
    %5926 = vmatpush1.bf16.msra.mxu0 %v5908
    %5927 = vmatprep.subr.bf16.mxu0 0
    %5928 = vmatpush1.bf16.msra.mxu0 %v5909
    %5929 = vmatprep.subr.bf16.mxu0 0
    %5930 = vmatpush1.bf16.msra.mxu0 %v5910
    %5931 = vmatprep.subr.bf16.mxu0 0
    %5932 = vmatpush1.bf16.msra.mxu0 %v5911
    %5933 = vmatprep.subr.bf16.mxu0 0
    %5934 = vmatpush1.bf16.msra.mxu0 %v5912
    %5935 = vmatprep.subr.bf16.mxu0 0
    %5936 = vmatpush1.bf16.msra.mxu0 %v5913
    %5937 = vmatprep.subr.bf16.mxu0 0
    %5938 = vmatpush1.bf16.msra.mxu0 %v5914
    %5939 = vmatprep.subr.bf16.mxu0 0
    %5940 = vmatpush1.bf16.msra.mxu0 0
    %5941 = vmatprep.subr.bf16.mxu0 0
    %5942 = vmatpush1.bf16.msra.mxu0 0
    %5943 = vmatprep.subr.bf16.mxu0 0
    %5944 = vmatpush1.bf16.msra.mxu0 0
    %5945 = vmatprep.subr.bf16.mxu0 0
    %5946 = vmatpush1.bf16.msra.mxu0 0
    %5947 = vmatprep.subr.bf16.mxu0 0
    %5948 = vmatpush1.bf16.msra.mxu0 0
    %5949 = vmatprep.subr.bf16.mxu0 0
    %5950 = vmatpush1.bf16.msra.mxu0 0
    %5951 = vmatprep.subr.bf16.mxu0 0
    %5952 = vmatpush1.bf16.msra.mxu0 0
    %5953 = vmatprep.subr.bf16.mxu0 0
    %5954 = vmatpush1.bf16.msra.mxu0 0
    %5955 = vmatprep.mubr.bf16.mxu0 0
    %5956 = vmatmul.mubr.bf16.gmra.mrb[0].mxu0 %v5378
    %v5957 = vpop.f32.mrb[0].mxu0
    %v5958 = vadd.f32 %v5621, %v5957
    %v5959 = vpop.f32.mrb[0].mxu0
    %v5960 = vpop.f32.mrb[0].mxu0
    %v5961 = vadd.f32 %v5624, %v5960
    %v5962 = vpop.f32.mrb[0].mxu0
    %5963 = vmatprep.mubr.bf16.mxu0 0
    %5964 = vmatmul.mubr.bf16.gmra.mrb[0].mxu0 %v5379
    %v5965 = vpop.f32.mrb[0].mxu0
    %v5966 = vadd.f32 %v5629, %v5965
    %v5967 = vpop.f32.mrb[0].mxu0
    %v5968 = vpop.f32.mrb[0].mxu0
    %v5969 = vadd.f32 %v5632, %v5968
    %v5970 = vpop.f32.mrb[0].mxu0
    %5971 = vmatprep.mubr.bf16.mxu0 0
    %5972 = vmatmul.mubr.bf16.gmra.mrb[0].mxu0 %v5380
    %v5973 = vpop.f32.mrb[0].mxu0
    %v5974 = vadd.f32 %v5637, %v5973
    %v5975 = vpop.f32.mrb[0].mxu0
    %v5976 = vpop.f32.mrb[0].mxu0
    %v5977 = vadd.f32 %v5640, %v5976
    %v5978 = vpop.f32.mrb[0].mxu0
    %5979 = vmatprep.mubr.bf16.mxu0 0
    %5980 = vmatmul.mubr.bf16.gmra.mrb[0].mxu0 %v5381
    %v5981 = vpop.f32.mrb[0].mxu0
    %v5982 = vadd.f32 %v5645, %v5981
    %v5983 = vpop.f32.mrb[0].mxu0
    %v5984 = vpop.f32.mrb[0].mxu0
    %v5985 = vadd.f32 %v5648, %v5984
    %v5986 = vpop.f32.mrb[0].mxu0
    %5987 = vmatprep.mubr.bf16.mxu0 0
    %5988 = vmatmul.mubr.bf16.gmra.mrb[0].mxu0 %v5382
    %v5989 = vpop.f32.mrb[0].mxu0
    %v5990 = vadd.f32 %v5653, %v5989
    %v5991 = vpop.f32.mrb[0].mxu0
    %v5992 = vpop.f32.mrb[0].mxu0
    %v5993 = vadd.f32 %v5656, %v5992
    %v5994 = vpop.f32.mrb[0].mxu0
    %5995 = vmatprep.mubr.bf16.mxu0 0
    %5996 = vmatmul.mubr.bf16.gmra.mrb[0].mxu0 %v5383
    %v5997 = vpop.f32.mrb[0].mxu0
    %v5998 = vadd.f32 %v5661, %v5997
    %v5999 = vpop.f32.mrb[0].mxu0
    %v6000 = vpop.f32.mrb[0].mxu0
    %v6001 = vadd.f32 %v5664, %v6000
    %v6002 = vpop.f32.mrb[0].mxu0
    %6003 = vmatprep.mubr.bf16.mxu0 0
    %6004 = vmatmul.mubr.bf16.gmra.mrb[0].mxu0 %v5384
    %v6005 = vpop.f32.mrb[0].mxu0
    %v6006 = vadd.f32 %v5669, %v6005
    %v6007 = vpop.f32.mrb[0].mxu0
    %v6008 = vpop.f32.mrb[0].mxu0
    %v6009 = vadd.f32 %v5672, %v6008
    %v6010 = vpop.f32.mrb[0].mxu0
    %6011 = vmatprep.mubr.bf16.mxu0 0
    %6012 = vmatmul.mubr.bf16.gmra.mrb[0].mxu0 %v5385
    %v6013 = vpop.f32.mrb[0].mxu0
    %v6014 = vadd.f32 %v5677, %v6013
    %v6015 = vpop.f32.mrb[0].mxu0
    %v6016 = vpop.f32.mrb[0].mxu0
    %v6017 = vadd.f32 %v5680, %v6016
    %v6018 = vpop.f32.mrb[0].mxu0
    %6019 = vmatprep.mubr.bf16.mxu0 0
    %6020 = vmatmul.mubr.bf16.gmra.mrb[0].mxu0 %v5386
    %v6021 = vpop.f32.mrb[0].mxu0
    %v6022 = vadd.f32 %v5685, %v6021
    %v6023 = vpop.f32.mrb[0].mxu0
    %v6024 = vpop.f32.mrb[0].mxu0
    %v6025 = vadd.f32 %v5688, %v6024
    %v6026 = vpop.f32.mrb[0].mxu0
    %6027 = vmatprep.mubr.bf16.mxu0 0
    %6028 = vmatmul.mubr.bf16.gmra.mrb[0].mxu0 %v5387
    %v6029 = vpop.f32.mrb[0].mxu0
    %v6030 = vadd.f32 %v5693, %v6029
    %v6031 = vpop.f32.mrb[0].mxu0
    %v6032 = vpop.f32.mrb[0].mxu0
    %v6033 = vadd.f32 %v5696, %v6032
    %v6034 = vpop.f32.mrb[0].mxu0
    %6035 = vmatprep.mubr.bf16.mxu0 0
    %6036 = vmatmul.mubr.bf16.gmra.mrb[0].mxu0 %v5388
    %v6037 = vpop.f32.mrb[0].mxu0
    %v6038 = vadd.f32 %v5701, %v6037
    %v6039 = vpop.f32.mrb[0].mxu0
    %v6040 = vpop.f32.mrb[0].mxu0
    %v6041 = vadd.f32 %v5704, %v6040
    %v6042 = vpop.f32.mrb[0].mxu0
    %6043 = vmatprep.mubr.bf16.mxu0 0
    %6044 = vmatmul.mubr.bf16.gmra.mrb[0].mxu0 %v5389
    %v6045 = vpop.f32.mrb[0].mxu0
    %v6046 = vadd.f32 %v5709, %v6045
    %v6047 = vpop.f32.mrb[0].mxu0
    %v6048 = vpop.f32.mrb[0].mxu0
    %v6049 = vadd.f32 %v5712, %v6048
    %v6050 = vpop.f32.mrb[0].mxu0
    %6051 = vmatprep.mubr.bf16.mxu0 0
    %6052 = vmatmul.mubr.bf16.gmra.mrb[0].mxu0 %v5390
    %v6053 = vpop.f32.mrb[0].mxu0
    %v6054 = vadd.f32 %v5717, %v6053
    %v6055 = vpop.f32.mrb[0].mxu0
    %v6056 = vpop.f32.mrb[0].mxu0
    %v6057 = vadd.f32 %v5720, %v6056
    %v6058 = vpop.f32.mrb[0].mxu0
    %6059 = vmatprep.mubr.bf16.mxu0 0
    %6060 = vmatmul.mubr.bf16.gmra.mrb[0].mxu0 %v5391
    %v6061 = vpop.f32.mrb[0].mxu0
    %v6062 = vadd.f32 %v5725, %v6061
    %v6063 = vpop.f32.mrb[0].mxu0
    %v6064 = vpop.f32.mrb[0].mxu0
    %v6065 = vadd.f32 %v5728, %v6064
    %v6066 = vpop.f32.mrb[0].mxu0
    %6067 = vmatprep.mubr.bf16.mxu0 0
    %6068 = vmatmul.mubr.bf16.gmra.mrb[0].mxu0 %v5392
    %v6069 = vpop.f32.mrb[0].mxu0
    %v6070 = vadd.f32 %v5733, %v6069
    %v6071 = vpop.f32.mrb[0].mxu0
    %v6072 = vpop.f32.mrb[0].mxu0
    %v6073 = vadd.f32 %v5736, %v6072
    %v6074 = vpop.f32.mrb[0].mxu0
    %6075 = vmatprep.mubr.bf16.mxu0 0
    %6076 = vmatmul.mubr.bf16.gmra.mrb[0].mxu0 %v5393
    %v6077 = vpop.f32.mrb[0].mxu0
    %v6078 = vadd.f32 %v5741, %v6077
    %v6079 = vpop.f32.mrb[0].mxu0
    %v6080 = vpop.f32.mrb[0].mxu0
    %v6081 = vadd.f32 %v5744, %v6080
    %v6082 = vpop.f32.mrb[0].mxu0
    %6083 = vmatprep.mubr.bf16.mxu0 0
    %6084 = vmatmul.mubr.bf16.gmra.mrb[0].mxu0 %v5394
    %v6085 = vpop.f32.mrb[0].mxu0
    %v6086 = vadd.f32 %v5749, %v6085
    %v6087 = vpop.f32.mrb[0].mxu0
    %v6088 = vpop.f32.mrb[0].mxu0
    %v6089 = vadd.f32 %v5752, %v6088
    %v6090 = vpop.f32.mrb[0].mxu0
    %6091 = vmatprep.mubr.bf16.mxu0 0
    %6092 = vmatmul.mubr.bf16.gmra.mrb[0].mxu0 %v5395
    %v6093 = vpop.f32.mrb[0].mxu0
    %v6094 = vadd.f32 %v5757, %v6093
    %v6095 = vpop.f32.mrb[0].mxu0
    %v6096 = vpop.f32.mrb[0].mxu0
    %v6097 = vadd.f32 %v5760, %v6096
    %v6098 = vpop.f32.mrb[0].mxu0
    %6099 = vmatprep.mubr.bf16.mxu0 0
    %6100 = vmatmul.mubr.bf16.gmra.mrb[0].mxu0 %v5396
    %v6101 = vpop.f32.mrb[0].mxu0
    %v6102 = vadd.f32 %v5765, %v6101
    %v6103 = vpop.f32.mrb[0].mxu0
    %v6104 = vpop.f32.mrb[0].mxu0
    %v6105 = vadd.f32 %v5768, %v6104
    %v6106 = vpop.f32.mrb[0].mxu0
    %6107 = vmatprep.mubr.bf16.mxu0 0
    %6108 = vmatmul.mubr.bf16.gmra.mrb[0].mxu0 %v5397
    %v6109 = vpop.f32.mrb[0].mxu0
    %v6110 = vadd.f32 %v5773, %v6109
    %v6111 = vpop.f32.mrb[0].mxu0
    %v6112 = vpop.f32.mrb[0].mxu0
    %v6113 = vadd.f32 %v5776, %v6112
    %v6114 = vpop.f32.mrb[0].mxu0
    %6115 = vmatprep.mubr.bf16.mxu0 0
    %6116 = vmatmul.mubr.bf16.gmra.mrb[0].mxu0 %v5398
    %v6117 = vpop.f32.mrb[0].mxu0
    %v6118 = vadd.f32 %v5781, %v6117
    %v6119 = vpop.f32.mrb[0].mxu0
    %v6120 = vpop.f32.mrb[0].mxu0
    %v6121 = vadd.f32 %v5784, %v6120
    %v6122 = vpop.f32.mrb[0].mxu0
    %6123 = vmatprep.mubr.bf16.mxu0 0
    %6124 = vmatmul.mubr.bf16.gmra.mrb[0].mxu0 %v5399
    %v6125 = vpop.f32.mrb[0].mxu0
    %v6126 = vadd.f32 %v5789, %v6125
    %v6127 = vpop.f32.mrb[0].mxu0
    %v6128 = vpop.f32.mrb[0].mxu0
    %v6129 = vadd.f32 %v5792, %v6128
    %v6130 = vpop.f32.mrb[0].mxu0
    %6131 = vmatprep.mubr.bf16.mxu0 0
    %6132 = vmatmul.mubr.bf16.gmra.mrb[0].mxu0 %v5400
    %v6133 = vpop.f32.mrb[0].mxu0
    %v6134 = vadd.f32 %v5797, %v6133
    %v6135 = vpop.f32.mrb[0].mxu0
    %v6136 = vpop.f32.mrb[0].mxu0
    %v6137 = vadd.f32 %v5800, %v6136
    %v6138 = vpop.f32.mrb[0].mxu0
    %6139 = vmatprep.mubr.bf16.mxu0 0
    %6140 = vmatmul.mubr.bf16.gmra.mrb[0].mxu0 %v5401
    %v6141 = vpop.f32.mrb[0].mxu0
    %v6142 = vadd.f32 %v5805, %v6141
    %v6143 = vpop.f32.mrb[0].mxu0
    %v6144 = vpop.f32.mrb[0].mxu0
    %v6145 = vadd.f32 %v5808, %v6144
    %v6146 = vpop.f32.mrb[0].mxu0
    %6147 = vmatprep.mubr.bf16.mxu0 0
    %6148 = vmatmul.mubr.bf16.gmra.mrb[0].mxu0 %v5402
    %v6149 = vpop.f32.mrb[0].mxu0
    %v6150 = vadd.f32 %v5813, %v6149
    %v6151 = vpop.f32.mrb[0].mxu0
    %v6152 = vpop.f32.mrb[0].mxu0
    %v6153 = vadd.f32 %v5816, %v6152
    %v6154 = vpop.f32.mrb[0].mxu0
    %6155 = vmatprep.mubr.bf16.mxu0 0
    %6156 = vmatmul.mubr.bf16.gmra.mrb[0].mxu0 %v5403
    %v6157 = vpop.f32.mrb[0].mxu0
    %v6158 = vadd.f32 %v5821, %v6157
    %v6159 = vpop.f32.mrb[0].mxu0
    %v6160 = vpop.f32.mrb[0].mxu0
    %v6161 = vadd.f32 %v5824, %v6160
    %v6162 = vpop.f32.mrb[0].mxu0
    %6163 = vmatprep.mubr.bf16.mxu0 0
    %6164 = vmatmul.mubr.bf16.gmra.mrb[0].mxu0 %v5404
    %v6165 = vpop.f32.mrb[0].mxu0
    %v6166 = vadd.f32 %v5829, %v6165
    %v6167 = vpop.f32.mrb[0].mxu0
    %v6168 = vpop.f32.mrb[0].mxu0
    %v6169 = vadd.f32 %v5832, %v6168
    %v6170 = vpop.f32.mrb[0].mxu0
    %6171 = vmatprep.mubr.bf16.mxu0 0
    %6172 = vmatmul.mubr.bf16.gmra.mrb[0].mxu0 %v5405
    %v6173 = vpop.f32.mrb[0].mxu0
    %v6174 = vadd.f32 %v5837, %v6173
    %v6175 = vpop.f32.mrb[0].mxu0
    %v6176 = vpop.f32.mrb[0].mxu0
    %v6177 = vadd.f32 %v5840, %v6176
    %v6178 = vpop.f32.mrb[0].mxu0
    %6179 = vmatprep.mubr.bf16.mxu0 0
    %6180 = vmatmul.mubr.bf16.gmra.mrb[0].mxu0 %v5406
    %v6181 = vpop.f32.mrb[0].mxu0
    %v6182 = vadd.f32 %v5845, %v6181
    %v6183 = vpop.f32.mrb[0].mxu0
    %v6184 = vpop.f32.mrb[0].mxu0
    %v6185 = vadd.f32 %v5848, %v6184
    %v6186 = vpop.f32.mrb[0].mxu0
    %6187 = vmatprep.mubr.bf16.mxu0 0
    %6188 = vmatmul.mubr.bf16.gmra.mrb[0].mxu0 %v5407
    %v6189 = vpop.f32.mrb[0].mxu0
    %v6190 = vadd.f32 %v5853, %v6189
    %v6191 = vpop.f32.mrb[0].mxu0
    %v6192 = vpop.f32.mrb[0].mxu0
    %v6193 = vadd.f32 %v5856, %v6192
    %v6194 = vpop.f32.mrb[0].mxu0
    %6195 = vmatprep.mubr.bf16.mxu0 0
    %6196 = vmatmul.mubr.bf16.gmra.mrb[0].mxu0 %v5408
    %v6197 = vpop.f32.mrb[0].mxu0
    %v6198 = vadd.f32 %v5861, %v6197
    %v6199 = vpop.f32.mrb[0].mxu0
    %v6200 = vpop.f32.mrb[0].mxu0
    %v6201 = vadd.f32 %v5864, %v6200
    %v6202 = vpop.f32.mrb[0].mxu0
    %6203 = vmatprep.mubr.bf16.mxu0 0
    %6204 = vmatmul.mubr.bf16.gmra.mrb[0].mxu0 %v5409
    %v6205 = vpop.f32.mrb[0].mxu0
    %v6206 = vadd.f32 %v5869, %v6205
    %v6207 = vpop.f32.mrb[0].mxu0
    %v6208 = vpop.f32.mrb[0].mxu0
    %v6209 = vadd.f32 %v5872, %v6208
    %v6210 = vpop.f32.mrb[0].mxu0
    %6211 = vdwg.mxu0
    %v6212 = vld [vmem:[#allocation2 + $0x2] sm:$0xff]
    %v6213 = vld [vmem:[#allocation2 + $0xa] sm:$0xff]
    %v6214 = vld [vmem:[#allocation2 + $0x1a] sm:$0xff]
    %v6215 = vld [vmem:[#allocation2 + $0x22] sm:$0xff]
    %v6216 = vld [vmem:[#allocation2 + $0x32] sm:$0xff]
    %v6217 = vld [vmem:[#allocation2 + $0x3a] sm:$0xff]
    %v6218 = vld [vmem:[#allocation2 + $0x4a] sm:$0xff]
    %v6219 = vld [vmem:[#allocation2 + $0x52] sm:$0xff]
    %v6220 = vld [vmem:[#allocation2 + $0x62] sm:$0xff]
    %v6221 = vld [vmem:[#allocation2 + $0x6a] sm:$0xff]
    %v6222 = vld [vmem:[#allocation2 + $0x7a] sm:$0xff]
    %v6223 = vld [vmem:[#allocation2 + $0x82] sm:$0xff]
    %v6224 = vld [vmem:[#allocation2 + $0x92] sm:$0xff]
    %v6225 = vld [vmem:[#allocation2 + $0x9a] sm:$0xff]
    %v6226 = vld [vmem:[#allocation2 + $0xaa] sm:$0xff]
    %v6227 = vld [vmem:[#allocation2 + $0xb2] sm:$0xff]
    %v6228 = vld [vmem:[#allocation2 + $0xc2] sm:$0xff]
    %v6229 = vld [vmem:[#allocation2 + $0xca] sm:$0xff]
    %v6230 = vld [vmem:[#allocation2 + $0xda] sm:$0xff]
    %v6231 = vld [vmem:[#allocation2 + $0xe2] sm:$0xff]
    %v6232 = vld [vmem:[#allocation2 + $0xf2] sm:$0xff]
    %v6233 = vld [vmem:[#allocation2 + $0xfa] sm:$0xff]
    %v6234 = vld [vmem:[#allocation2 + $0x10a] sm:$0xff]
    %v6235 = vld [vmem:[#allocation2 + $0x112] sm:$0xff]
    %v6236 = vld [vmem:[#allocation2 + $0x122] sm:$0xff]
    %v6237 = vld [vmem:[#allocation2 + $0x12a] sm:$0xff]
    %v6238 = vld [vmem:[#allocation2 + $0x13a] sm:$0xff]
    %v6239 = vld [vmem:[#allocation2 + $0x142] sm:$0xff]
    %v6240 = vld [vmem:[#allocation2 + $0x152] sm:$0xff]
    %v6241 = vld [vmem:[#allocation2 + $0x15a] sm:$0xff]
    %v6242 = vld [vmem:[#allocation2 + $0x16a] sm:$0xff]
    %v6243 = vld [vmem:[#allocation2 + $0x172] sm:$0xff]
    %v6244 = vld [vmem:[#allocation2 + $0x1b2] sm:$0xff]
    %v6245 = vld [vmem:[#allocation2 + $0x1ba] sm:$0xff]
    %v6246 = vld [vmem:[#allocation2 + $0x1ca] sm:$0xff]
    %v6247 = vld [vmem:[#allocation2 + $0x1d2] sm:$0xff]
    %v6248 = vld [vmem:[#allocation2 + $0x1e2] sm:$0xff]
    %v6249 = vld [vmem:[#allocation2 + $0x1ea] sm:$0xff]
    %v6250 = vld [vmem:[#allocation2 + $0x1fa] sm:$0xff]
    %v6251 = vld [vmem:[#allocation2 + $0x202] sm:$0xff]
    %v6252 = vld [vmem:[#allocation2 + $0x212] sm:$0xff]
    %v6253 = vld [vmem:[#allocation2 + $0x21a] sm:$0xff]
    %v6254 = vld [vmem:[#allocation2 + $0x22a] sm:$0xff]
    %v6255 = vld [vmem:[#allocation2 + $0x232] sm:$0xff]
    %v6256 = vld [vmem:[#allocation2 + $0x242] sm:$0xff]
    %v6257 = vld [vmem:[#allocation2 + $0x24a] sm:$0xff]
    %v6258 = vld [vmem:[#allocation2 + $0x25a] sm:$0xff]
    %v6259 = vld [vmem:[#allocation2 + $0x262] sm:$0xff]
    %v6260 = vld [vmem:[#allocation2 + $0x272] sm:$0xff]
    %v6261 = vld [vmem:[#allocation2 + $0x27a] sm:$0xff]
    %v6262 = vld [vmem:[#allocation2 + $0x28a] sm:$0xff]
    %v6263 = vld [vmem:[#allocation2 + $0x292] sm:$0xff]
    %v6264 = vld [vmem:[#allocation2 + $0x2a2] sm:$0xff]
    %v6265 = vld [vmem:[#allocation2 + $0x2aa] sm:$0xff]
    %v6266 = vld [vmem:[#allocation2 + $0x2ba] sm:$0xff]
    %v6267 = vld [vmem:[#allocation2 + $0x2c2] sm:$0xff]
    %v6268 = vld [vmem:[#allocation2 + $0x2d2] sm:$0xff]
    %v6269 = vld [vmem:[#allocation2 + $0x2da] sm:$0xff]
    %v6270 = vld [vmem:[#allocation2 + $0x2ea] sm:$0xff]
    %v6271 = vld [vmem:[#allocation2 + $0x2f2] sm:$0xff]
    %v6272 = vld [vmem:[#allocation2 + $0x302] sm:$0xff]
    %v6273 = vld [vmem:[#allocation2 + $0x30a] sm:$0xff]
    %v6274 = vld [vmem:[#allocation2 + $0x31a] sm:$0xff]
    %v6275 = vld [vmem:[#allocation2 + $0x322] sm:$0xff]
    %v6276 = vpack.c.bf16 %v6213, %v6212
    %v6277 = vpack.c.bf16 %v6215, %v6214
    %v6278 = vpack.c.bf16 %v6217, %v6216
    %v6279 = vpack.c.bf16 %v6219, %v6218
    %v6280 = vpack.c.bf16 %v6221, %v6220
    %v6281 = vpack.c.bf16 %v6223, %v6222
    %v6282 = vpack.c.bf16 %v6225, %v6224
    %v6283 = vpack.c.bf16 %v6227, %v6226
    %v6284 = vpack.c.bf16 %v6229, %v6228
    %v6285 = vpack.c.bf16 %v6231, %v6230
    %v6286 = vpack.c.bf16 %v6233, %v6232
    %v6287 = vpack.c.bf16 %v6235, %v6234
    %v6288 = vpack.c.bf16 %v6237, %v6236
    %v6289 = vpack.c.bf16 %v6239, %v6238
    %v6290 = vpack.c.bf16 %v6241, %v6240
    %v6291 = vpack.c.bf16 %v6243, %v6242
    %v6292 = vpack.c.bf16 %v6245, %v6244
    %v6293 = vpack.c.bf16 %v6247, %v6246
    %v6294 = vpack.c.bf16 %v6249, %v6248
    %v6295 = vpack.c.bf16 %v6251, %v6250
    %v6296 = vpack.c.bf16 %v6253, %v6252
    %v6297 = vpack.c.bf16 %v6255, %v6254
    %v6298 = vpack.c.bf16 %v6257, %v6256
    %v6299 = vpack.c.bf16 %v6259, %v6258
    %v6300 = vpack.c.bf16 %v6261, %v6260
    %v6301 = vpack.c.bf16 %v6263, %v6262
    %v6302 = vpack.c.bf16 %v6265, %v6264
    %v6303 = vpack.c.bf16 %v6267, %v6266
    %v6304 = vpack.c.bf16 %v6269, %v6268
    %v6305 = vpack.c.bf16 %v6271, %v6270
    %v6306 = vpack.c.bf16 %v6273, %v6272
    %v6307 = vpack.c.bf16 %v6275, %v6274
    %v6308 = vld [vmem:[#allocation8 + $0x80] sm:$0xf]
    %v6309 = vld [vmem:[#allocation8 + $0x84] sm:$0xf]
    %v6310 = vld [vmem:[#allocation8 + $0x88] sm:$0xf]
    %v6311 = vld [vmem:[#allocation8 + $0x8c] sm:$0xf]
    %v6312 = vld [vmem:[#allocation8 + $0x90] sm:$0xf]
    %v6313 = vld [vmem:[#allocation8 + $0x94] sm:$0xf]
    %v6314 = vld [vmem:[#allocation8 + $0x98] sm:$0xf]
    %v6315 = vld [vmem:[#allocation8 + $0x9c] sm:$0xf]
    %v6316 = vld [vmem:[#allocation8 + $0xa0] sm:$0xf]
    %v6317 = vld [vmem:[#allocation8 + $0xa4] sm:$0xf]
    %v6318 = vld [vmem:[#allocation8 + $0xa8] sm:$0xf]
    %v6319 = vld [vmem:[#allocation8 + $0xac] sm:$0xf]
    %v6320 = vld [vmem:[#allocation8 + $0xb0] sm:$0xf]
    %v6321 = vld [vmem:[#allocation8 + $0xb4] sm:$0xf]
    %v6322 = vld [vmem:[#allocation8 + $0xb8] sm:$0xf]
    %v6323 = vld [vmem:[#allocation8 + $0xbc] sm:$0xf]
    %v6340 = vunpack.c.l.b16 %v6308
    %v6341 = vunpack.c.l.b16 %v6309
    %v6342 = vunpack.c.l.b16 %v6310
    %v6343 = vunpack.c.l.b16 %v6311
    %v6344 = vunpack.c.l.b16 %v6312
    %v6345 = vunpack.c.l.b16 %v6313
    %v6346 = vunpack.c.l.b16 %v6314
    %v6347 = vunpack.c.l.b16 %v6315
    %v6348 = vunpack.c.l.b16 %v6316
    %v6349 = vunpack.c.l.b16 %v6317
    %v6350 = vunpack.c.l.b16 %v6318
    %v6351 = vunpack.c.l.b16 %v6319
    %v6352 = vunpack.c.l.b16 %v6320
    %v6353 = vunpack.c.l.b16 %v6321
    %v6354 = vunpack.c.l.b16 %v6322
    %v6355 = vunpack.c.l.b16 %v6323
    %v6356 = vpack.c.b16 %v6341, %v6340
    %v6357 = vpack.c.b16 %v6343, %v6342
    %v6358 = vpack.c.b16 %v6345, %v6344
    %v6359 = vpack.c.b16 %v6347, %v6346
    %v6360 = vpack.c.b16 %v6349, %v6348
    %v6361 = vpack.c.b16 %v6351, %v6350
    %v6362 = vpack.c.b16 %v6353, %v6352
    %v6363 = vpack.c.b16 %v6355, %v6354
    %6372 = vmatprep.subr.bf16.mxu0 0
    %6373 = vmatpush1.bf16.msra.mxu0 %v6356
    %6374 = vmatprep.subr.bf16.mxu0 0
    %6375 = vmatpush1.bf16.msra.mxu0 %v6357
    %6376 = vmatprep.subr.bf16.mxu0 0
    %6377 = vmatpush1.bf16.msra.mxu0 %v6358
    %6378 = vmatprep.subr.bf16.mxu0 0
    %6379 = vmatpush1.bf16.msra.mxu0 %v6359
    %6380 = vmatprep.subr.bf16.mxu0 0
    %6381 = vmatpush1.bf16.msra.mxu0 %v6360
    %6382 = vmatprep.subr.bf16.mxu0 0
    %6383 = vmatpush1.bf16.msra.mxu0 %v6361
    %6384 = vmatprep.subr.bf16.mxu0 0
    %6385 = vmatpush1.bf16.msra.mxu0 %v6362
    %6386 = vmatprep.subr.bf16.mxu0 0
    %6387 = vmatpush1.bf16.msra.mxu0 %v6363
    %6388 = vmatprep.subr.bf16.mxu0 0
    %6389 = vmatpush1.bf16.msra.mxu0 0
    %6390 = vmatprep.subr.bf16.mxu0 0
    %6391 = vmatpush1.bf16.msra.mxu0 0
    %6392 = vmatprep.subr.bf16.mxu0 0
    %6393 = vmatpush1.bf16.msra.mxu0 0
    %6394 = vmatprep.subr.bf16.mxu0 0
    %6395 = vmatpush1.bf16.msra.mxu0 0
    %6396 = vmatprep.subr.bf16.mxu0 0
    %6397 = vmatpush1.bf16.msra.mxu0 0
    %6398 = vmatprep.subr.bf16.mxu0 0
    %6399 = vmatpush1.bf16.msra.mxu0 0
    %6400 = vmatprep.subr.bf16.mxu0 0
    %6401 = vmatpush1.bf16.msra.mxu0 0
    %6402 = vmatprep.subr.bf16.mxu0 0
    %6403 = vmatpush1.bf16.msra.mxu0 0
    %6404 = vmatprep.mubr.bf16.mxu0 0
    %6405 = vmatmul.mubr.bf16.gmra.mrb[0].mxu0 %v6276
    %v6406 = vpop.f32.mrb[0].mxu0
    %v6407 = vadd.f32 0.0, %v6406
    %v6408 = vpop.f32.mrb[0].mxu0
    %v6409 = vpop.f32.mrb[0].mxu0
    %v6410 = vadd.f32 0.0, %v6409
    %v6411 = vpop.f32.mrb[0].mxu0
    %6412 = vmatprep.mubr.bf16.mxu0 0
    %6413 = vmatmul.mubr.bf16.gmra.mrb[0].mxu0 %v6277
    %v6414 = vpop.f32.mrb[0].mxu0
    %v6415 = vadd.f32 0.0, %v6414
    %v6416 = vpop.f32.mrb[0].mxu0
    %v6417 = vpop.f32.mrb[0].mxu0
    %v6418 = vadd.f32 0.0, %v6417
    %v6419 = vpop.f32.mrb[0].mxu0
    %6420 = vmatprep.mubr.bf16.mxu0 0
    %6421 = vmatmul.mubr.bf16.gmra.mrb[0].mxu0 %v6278
    %v6422 = vpop.f32.mrb[0].mxu0
    %v6423 = vadd.f32 0.0, %v6422
    %v6424 = vpop.f32.mrb[0].mxu0
    %v6425 = vpop.f32.mrb[0].mxu0
    %v6426 = vadd.f32 0.0, %v6425
    %v6427 = vpop.f32.mrb[0].mxu0
    %6428 = vmatprep.mubr.bf16.mxu0 0
    %6429 = vmatmul.mubr.bf16.gmra.mrb[0].mxu0 %v6279
    %v6430 = vpop.f32.mrb[0].mxu0
    %v6431 = vadd.f32 0.0, %v6430
    %v6432 = vpop.f32.mrb[0].mxu0
    %v6433 = vpop.f32.mrb[0].mxu0
    %v6434 = vadd.f32 0.0, %v6433
    %v6435 = vpop.f32.mrb[0].mxu0
    %6436 = vmatprep.mubr.bf16.mxu0 0
    %6437 = vmatmul.mubr.bf16.gmra.mrb[0].mxu0 %v6280
    %v6438 = vpop.f32.mrb[0].mxu0
    %v6439 = vadd.f32 0.0, %v6438
    %v6440 = vpop.f32.mrb[0].mxu0
    %v6441 = vpop.f32.mrb[0].mxu0
    %v6442 = vadd.f32 0.0, %v6441
    %v6443 = vpop.f32.mrb[0].mxu0
    %6444 = vmatprep.mubr.bf16.mxu0 0
    %6445 = vmatmul.mubr.bf16.gmra.mrb[0].mxu0 %v6281
    %v6446 = vpop.f32.mrb[0].mxu0
    %v6447 = vadd.f32 0.0, %v6446
    %v6448 = vpop.f32.mrb[0].mxu0
    %v6449 = vpop.f32.mrb[0].mxu0
    %v6450 = vadd.f32 0.0, %v6449
    %v6451 = vpop.f32.mrb[0].mxu0
    %6452 = vmatprep.mubr.bf16.mxu0 0
    %6453 = vmatmul.mubr.bf16.gmra.mrb[0].mxu0 %v6282
    %v6454 = vpop.f32.mrb[0].mxu0
    %v6455 = vadd.f32 0.0, %v6454
    %v6456 = vpop.f32.mrb[0].mxu0
    %v6457 = vpop.f32.mrb[0].mxu0
    %v6458 = vadd.f32 0.0, %v6457
    %v6459 = vpop.f32.mrb[0].mxu0
    %6460 = vmatprep.mubr.bf16.mxu0 0
    %6461 = vmatmul.mubr.bf16.gmra.mrb[0].mxu0 %v6283
    %v6462 = vpop.f32.mrb[0].mxu0
    %v6463 = vadd.f32 0.0, %v6462
    %v6464 = vpop.f32.mrb[0].mxu0
    %v6465 = vpop.f32.mrb[0].mxu0
    %v6466 = vadd.f32 0.0, %v6465
    %v6467 = vpop.f32.mrb[0].mxu0
    %6468 = vmatprep.mubr.bf16.mxu0 0
    %6469 = vmatmul.mubr.bf16.gmra.mrb[0].mxu0 %v6284
    %v6470 = vpop.f32.mrb[0].mxu0
    %v6471 = vadd.f32 0.0, %v6470
    %v6472 = vpop.f32.mrb[0].mxu0
    %v6473 = vpop.f32.mrb[0].mxu0
    %v6474 = vadd.f32 0.0, %v6473
    %v6475 = vpop.f32.mrb[0].mxu0
    %6476 = vmatprep.mubr.bf16.mxu0 0
    %6477 = vmatmul.mubr.bf16.gmra.mrb[0].mxu0 %v6285
    %v6478 = vpop.f32.mrb[0].mxu0
    %v6479 = vadd.f32 0.0, %v6478
    %v6480 = vpop.f32.mrb[0].mxu0
    %v6481 = vpop.f32.mrb[0].mxu0
    %v6482 = vadd.f32 0.0, %v6481
    %v6483 = vpop.f32.mrb[0].mxu0
    %6484 = vmatprep.mubr.bf16.mxu0 0
    %6485 = vmatmul.mubr.bf16.gmra.mrb[0].mxu0 %v6286
    %v6486 = vpop.f32.mrb[0].mxu0
    %v6487 = vadd.f32 0.0, %v6486
    %v6488 = vpop.f32.mrb[0].mxu0
    %v6489 = vpop.f32.mrb[0].mxu0
    %v6490 = vadd.f32 0.0, %v6489
    %v6491 = vpop.f32.mrb[0].mxu0
    %6492 = vmatprep.mubr.bf16.mxu0 0
    %6493 = vmatmul.mubr.bf16.gmra.mrb[0].mxu0 %v6287
    %v6494 = vpop.f32.mrb[0].mxu0
    %v6495 = vadd.f32 0.0, %v6494
    %v6496 = vpop.f32.mrb[0].mxu0
    %v6497 = vpop.f32.mrb[0].mxu0
    %v6498 = vadd.f32 0.0, %v6497
    %v6499 = vpop.f32.mrb[0].mxu0
    %6500 = vmatprep.mubr.bf16.mxu0 0
    %6501 = vmatmul.mubr.bf16.gmra.mrb[0].mxu0 %v6288
    %v6502 = vpop.f32.mrb[0].mxu0
    %v6503 = vadd.f32 0.0, %v6502
    %v6504 = vpop.f32.mrb[0].mxu0
    %v6505 = vpop.f32.mrb[0].mxu0
    %v6506 = vadd.f32 0.0, %v6505
    %v6507 = vpop.f32.mrb[0].mxu0
    %6508 = vmatprep.mubr.bf16.mxu0 0
    %6509 = vmatmul.mubr.bf16.gmra.mrb[0].mxu0 %v6289
    %v6510 = vpop.f32.mrb[0].mxu0
    %v6511 = vadd.f32 0.0, %v6510
    %v6512 = vpop.f32.mrb[0].mxu0
    %v6513 = vpop.f32.mrb[0].mxu0
    %v6514 = vadd.f32 0.0, %v6513
    %v6515 = vpop.f32.mrb[0].mxu0
    %6516 = vmatprep.mubr.bf16.mxu0 0
    %6517 = vmatmul.mubr.bf16.gmra.mrb[0].mxu0 %v6290
    %v6518 = vpop.f32.mrb[0].mxu0
    %v6519 = vadd.f32 0.0, %v6518
    %v6520 = vpop.f32.mrb[0].mxu0
    %v6521 = vpop.f32.mrb[0].mxu0
    %v6522 = vadd.f32 0.0, %v6521
    %v6523 = vpop.f32.mrb[0].mxu0
    %6524 = vmatprep.mubr.bf16.mxu0 0
    %6525 = vmatmul.mubr.bf16.gmra.mrb[0].mxu0 %v6291
    %v6526 = vpop.f32.mrb[0].mxu0
    %v6527 = vadd.f32 0.0, %v6526
    %v6528 = vpop.f32.mrb[0].mxu0
    %v6529 = vpop.f32.mrb[0].mxu0
    %v6530 = vadd.f32 0.0, %v6529
    %v6531 = vpop.f32.mrb[0].mxu0
    %6532 = vmatprep.mubr.bf16.mxu0 0
    %6533 = vmatmul.mubr.bf16.gmra.mrb[0].mxu0 %v6292
    %v6534 = vpop.f32.mrb[0].mxu0
    %v6535 = vadd.f32 0.0, %v6534
    %v6536 = vpop.f32.mrb[0].mxu0
    %v6537 = vpop.f32.mrb[0].mxu0
    %v6538 = vadd.f32 0.0, %v6537
    %v6539 = vpop.f32.mrb[0].mxu0
    %6540 = vmatprep.mubr.bf16.mxu0 0
    %6541 = vmatmul.mubr.bf16.gmra.mrb[0].mxu0 %v6293
    %v6542 = vpop.f32.mrb[0].mxu0
    %v6543 = vadd.f32 0.0, %v6542
    %v6544 = vpop.f32.mrb[0].mxu0
    %v6545 = vpop.f32.mrb[0].mxu0
    %v6546 = vadd.f32 0.0, %v6545
    %v6547 = vpop.f32.mrb[0].mxu0
    %6548 = vmatprep.mubr.bf16.mxu0 0
    %6549 = vmatmul.mubr.bf16.gmra.mrb[0].mxu0 %v6294
    %v6550 = vpop.f32.mrb[0].mxu0
    %v6551 = vadd.f32 0.0, %v6550
    %v6552 = vpop.f32.mrb[0].mxu0
    %v6553 = vpop.f32.mrb[0].mxu0
    %v6554 = vadd.f32 0.0, %v6553
    %v6555 = vpop.f32.mrb[0].mxu0
    %6556 = vmatprep.mubr.bf16.mxu0 0
    %6557 = vmatmul.mubr.bf16.gmra.mrb[0].mxu0 %v6295
    %v6558 = vpop.f32.mrb[0].mxu0
    %v6559 = vadd.f32 0.0, %v6558
    %v6560 = vpop.f32.mrb[0].mxu0
    %v6561 = vpop.f32.mrb[0].mxu0
    %v6562 = vadd.f32 0.0, %v6561
    %v6563 = vpop.f32.mrb[0].mxu0
    %6564 = vmatprep.mubr.bf16.mxu0 0
    %6565 = vmatmul.mubr.bf16.gmra.mrb[0].mxu0 %v6296
    %v6566 = vpop.f32.mrb[0].mxu0
    %v6567 = vadd.f32 0.0, %v6566
    %v6568 = vpop.f32.mrb[0].mxu0
    %v6569 = vpop.f32.mrb[0].mxu0
    %v6570 = vadd.f32 0.0, %v6569
    %v6571 = vpop.f32.mrb[0].mxu0
    %6572 = vmatprep.mubr.bf16.mxu0 0
    %6573 = vmatmul.mubr.bf16.gmra.mrb[0].mxu0 %v6297
    %v6574 = vpop.f32.mrb[0].mxu0
    %v6575 = vadd.f32 0.0, %v6574
    %v6576 = vpop.f32.mrb[0].mxu0
    %v6577 = vpop.f32.mrb[0].mxu0
    %v6578 = vadd.f32 0.0, %v6577
    %v6579 = vpop.f32.mrb[0].mxu0
    %6580 = vmatprep.mubr.bf16.mxu0 0
    %6581 = vmatmul.mubr.bf16.gmra.mrb[0].mxu0 %v6298
    %v6582 = vpop.f32.mrb[0].mxu0
    %v6583 = vadd.f32 0.0, %v6582
    %v6584 = vpop.f32.mrb[0].mxu0
    %v6585 = vpop.f32.mrb[0].mxu0
    %v6586 = vadd.f32 0.0, %v6585
    %v6587 = vpop.f32.mrb[0].mxu0
    %6588 = vmatprep.mubr.bf16.mxu0 0
    %6589 = vmatmul.mubr.bf16.gmra.mrb[0].mxu0 %v6299
    %v6590 = vpop.f32.mrb[0].mxu0
    %v6591 = vadd.f32 0.0, %v6590
    %v6592 = vpop.f32.mrb[0].mxu0
    %v6593 = vpop.f32.mrb[0].mxu0
    %v6594 = vadd.f32 0.0, %v6593
    %v6595 = vpop.f32.mrb[0].mxu0
    %6596 = vmatprep.mubr.bf16.mxu0 0
    %6597 = vmatmul.mubr.bf16.gmra.mrb[0].mxu0 %v6300
    %v6598 = vpop.f32.mrb[0].mxu0
    %v6599 = vadd.f32 0.0, %v6598
    %v6600 = vpop.f32.mrb[0].mxu0
    %v6601 = vpop.f32.mrb[0].mxu0
    %v6602 = vadd.f32 0.0, %v6601
    %v6603 = vpop.f32.mrb[0].mxu0
    %6604 = vmatprep.mubr.bf16.mxu0 0
    %6605 = vmatmul.mubr.bf16.gmra.mrb[0].mxu0 %v6301
    %v6606 = vpop.f32.mrb[0].mxu0
    %v6607 = vadd.f32 0.0, %v6606
    %v6608 = vpop.f32.mrb[0].mxu0
    %v6609 = vpop.f32.mrb[0].mxu0
    %v6610 = vadd.f32 0.0, %v6609
    %v6611 = vpop.f32.mrb[0].mxu0
    %6612 = vmatprep.mubr.bf16.mxu0 0
    %6613 = vmatmul.mubr.bf16.gmra.mrb[0].mxu0 %v6302
    %v6614 = vpop.f32.mrb[0].mxu0
    %v6615 = vadd.f32 0.0, %v6614
    %v6616 = vpop.f32.mrb[0].mxu0
    %v6617 = vpop.f32.mrb[0].mxu0
    %v6618 = vadd.f32 0.0, %v6617
    %v6619 = vpop.f32.mrb[0].mxu0
    %6620 = vmatprep.mubr.bf16.mxu0 0
    %6621 = vmatmul.mubr.bf16.gmra.mrb[0].mxu0 %v6303
    %v6622 = vpop.f32.mrb[0].mxu0
    %v6623 = vadd.f32 0.0, %v6622
    %v6624 = vpop.f32.mrb[0].mxu0
    %v6625 = vpop.f32.mrb[0].mxu0
    %v6626 = vadd.f32 0.0, %v6625
    %v6627 = vpop.f32.mrb[0].mxu0
    %6628 = vmatprep.mubr.bf16.mxu0 0
    %6629 = vmatmul.mubr.bf16.gmra.mrb[0].mxu0 %v6304
    %v6630 = vpop.f32.mrb[0].mxu0
    %v6631 = vadd.f32 0.0, %v6630
    %v6632 = vpop.f32.mrb[0].mxu0
    %v6633 = vpop.f32.mrb[0].mxu0
    %v6634 = vadd.f32 0.0, %v6633
    %v6635 = vpop.f32.mrb[0].mxu0
    %6636 = vmatprep.mubr.bf16.mxu0 0
    %6637 = vmatmul.mubr.bf16.gmra.mrb[0].mxu0 %v6305
    %v6638 = vpop.f32.mrb[0].mxu0
    %v6639 = vadd.f32 0.0, %v6638
    %v6640 = vpop.f32.mrb[0].mxu0
    %v6641 = vpop.f32.mrb[0].mxu0
    %v6642 = vadd.f32 0.0, %v6641
    %v6643 = vpop.f32.mrb[0].mxu0
    %6644 = vmatprep.mubr.bf16.mxu0 0
    %6645 = vmatmul.mubr.bf16.gmra.mrb[0].mxu0 %v6306
    %v6646 = vpop.f32.mrb[0].mxu0
    %v6647 = vadd.f32 0.0, %v6646
    %v6648 = vpop.f32.mrb[0].mxu0
    %v6649 = vpop.f32.mrb[0].mxu0
    %v6650 = vadd.f32 0.0, %v6649
    %v6651 = vpop.f32.mrb[0].mxu0
    %6652 = vmatprep.mubr.bf16.mxu0 0
    %6653 = vmatmul.mubr.bf16.gmra.mrb[0].mxu0 %v6307
    %v6654 = vpop.f32.mrb[0].mxu0
    %v6655 = vadd.f32 0.0, %v6654
    %v6656 = vpop.f32.mrb[0].mxu0
    %v6657 = vpop.f32.mrb[0].mxu0
    %v6658 = vadd.f32 0.0, %v6657
    %v6659 = vpop.f32.mrb[0].mxu0
    %6660 = vdwg.mxu0
    %v6661 = vadd.f32 %v5958, %v6407
    %v6662 = vadd.f32 %v5961, %v6410
    %v6663 = vadd.f32 %v5966, %v6415
    %v6664 = vadd.f32 %v5969, %v6418
    %v6665 = vadd.f32 %v5974, %v6423
    %v6666 = vadd.f32 %v5977, %v6426
    %v6667 = vadd.f32 %v5982, %v6431
    %v6668 = vadd.f32 %v5985, %v6434
    %v6669 = vadd.f32 %v5990, %v6439
    %v6670 = vadd.f32 %v5993, %v6442
    %v6671 = vadd.f32 %v5998, %v6447
    %v6672 = vadd.f32 %v6001, %v6450
    %v6673 = vadd.f32 %v6006, %v6455
    %v6674 = vadd.f32 %v6009, %v6458
    %v6675 = vadd.f32 %v6014, %v6463
    %v6676 = vadd.f32 %v6017, %v6466
    %v6677 = vadd.f32 %v6022, %v6471
    %v6678 = vadd.f32 %v6025, %v6474
    %v6679 = vadd.f32 %v6030, %v6479
    %v6680 = vadd.f32 %v6033, %v6482
    %v6681 = vadd.f32 %v6038, %v6487
    %v6682 = vadd.f32 %v6041, %v6490
    %v6683 = vadd.f32 %v6046, %v6495
    %v6684 = vadd.f32 %v6049, %v6498
    %v6685 = vadd.f32 %v6054, %v6503
    %v6686 = vadd.f32 %v6057, %v6506
    %v6687 = vadd.f32 %v6062, %v6511
    %v6688 = vadd.f32 %v6065, %v6514
    %v6689 = vadd.f32 %v6070, %v6519
    %v6690 = vadd.f32 %v6073, %v6522
    %v6691 = vadd.f32 %v6078, %v6527
    %v6692 = vadd.f32 %v6081, %v6530
    %v6693 = vadd.f32 %v6086, %v6535
    %v6694 = vadd.f32 %v6089, %v6538
    %v6695 = vadd.f32 %v6094, %v6543
    %v6696 = vadd.f32 %v6097, %v6546
    %v6697 = vadd.f32 %v6102, %v6551
    %v6698 = vadd.f32 %v6105, %v6554
    %v6699 = vadd.f32 %v6110, %v6559
    %v6700 = vadd.f32 %v6113, %v6562
    %v6701 = vadd.f32 %v6118, %v6567
    %v6702 = vadd.f32 %v6121, %v6570
    %v6703 = vadd.f32 %v6126, %v6575
    %v6704 = vadd.f32 %v6129, %v6578
    %v6705 = vadd.f32 %v6134, %v6583
    %v6706 = vadd.f32 %v6137, %v6586
    %v6707 = vadd.f32 %v6142, %v6591
    %v6708 = vadd.f32 %v6145, %v6594
    %v6709 = vadd.f32 %v6150, %v6599
    %v6710 = vadd.f32 %v6153, %v6602
    %v6711 = vadd.f32 %v6158, %v6607
    %v6712 = vadd.f32 %v6161, %v6610
    %v6713 = vadd.f32 %v6166, %v6615
    %v6714 = vadd.f32 %v6169, %v6618
    %v6715 = vadd.f32 %v6174, %v6623
    %v6716 = vadd.f32 %v6177, %v6626
    %v6717 = vadd.f32 %v6182, %v6631
    %v6718 = vadd.f32 %v6185, %v6634
    %v6719 = vadd.f32 %v6190, %v6639
    %v6720 = vadd.f32 %v6193, %v6642
    %v6721 = vadd.f32 %v6198, %v6647
    %v6722 = vadd.f32 %v6201, %v6650
    %v6723 = vadd.f32 %v6206, %v6655
    %v6724 = vadd.f32 %v6209, %v6658
    %v6725 = vld [vmem:[%s218] sm:$0xff]
    %v6726 = vld [vmem:[%s218 + $0x8] sm:$0xff]
    %v6727 = vld [vmem:[%s218 + $0x18] sm:$0xff]
    %v6728 = vld [vmem:[%s218 + $0x20] sm:$0xff]
    %v6729 = vld [vmem:[%s218 + $0x30] sm:$0xff]
    %v6730 = vld [vmem:[%s218 + $0x38] sm:$0xff]
    %v6731 = vld [vmem:[%s218 + $0x48] sm:$0xff]
    %v6732 = vld [vmem:[%s218 + $0x50] sm:$0xff]
    %v6733 = vld [vmem:[%s218 + $0x60] sm:$0xff]
    %v6734 = vld [vmem:[%s218 + $0x68] sm:$0xff]
    %v6735 = vld [vmem:[%s218 + $0x78] sm:$0xff]
    %v6736 = vld [vmem:[%s218 + $0x80] sm:$0xff]
    %v6737 = vld [vmem:[%s218 + $0x90] sm:$0xff]
    %v6738 = vld [vmem:[%s218 + $0x98] sm:$0xff]
    %v6739 = vld [vmem:[%s218 + $0xa8] sm:$0xff]
    %v6740 = vld [vmem:[%s218 + $0xb0] sm:$0xff]
    %v6741 = vld [vmem:[%s218 + $0xc0] sm:$0xff]
    %v6742 = vld [vmem:[%s218 + $0xc8] sm:$0xff]
    %v6743 = vld [vmem:[%s218 + $0xd8] sm:$0xff]
    %v6744 = vld [vmem:[%s218 + $0xe0] sm:$0xff]
    %v6745 = vld [vmem:[%s218 + $0xf0] sm:$0xff]
    %v6746 = vld [vmem:[%s218 + $0xf8] sm:$0xff]
    %v6747 = vld [vmem:[%s218 + $0x108] sm:$0xff]
    %v6748 = vld [vmem:[%s218 + $0x110] sm:$0xff]
    %v6749 = vld [vmem:[%s218 + $0x120] sm:$0xff]
    %v6750 = vld [vmem:[%s218 + $0x128] sm:$0xff]
    %v6751 = vld [vmem:[%s218 + $0x138] sm:$0xff]
    %v6752 = vld [vmem:[%s218 + $0x140] sm:$0xff]
    %v6753 = vld [vmem:[%s218 + $0x150] sm:$0xff]
    %v6754 = vld [vmem:[%s218 + $0x158] sm:$0xff]
    %v6755 = vld [vmem:[%s218 + $0x168] sm:$0xff]
    %v6756 = vld [vmem:[%s218 + $0x170] sm:$0xff]
    %v6757 = vld [vmem:[%s218 + $0x1b0] sm:$0xff]
    %v6758 = vld [vmem:[%s218 + $0x1b8] sm:$0xff]
    %v6759 = vld [vmem:[%s218 + $0x1c8] sm:$0xff]
    %v6760 = vld [vmem:[%s218 + $0x1d0] sm:$0xff]
    %v6761 = vld [vmem:[%s218 + $0x1e0] sm:$0xff]
    %v6762 = vld [vmem:[%s218 + $0x1e8] sm:$0xff]
    %v6763 = vld [vmem:[%s218 + $0x1f8] sm:$0xff]
    %v6764 = vld [vmem:[%s218 + $0x200] sm:$0xff]
    %v6765 = vld [vmem:[%s218 + $0x210] sm:$0xff]
    %v6766 = vld [vmem:[%s218 + $0x218] sm:$0xff]
    %v6767 = vld [vmem:[%s218 + $0x228] sm:$0xff]
    %v6768 = vld [vmem:[%s218 + $0x230] sm:$0xff]
    %v6769 = vld [vmem:[%s218 + $0x240] sm:$0xff]
    %v6770 = vld [vmem:[%s218 + $0x248] sm:$0xff]
    %v6771 = vld [vmem:[%s218 + $0x258] sm:$0xff]
    %v6772 = vld [vmem:[%s218 + $0x260] sm:$0xff]
    %v6773 = vld [vmem:[%s218 + $0x270] sm:$0xff]
    %v6774 = vld [vmem:[%s218 + $0x278] sm:$0xff]
    %v6775 = vld [vmem:[%s218 + $0x288] sm:$0xff]
    %v6776 = vld [vmem:[%s218 + $0x290] sm:$0xff]
    %v6777 = vld [vmem:[%s218 + $0x2a0] sm:$0xff]
    %v6778 = vld [vmem:[%s218 + $0x2a8] sm:$0xff]
    %v6779 = vld [vmem:[%s218 + $0x2b8] sm:$0xff]
    %v6780 = vld [vmem:[%s218 + $0x2c0] sm:$0xff]
    %v6781 = vld [vmem:[%s218 + $0x2d0] sm:$0xff]
    %v6782 = vld [vmem:[%s218 + $0x2d8] sm:$0xff]
    %v6783 = vld [vmem:[%s218 + $0x2e8] sm:$0xff]
    %v6784 = vld [vmem:[%s218 + $0x2f0] sm:$0xff]
    %v6785 = vld [vmem:[%s218 + $0x300] sm:$0xff]
    %v6786 = vld [vmem:[%s218 + $0x308] sm:$0xff]
    %v6787 = vld [vmem:[%s218 + $0x318] sm:$0xff]
    %v6788 = vld [vmem:[%s218 + $0x320] sm:$0xff]
    %v6789 = vpack.c.bf16 %v6726, %v6725
    %v6790 = vpack.c.bf16 %v6728, %v6727
    %v6791 = vpack.c.bf16 %v6730, %v6729
    %v6792 = vpack.c.bf16 %v6732, %v6731
    %v6793 = vpack.c.bf16 %v6734, %v6733
    %v6794 = vpack.c.bf16 %v6736, %v6735
    %v6795 = vpack.c.bf16 %v6738, %v6737
    %v6796 = vpack.c.bf16 %v6740, %v6739
    %v6797 = vpack.c.bf16 %v6742, %v6741
    %v6798 = vpack.c.bf16 %v6744, %v6743
    %v6799 = vpack.c.bf16 %v6746, %v6745
    %v6800 = vpack.c.bf16 %v6748, %v6747
    %v6801 = vpack.c.bf16 %v6750, %v6749
    %v6802 = vpack.c.bf16 %v6752, %v6751
    %v6803 = vpack.c.bf16 %v6754, %v6753
    %v6804 = vpack.c.bf16 %v6756, %v6755
    %v6805 = vpack.c.bf16 %v6758, %v6757
    %v6806 = vpack.c.bf16 %v6760, %v6759
    %v6807 = vpack.c.bf16 %v6762, %v6761
    %v6808 = vpack.c.bf16 %v6764, %v6763
    %v6809 = vpack.c.bf16 %v6766, %v6765
    %v6810 = vpack.c.bf16 %v6768, %v6767
    %v6811 = vpack.c.bf16 %v6770, %v6769
    %v6812 = vpack.c.bf16 %v6772, %v6771
    %v6813 = vpack.c.bf16 %v6774, %v6773
    %v6814 = vpack.c.bf16 %v6776, %v6775
    %v6815 = vpack.c.bf16 %v6778, %v6777
    %v6816 = vpack.c.bf16 %v6780, %v6779
    %v6817 = vpack.c.bf16 %v6782, %v6781
    %v6818 = vpack.c.bf16 %v6784, %v6783
    %v6819 = vpack.c.bf16 %v6786, %v6785
    %v6820 = vpack.c.bf16 %v6788, %v6787
    %v6821 = vld [vmem:[#allocation8 + $0xc0] sm:$0xf]
    %v6822 = vld [vmem:[#allocation8 + $0xc4] sm:$0xf]
    %v6823 = vld [vmem:[#allocation8 + $0xc8] sm:$0xf]
    %v6824 = vld [vmem:[#allocation8 + $0xcc] sm:$0xf]
    %v6825 = vld [vmem:[#allocation8 + $0xd0] sm:$0xf]
    %v6826 = vld [vmem:[#allocation8 + $0xd4] sm:$0xf]
    %v6827 = vld [vmem:[#allocation8 + $0xd8] sm:$0xf]
    %v6828 = vld [vmem:[#allocation8 + $0xdc] sm:$0xf]
    %v6829 = vld [vmem:[#allocation8 + $0xe0] sm:$0xf]
    %v6830 = vld [vmem:[#allocation8 + $0xe4] sm:$0xf]
    %v6831 = vld [vmem:[#allocation8 + $0xe8] sm:$0xf]
    %v6832 = vld [vmem:[#allocation8 + $0xec] sm:$0xf]
    %v6833 = vld [vmem:[#allocation8 + $0xf0] sm:$0xf]
    %v6834 = vld [vmem:[#allocation8 + $0xf4] sm:$0xf]
    %v6835 = vld [vmem:[#allocation8 + $0xf8] sm:$0xf]
    %v6836 = vld [vmem:[#allocation8 + $0xfc] sm:$0xf]
    %v6853 = vunpack.c.l.b16 %v6821
    %v6854 = vunpack.c.l.b16 %v6822
    %v6855 = vunpack.c.l.b16 %v6823
    %v6856 = vunpack.c.l.b16 %v6824
    %v6857 = vunpack.c.l.b16 %v6825
    %v6858 = vunpack.c.l.b16 %v6826
    %v6859 = vunpack.c.l.b16 %v6827
    %v6860 = vunpack.c.l.b16 %v6828
    %v6861 = vunpack.c.l.b16 %v6829
    %v6862 = vunpack.c.l.b16 %v6830
    %v6863 = vunpack.c.l.b16 %v6831
    %v6864 = vunpack.c.l.b16 %v6832
    %v6865 = vunpack.c.l.b16 %v6833
    %v6866 = vunpack.c.l.b16 %v6834
    %v6867 = vunpack.c.l.b16 %v6835
    %v6868 = vunpack.c.l.b16 %v6836
    %v6869 = vpack.c.b16 %v6854, %v6853
    %v6870 = vpack.c.b16 %v6856, %v6855
    %v6871 = vpack.c.b16 %v6858, %v6857
    %v6872 = vpack.c.b16 %v6860, %v6859
    %v6873 = vpack.c.b16 %v6862, %v6861
    %v6874 = vpack.c.b16 %v6864, %v6863
    %v6875 = vpack.c.b16 %v6866, %v6865
    %v6876 = vpack.c.b16 %v6868, %v6867
    %6885 = vmatprep.subr.bf16.mxu0 0
    %6886 = vmatpush1.bf16.msra.mxu0 %v6869
    %6887 = vmatprep.subr.bf16.mxu0 0
    %6888 = vmatpush1.bf16.msra.mxu0 %v6870
    %6889 = vmatprep.subr.bf16.mxu0 0
    %6890 = vmatpush1.bf16.msra.mxu0 %v6871
    %6891 = vmatprep.subr.bf16.mxu0 0
    %6892 = vmatpush1.bf16.msra.mxu0 %v6872
    %6893 = vmatprep.subr.bf16.mxu0 0
    %6894 = vmatpush1.bf16.msra.mxu0 %v6873
    %6895 = vmatprep.subr.bf16.mxu0 0
    %6896 = vmatpush1.bf16.msra.mxu0 %v6874
    %6897 = vmatprep.subr.bf16.mxu0 0
    %6898 = vmatpush1.bf16.msra.mxu0 %v6875
    %6899 = vmatprep.subr.bf16.mxu0 0
    %6900 = vmatpush1.bf16.msra.mxu0 %v6876
    %6901 = vmatprep.subr.bf16.mxu0 0
    %6902 = vmatpush1.bf16.msra.mxu0 0
    %6903 = vmatprep.subr.bf16.mxu0 0
    %6904 = vmatpush1.bf16.msra.mxu0 0
    %6905 = vmatprep.subr.bf16.mxu0 0
    %6906 = vmatpush1.bf16.msra.mxu0 0
    %6907 = vmatprep.subr.bf16.mxu0 0
    %6908 = vmatpush1.bf16.msra.mxu0 0
    %6909 = vmatprep.subr.bf16.mxu0 0
    %6910 = vmatpush1.bf16.msra.mxu0 0
    %6911 = vmatprep.subr.bf16.mxu0 0
    %6912 = vmatpush1.bf16.msra.mxu0 0
    %6913 = vmatprep.subr.bf16.mxu0 0
    %6914 = vmatpush1.bf16.msra.mxu0 0
    %6915 = vmatprep.subr.bf16.mxu0 0
    %6916 = vmatpush1.bf16.msra.mxu0 0
    %6917 = vmatprep.mubr.bf16.mxu0 0
    %6918 = vmatmul.mubr.bf16.gmra.mrb[0].mxu0 %v6789
    %v6919 = vpop.f32.mrb[0].mxu0
    %v6920 = vadd.f32 0.0, %v6919
    %v6921 = vpop.f32.mrb[0].mxu0
    %v6922 = vpop.f32.mrb[0].mxu0
    %v6923 = vadd.f32 0.0, %v6922
    %v6924 = vpop.f32.mrb[0].mxu0
    %6925 = vmatprep.mubr.bf16.mxu0 0
    %6926 = vmatmul.mubr.bf16.gmra.mrb[0].mxu0 %v6790
    %v6927 = vpop.f32.mrb[0].mxu0
    %v6928 = vadd.f32 0.0, %v6927
    %v6929 = vpop.f32.mrb[0].mxu0
    %v6930 = vpop.f32.mrb[0].mxu0
    %v6931 = vadd.f32 0.0, %v6930
    %v6932 = vpop.f32.mrb[0].mxu0
    %6933 = vmatprep.mubr.bf16.mxu0 0
    %6934 = vmatmul.mubr.bf16.gmra.mrb[0].mxu0 %v6791
    %v6935 = vpop.f32.mrb[0].mxu0
    %v6936 = vadd.f32 0.0, %v6935
    %v6937 = vpop.f32.mrb[0].mxu0
    %v6938 = vpop.f32.mrb[0].mxu0
    %v6939 = vadd.f32 0.0, %v6938
    %v6940 = vpop.f32.mrb[0].mxu0
    %6941 = vmatprep.mubr.bf16.mxu0 0
    %6942 = vmatmul.mubr.bf16.gmra.mrb[0].mxu0 %v6792
    %v6943 = vpop.f32.mrb[0].mxu0
    %v6944 = vadd.f32 0.0, %v6943
    %v6945 = vpop.f32.mrb[0].mxu0
    %v6946 = vpop.f32.mrb[0].mxu0
    %v6947 = vadd.f32 0.0, %v6946
    %v6948 = vpop.f32.mrb[0].mxu0
    %6949 = vmatprep.mubr.bf16.mxu0 0
    %6950 = vmatmul.mubr.bf16.gmra.mrb[0].mxu0 %v6793
    %v6951 = vpop.f32.mrb[0].mxu0
    %v6952 = vadd.f32 0.0, %v6951
    %v6953 = vpop.f32.mrb[0].mxu0
    %v6954 = vpop.f32.mrb[0].mxu0
    %v6955 = vadd.f32 0.0, %v6954
    %v6956 = vpop.f32.mrb[0].mxu0
    %6957 = vmatprep.mubr.bf16.mxu0 0
    %6958 = vmatmul.mubr.bf16.gmra.mrb[0].mxu0 %v6794
    %v6959 = vpop.f32.mrb[0].mxu0
    %v6960 = vadd.f32 0.0, %v6959
    %v6961 = vpop.f32.mrb[0].mxu0
    %v6962 = vpop.f32.mrb[0].mxu0
    %v6963 = vadd.f32 0.0, %v6962
    %v6964 = vpop.f32.mrb[0].mxu0
    %6965 = vmatprep.mubr.bf16.mxu0 0
    %6966 = vmatmul.mubr.bf16.gmra.mrb[0].mxu0 %v6795
    %v6967 = vpop.f32.mrb[0].mxu0
    %v6968 = vadd.f32 0.0, %v6967
    %v6969 = vpop.f32.mrb[0].mxu0
    %v6970 = vpop.f32.mrb[0].mxu0
    %v6971 = vadd.f32 0.0, %v6970
    %v6972 = vpop.f32.mrb[0].mxu0
    %6973 = vmatprep.mubr.bf16.mxu0 0
    %6974 = vmatmul.mubr.bf16.gmra.mrb[0].mxu0 %v6796
    %v6975 = vpop.f32.mrb[0].mxu0
    %v6976 = vadd.f32 0.0, %v6975
    %v6977 = vpop.f32.mrb[0].mxu0
    %v6978 = vpop.f32.mrb[0].mxu0
    %v6979 = vadd.f32 0.0, %v6978
    %v6980 = vpop.f32.mrb[0].mxu0
    %6981 = vmatprep.mubr.bf16.mxu0 0
    %6982 = vmatmul.mubr.bf16.gmra.mrb[0].mxu0 %v6797
    %v6983 = vpop.f32.mrb[0].mxu0
    %v6984 = vadd.f32 0.0, %v6983
    %v6985 = vpop.f32.mrb[0].mxu0
    %v6986 = vpop.f32.mrb[0].mxu0
    %v6987 = vadd.f32 0.0, %v6986
    %v6988 = vpop.f32.mrb[0].mxu0
    %6989 = vmatprep.mubr.bf16.mxu0 0
    %6990 = vmatmul.mubr.bf16.gmra.mrb[0].mxu0 %v6798
    %v6991 = vpop.f32.mrb[0].mxu0
    %v6992 = vadd.f32 0.0, %v6991
    %v6993 = vpop.f32.mrb[0].mxu0
    %v6994 = vpop.f32.mrb[0].mxu0
    %v6995 = vadd.f32 0.0, %v6994
    %v6996 = vpop.f32.mrb[0].mxu0
    %6997 = vmatprep.mubr.bf16.mxu0 0
    %6998 = vmatmul.mubr.bf16.gmra.mrb[0].mxu0 %v6799
    %v6999 = vpop.f32.mrb[0].mxu0
    %v7000 = vadd.f32 0.0, %v6999
    %v7001 = vpop.f32.mrb[0].mxu0
    %v7002 = vpop.f32.mrb[0].mxu0
    %v7003 = vadd.f32 0.0, %v7002
    %v7004 = vpop.f32.mrb[0].mxu0
    %7005 = vmatprep.mubr.bf16.mxu0 0
    %7006 = vmatmul.mubr.bf16.gmra.mrb[0].mxu0 %v6800
    %v7007 = vpop.f32.mrb[0].mxu0
    %v7008 = vadd.f32 0.0, %v7007
    %v7009 = vpop.f32.mrb[0].mxu0
    %v7010 = vpop.f32.mrb[0].mxu0
    %v7011 = vadd.f32 0.0, %v7010
    %v7012 = vpop.f32.mrb[0].mxu0
    %7013 = vmatprep.mubr.bf16.mxu0 0
    %7014 = vmatmul.mubr.bf16.gmra.mrb[0].mxu0 %v6801
    %v7015 = vpop.f32.mrb[0].mxu0
    %v7016 = vadd.f32 0.0, %v7015
    %v7017 = vpop.f32.mrb[0].mxu0
    %v7018 = vpop.f32.mrb[0].mxu0
    %v7019 = vadd.f32 0.0, %v7018
    %v7020 = vpop.f32.mrb[0].mxu0
    %7021 = vmatprep.mubr.bf16.mxu0 0
    %7022 = vmatmul.mubr.bf16.gmra.mrb[0].mxu0 %v6802
    %v7023 = vpop.f32.mrb[0].mxu0
    %v7024 = vadd.f32 0.0, %v7023
    %v7025 = vpop.f32.mrb[0].mxu0
    %v7026 = vpop.f32.mrb[0].mxu0
    %v7027 = vadd.f32 0.0, %v7026
    %v7028 = vpop.f32.mrb[0].mxu0
    %7029 = vmatprep.mubr.bf16.mxu0 0
    %7030 = vmatmul.mubr.bf16.gmra.mrb[0].mxu0 %v6803
    %v7031 = vpop.f32.mrb[0].mxu0
    %v7032 = vadd.f32 0.0, %v7031
    %v7033 = vpop.f32.mrb[0].mxu0
    %v7034 = vpop.f32.mrb[0].mxu0
    %v7035 = vadd.f32 0.0, %v7034
    %v7036 = vpop.f32.mrb[0].mxu0
    %7037 = vmatprep.mubr.bf16.mxu0 0
    %7038 = vmatmul.mubr.bf16.gmra.mrb[0].mxu0 %v6804
    %v7039 = vpop.f32.mrb[0].mxu0
    %v7040 = vadd.f32 0.0, %v7039
    %v7041 = vpop.f32.mrb[0].mxu0
    %v7042 = vpop.f32.mrb[0].mxu0
    %v7043 = vadd.f32 0.0, %v7042
    %v7044 = vpop.f32.mrb[0].mxu0
    %7045 = vmatprep.mubr.bf16.mxu0 0
    %7046 = vmatmul.mubr.bf16.gmra.mrb[0].mxu0 %v6805
    %v7047 = vpop.f32.mrb[0].mxu0
    %v7048 = vadd.f32 0.0, %v7047
    %v7049 = vpop.f32.mrb[0].mxu0
    %v7050 = vpop.f32.mrb[0].mxu0
    %v7051 = vadd.f32 0.0, %v7050
    %v7052 = vpop.f32.mrb[0].mxu0
    %7053 = vmatprep.mubr.bf16.mxu0 0
    %7054 = vmatmul.mubr.bf16.gmra.mrb[0].mxu0 %v6806
    %v7055 = vpop.f32.mrb[0].mxu0
    %v7056 = vadd.f32 0.0, %v7055
    %v7057 = vpop.f32.mrb[0].mxu0
    %v7058 = vpop.f32.mrb[0].mxu0
    %v7059 = vadd.f32 0.0, %v7058
    %v7060 = vpop.f32.mrb[0].mxu0
    %7061 = vmatprep.mubr.bf16.mxu0 0
    %7062 = vmatmul.mubr.bf16.gmra.mrb[0].mxu0 %v6807
    %v7063 = vpop.f32.mrb[0].mxu0
    %v7064 = vadd.f32 0.0, %v7063
    %v7065 = vpop.f32.mrb[0].mxu0
    %v7066 = vpop.f32.mrb[0].mxu0
    %v7067 = vadd.f32 0.0, %v7066
    %v7068 = vpop.f32.mrb[0].mxu0
    %7069 = vmatprep.mubr.bf16.mxu0 0
    %7070 = vmatmul.mubr.bf16.gmra.mrb[0].mxu0 %v6808
    %v7071 = vpop.f32.mrb[0].mxu0
    %v7072 = vadd.f32 0.0, %v7071
    %v7073 = vpop.f32.mrb[0].mxu0
    %v7074 = vpop.f32.mrb[0].mxu0
    %v7075 = vadd.f32 0.0, %v7074
    %v7076 = vpop.f32.mrb[0].mxu0
    %7077 = vmatprep.mubr.bf16.mxu0 0
    %7078 = vmatmul.mubr.bf16.gmra.mrb[0].mxu0 %v6809
    %v7079 = vpop.f32.mrb[0].mxu0
    %v7080 = vadd.f32 0.0, %v7079
    %v7081 = vpop.f32.mrb[0].mxu0
    %v7082 = vpop.f32.mrb[0].mxu0
    %v7083 = vadd.f32 0.0, %v7082
    %v7084 = vpop.f32.mrb[0].mxu0
    %7085 = vmatprep.mubr.bf16.mxu0 0
    %7086 = vmatmul.mubr.bf16.gmra.mrb[0].mxu0 %v6810
    %v7087 = vpop.f32.mrb[0].mxu0
    %v7088 = vadd.f32 0.0, %v7087
    %v7089 = vpop.f32.mrb[0].mxu0
    %v7090 = vpop.f32.mrb[0].mxu0
    %v7091 = vadd.f32 0.0, %v7090
    %v7092 = vpop.f32.mrb[0].mxu0
    %7093 = vmatprep.mubr.bf16.mxu0 0
    %7094 = vmatmul.mubr.bf16.gmra.mrb[0].mxu0 %v6811
    %v7095 = vpop.f32.mrb[0].mxu0
    %v7096 = vadd.f32 0.0, %v7095
    %v7097 = vpop.f32.mrb[0].mxu0
    %v7098 = vpop.f32.mrb[0].mxu0
    %v7099 = vadd.f32 0.0, %v7098
    %v7100 = vpop.f32.mrb[0].mxu0
    %7101 = vmatprep.mubr.bf16.mxu0 0
    %7102 = vmatmul.mubr.bf16.gmra.mrb[0].mxu0 %v6812
    %v7103 = vpop.f32.mrb[0].mxu0
    %v7104 = vadd.f32 0.0, %v7103
    %v7105 = vpop.f32.mrb[0].mxu0
    %v7106 = vpop.f32.mrb[0].mxu0
    %v7107 = vadd.f32 0.0, %v7106
    %v7108 = vpop.f32.mrb[0].mxu0
    %7109 = vmatprep.mubr.bf16.mxu0 0
    %7110 = vmatmul.mubr.bf16.gmra.mrb[0].mxu0 %v6813
    %v7111 = vpop.f32.mrb[0].mxu0
    %v7112 = vadd.f32 0.0, %v7111
    %v7113 = vpop.f32.mrb[0].mxu0
    %v7114 = vpop.f32.mrb[0].mxu0
    %v7115 = vadd.f32 0.0, %v7114
    %v7116 = vpop.f32.mrb[0].mxu0
    %7117 = vmatprep.mubr.bf16.mxu0 0
    %7118 = vmatmul.mubr.bf16.gmra.mrb[0].mxu0 %v6814
    %v7119 = vpop.f32.mrb[0].mxu0
    %v7120 = vadd.f32 0.0, %v7119
    %v7121 = vpop.f32.mrb[0].mxu0
    %v7122 = vpop.f32.mrb[0].mxu0
    %v7123 = vadd.f32 0.0, %v7122
    %v7124 = vpop.f32.mrb[0].mxu0
    %7125 = vmatprep.mubr.bf16.mxu0 0
    %7126 = vmatmul.mubr.bf16.gmra.mrb[0].mxu0 %v6815
    %v7127 = vpop.f32.mrb[0].mxu0
    %v7128 = vadd.f32 0.0, %v7127
    %v7129 = vpop.f32.mrb[0].mxu0
    %v7130 = vpop.f32.mrb[0].mxu0
    %v7131 = vadd.f32 0.0, %v7130
    %v7132 = vpop.f32.mrb[0].mxu0
    %7133 = vmatprep.mubr.bf16.mxu0 0
    %7134 = vmatmul.mubr.bf16.gmra.mrb[0].mxu0 %v6816
    %v7135 = vpop.f32.mrb[0].mxu0
    %v7136 = vadd.f32 0.0, %v7135
    %v7137 = vpop.f32.mrb[0].mxu0
    %v7138 = vpop.f32.mrb[0].mxu0
    %v7139 = vadd.f32 0.0, %v7138
    %v7140 = vpop.f32.mrb[0].mxu0
    %7141 = vmatprep.mubr.bf16.mxu0 0
    %7142 = vmatmul.mubr.bf16.gmra.mrb[0].mxu0 %v6817
    %v7143 = vpop.f32.mrb[0].mxu0
    %v7144 = vadd.f32 0.0, %v7143
    %v7145 = vpop.f32.mrb[0].mxu0
    %v7146 = vpop.f32.mrb[0].mxu0
    %v7147 = vadd.f32 0.0, %v7146
    %v7148 = vpop.f32.mrb[0].mxu0
    %7149 = vmatprep.mubr.bf16.mxu0 0
    %7150 = vmatmul.mubr.bf16.gmra.mrb[0].mxu0 %v6818
    %v7151 = vpop.f32.mrb[0].mxu0
    %v7152 = vadd.f32 0.0, %v7151
    %v7153 = vpop.f32.mrb[0].mxu0
    %v7154 = vpop.f32.mrb[0].mxu0
    %v7155 = vadd.f32 0.0, %v7154
    %v7156 = vpop.f32.mrb[0].mxu0
    %7157 = vmatprep.mubr.bf16.mxu0 0
    %7158 = vmatmul.mubr.bf16.gmra.mrb[0].mxu0 %v6819
    %v7159 = vpop.f32.mrb[0].mxu0
    %v7160 = vadd.f32 0.0, %v7159
    %v7161 = vpop.f32.mrb[0].mxu0
    %v7162 = vpop.f32.mrb[0].mxu0
    %v7163 = vadd.f32 0.0, %v7162
    %v7164 = vpop.f32.mrb[0].mxu0
    %7165 = vmatprep.mubr.bf16.mxu0 0
    %7166 = vmatmul.mubr.bf16.gmra.mrb[0].mxu0 %v6820
    %v7167 = vpop.f32.mrb[0].mxu0
    %v7168 = vadd.f32 0.0, %v7167
    %v7169 = vpop.f32.mrb[0].mxu0
    %v7170 = vpop.f32.mrb[0].mxu0
    %v7171 = vadd.f32 0.0, %v7170
    %v7172 = vpop.f32.mrb[0].mxu0
    %7173 = vdwg.mxu0
    %v7174 = vadd.f32 %v6661, %v6920
    %v7175 = vadd.f32 %v6662, %v6923
    %v7176 = vadd.f32 %v6663, %v6928
    %v7177 = vadd.f32 %v6664, %v6931
    %v7178 = vadd.f32 %v6665, %v6936
    %v7179 = vadd.f32 %v6666, %v6939
    %v7180 = vadd.f32 %v6667, %v6944
    %v7181 = vadd.f32 %v6668, %v6947
    %v7182 = vadd.f32 %v6669, %v6952
    %v7183 = vadd.f32 %v6670, %v6955
    %v7184 = vadd.f32 %v6671, %v6960
    %v7185 = vadd.f32 %v6672, %v6963
    %v7186 = vadd.f32 %v6673, %v6968
    %v7187 = vadd.f32 %v6674, %v6971
    %v7188 = vadd.f32 %v6675, %v6976
    %v7189 = vadd.f32 %v6676, %v6979
    %v7190 = vadd.f32 %v6677, %v6984
    %v7191 = vadd.f32 %v6678, %v6987
    %v7192 = vadd.f32 %v6679, %v6992
    %v7193 = vadd.f32 %v6680, %v6995
    %v7194 = vadd.f32 %v6681, %v7000
    %v7195 = vadd.f32 %v6682, %v7003
    %v7196 = vadd.f32 %v6683, %v7008
    %v7197 = vadd.f32 %v6684, %v7011
    %v7198 = vadd.f32 %v6685, %v7016
    %v7199 = vadd.f32 %v6686, %v7019
    %v7200 = vadd.f32 %v6687, %v7024
    %v7201 = vadd.f32 %v6688, %v7027
    %v7202 = vadd.f32 %v6689, %v7032
    %v7203 = vadd.f32 %v6690, %v7035
    %v7204 = vadd.f32 %v6691, %v7040
    %v7205 = vadd.f32 %v6692, %v7043
    %v7206 = vadd.f32 %v6693, %v7048
    %v7207 = vadd.f32 %v6694, %v7051
    %v7208 = vadd.f32 %v6695, %v7056
    %v7209 = vadd.f32 %v6696, %v7059
    %v7210 = vadd.f32 %v6697, %v7064
    %v7211 = vadd.f32 %v6698, %v7067
    %v7212 = vadd.f32 %v6699, %v7072
    %v7213 = vadd.f32 %v6700, %v7075
    %v7214 = vadd.f32 %v6701, %v7080
    %v7215 = vadd.f32 %v6702, %v7083
    %v7216 = vadd.f32 %v6703, %v7088
    %v7217 = vadd.f32 %v6704, %v7091
    %v7218 = vadd.f32 %v6705, %v7096
    %v7219 = vadd.f32 %v6706, %v7099
    %v7220 = vadd.f32 %v6707, %v7104
    %v7221 = vadd.f32 %v6708, %v7107
    %v7222 = vadd.f32 %v6709, %v7112
    %v7223 = vadd.f32 %v6710, %v7115
    %v7224 = vadd.f32 %v6711, %v7120
    %v7225 = vadd.f32 %v6712, %v7123
    %v7226 = vadd.f32 %v6713, %v7128
    %v7227 = vadd.f32 %v6714, %v7131
    %v7228 = vadd.f32 %v6715, %v7136
    %v7229 = vadd.f32 %v6716, %v7139
    %v7230 = vadd.f32 %v6717, %v7144
    %v7231 = vadd.f32 %v6718, %v7147
    %v7232 = vadd.f32 %v6719, %v7152
    %v7233 = vadd.f32 %v6720, %v7155
    %v7234 = vadd.f32 %v6721, %v7160
    %v7235 = vadd.f32 %v6722, %v7163
    %v7236 = vadd.f32 %v6723, %v7168
    %v7237 = vadd.f32 %v6724, %v7171
    %v7238 = vld [vmem:[%s218 + $0x1] sm:$0xff]
    %v7239 = vld [vmem:[%s218 + $0x9] sm:$0xff]
    %v7240 = vld [vmem:[%s218 + $0x19] sm:$0xff]
    %v7241 = vld [vmem:[%s218 + $0x21] sm:$0xff]
    %v7242 = vld [vmem:[%s218 + $0x31] sm:$0xff]
    %v7243 = vld [vmem:[%s218 + $0x39] sm:$0xff]
    %v7244 = vld [vmem:[%s218 + $0x49] sm:$0xff]
    %v7245 = vld [vmem:[%s218 + $0x51] sm:$0xff]
    %v7246 = vld [vmem:[%s218 + $0x61] sm:$0xff]
    %v7247 = vld [vmem:[%s218 + $0x69] sm:$0xff]
    %v7248 = vld [vmem:[%s218 + $0x79] sm:$0xff]
    %v7249 = vld [vmem:[%s218 + $0x81] sm:$0xff]
    %v7250 = vld [vmem:[%s218 + $0x91] sm:$0xff]
    %v7251 = vld [vmem:[%s218 + $0x99] sm:$0xff]
    %v7252 = vld [vmem:[%s218 + $0xa9] sm:$0xff]
    %v7253 = vld [vmem:[%s218 + $0xb1] sm:$0xff]
    %v7254 = vld [vmem:[%s218 + $0xc1] sm:$0xff]
    %v7255 = vld [vmem:[%s218 + $0xc9] sm:$0xff]
    %v7256 = vld [vmem:[%s218 + $0xd9] sm:$0xff]
    %v7257 = vld [vmem:[%s218 + $0xe1] sm:$0xff]
    %v7258 = vld [vmem:[%s218 + $0xf1] sm:$0xff]
    %v7259 = vld [vmem:[%s218 + $0xf9] sm:$0xff]
    %v7260 = vld [vmem:[%s218 + $0x109] sm:$0xff]
    %v7261 = vld [vmem:[%s218 + $0x111] sm:$0xff]
    %v7262 = vld [vmem:[%s218 + $0x121] sm:$0xff]
    %v7263 = vld [vmem:[%s218 + $0x129] sm:$0xff]
    %v7264 = vld [vmem:[%s218 + $0x139] sm:$0xff]
    %v7265 = vld [vmem:[%s218 + $0x141] sm:$0xff]
    %v7266 = vld [vmem:[%s218 + $0x151] sm:$0xff]
    %v7267 = vld [vmem:[%s218 + $0x159] sm:$0xff]
    %v7268 = vld [vmem:[%s218 + $0x169] sm:$0xff]
    %v7269 = vld [vmem:[%s218 + $0x171] sm:$0xff]
    %v7270 = vld [vmem:[%s218 + $0x1b1] sm:$0xff]
    %v7271 = vld [vmem:[%s218 + $0x1b9] sm:$0xff]
    %v7272 = vld [vmem:[%s218 + $0x1c9] sm:$0xff]
    %v7273 = vld [vmem:[%s218 + $0x1d1] sm:$0xff]
    %v7274 = vld [vmem:[%s218 + $0x1e1] sm:$0xff]
    %v7275 = vld [vmem:[%s218 + $0x1e9] sm:$0xff]
    %v7276 = vld [vmem:[%s218 + $0x1f9] sm:$0xff]
    %v7277 = vld [vmem:[%s218 + $0x201] sm:$0xff]
    %v7278 = vld [vmem:[%s218 + $0x211] sm:$0xff]
    %v7279 = vld [vmem:[%s218 + $0x219] sm:$0xff]
    %v7280 = vld [vmem:[%s218 + $0x229] sm:$0xff]
    %v7281 = vld [vmem:[%s218 + $0x231] sm:$0xff]
    %v7282 = vld [vmem:[%s218 + $0x241] sm:$0xff]
    %v7283 = vld [vmem:[%s218 + $0x249] sm:$0xff]
    %v7284 = vld [vmem:[%s218 + $0x259] sm:$0xff]
    %v7285 = vld [vmem:[%s218 + $0x261] sm:$0xff]
    %v7286 = vld [vmem:[%s218 + $0x271] sm:$0xff]
    %v7287 = vld [vmem:[%s218 + $0x279] sm:$0xff]
    %v7288 = vld [vmem:[%s218 + $0x289] sm:$0xff]
    %v7289 = vld [vmem:[%s218 + $0x291] sm:$0xff]
    %v7290 = vld [vmem:[%s218 + $0x2a1] sm:$0xff]
    %v7291 = vld [vmem:[%s218 + $0x2a9] sm:$0xff]
    %v7292 = vld [vmem:[%s218 + $0x2b9] sm:$0xff]
    %v7293 = vld [vmem:[%s218 + $0x2c1] sm:$0xff]
    %v7294 = vld [vmem:[%s218 + $0x2d1] sm:$0xff]
    %v7295 = vld [vmem:[%s218 + $0x2d9] sm:$0xff]
    %v7296 = vld [vmem:[%s218 + $0x2e9] sm:$0xff]
    %v7297 = vld [vmem:[%s218 + $0x2f1] sm:$0xff]
    %v7298 = vld [vmem:[%s218 + $0x301] sm:$0xff]
    %v7299 = vld [vmem:[%s218 + $0x309] sm:$0xff]
    %v7300 = vld [vmem:[%s218 + $0x319] sm:$0xff]
    %v7301 = vld [vmem:[%s218 + $0x321] sm:$0xff]
    %v7302 = vpack.c.bf16 %v7239, %v7238
    %v7303 = vpack.c.bf16 %v7241, %v7240
    %v7304 = vpack.c.bf16 %v7243, %v7242
    %v7305 = vpack.c.bf16 %v7245, %v7244
    %v7306 = vpack.c.bf16 %v7247, %v7246
    %v7307 = vpack.c.bf16 %v7249, %v7248
    %v7308 = vpack.c.bf16 %v7251, %v7250
    %v7309 = vpack.c.bf16 %v7253, %v7252
    %v7310 = vpack.c.bf16 %v7255, %v7254
    %v7311 = vpack.c.bf16 %v7257, %v7256
    %v7312 = vpack.c.bf16 %v7259, %v7258
    %v7313 = vpack.c.bf16 %v7261, %v7260
    %v7314 = vpack.c.bf16 %v7263, %v7262
    %v7315 = vpack.c.bf16 %v7265, %v7264
    %v7316 = vpack.c.bf16 %v7267, %v7266
    %v7317 = vpack.c.bf16 %v7269, %v7268
    %v7318 = vpack.c.bf16 %v7271, %v7270
    %v7319 = vpack.c.bf16 %v7273, %v7272
    %v7320 = vpack.c.bf16 %v7275, %v7274
    %v7321 = vpack.c.bf16 %v7277, %v7276
    %v7322 = vpack.c.bf16 %v7279, %v7278
    %v7323 = vpack.c.bf16 %v7281, %v7280
    %v7324 = vpack.c.bf16 %v7283, %v7282
    %v7325 = vpack.c.bf16 %v7285, %v7284
    %v7326 = vpack.c.bf16 %v7287, %v7286
    %v7327 = vpack.c.bf16 %v7289, %v7288
    %v7328 = vpack.c.bf16 %v7291, %v7290
    %v7329 = vpack.c.bf16 %v7293, %v7292
    %v7330 = vpack.c.bf16 %v7295, %v7294
    %v7331 = vpack.c.bf16 %v7297, %v7296
    %v7332 = vpack.c.bf16 %v7299, %v7298
    %v7333 = vpack.c.bf16 %v7301, %v7300
    %v7334 = vld [vmem:[#allocation8 + $0x100] sm:$0xf]
    %v7335 = vld [vmem:[#allocation8 + $0x104] sm:$0xf]
    %v7336 = vld [vmem:[#allocation8 + $0x108] sm:$0xf]
    %v7337 = vld [vmem:[#allocation8 + $0x10c] sm:$0xf]
    %v7338 = vld [vmem:[#allocation8 + $0x110] sm:$0xf]
    %v7339 = vld [vmem:[#allocation8 + $0x114] sm:$0xf]
    %v7340 = vld [vmem:[#allocation8 + $0x118] sm:$0xf]
    %v7341 = vld [vmem:[#allocation8 + $0x11c] sm:$0xf]
    %v7342 = vld [vmem:[#allocation8 + $0x120] sm:$0xf]
    %v7343 = vld [vmem:[#allocation8 + $0x124] sm:$0xf]
    %v7344 = vld [vmem:[#allocation8 + $0x128] sm:$0xf]
    %v7345 = vld [vmem:[#allocation8 + $0x12c] sm:$0xf]
    %v7346 = vld [vmem:[#allocation8 + $0x130] sm:$0xf]
    %v7347 = vld [vmem:[#allocation8 + $0x134] sm:$0xf]
    %v7348 = vld [vmem:[#allocation8 + $0x138] sm:$0xf]
    %v7349 = vld [vmem:[#allocation8 + $0x13c] sm:$0xf]
    %v7366 = vunpack.c.l.b16 %v7334
    %v7367 = vunpack.c.l.b16 %v7335
    %v7368 = vunpack.c.l.b16 %v7336
    %v7369 = vunpack.c.l.b16 %v7337
    %v7370 = vunpack.c.l.b16 %v7338
    %v7371 = vunpack.c.l.b16 %v7339
    %v7372 = vunpack.c.l.b16 %v7340
    %v7373 = vunpack.c.l.b16 %v7341
    %v7374 = vunpack.c.l.b16 %v7342
    %v7375 = vunpack.c.l.b16 %v7343
    %v7376 = vunpack.c.l.b16 %v7344
    %v7377 = vunpack.c.l.b16 %v7345
    %v7378 = vunpack.c.l.b16 %v7346
    %v7379 = vunpack.c.l.b16 %v7347
    %v7380 = vunpack.c.l.b16 %v7348
    %v7381 = vunpack.c.l.b16 %v7349
    %v7382 = vpack.c.b16 %v7367, %v7366
    %v7383 = vpack.c.b16 %v7369, %v7368
    %v7384 = vpack.c.b16 %v7371, %v7370
    %v7385 = vpack.c.b16 %v7373, %v7372
    %v7386 = vpack.c.b16 %v7375, %v7374
    %v7387 = vpack.c.b16 %v7377, %v7376
    %v7388 = vpack.c.b16 %v7379, %v7378
    %v7389 = vpack.c.b16 %v7381, %v7380
    %7398 = vmatprep.subr.bf16.mxu0 0
    %7399 = vmatpush1.bf16.msra.mxu0 %v7382
    %7400 = vmatprep.subr.bf16.mxu0 0
    %7401 = vmatpush1.bf16.msra.mxu0 %v7383
    %7402 = vmatprep.subr.bf16.mxu0 0
    %7403 = vmatpush1.bf16.msra.mxu0 %v7384
    %7404 = vmatprep.subr.bf16.mxu0 0
    %7405 = vmatpush1.bf16.msra.mxu0 %v7385
    %7406 = vmatprep.subr.bf16.mxu0 0
    %7407 = vmatpush1.bf16.msra.mxu0 %v7386
    %7408 = vmatprep.subr.bf16.mxu0 0
    %7409 = vmatpush1.bf16.msra.mxu0 %v7387
    %7410 = vmatprep.subr.bf16.mxu0 0
    %7411 = vmatpush1.bf16.msra.mxu0 %v7388
    %7412 = vmatprep.subr.bf16.mxu0 0
    %7413 = vmatpush1.bf16.msra.mxu0 %v7389
    %7414 = vmatprep.subr.bf16.mxu0 0
    %7415 = vmatpush1.bf16.msra.mxu0 0
    %7416 = vmatprep.subr.bf16.mxu0 0
    %7417 = vmatpush1.bf16.msra.mxu0 0
    %7418 = vmatprep.subr.bf16.mxu0 0
    %7419 = vmatpush1.bf16.msra.mxu0 0
    %7420 = vmatprep.subr.bf16.mxu0 0
    %7421 = vmatpush1.bf16.msra.mxu0 0
    %7422 = vmatprep.subr.bf16.mxu0 0
    %7423 = vmatpush1.bf16.msra.mxu0 0
    %7424 = vmatprep.subr.bf16.mxu0 0
    %7425 = vmatpush1.bf16.msra.mxu0 0
    %7426 = vmatprep.subr.bf16.mxu0 0
    %7427 = vmatpush1.bf16.msra.mxu0 0
    %7428 = vmatprep.subr.bf16.mxu0 0
    %7429 = vmatpush1.bf16.msra.mxu0 0
    %7430 = vmatprep.mubr.bf16.mxu0 0
    %7431 = vmatmul.mubr.bf16.gmra.mrb[0].mxu0 %v7302
    %v7432 = vpop.f32.mrb[0].mxu0
    %v7433 = vadd.f32 0.0, %v7432
    %v7434 = vpop.f32.mrb[0].mxu0
    %v7435 = vpop.f32.mrb[0].mxu0
    %v7436 = vadd.f32 0.0, %v7435
    %v7437 = vpop.f32.mrb[0].mxu0
    %7438 = vmatprep.mubr.bf16.mxu0 0
    %7439 = vmatmul.mubr.bf16.gmra.mrb[0].mxu0 %v7303
    %v7440 = vpop.f32.mrb[0].mxu0
    %v7441 = vadd.f32 0.0, %v7440
    %v7442 = vpop.f32.mrb[0].mxu0
    %v7443 = vpop.f32.mrb[0].mxu0
    %v7444 = vadd.f32 0.0, %v7443
    %v7445 = vpop.f32.mrb[0].mxu0
    %7446 = vmatprep.mubr.bf16.mxu0 0
    %7447 = vmatmul.mubr.bf16.gmra.mrb[0].mxu0 %v7304
    %v7448 = vpop.f32.mrb[0].mxu0
    %v7449 = vadd.f32 0.0, %v7448
    %v7450 = vpop.f32.mrb[0].mxu0
    %v7451 = vpop.f32.mrb[0].mxu0
    %v7452 = vadd.f32 0.0, %v7451
    %v7453 = vpop.f32.mrb[0].mxu0
    %7454 = vmatprep.mubr.bf16.mxu0 0
    %7455 = vmatmul.mubr.bf16.gmra.mrb[0].mxu0 %v7305
    %v7456 = vpop.f32.mrb[0].mxu0
    %v7457 = vadd.f32 0.0, %v7456
    %v7458 = vpop.f32.mrb[0].mxu0
    %v7459 = vpop.f32.mrb[0].mxu0
    %v7460 = vadd.f32 0.0, %v7459
    %v7461 = vpop.f32.mrb[0].mxu0
    %7462 = vmatprep.mubr.bf16.mxu0 0
    %7463 = vmatmul.mubr.bf16.gmra.mrb[0].mxu0 %v7306
    %v7464 = vpop.f32.mrb[0].mxu0
    %v7465 = vadd.f32 0.0, %v7464
    %v7466 = vpop.f32.mrb[0].mxu0
    %v7467 = vpop.f32.mrb[0].mxu0
    %v7468 = vadd.f32 0.0, %v7467
    %v7469 = vpop.f32.mrb[0].mxu0
    %7470 = vmatprep.mubr.bf16.mxu0 0
    %7471 = vmatmul.mubr.bf16.gmra.mrb[0].mxu0 %v7307
    %v7472 = vpop.f32.mrb[0].mxu0
    %v7473 = vadd.f32 0.0, %v7472
    %v7474 = vpop.f32.mrb[0].mxu0
    %v7475 = vpop.f32.mrb[0].mxu0
    %v7476 = vadd.f32 0.0, %v7475
    %v7477 = vpop.f32.mrb[0].mxu0
    %7478 = vmatprep.mubr.bf16.mxu0 0
    %7479 = vmatmul.mubr.bf16.gmra.mrb[0].mxu0 %v7308
    %v7480 = vpop.f32.mrb[0].mxu0
    %v7481 = vadd.f32 0.0, %v7480
    %v7482 = vpop.f32.mrb[0].mxu0
    %v7483 = vpop.f32.mrb[0].mxu0
    %v7484 = vadd.f32 0.0, %v7483
    %v7485 = vpop.f32.mrb[0].mxu0
    %7486 = vmatprep.mubr.bf16.mxu0 0
    %7487 = vmatmul.mubr.bf16.gmra.mrb[0].mxu0 %v7309
    %v7488 = vpop.f32.mrb[0].mxu0
    %v7489 = vadd.f32 0.0, %v7488
    %v7490 = vpop.f32.mrb[0].mxu0
    %v7491 = vpop.f32.mrb[0].mxu0
    %v7492 = vadd.f32 0.0, %v7491
    %v7493 = vpop.f32.mrb[0].mxu0
    %7494 = vmatprep.mubr.bf16.mxu0 0
    %7495 = vmatmul.mubr.bf16.gmra.mrb[0].mxu0 %v7310
    %v7496 = vpop.f32.mrb[0].mxu0
    %v7497 = vadd.f32 0.0, %v7496
    %v7498 = vpop.f32.mrb[0].mxu0
    %v7499 = vpop.f32.mrb[0].mxu0
    %v7500 = vadd.f32 0.0, %v7499
    %v7501 = vpop.f32.mrb[0].mxu0
    %7502 = vmatprep.mubr.bf16.mxu0 0
    %7503 = vmatmul.mubr.bf16.gmra.mrb[0].mxu0 %v7311
    %v7504 = vpop.f32.mrb[0].mxu0
    %v7505 = vadd.f32 0.0, %v7504
    %v7506 = vpop.f32.mrb[0].mxu0
    %v7507 = vpop.f32.mrb[0].mxu0
    %v7508 = vadd.f32 0.0, %v7507
    %v7509 = vpop.f32.mrb[0].mxu0
    %7510 = vmatprep.mubr.bf16.mxu0 0
    %7511 = vmatmul.mubr.bf16.gmra.mrb[0].mxu0 %v7312
    %v7512 = vpop.f32.mrb[0].mxu0
    %v7513 = vadd.f32 0.0, %v7512
    %v7514 = vpop.f32.mrb[0].mxu0
    %v7515 = vpop.f32.mrb[0].mxu0
    %v7516 = vadd.f32 0.0, %v7515
    %v7517 = vpop.f32.mrb[0].mxu0
    %7518 = vmatprep.mubr.bf16.mxu0 0
    %7519 = vmatmul.mubr.bf16.gmra.mrb[0].mxu0 %v7313
    %v7520 = vpop.f32.mrb[0].mxu0
    %v7521 = vadd.f32 0.0, %v7520
    %v7522 = vpop.f32.mrb[0].mxu0
    %v7523 = vpop.f32.mrb[0].mxu0
    %v7524 = vadd.f32 0.0, %v7523
    %v7525 = vpop.f32.mrb[0].mxu0
    %7526 = vmatprep.mubr.bf16.mxu0 0
    %7527 = vmatmul.mubr.bf16.gmra.mrb[0].mxu0 %v7314
    %v7528 = vpop.f32.mrb[0].mxu0
    %v7529 = vadd.f32 0.0, %v7528
    %v7530 = vpop.f32.mrb[0].mxu0
    %v7531 = vpop.f32.mrb[0].mxu0
    %v7532 = vadd.f32 0.0, %v7531
    %v7533 = vpop.f32.mrb[0].mxu0
    %7534 = vmatprep.mubr.bf16.mxu0 0
    %7535 = vmatmul.mubr.bf16.gmra.mrb[0].mxu0 %v7315
    %v7536 = vpop.f32.mrb[0].mxu0
    %v7537 = vadd.f32 0.0, %v7536
    %v7538 = vpop.f32.mrb[0].mxu0
    %v7539 = vpop.f32.mrb[0].mxu0
    %v7540 = vadd.f32 0.0, %v7539
    %v7541 = vpop.f32.mrb[0].mxu0
    %7542 = vmatprep.mubr.bf16.mxu0 0
    %7543 = vmatmul.mubr.bf16.gmra.mrb[0].mxu0 %v7316
    %v7544 = vpop.f32.mrb[0].mxu0
    %v7545 = vadd.f32 0.0, %v7544
    %v7546 = vpop.f32.mrb[0].mxu0
    %v7547 = vpop.f32.mrb[0].mxu0
    %v7548 = vadd.f32 0.0, %v7547
    %v7549 = vpop.f32.mrb[0].mxu0
    %7550 = vmatprep.mubr.bf16.mxu0 0
    %7551 = vmatmul.mubr.bf16.gmra.mrb[0].mxu0 %v7317
    %v7552 = vpop.f32.mrb[0].mxu0
    %v7553 = vadd.f32 0.0, %v7552
    %v7554 = vpop.f32.mrb[0].mxu0
    %v7555 = vpop.f32.mrb[0].mxu0
    %v7556 = vadd.f32 0.0, %v7555
    %v7557 = vpop.f32.mrb[0].mxu0
    %7558 = vmatprep.mubr.bf16.mxu0 0
    %7559 = vmatmul.mubr.bf16.gmra.mrb[0].mxu0 %v7318
    %v7560 = vpop.f32.mrb[0].mxu0
    %v7561 = vadd.f32 0.0, %v7560
    %v7562 = vpop.f32.mrb[0].mxu0
    %v7563 = vpop.f32.mrb[0].mxu0
    %v7564 = vadd.f32 0.0, %v7563
    %v7565 = vpop.f32.mrb[0].mxu0
    %7566 = vmatprep.mubr.bf16.mxu0 0
    %7567 = vmatmul.mubr.bf16.gmra.mrb[0].mxu0 %v7319
    %v7568 = vpop.f32.mrb[0].mxu0
    %v7569 = vadd.f32 0.0, %v7568
    %v7570 = vpop.f32.mrb[0].mxu0
    %v7571 = vpop.f32.mrb[0].mxu0
    %v7572 = vadd.f32 0.0, %v7571
    %v7573 = vpop.f32.mrb[0].mxu0
    %7574 = vmatprep.mubr.bf16.mxu0 0
    %7575 = vmatmul.mubr.bf16.gmra.mrb[0].mxu0 %v7320
    %v7576 = vpop.f32.mrb[0].mxu0
    %v7577 = vadd.f32 0.0, %v7576
    %v7578 = vpop.f32.mrb[0].mxu0
    %v7579 = vpop.f32.mrb[0].mxu0
    %v7580 = vadd.f32 0.0, %v7579
    %v7581 = vpop.f32.mrb[0].mxu0
    %7582 = vmatprep.mubr.bf16.mxu0 0
    %7583 = vmatmul.mubr.bf16.gmra.mrb[0].mxu0 %v7321
    %v7584 = vpop.f32.mrb[0].mxu0
    %v7585 = vadd.f32 0.0, %v7584
    %v7586 = vpop.f32.mrb[0].mxu0
    %v7587 = vpop.f32.mrb[0].mxu0
    %v7588 = vadd.f32 0.0, %v7587
    %v7589 = vpop.f32.mrb[0].mxu0
    %7590 = vmatprep.mubr.bf16.mxu0 0
    %7591 = vmatmul.mubr.bf16.gmra.mrb[0].mxu0 %v7322
    %v7592 = vpop.f32.mrb[0].mxu0
    %v7593 = vadd.f32 0.0, %v7592
    %v7594 = vpop.f32.mrb[0].mxu0
    %v7595 = vpop.f32.mrb[0].mxu0
    %v7596 = vadd.f32 0.0, %v7595
    %v7597 = vpop.f32.mrb[0].mxu0
    %7598 = vmatprep.mubr.bf16.mxu0 0
    %7599 = vmatmul.mubr.bf16.gmra.mrb[0].mxu0 %v7323
    %v7600 = vpop.f32.mrb[0].mxu0
    %v7601 = vadd.f32 0.0, %v7600
    %v7602 = vpop.f32.mrb[0].mxu0
    %v7603 = vpop.f32.mrb[0].mxu0
    %v7604 = vadd.f32 0.0, %v7603
    %v7605 = vpop.f32.mrb[0].mxu0
    %7606 = vmatprep.mubr.bf16.mxu0 0
    %7607 = vmatmul.mubr.bf16.gmra.mrb[0].mxu0 %v7324
    %v7608 = vpop.f32.mrb[0].mxu0
    %v7609 = vadd.f32 0.0, %v7608
    %v7610 = vpop.f32.mrb[0].mxu0
    %v7611 = vpop.f32.mrb[0].mxu0
    %v7612 = vadd.f32 0.0, %v7611
    %v7613 = vpop.f32.mrb[0].mxu0
    %7614 = vmatprep.mubr.bf16.mxu0 0
    %7615 = vmatmul.mubr.bf16.gmra.mrb[0].mxu0 %v7325
    %v7616 = vpop.f32.mrb[0].mxu0
    %v7617 = vadd.f32 0.0, %v7616
    %v7618 = vpop.f32.mrb[0].mxu0
    %v7619 = vpop.f32.mrb[0].mxu0
    %v7620 = vadd.f32 0.0, %v7619
    %v7621 = vpop.f32.mrb[0].mxu0
    %7622 = vmatprep.mubr.bf16.mxu0 0
    %7623 = vmatmul.mubr.bf16.gmra.mrb[0].mxu0 %v7326
    %v7624 = vpop.f32.mrb[0].mxu0
    %v7625 = vadd.f32 0.0, %v7624
    %v7626 = vpop.f32.mrb[0].mxu0
    %v7627 = vpop.f32.mrb[0].mxu0
    %v7628 = vadd.f32 0.0, %v7627
    %v7629 = vpop.f32.mrb[0].mxu0
    %7630 = vmatprep.mubr.bf16.mxu0 0
    %7631 = vmatmul.mubr.bf16.gmra.mrb[0].mxu0 %v7327
    %v7632 = vpop.f32.mrb[0].mxu0
    %v7633 = vadd.f32 0.0, %v7632
    %v7634 = vpop.f32.mrb[0].mxu0
    %v7635 = vpop.f32.mrb[0].mxu0
    %v7636 = vadd.f32 0.0, %v7635
    %v7637 = vpop.f32.mrb[0].mxu0
    %7638 = vmatprep.mubr.bf16.mxu0 0
    %7639 = vmatmul.mubr.bf16.gmra.mrb[0].mxu0 %v7328
    %v7640 = vpop.f32.mrb[0].mxu0
    %v7641 = vadd.f32 0.0, %v7640
    %v7642 = vpop.f32.mrb[0].mxu0
    %v7643 = vpop.f32.mrb[0].mxu0
    %v7644 = vadd.f32 0.0, %v7643
    %v7645 = vpop.f32.mrb[0].mxu0
    %7646 = vmatprep.mubr.bf16.mxu0 0
    %7647 = vmatmul.mubr.bf16.gmra.mrb[0].mxu0 %v7329
    %v7648 = vpop.f32.mrb[0].mxu0
    %v7649 = vadd.f32 0.0, %v7648
    %v7650 = vpop.f32.mrb[0].mxu0
    %v7651 = vpop.f32.mrb[0].mxu0
    %v7652 = vadd.f32 0.0, %v7651
    %v7653 = vpop.f32.mrb[0].mxu0
    %7654 = vmatprep.mubr.bf16.mxu0 0
    %7655 = vmatmul.mubr.bf16.gmra.mrb[0].mxu0 %v7330
    %v7656 = vpop.f32.mrb[0].mxu0
    %v7657 = vadd.f32 0.0, %v7656
    %v7658 = vpop.f32.mrb[0].mxu0
    %v7659 = vpop.f32.mrb[0].mxu0
    %v7660 = vadd.f32 0.0, %v7659
    %v7661 = vpop.f32.mrb[0].mxu0
    %7662 = vmatprep.mubr.bf16.mxu0 0
    %7663 = vmatmul.mubr.bf16.gmra.mrb[0].mxu0 %v7331
    %v7664 = vpop.f32.mrb[0].mxu0
    %v7665 = vadd.f32 0.0, %v7664
    %v7666 = vpop.f32.mrb[0].mxu0
    %v7667 = vpop.f32.mrb[0].mxu0
    %v7668 = vadd.f32 0.0, %v7667
    %v7669 = vpop.f32.mrb[0].mxu0
    %7670 = vmatprep.mubr.bf16.mxu0 0
    %7671 = vmatmul.mubr.bf16.gmra.mrb[0].mxu0 %v7332
    %v7672 = vpop.f32.mrb[0].mxu0
    %v7673 = vadd.f32 0.0, %v7672
    %v7674 = vpop.f32.mrb[0].mxu0
    %v7675 = vpop.f32.mrb[0].mxu0
    %v7676 = vadd.f32 0.0, %v7675
    %v7677 = vpop.f32.mrb[0].mxu0
    %7678 = vmatprep.mubr.bf16.mxu0 0
    %7679 = vmatmul.mubr.bf16.gmra.mrb[0].mxu0 %v7333
    %v7680 = vpop.f32.mrb[0].mxu0
    %v7681 = vadd.f32 0.0, %v7680
    %v7682 = vpop.f32.mrb[0].mxu0
    %v7683 = vpop.f32.mrb[0].mxu0
    %v7684 = vadd.f32 0.0, %v7683
    %v7685 = vpop.f32.mrb[0].mxu0
    %7686 = vdwg.mxu0
    %v7687 = vadd.f32 %v7174, %v7433
    %v7688 = vadd.f32 %v7175, %v7436
    %v7689 = vadd.f32 %v7176, %v7441
    %v7690 = vadd.f32 %v7177, %v7444
    %v7691 = vadd.f32 %v7178, %v7449
    %v7692 = vadd.f32 %v7179, %v7452
    %v7693 = vadd.f32 %v7180, %v7457
    %v7694 = vadd.f32 %v7181, %v7460
    %v7695 = vadd.f32 %v7182, %v7465
    %v7696 = vadd.f32 %v7183, %v7468
    %v7697 = vadd.f32 %v7184, %v7473
    %v7698 = vadd.f32 %v7185, %v7476
    %v7699 = vadd.f32 %v7186, %v7481
    %v7700 = vadd.f32 %v7187, %v7484
    %v7701 = vadd.f32 %v7188, %v7489
    %v7702 = vadd.f32 %v7189, %v7492
    %v7703 = vadd.f32 %v7190, %v7497
    %v7704 = vadd.f32 %v7191, %v7500
    %v7705 = vadd.f32 %v7192, %v7505
    %v7706 = vadd.f32 %v7193, %v7508
    %v7707 = vadd.f32 %v7194, %v7513
    %v7708 = vadd.f32 %v7195, %v7516
    %v7709 = vadd.f32 %v7196, %v7521
    %v7710 = vadd.f32 %v7197, %v7524
    %v7711 = vadd.f32 %v7198, %v7529
    %v7712 = vadd.f32 %v7199, %v7532
    %v7713 = vadd.f32 %v7200, %v7537
    %v7714 = vadd.f32 %v7201, %v7540
    %v7715 = vadd.f32 %v7202, %v7545
    %v7716 = vadd.f32 %v7203, %v7548
    %v7717 = vadd.f32 %v7204, %v7553
    %v7718 = vadd.f32 %v7205, %v7556
    %v7719 = vadd.f32 %v7206, %v7561
    %v7720 = vadd.f32 %v7207, %v7564
    %v7721 = vadd.f32 %v7208, %v7569
    %v7722 = vadd.f32 %v7209, %v7572
    %v7723 = vadd.f32 %v7210, %v7577
    %v7724 = vadd.f32 %v7211, %v7580
    %v7725 = vadd.f32 %v7212, %v7585
    %v7726 = vadd.f32 %v7213, %v7588
    %v7727 = vadd.f32 %v7214, %v7593
    %v7728 = vadd.f32 %v7215, %v7596
    %v7729 = vadd.f32 %v7216, %v7601
    %v7730 = vadd.f32 %v7217, %v7604
    %v7731 = vadd.f32 %v7218, %v7609
    %v7732 = vadd.f32 %v7219, %v7612
    %v7733 = vadd.f32 %v7220, %v7617
    %v7734 = vadd.f32 %v7221, %v7620
    %v7735 = vadd.f32 %v7222, %v7625
    %v7736 = vadd.f32 %v7223, %v7628
    %v7737 = vadd.f32 %v7224, %v7633
    %v7738 = vadd.f32 %v7225, %v7636
    %v7739 = vadd.f32 %v7226, %v7641
    %v7740 = vadd.f32 %v7227, %v7644
    %v7741 = vadd.f32 %v7228, %v7649
    %v7742 = vadd.f32 %v7229, %v7652
    %v7743 = vadd.f32 %v7230, %v7657
    %v7744 = vadd.f32 %v7231, %v7660
    %v7745 = vadd.f32 %v7232, %v7665
    %v7746 = vadd.f32 %v7233, %v7668
    %v7747 = vadd.f32 %v7234, %v7673
    %v7748 = vadd.f32 %v7235, %v7676
    %v7749 = vadd.f32 %v7236, %v7681
    %v7750 = vadd.f32 %v7237, %v7684
    %v7751 = vld [vmem:[%s218 + $0x2] sm:$0xff]
    %v7752 = vld [vmem:[%s218 + $0xa] sm:$0xff]
    %v7753 = vld [vmem:[%s218 + $0x1a] sm:$0xff]
    %v7754 = vld [vmem:[%s218 + $0x22] sm:$0xff]
    %v7755 = vld [vmem:[%s218 + $0x32] sm:$0xff]
    %v7756 = vld [vmem:[%s218 + $0x3a] sm:$0xff]
    %v7757 = vld [vmem:[%s218 + $0x4a] sm:$0xff]
    %v7758 = vld [vmem:[%s218 + $0x52] sm:$0xff]
    %v7759 = vld [vmem:[%s218 + $0x62] sm:$0xff]
    %v7760 = vld [vmem:[%s218 + $0x6a] sm:$0xff]
    %v7761 = vld [vmem:[%s218 + $0x7a] sm:$0xff]
    %v7762 = vld [vmem:[%s218 + $0x82] sm:$0xff]
    %v7763 = vld [vmem:[%s218 + $0x92] sm:$0xff]
    %v7764 = vld [vmem:[%s218 + $0x9a] sm:$0xff]
    %v7765 = vld [vmem:[%s218 + $0xaa] sm:$0xff]
    %v7766 = vld [vmem:[%s218 + $0xb2] sm:$0xff]
    %v7767 = vld [vmem:[%s218 + $0xc2] sm:$0xff]
    %v7768 = vld [vmem:[%s218 + $0xca] sm:$0xff]
    %v7769 = vld [vmem:[%s218 + $0xda] sm:$0xff]
    %v7770 = vld [vmem:[%s218 + $0xe2] sm:$0xff]
    %v7771 = vld [vmem:[%s218 + $0xf2] sm:$0xff]
    %v7772 = vld [vmem:[%s218 + $0xfa] sm:$0xff]
    %v7773 = vld [vmem:[%s218 + $0x10a] sm:$0xff]
    %v7774 = vld [vmem:[%s218 + $0x112] sm:$0xff]
    %v7775 = vld [vmem:[%s218 + $0x122] sm:$0xff]
    %v7776 = vld [vmem:[%s218 + $0x12a] sm:$0xff]
    %v7777 = vld [vmem:[%s218 + $0x13a] sm:$0xff]
    %v7778 = vld [vmem:[%s218 + $0x142] sm:$0xff]
    %v7779 = vld [vmem:[%s218 + $0x152] sm:$0xff]
    %v7780 = vld [vmem:[%s218 + $0x15a] sm:$0xff]
    %v7781 = vld [vmem:[%s218 + $0x16a] sm:$0xff]
    %v7782 = vld [vmem:[%s218 + $0x172] sm:$0xff]
    %v7783 = vld [vmem:[%s218 + $0x1b2] sm:$0xff]
    %v7784 = vld [vmem:[%s218 + $0x1ba] sm:$0xff]
    %v7785 = vld [vmem:[%s218 + $0x1ca] sm:$0xff]
    %v7786 = vld [vmem:[%s218 + $0x1d2] sm:$0xff]
    %v7787 = vld [vmem:[%s218 + $0x1e2] sm:$0xff]
    %v7788 = vld [vmem:[%s218 + $0x1ea] sm:$0xff]
    %v7789 = vld [vmem:[%s218 + $0x1fa] sm:$0xff]
    %v7790 = vld [vmem:[%s218 + $0x202] sm:$0xff]
    %v7791 = vld [vmem:[%s218 + $0x212] sm:$0xff]
    %v7792 = vld [vmem:[%s218 + $0x21a] sm:$0xff]
    %v7793 = vld [vmem:[%s218 + $0x22a] sm:$0xff]
    %v7794 = vld [vmem:[%s218 + $0x232] sm:$0xff]
    %v7795 = vld [vmem:[%s218 + $0x242] sm:$0xff]
    %v7796 = vld [vmem:[%s218 + $0x24a] sm:$0xff]
    %v7797 = vld [vmem:[%s218 + $0x25a] sm:$0xff]
    %v7798 = vld [vmem:[%s218 + $0x262] sm:$0xff]
    %v7799 = vld [vmem:[%s218 + $0x272] sm:$0xff]
    %v7800 = vld [vmem:[%s218 + $0x27a] sm:$0xff]
    %v7801 = vld [vmem:[%s218 + $0x28a] sm:$0xff]
    %v7802 = vld [vmem:[%s218 + $0x292] sm:$0xff]
    %v7803 = vld [vmem:[%s218 + $0x2a2] sm:$0xff]
    %v7804 = vld [vmem:[%s218 + $0x2aa] sm:$0xff]
    %v7805 = vld [vmem:[%s218 + $0x2ba] sm:$0xff]
    %v7806 = vld [vmem:[%s218 + $0x2c2] sm:$0xff]
    %v7807 = vld [vmem:[%s218 + $0x2d2] sm:$0xff]
    %v7808 = vld [vmem:[%s218 + $0x2da] sm:$0xff]
    %v7809 = vld [vmem:[%s218 + $0x2ea] sm:$0xff]
    %v7810 = vld [vmem:[%s218 + $0x2f2] sm:$0xff]
    %v7811 = vld [vmem:[%s218 + $0x302] sm:$0xff]
    %v7812 = vld [vmem:[%s218 + $0x30a] sm:$0xff]
    %v7813 = vld [vmem:[%s218 + $0x31a] sm:$0xff]
    %v7814 = vld [vmem:[%s218 + $0x322] sm:$0xff]
    %v7815 = vpack.c.bf16 %v7752, %v7751
    %v7816 = vpack.c.bf16 %v7754, %v7753
    %v7817 = vpack.c.bf16 %v7756, %v7755
    %v7818 = vpack.c.bf16 %v7758, %v7757
    %v7819 = vpack.c.bf16 %v7760, %v7759
    %v7820 = vpack.c.bf16 %v7762, %v7761
    %v7821 = vpack.c.bf16 %v7764, %v7763
    %v7822 = vpack.c.bf16 %v7766, %v7765
    %v7823 = vpack.c.bf16 %v7768, %v7767
    %v7824 = vpack.c.bf16 %v7770, %v7769
    %v7825 = vpack.c.bf16 %v7772, %v7771
    %v7826 = vpack.c.bf16 %v7774, %v7773
    %v7827 = vpack.c.bf16 %v7776, %v7775
    %v7828 = vpack.c.bf16 %v7778, %v7777
    %v7829 = vpack.c.bf16 %v7780, %v7779
    %v7830 = vpack.c.bf16 %v7782, %v7781
    %v7831 = vpack.c.bf16 %v7784, %v7783
    %v7832 = vpack.c.bf16 %v7786, %v7785
    %v7833 = vpack.c.bf16 %v7788, %v7787
    %v7834 = vpack.c.bf16 %v7790, %v7789
    %v7835 = vpack.c.bf16 %v7792, %v7791
    %v7836 = vpack.c.bf16 %v7794, %v7793
    %v7837 = vpack.c.bf16 %v7796, %v7795
    %v7838 = vpack.c.bf16 %v7798, %v7797
    %v7839 = vpack.c.bf16 %v7800, %v7799
    %v7840 = vpack.c.bf16 %v7802, %v7801
    %v7841 = vpack.c.bf16 %v7804, %v7803
    %v7842 = vpack.c.bf16 %v7806, %v7805
    %v7843 = vpack.c.bf16 %v7808, %v7807
    %v7844 = vpack.c.bf16 %v7810, %v7809
    %v7845 = vpack.c.bf16 %v7812, %v7811
    %v7846 = vpack.c.bf16 %v7814, %v7813
    %v7847 = vld [vmem:[#allocation8 + $0x140] sm:$0xf]
    %v7848 = vld [vmem:[#allocation8 + $0x144] sm:$0xf]
    %v7849 = vld [vmem:[#allocation8 + $0x148] sm:$0xf]
    %v7850 = vld [vmem:[#allocation8 + $0x14c] sm:$0xf]
    %v7851 = vld [vmem:[#allocation8 + $0x150] sm:$0xf]
    %v7852 = vld [vmem:[#allocation8 + $0x154] sm:$0xf]
    %v7853 = vld [vmem:[#allocation8 + $0x158] sm:$0xf]
    %v7854 = vld [vmem:[#allocation8 + $0x15c] sm:$0xf]
    %v7855 = vld [vmem:[#allocation8 + $0x160] sm:$0xf]
    %v7856 = vld [vmem:[#allocation8 + $0x164] sm:$0xf]
    %v7857 = vld [vmem:[#allocation8 + $0x168] sm:$0xf]
    %v7858 = vld [vmem:[#allocation8 + $0x16c] sm:$0xf]
    %v7859 = vld [vmem:[#allocation8 + $0x170] sm:$0xf]
    %v7860 = vld [vmem:[#allocation8 + $0x174] sm:$0xf]
    %v7861 = vld [vmem:[#allocation8 + $0x178] sm:$0xf]
    %v7862 = vld [vmem:[#allocation8 + $0x17c] sm:$0xf]
    %v7879 = vunpack.c.l.b16 %v7847
    %v7880 = vunpack.c.l.b16 %v7848
    %v7881 = vunpack.c.l.b16 %v7849
    %v7882 = vunpack.c.l.b16 %v7850
    %v7883 = vunpack.c.l.b16 %v7851
    %v7884 = vunpack.c.l.b16 %v7852
    %v7885 = vunpack.c.l.b16 %v7853
    %v7886 = vunpack.c.l.b16 %v7854
    %v7887 = vunpack.c.l.b16 %v7855
    %v7888 = vunpack.c.l.b16 %v7856
    %v7889 = vunpack.c.l.b16 %v7857
    %v7890 = vunpack.c.l.b16 %v7858
    %v7891 = vunpack.c.l.b16 %v7859
    %v7892 = vunpack.c.l.b16 %v7860
    %v7893 = vunpack.c.l.b16 %v7861
    %v7894 = vunpack.c.l.b16 %v7862
    %v7895 = vpack.c.b16 %v7880, %v7879
    %v7896 = vpack.c.b16 %v7882, %v7881
    %v7897 = vpack.c.b16 %v7884, %v7883
    %v7898 = vpack.c.b16 %v7886, %v7885
    %v7899 = vpack.c.b16 %v7888, %v7887
    %v7900 = vpack.c.b16 %v7890, %v7889
    %v7901 = vpack.c.b16 %v7892, %v7891
    %v7902 = vpack.c.b16 %v7894, %v7893
    %7911 = vmatprep.subr.bf16.mxu0 0
    %7912 = vmatpush1.bf16.msra.mxu0 %v7895
    %7913 = vmatprep.subr.bf16.mxu0 0
    %7914 = vmatpush1.bf16.msra.mxu0 %v7896
    %7915 = vmatprep.subr.bf16.mxu0 0
    %7916 = vmatpush1.bf16.msra.mxu0 %v7897
    %7917 = vmatprep.subr.bf16.mxu0 0
    %7918 = vmatpush1.bf16.msra.mxu0 %v7898
    %7919 = vmatprep.subr.bf16.mxu0 0
    %7920 = vmatpush1.bf16.msra.mxu0 %v7899
    %7921 = vmatprep.subr.bf16.mxu0 0
    %7922 = vmatpush1.bf16.msra.mxu0 %v7900
    %7923 = vmatprep.subr.bf16.mxu0 0
    %7924 = vmatpush1.bf16.msra.mxu0 %v7901
    %7925 = vmatprep.subr.bf16.mxu0 0
    %7926 = vmatpush1.bf16.msra.mxu0 %v7902
    %7927 = vmatprep.subr.bf16.mxu0 0
    %7928 = vmatpush1.bf16.msra.mxu0 0
    %7929 = vmatprep.subr.bf16.mxu0 0
    %7930 = vmatpush1.bf16.msra.mxu0 0
    %7931 = vmatprep.subr.bf16.mxu0 0
    %7932 = vmatpush1.bf16.msra.mxu0 0
    %7933 = vmatprep.subr.bf16.mxu0 0
    %7934 = vmatpush1.bf16.msra.mxu0 0
    %7935 = vmatprep.subr.bf16.mxu0 0
    %7936 = vmatpush1.bf16.msra.mxu0 0
    %7937 = vmatprep.subr.bf16.mxu0 0
    %7938 = vmatpush1.bf16.msra.mxu0 0
    %7939 = vmatprep.subr.bf16.mxu0 0
    %7940 = vmatpush1.bf16.msra.mxu0 0
    %7941 = vmatprep.subr.bf16.mxu0 0
    %7942 = vmatpush1.bf16.msra.mxu0 0
    %7943 = vmatprep.mubr.bf16.mxu0 0
    %7944 = vmatmul.mubr.bf16.gmra.mrb[0].mxu0 %v7815
    %v7945 = vpop.f32.mrb[0].mxu0
    %v7946 = vadd.f32 0.0, %v7945
    %v7947 = vpop.f32.mrb[0].mxu0
    %v7948 = vpop.f32.mrb[0].mxu0
    %v7949 = vadd.f32 0.0, %v7948
    %v7950 = vpop.f32.mrb[0].mxu0
    %7951 = vmatprep.mubr.bf16.mxu0 0
    %7952 = vmatmul.mubr.bf16.gmra.mrb[0].mxu0 %v7816
    %v7953 = vpop.f32.mrb[0].mxu0
    %v7954 = vadd.f32 0.0, %v7953
    %v7955 = vpop.f32.mrb[0].mxu0
    %v7956 = vpop.f32.mrb[0].mxu0
    %v7957 = vadd.f32 0.0, %v7956
    %v7958 = vpop.f32.mrb[0].mxu0
    %7959 = vmatprep.mubr.bf16.mxu0 0
    %7960 = vmatmul.mubr.bf16.gmra.mrb[0].mxu0 %v7817
    %v7961 = vpop.f32.mrb[0].mxu0
    %v7962 = vadd.f32 0.0, %v7961
    %v7963 = vpop.f32.mrb[0].mxu0
    %v7964 = vpop.f32.mrb[0].mxu0
    %v7965 = vadd.f32 0.0, %v7964
    %v7966 = vpop.f32.mrb[0].mxu0
    %7967 = vmatprep.mubr.bf16.mxu0 0
    %7968 = vmatmul.mubr.bf16.gmra.mrb[0].mxu0 %v7818
    %v7969 = vpop.f32.mrb[0].mxu0
    %v7970 = vadd.f32 0.0, %v7969
    %v7971 = vpop.f32.mrb[0].mxu0
    %v7972 = vpop.f32.mrb[0].mxu0
    %v7973 = vadd.f32 0.0, %v7972
    %v7974 = vpop.f32.mrb[0].mxu0
    %7975 = vmatprep.mubr.bf16.mxu0 0
    %7976 = vmatmul.mubr.bf16.gmra.mrb[0].mxu0 %v7819
    %v7977 = vpop.f32.mrb[0].mxu0
    %v7978 = vadd.f32 0.0, %v7977
    %v7979 = vpop.f32.mrb[0].mxu0
    %v7980 = vpop.f32.mrb[0].mxu0
    %v7981 = vadd.f32 0.0, %v7980
    %v7982 = vpop.f32.mrb[0].mxu0
    %7983 = vmatprep.mubr.bf16.mxu0 0
    %7984 = vmatmul.mubr.bf16.gmra.mrb[0].mxu0 %v7820
    %v7985 = vpop.f32.mrb[0].mxu0
    %v7986 = vadd.f32 0.0, %v7985
    %v7987 = vpop.f32.mrb[0].mxu0
    %v7988 = vpop.f32.mrb[0].mxu0
    %v7989 = vadd.f32 0.0, %v7988
    %v7990 = vpop.f32.mrb[0].mxu0
    %7991 = vmatprep.mubr.bf16.mxu0 0
    %7992 = vmatmul.mubr.bf16.gmra.mrb[0].mxu0 %v7821
    %v7993 = vpop.f32.mrb[0].mxu0
    %v7994 = vadd.f32 0.0, %v7993
    %v7995 = vpop.f32.mrb[0].mxu0
    %v7996 = vpop.f32.mrb[0].mxu0
    %v7997 = vadd.f32 0.0, %v7996
    %v7998 = vpop.f32.mrb[0].mxu0
    %7999 = vmatprep.mubr.bf16.mxu0 0
    %8000 = vmatmul.mubr.bf16.gmra.mrb[0].mxu0 %v7822
    %v8001 = vpop.f32.mrb[0].mxu0
    %v8002 = vadd.f32 0.0, %v8001
    %v8003 = vpop.f32.mrb[0].mxu0
    %v8004 = vpop.f32.mrb[0].mxu0
    %v8005 = vadd.f32 0.0, %v8004
    %v8006 = vpop.f32.mrb[0].mxu0
    %8007 = vmatprep.mubr.bf16.mxu0 0
    %8008 = vmatmul.mubr.bf16.gmra.mrb[0].mxu0 %v7823
    %v8009 = vpop.f32.mrb[0].mxu0
    %v8010 = vadd.f32 0.0, %v8009
    %v8011 = vpop.f32.mrb[0].mxu0
    %v8012 = vpop.f32.mrb[0].mxu0
    %v8013 = vadd.f32 0.0, %v8012
    %v8014 = vpop.f32.mrb[0].mxu0
    %8015 = vmatprep.mubr.bf16.mxu0 0
    %8016 = vmatmul.mubr.bf16.gmra.mrb[0].mxu0 %v7824
    %v8017 = vpop.f32.mrb[0].mxu0
    %v8018 = vadd.f32 0.0, %v8017
    %v8019 = vpop.f32.mrb[0].mxu0
    %v8020 = vpop.f32.mrb[0].mxu0
    %v8021 = vadd.f32 0.0, %v8020
    %v8022 = vpop.f32.mrb[0].mxu0
    %8023 = vmatprep.mubr.bf16.mxu0 0
    %8024 = vmatmul.mubr.bf16.gmra.mrb[0].mxu0 %v7825
    %v8025 = vpop.f32.mrb[0].mxu0
    %v8026 = vadd.f32 0.0, %v8025
    %v8027 = vpop.f32.mrb[0].mxu0
    %v8028 = vpop.f32.mrb[0].mxu0
    %v8029 = vadd.f32 0.0, %v8028
    %v8030 = vpop.f32.mrb[0].mxu0
    %8031 = vmatprep.mubr.bf16.mxu0 0
    %8032 = vmatmul.mubr.bf16.gmra.mrb[0].mxu0 %v7826
    %v8033 = vpop.f32.mrb[0].mxu0
    %v8034 = vadd.f32 0.0, %v8033
    %v8035 = vpop.f32.mrb[0].mxu0
    %v8036 = vpop.f32.mrb[0].mxu0
    %v8037 = vadd.f32 0.0, %v8036
    %v8038 = vpop.f32.mrb[0].mxu0
    %8039 = vmatprep.mubr.bf16.mxu0 0
    %8040 = vmatmul.mubr.bf16.gmra.mrb[0].mxu0 %v7827
    %v8041 = vpop.f32.mrb[0].mxu0
    %v8042 = vadd.f32 0.0, %v8041
    %v8043 = vpop.f32.mrb[0].mxu0
    %v8044 = vpop.f32.mrb[0].mxu0
    %v8045 = vadd.f32 0.0, %v8044
    %v8046 = vpop.f32.mrb[0].mxu0
    %8047 = vmatprep.mubr.bf16.mxu0 0
    %8048 = vmatmul.mubr.bf16.gmra.mrb[0].mxu0 %v7828
    %v8049 = vpop.f32.mrb[0].mxu0
    %v8050 = vadd.f32 0.0, %v8049
    %v8051 = vpop.f32.mrb[0].mxu0
    %v8052 = vpop.f32.mrb[0].mxu0
    %v8053 = vadd.f32 0.0, %v8052
    %v8054 = vpop.f32.mrb[0].mxu0
    %8055 = vmatprep.mubr.bf16.mxu0 0
    %8056 = vmatmul.mubr.bf16.gmra.mrb[0].mxu0 %v7829
    %v8057 = vpop.f32.mrb[0].mxu0
    %v8058 = vadd.f32 0.0, %v8057
    %v8059 = vpop.f32.mrb[0].mxu0
    %v8060 = vpop.f32.mrb[0].mxu0
    %v8061 = vadd.f32 0.0, %v8060
    %v8062 = vpop.f32.mrb[0].mxu0
    %8063 = vmatprep.mubr.bf16.mxu0 0
    %8064 = vmatmul.mubr.bf16.gmra.mrb[0].mxu0 %v7830
    %v8065 = vpop.f32.mrb[0].mxu0
    %v8066 = vadd.f32 0.0, %v8065
    %v8067 = vpop.f32.mrb[0].mxu0
    %v8068 = vpop.f32.mrb[0].mxu0
    %v8069 = vadd.f32 0.0, %v8068
    %v8070 = vpop.f32.mrb[0].mxu0
    %8071 = vmatprep.mubr.bf16.mxu0 0
    %8072 = vmatmul.mubr.bf16.gmra.mrb[0].mxu0 %v7831
    %v8073 = vpop.f32.mrb[0].mxu0
    %v8074 = vadd.f32 0.0, %v8073
    %v8075 = vpop.f32.mrb[0].mxu0
    %v8076 = vpop.f32.mrb[0].mxu0
    %v8077 = vadd.f32 0.0, %v8076
    %v8078 = vpop.f32.mrb[0].mxu0
    %8079 = vmatprep.mubr.bf16.mxu0 0
    %8080 = vmatmul.mubr.bf16.gmra.mrb[0].mxu0 %v7832
    %v8081 = vpop.f32.mrb[0].mxu0
    %v8082 = vadd.f32 0.0, %v8081
    %v8083 = vpop.f32.mrb[0].mxu0
    %v8084 = vpop.f32.mrb[0].mxu0
    %v8085 = vadd.f32 0.0, %v8084
    %v8086 = vpop.f32.mrb[0].mxu0
    %8087 = vmatprep.mubr.bf16.mxu0 0
    %8088 = vmatmul.mubr.bf16.gmra.mrb[0].mxu0 %v7833
    %v8089 = vpop.f32.mrb[0].mxu0
    %v8090 = vadd.f32 0.0, %v8089
    %v8091 = vpop.f32.mrb[0].mxu0
    %v8092 = vpop.f32.mrb[0].mxu0
    %v8093 = vadd.f32 0.0, %v8092
    %v8094 = vpop.f32.mrb[0].mxu0
    %8095 = vmatprep.mubr.bf16.mxu0 0
    %8096 = vmatmul.mubr.bf16.gmra.mrb[0].mxu0 %v7834
    %v8097 = vpop.f32.mrb[0].mxu0
    %v8098 = vadd.f32 0.0, %v8097
    %v8099 = vpop.f32.mrb[0].mxu0
    %v8100 = vpop.f32.mrb[0].mxu0
    %v8101 = vadd.f32 0.0, %v8100
    %v8102 = vpop.f32.mrb[0].mxu0
    %8103 = vmatprep.mubr.bf16.mxu0 0
    %8104 = vmatmul.mubr.bf16.gmra.mrb[0].mxu0 %v7835
    %v8105 = vpop.f32.mrb[0].mxu0
    %v8106 = vadd.f32 0.0, %v8105
    %v8107 = vpop.f32.mrb[0].mxu0
    %v8108 = vpop.f32.mrb[0].mxu0
    %v8109 = vadd.f32 0.0, %v8108
    %v8110 = vpop.f32.mrb[0].mxu0
    %8111 = vmatprep.mubr.bf16.mxu0 0
    %8112 = vmatmul.mubr.bf16.gmra.mrb[0].mxu0 %v7836
    %v8113 = vpop.f32.mrb[0].mxu0
    %v8114 = vadd.f32 0.0, %v8113
    %v8115 = vpop.f32.mrb[0].mxu0
    %v8116 = vpop.f32.mrb[0].mxu0
    %v8117 = vadd.f32 0.0, %v8116
    %v8118 = vpop.f32.mrb[0].mxu0
    %8119 = vmatprep.mubr.bf16.mxu0 0
    %8120 = vmatmul.mubr.bf16.gmra.mrb[0].mxu0 %v7837
    %v8121 = vpop.f32.mrb[0].mxu0
    %v8122 = vadd.f32 0.0, %v8121
    %v8123 = vpop.f32.mrb[0].mxu0
    %v8124 = vpop.f32.mrb[0].mxu0
    %v8125 = vadd.f32 0.0, %v8124
    %v8126 = vpop.f32.mrb[0].mxu0
    %8127 = vmatprep.mubr.bf16.mxu0 0
    %8128 = vmatmul.mubr.bf16.gmra.mrb[0].mxu0 %v7838
    %v8129 = vpop.f32.mrb[0].mxu0
    %v8130 = vadd.f32 0.0, %v8129
    %v8131 = vpop.f32.mrb[0].mxu0
    %v8132 = vpop.f32.mrb[0].mxu0
    %v8133 = vadd.f32 0.0, %v8132
    %v8134 = vpop.f32.mrb[0].mxu0
    %8135 = vmatprep.mubr.bf16.mxu0 0
    %8136 = vmatmul.mubr.bf16.gmra.mrb[0].mxu0 %v7839
    %v8137 = vpop.f32.mrb[0].mxu0
    %v8138 = vadd.f32 0.0, %v8137
    %v8139 = vpop.f32.mrb[0].mxu0
    %v8140 = vpop.f32.mrb[0].mxu0
    %v8141 = vadd.f32 0.0, %v8140
    %v8142 = vpop.f32.mrb[0].mxu0
    %8143 = vmatprep.mubr.bf16.mxu0 0
    %8144 = vmatmul.mubr.bf16.gmra.mrb[0].mxu0 %v7840
    %v8145 = vpop.f32.mrb[0].mxu0
    %v8146 = vadd.f32 0.0, %v8145
    %v8147 = vpop.f32.mrb[0].mxu0
    %v8148 = vpop.f32.mrb[0].mxu0
    %v8149 = vadd.f32 0.0, %v8148
    %v8150 = vpop.f32.mrb[0].mxu0
    %8151 = vmatprep.mubr.bf16.mxu0 0
    %8152 = vmatmul.mubr.bf16.gmra.mrb[0].mxu0 %v7841
    %v8153 = vpop.f32.mrb[0].mxu0
    %v8154 = vadd.f32 0.0, %v8153
    %v8155 = vpop.f32.mrb[0].mxu0
    %v8156 = vpop.f32.mrb[0].mxu0
    %v8157 = vadd.f32 0.0, %v8156
    %v8158 = vpop.f32.mrb[0].mxu0
    %8159 = vmatprep.mubr.bf16.mxu0 0
    %8160 = vmatmul.mubr.bf16.gmra.mrb[0].mxu0 %v7842
    %v8161 = vpop.f32.mrb[0].mxu0
    %v8162 = vadd.f32 0.0, %v8161
    %v8163 = vpop.f32.mrb[0].mxu0
    %v8164 = vpop.f32.mrb[0].mxu0
    %v8165 = vadd.f32 0.0, %v8164
    %v8166 = vpop.f32.mrb[0].mxu0
    %8167 = vmatprep.mubr.bf16.mxu0 0
    %8168 = vmatmul.mubr.bf16.gmra.mrb[0].mxu0 %v7843
    %v8169 = vpop.f32.mrb[0].mxu0
    %v8170 = vadd.f32 0.0, %v8169
    %v8171 = vpop.f32.mrb[0].mxu0
    %v8172 = vpop.f32.mrb[0].mxu0
    %v8173 = vadd.f32 0.0, %v8172
    %v8174 = vpop.f32.mrb[0].mxu0
    %8175 = vmatprep.mubr.bf16.mxu0 0
    %8176 = vmatmul.mubr.bf16.gmra.mrb[0].mxu0 %v7844
    %v8177 = vpop.f32.mrb[0].mxu0
    %v8178 = vadd.f32 0.0, %v8177
    %v8179 = vpop.f32.mrb[0].mxu0
    %v8180 = vpop.f32.mrb[0].mxu0
    %v8181 = vadd.f32 0.0, %v8180
    %v8182 = vpop.f32.mrb[0].mxu0
    %8183 = vmatprep.mubr.bf16.mxu0 0
    %8184 = vmatmul.mubr.bf16.gmra.mrb[0].mxu0 %v7845
    %v8185 = vpop.f32.mrb[0].mxu0
    %v8186 = vadd.f32 0.0, %v8185
    %v8187 = vpop.f32.mrb[0].mxu0
    %v8188 = vpop.f32.mrb[0].mxu0
    %v8189 = vadd.f32 0.0, %v8188
    %v8190 = vpop.f32.mrb[0].mxu0
    %8191 = vmatprep.mubr.bf16.mxu0 0
    %8192 = vmatmul.mubr.bf16.gmra.mrb[0].mxu0 %v7846
    %v8193 = vpop.f32.mrb[0].mxu0
    %v8194 = vadd.f32 0.0, %v8193
    %v8195 = vpop.f32.mrb[0].mxu0
    %v8196 = vpop.f32.mrb[0].mxu0
    %v8197 = vadd.f32 0.0, %v8196
    %v8198 = vpop.f32.mrb[0].mxu0
    %8199 = vdwg.mxu0
    %v8200 = vadd.f32 %v7687, %v7946
    %v8201 = vadd.f32 %v7688, %v7949
    %v8202 = vadd.f32 %v7689, %v7954
    %v8203 = vadd.f32 %v7690, %v7957
    %v8204 = vadd.f32 %v7691, %v7962
    %v8205 = vadd.f32 %v7692, %v7965
    %v8206 = vadd.f32 %v7693, %v7970
    %v8207 = vadd.f32 %v7694, %v7973
    %v8208 = vadd.f32 %v7695, %v7978
    %v8209 = vadd.f32 %v7696, %v7981
    %v8210 = vadd.f32 %v7697, %v7986
    %v8211 = vadd.f32 %v7698, %v7989
    %v8212 = vadd.f32 %v7699, %v7994
    %v8213 = vadd.f32 %v7700, %v7997
    %v8214 = vadd.f32 %v7701, %v8002
    %v8215 = vadd.f32 %v7702, %v8005
    %v8216 = vadd.f32 %v7703, %v8010
    %v8217 = vadd.f32 %v7704, %v8013
    %v8218 = vadd.f32 %v7705, %v8018
    %v8219 = vadd.f32 %v7706, %v8021
    %v8220 = vadd.f32 %v7707, %v8026
    %v8221 = vadd.f32 %v7708, %v8029
    %v8222 = vadd.f32 %v7709, %v8034
    %v8223 = vadd.f32 %v7710, %v8037
    %v8224 = vadd.f32 %v7711, %v8042
    %v8225 = vadd.f32 %v7712, %v8045
    %v8226 = vadd.f32 %v7713, %v8050
    %v8227 = vadd.f32 %v7714, %v8053
    %v8228 = vadd.f32 %v7715, %v8058
    %v8229 = vadd.f32 %v7716, %v8061
    %v8230 = vadd.f32 %v7717, %v8066
    %v8231 = vadd.f32 %v7718, %v8069
    %v8232 = vadd.f32 %v7719, %v8074
    %v8233 = vadd.f32 %v7720, %v8077
    %v8234 = vadd.f32 %v7721, %v8082
    %v8235 = vadd.f32 %v7722, %v8085
    %v8236 = vadd.f32 %v7723, %v8090
    %v8237 = vadd.f32 %v7724, %v8093
    %v8238 = vadd.f32 %v7725, %v8098
    %v8239 = vadd.f32 %v7726, %v8101
    %v8240 = vadd.f32 %v7727, %v8106
    %v8241 = vadd.f32 %v7728, %v8109
    %v8242 = vadd.f32 %v7729, %v8114
    %v8243 = vadd.f32 %v7730, %v8117
    %v8244 = vadd.f32 %v7731, %v8122
    %v8245 = vadd.f32 %v7732, %v8125
    %v8246 = vadd.f32 %v7733, %v8130
    %v8247 = vadd.f32 %v7734, %v8133
    %v8248 = vadd.f32 %v7735, %v8138
    %v8249 = vadd.f32 %v7736, %v8141
    %v8250 = vadd.f32 %v7737, %v8146
    %v8251 = vadd.f32 %v7738, %v8149
    %v8252 = vadd.f32 %v7739, %v8154
    %v8253 = vadd.f32 %v7740, %v8157
    %v8254 = vadd.f32 %v7741, %v8162
    %v8255 = vadd.f32 %v7742, %v8165
    %v8256 = vadd.f32 %v7743, %v8170
    %v8257 = vadd.f32 %v7744, %v8173
    %v8258 = vadd.f32 %v7745, %v8178
    %v8259 = vadd.f32 %v7746, %v8181
    %v8260 = vadd.f32 %v7747, %v8186
    %v8261 = vadd.f32 %v7748, %v8189
    %v8262 = vadd.f32 %v7749, %v8194
    %v8263 = vadd.f32 %v7750, %v8197
    %v8264 = vld [vmem:[%s3233] sm:$0xff]
    %v8265 = vld [vmem:[%s3233 + $0x8] sm:$0xff]
    %v8266 = vld [vmem:[%s3233 + $0x18] sm:$0xff]
    %v8267 = vld [vmem:[%s3233 + $0x20] sm:$0xff]
    %v8268 = vld [vmem:[%s3233 + $0x30] sm:$0xff]
    %v8269 = vld [vmem:[%s3233 + $0x38] sm:$0xff]
    %v8270 = vld [vmem:[%s3233 + $0x48] sm:$0xff]
    %v8271 = vld [vmem:[%s3233 + $0x50] sm:$0xff]
    %v8272 = vld [vmem:[%s3233 + $0x60] sm:$0xff]
    %v8273 = vld [vmem:[%s3233 + $0x68] sm:$0xff]
    %v8274 = vld [vmem:[%s3233 + $0x78] sm:$0xff]
    %v8275 = vld [vmem:[%s3233 + $0x80] sm:$0xff]
    %v8276 = vld [vmem:[%s3233 + $0x90] sm:$0xff]
    %v8277 = vld [vmem:[%s3233 + $0x98] sm:$0xff]
    %v8278 = vld [vmem:[%s3233 + $0xa8] sm:$0xff]
    %v8279 = vld [vmem:[%s3233 + $0xb0] sm:$0xff]
    %v8280 = vld [vmem:[%s3233 + $0xc0] sm:$0xff]
    %v8281 = vld [vmem:[%s3233 + $0xc8] sm:$0xff]
    %v8282 = vld [vmem:[%s3233 + $0xd8] sm:$0xff]
    %v8283 = vld [vmem:[%s3233 + $0xe0] sm:$0xff]
    %v8284 = vld [vmem:[%s3233 + $0xf0] sm:$0xff]
    %v8285 = vld [vmem:[%s3233 + $0xf8] sm:$0xff]
    %v8286 = vld [vmem:[%s3233 + $0x108] sm:$0xff]
    %v8287 = vld [vmem:[%s3233 + $0x110] sm:$0xff]
    %v8288 = vld [vmem:[%s3233 + $0x120] sm:$0xff]
    %v8289 = vld [vmem:[%s3233 + $0x128] sm:$0xff]
    %v8290 = vld [vmem:[%s3233 + $0x138] sm:$0xff]
    %v8291 = vld [vmem:[%s3233 + $0x140] sm:$0xff]
    %v8292 = vld [vmem:[%s3233 + $0x150] sm:$0xff]
    %v8293 = vld [vmem:[%s3233 + $0x158] sm:$0xff]
    %v8294 = vld [vmem:[%s3233 + $0x168] sm:$0xff]
    %v8295 = vld [vmem:[%s3233 + $0x170] sm:$0xff]
    %v8296 = vld [vmem:[%s3233 + $0x1b0] sm:$0xff]
    %v8297 = vld [vmem:[%s3233 + $0x1b8] sm:$0xff]
    %v8298 = vld [vmem:[%s3233 + $0x1c8] sm:$0xff]
    %v8299 = vld [vmem:[%s3233 + $0x1d0] sm:$0xff]
    %v8300 = vld [vmem:[%s3233 + $0x1e0] sm:$0xff]
    %v8301 = vld [vmem:[%s3233 + $0x1e8] sm:$0xff]
    %v8302 = vld [vmem:[%s3233 + $0x1f8] sm:$0xff]
    %v8303 = vld [vmem:[%s3233 + $0x200] sm:$0xff]
    %v8304 = vld [vmem:[%s3233 + $0x210] sm:$0xff]
    %v8305 = vld [vmem:[%s3233 + $0x218] sm:$0xff]
    %v8306 = vld [vmem:[%s3233 + $0x228] sm:$0xff]
    %v8307 = vld [vmem:[%s3233 + $0x230] sm:$0xff]
    %v8308 = vld [vmem:[%s3233 + $0x240] sm:$0xff]
    %v8309 = vld [vmem:[%s3233 + $0x248] sm:$0xff]
    %v8310 = vld [vmem:[%s3233 + $0x258] sm:$0xff]
    %v8311 = vld [vmem:[%s3233 + $0x260] sm:$0xff]
    %v8312 = vld [vmem:[%s3233 + $0x270] sm:$0xff]
    %v8313 = vld [vmem:[%s3233 + $0x278] sm:$0xff]
    %v8314 = vld [vmem:[%s3233 + $0x288] sm:$0xff]
    %v8315 = vld [vmem:[%s3233 + $0x290] sm:$0xff]
    %v8316 = vld [vmem:[%s3233 + $0x2a0] sm:$0xff]
    %v8317 = vld [vmem:[%s3233 + $0x2a8] sm:$0xff]
    %v8318 = vld [vmem:[%s3233 + $0x2b8] sm:$0xff]
    %v8319 = vld [vmem:[%s3233 + $0x2c0] sm:$0xff]
    %v8320 = vld [vmem:[%s3233 + $0x2d0] sm:$0xff]
    %v8321 = vld [vmem:[%s3233 + $0x2d8] sm:$0xff]
    %v8322 = vld [vmem:[%s3233 + $0x2e8] sm:$0xff]
    %v8323 = vld [vmem:[%s3233 + $0x2f0] sm:$0xff]
    %v8324 = vld [vmem:[%s3233 + $0x300] sm:$0xff]
    %v8325 = vld [vmem:[%s3233 + $0x308] sm:$0xff]
    %v8326 = vld [vmem:[%s3233 + $0x318] sm:$0xff]
    %v8327 = vld [vmem:[%s3233 + $0x320] sm:$0xff]
    %v8328 = vpack.c.bf16 %v8265, %v8264
    %v8329 = vpack.c.bf16 %v8267, %v8266
    %v8330 = vpack.c.bf16 %v8269, %v8268
    %v8331 = vpack.c.bf16 %v8271, %v8270
    %v8332 = vpack.c.bf16 %v8273, %v8272
    %v8333 = vpack.c.bf16 %v8275, %v8274
    %v8334 = vpack.c.bf16 %v8277, %v8276
    %v8335 = vpack.c.bf16 %v8279, %v8278
    %v8336 = vpack.c.bf16 %v8281, %v8280
    %v8337 = vpack.c.bf16 %v8283, %v8282
    %v8338 = vpack.c.bf16 %v8285, %v8284
    %v8339 = vpack.c.bf16 %v8287, %v8286
    %v8340 = vpack.c.bf16 %v8289, %v8288
    %v8341 = vpack.c.bf16 %v8291, %v8290
    %v8342 = vpack.c.bf16 %v8293, %v8292
    %v8343 = vpack.c.bf16 %v8295, %v8294
    %v8344 = vpack.c.bf16 %v8297, %v8296
    %v8345 = vpack.c.bf16 %v8299, %v8298
    %v8346 = vpack.c.bf16 %v8301, %v8300
    %v8347 = vpack.c.bf16 %v8303, %v8302
    %v8348 = vpack.c.bf16 %v8305, %v8304
    %v8349 = vpack.c.bf16 %v8307, %v8306
    %v8350 = vpack.c.bf16 %v8309, %v8308
    %v8351 = vpack.c.bf16 %v8311, %v8310
    %v8352 = vpack.c.bf16 %v8313, %v8312
    %v8353 = vpack.c.bf16 %v8315, %v8314
    %v8354 = vpack.c.bf16 %v8317, %v8316
    %v8355 = vpack.c.bf16 %v8319, %v8318
    %v8356 = vpack.c.bf16 %v8321, %v8320
    %v8357 = vpack.c.bf16 %v8323, %v8322
    %v8358 = vpack.c.bf16 %v8325, %v8324
    %v8359 = vpack.c.bf16 %v8327, %v8326
    %v8360 = vld [vmem:[#allocation8 + $0x180] sm:$0xf]
    %v8361 = vld [vmem:[#allocation8 + $0x184] sm:$0xf]
    %v8362 = vld [vmem:[#allocation8 + $0x188] sm:$0xf]
    %v8363 = vld [vmem:[#allocation8 + $0x18c] sm:$0xf]
    %v8364 = vld [vmem:[#allocation8 + $0x190] sm:$0xf]
    %v8365 = vld [vmem:[#allocation8 + $0x194] sm:$0xf]
    %v8366 = vld [vmem:[#allocation8 + $0x198] sm:$0xf]
    %v8367 = vld [vmem:[#allocation8 + $0x19c] sm:$0xf]
    %v8368 = vld [vmem:[#allocation8 + $0x1a0] sm:$0xf]
    %v8369 = vld [vmem:[#allocation8 + $0x1a4] sm:$0xf]
    %v8370 = vld [vmem:[#allocation8 + $0x1a8] sm:$0xf]
    %v8371 = vld [vmem:[#allocation8 + $0x1ac] sm:$0xf]
    %v8372 = vld [vmem:[#allocation8 + $0x1b0] sm:$0xf]
    %v8373 = vld [vmem:[#allocation8 + $0x1b4] sm:$0xf]
    %v8374 = vld [vmem:[#allocation8 + $0x1b8] sm:$0xf]
    %v8375 = vld [vmem:[#allocation8 + $0x1bc] sm:$0xf]
    %v8392 = vunpack.c.l.b16 %v8360
    %v8393 = vunpack.c.l.b16 %v8361
    %v8394 = vunpack.c.l.b16 %v8362
    %v8395 = vunpack.c.l.b16 %v8363
    %v8396 = vunpack.c.l.b16 %v8364
    %v8397 = vunpack.c.l.b16 %v8365
    %v8398 = vunpack.c.l.b16 %v8366
    %v8399 = vunpack.c.l.b16 %v8367
    %v8400 = vunpack.c.l.b16 %v8368
    %v8401 = vunpack.c.l.b16 %v8369
    %v8402 = vunpack.c.l.b16 %v8370
    %v8403 = vunpack.c.l.b16 %v8371
    %v8404 = vunpack.c.l.b16 %v8372
    %v8405 = vunpack.c.l.b16 %v8373
    %v8406 = vunpack.c.l.b16 %v8374
    %v8407 = vunpack.c.l.b16 %v8375
    %v8408 = vpack.c.b16 %v8393, %v8392
    %v8409 = vpack.c.b16 %v8395, %v8394
    %v8410 = vpack.c.b16 %v8397, %v8396
    %v8411 = vpack.c.b16 %v8399, %v8398
    %v8412 = vpack.c.b16 %v8401, %v8400
    %v8413 = vpack.c.b16 %v8403, %v8402
    %v8414 = vpack.c.b16 %v8405, %v8404
    %v8415 = vpack.c.b16 %v8407, %v8406
    %8424 = vmatprep.subr.bf16.mxu0 0
    %8425 = vmatpush1.bf16.msra.mxu0 %v8408
    %8426 = vmatprep.subr.bf16.mxu0 0
    %8427 = vmatpush1.bf16.msra.mxu0 %v8409
    %8428 = vmatprep.subr.bf16.mxu0 0
    %8429 = vmatpush1.bf16.msra.mxu0 %v8410
    %8430 = vmatprep.subr.bf16.mxu0 0
    %8431 = vmatpush1.bf16.msra.mxu0 %v8411
    %8432 = vmatprep.subr.bf16.mxu0 0
    %8433 = vmatpush1.bf16.msra.mxu0 %v8412
    %8434 = vmatprep.subr.bf16.mxu0 0
    %8435 = vmatpush1.bf16.msra.mxu0 %v8413
    %8436 = vmatprep.subr.bf16.mxu0 0
    %8437 = vmatpush1.bf16.msra.mxu0 %v8414
    %8438 = vmatprep.subr.bf16.mxu0 0
    %8439 = vmatpush1.bf16.msra.mxu0 %v8415
    %8440 = vmatprep.subr.bf16.mxu0 0
    %8441 = vmatpush1.bf16.msra.mxu0 0
    %8442 = vmatprep.subr.bf16.mxu0 0
    %8443 = vmatpush1.bf16.msra.mxu0 0
    %8444 = vmatprep.subr.bf16.mxu0 0
    %8445 = vmatpush1.bf16.msra.mxu0 0
    %8446 = vmatprep.subr.bf16.mxu0 0
    %8447 = vmatpush1.bf16.msra.mxu0 0
    %8448 = vmatprep.subr.bf16.mxu0 0
    %8449 = vmatpush1.bf16.msra.mxu0 0
    %8450 = vmatprep.subr.bf16.mxu0 0
    %8451 = vmatpush1.bf16.msra.mxu0 0
    %8452 = vmatprep.subr.bf16.mxu0 0
    %8453 = vmatpush1.bf16.msra.mxu0 0
    %8454 = vmatprep.subr.bf16.mxu0 0
    %8455 = vmatpush1.bf16.msra.mxu0 0
    %8456 = vmatprep.mubr.bf16.mxu0 0
    %8457 = vmatmul.mubr.bf16.gmra.mrb[0].mxu0 %v8328
    %v8458 = vpop.f32.mrb[0].mxu0
    %v8459 = vadd.f32 0.0, %v8458
    %v8460 = vpop.f32.mrb[0].mxu0
    %v8461 = vpop.f32.mrb[0].mxu0
    %v8462 = vadd.f32 0.0, %v8461
    %v8463 = vpop.f32.mrb[0].mxu0
    %8464 = vmatprep.mubr.bf16.mxu0 0
    %8465 = vmatmul.mubr.bf16.gmra.mrb[0].mxu0 %v8329
    %v8466 = vpop.f32.mrb[0].mxu0
    %v8467 = vadd.f32 0.0, %v8466
    %v8468 = vpop.f32.mrb[0].mxu0
    %v8469 = vpop.f32.mrb[0].mxu0
    %v8470 = vadd.f32 0.0, %v8469
    %v8471 = vpop.f32.mrb[0].mxu0
    %8472 = vmatprep.mubr.bf16.mxu0 0
    %8473 = vmatmul.mubr.bf16.gmra.mrb[0].mxu0 %v8330
    %v8474 = vpop.f32.mrb[0].mxu0
    %v8475 = vadd.f32 0.0, %v8474
    %v8476 = vpop.f32.mrb[0].mxu0
    %v8477 = vpop.f32.mrb[0].mxu0
    %v8478 = vadd.f32 0.0, %v8477
    %v8479 = vpop.f32.mrb[0].mxu0
    %8480 = vmatprep.mubr.bf16.mxu0 0
    %8481 = vmatmul.mubr.bf16.gmra.mrb[0].mxu0 %v8331
    %v8482 = vpop.f32.mrb[0].mxu0
    %v8483 = vadd.f32 0.0, %v8482
    %v8484 = vpop.f32.mrb[0].mxu0
    %v8485 = vpop.f32.mrb[0].mxu0
    %v8486 = vadd.f32 0.0, %v8485
    %v8487 = vpop.f32.mrb[0].mxu0
    %8488 = vmatprep.mubr.bf16.mxu0 0
    %8489 = vmatmul.mubr.bf16.gmra.mrb[0].mxu0 %v8332
    %v8490 = vpop.f32.mrb[0].mxu0
    %v8491 = vadd.f32 0.0, %v8490
    %v8492 = vpop.f32.mrb[0].mxu0
    %v8493 = vpop.f32.mrb[0].mxu0
    %v8494 = vadd.f32 0.0, %v8493
    %v8495 = vpop.f32.mrb[0].mxu0
    %8496 = vmatprep.mubr.bf16.mxu0 0
    %8497 = vmatmul.mubr.bf16.gmra.mrb[0].mxu0 %v8333
    %v8498 = vpop.f32.mrb[0].mxu0
    %v8499 = vadd.f32 0.0, %v8498
    %v8500 = vpop.f32.mrb[0].mxu0
    %v8501 = vpop.f32.mrb[0].mxu0
    %v8502 = vadd.f32 0.0, %v8501
    %v8503 = vpop.f32.mrb[0].mxu0
    %8504 = vmatprep.mubr.bf16.mxu0 0
    %8505 = vmatmul.mubr.bf16.gmra.mrb[0].mxu0 %v8334
    %v8506 = vpop.f32.mrb[0].mxu0
    %v8507 = vadd.f32 0.0, %v8506
    %v8508 = vpop.f32.mrb[0].mxu0
    %v8509 = vpop.f32.mrb[0].mxu0
    %v8510 = vadd.f32 0.0, %v8509
    %v8511 = vpop.f32.mrb[0].mxu0
    %8512 = vmatprep.mubr.bf16.mxu0 0
    %8513 = vmatmul.mubr.bf16.gmra.mrb[0].mxu0 %v8335
    %v8514 = vpop.f32.mrb[0].mxu0
    %v8515 = vadd.f32 0.0, %v8514
    %v8516 = vpop.f32.mrb[0].mxu0
    %v8517 = vpop.f32.mrb[0].mxu0
    %v8518 = vadd.f32 0.0, %v8517
    %v8519 = vpop.f32.mrb[0].mxu0
    %8520 = vmatprep.mubr.bf16.mxu0 0
    %8521 = vmatmul.mubr.bf16.gmra.mrb[0].mxu0 %v8336
    %v8522 = vpop.f32.mrb[0].mxu0
    %v8523 = vadd.f32 0.0, %v8522
    %v8524 = vpop.f32.mrb[0].mxu0
    %v8525 = vpop.f32.mrb[0].mxu0
    %v8526 = vadd.f32 0.0, %v8525
    %v8527 = vpop.f32.mrb[0].mxu0
    %8528 = vmatprep.mubr.bf16.mxu0 0
    %8529 = vmatmul.mubr.bf16.gmra.mrb[0].mxu0 %v8337
    %v8530 = vpop.f32.mrb[0].mxu0
    %v8531 = vadd.f32 0.0, %v8530
    %v8532 = vpop.f32.mrb[0].mxu0
    %v8533 = vpop.f32.mrb[0].mxu0
    %v8534 = vadd.f32 0.0, %v8533
    %v8535 = vpop.f32.mrb[0].mxu0
    %8536 = vmatprep.mubr.bf16.mxu0 0
    %8537 = vmatmul.mubr.bf16.gmra.mrb[0].mxu0 %v8338
    %v8538 = vpop.f32.mrb[0].mxu0
    %v8539 = vadd.f32 0.0, %v8538
    %v8540 = vpop.f32.mrb[0].mxu0
    %v8541 = vpop.f32.mrb[0].mxu0
    %v8542 = vadd.f32 0.0, %v8541
    %v8543 = vpop.f32.mrb[0].mxu0
    %8544 = vmatprep.mubr.bf16.mxu0 0
    %8545 = vmatmul.mubr.bf16.gmra.mrb[0].mxu0 %v8339
    %v8546 = vpop.f32.mrb[0].mxu0
    %v8547 = vadd.f32 0.0, %v8546
    %v8548 = vpop.f32.mrb[0].mxu0
    %v8549 = vpop.f32.mrb[0].mxu0
    %v8550 = vadd.f32 0.0, %v8549
    %v8551 = vpop.f32.mrb[0].mxu0
    %8552 = vmatprep.mubr.bf16.mxu0 0
    %8553 = vmatmul.mubr.bf16.gmra.mrb[0].mxu0 %v8340
    %v8554 = vpop.f32.mrb[0].mxu0
    %v8555 = vadd.f32 0.0, %v8554
    %v8556 = vpop.f32.mrb[0].mxu0
    %v8557 = vpop.f32.mrb[0].mxu0
    %v8558 = vadd.f32 0.0, %v8557
    %v8559 = vpop.f32.mrb[0].mxu0
    %8560 = vmatprep.mubr.bf16.mxu0 0
    %8561 = vmatmul.mubr.bf16.gmra.mrb[0].mxu0 %v8341
    %v8562 = vpop.f32.mrb[0].mxu0
    %v8563 = vadd.f32 0.0, %v8562
    %v8564 = vpop.f32.mrb[0].mxu0
    %v8565 = vpop.f32.mrb[0].mxu0
    %v8566 = vadd.f32 0.0, %v8565
    %v8567 = vpop.f32.mrb[0].mxu0
    %8568 = vmatprep.mubr.bf16.mxu0 0
    %8569 = vmatmul.mubr.bf16.gmra.mrb[0].mxu0 %v8342
    %v8570 = vpop.f32.mrb[0].mxu0
    %v8571 = vadd.f32 0.0, %v8570
    %v8572 = vpop.f32.mrb[0].mxu0
    %v8573 = vpop.f32.mrb[0].mxu0
    %v8574 = vadd.f32 0.0, %v8573
    %v8575 = vpop.f32.mrb[0].mxu0
    %8576 = vmatprep.mubr.bf16.mxu0 0
    %8577 = vmatmul.mubr.bf16.gmra.mrb[0].mxu0 %v8343
    %v8578 = vpop.f32.mrb[0].mxu0
    %v8579 = vadd.f32 0.0, %v8578
    %v8580 = vpop.f32.mrb[0].mxu0
    %v8581 = vpop.f32.mrb[0].mxu0
    %v8582 = vadd.f32 0.0, %v8581
    %v8583 = vpop.f32.mrb[0].mxu0
    %8584 = vmatprep.mubr.bf16.mxu0 0
    %8585 = vmatmul.mubr.bf16.gmra.mrb[0].mxu0 %v8344
    %v8586 = vpop.f32.mrb[0].mxu0
    %v8587 = vadd.f32 0.0, %v8586
    %v8588 = vpop.f32.mrb[0].mxu0
    %v8589 = vpop.f32.mrb[0].mxu0
    %v8590 = vadd.f32 0.0, %v8589
    %v8591 = vpop.f32.mrb[0].mxu0
    %8592 = vmatprep.mubr.bf16.mxu0 0
    %8593 = vmatmul.mubr.bf16.gmra.mrb[0].mxu0 %v8345
    %v8594 = vpop.f32.mrb[0].mxu0
    %v8595 = vadd.f32 0.0, %v8594
    %v8596 = vpop.f32.mrb[0].mxu0
    %v8597 = vpop.f32.mrb[0].mxu0
    %v8598 = vadd.f32 0.0, %v8597
    %v8599 = vpop.f32.mrb[0].mxu0
    %8600 = vmatprep.mubr.bf16.mxu0 0
    %8601 = vmatmul.mubr.bf16.gmra.mrb[0].mxu0 %v8346
    %v8602 = vpop.f32.mrb[0].mxu0
    %v8603 = vadd.f32 0.0, %v8602
    %v8604 = vpop.f32.mrb[0].mxu0
    %v8605 = vpop.f32.mrb[0].mxu0
    %v8606 = vadd.f32 0.0, %v8605
    %v8607 = vpop.f32.mrb[0].mxu0
    %8608 = vmatprep.mubr.bf16.mxu0 0
    %8609 = vmatmul.mubr.bf16.gmra.mrb[0].mxu0 %v8347
    %v8610 = vpop.f32.mrb[0].mxu0
    %v8611 = vadd.f32 0.0, %v8610
    %v8612 = vpop.f32.mrb[0].mxu0
    %v8613 = vpop.f32.mrb[0].mxu0
    %v8614 = vadd.f32 0.0, %v8613
    %v8615 = vpop.f32.mrb[0].mxu0
    %8616 = vmatprep.mubr.bf16.mxu0 0
    %8617 = vmatmul.mubr.bf16.gmra.mrb[0].mxu0 %v8348
    %v8618 = vpop.f32.mrb[0].mxu0
    %v8619 = vadd.f32 0.0, %v8618
    %v8620 = vpop.f32.mrb[0].mxu0
    %v8621 = vpop.f32.mrb[0].mxu0
    %v8622 = vadd.f32 0.0, %v8621
    %v8623 = vpop.f32.mrb[0].mxu0
    %8624 = vmatprep.mubr.bf16.mxu0 0
    %8625 = vmatmul.mubr.bf16.gmra.mrb[0].mxu0 %v8349
    %v8626 = vpop.f32.mrb[0].mxu0
    %v8627 = vadd.f32 0.0, %v8626
    %v8628 = vpop.f32.mrb[0].mxu0
    %v8629 = vpop.f32.mrb[0].mxu0
    %v8630 = vadd.f32 0.0, %v8629
    %v8631 = vpop.f32.mrb[0].mxu0
    %8632 = vmatprep.mubr.bf16.mxu0 0
    %8633 = vmatmul.mubr.bf16.gmra.mrb[0].mxu0 %v8350
    %v8634 = vpop.f32.mrb[0].mxu0
    %v8635 = vadd.f32 0.0, %v8634
    %v8636 = vpop.f32.mrb[0].mxu0
    %v8637 = vpop.f32.mrb[0].mxu0
    %v8638 = vadd.f32 0.0, %v8637
    %v8639 = vpop.f32.mrb[0].mxu0
    %8640 = vmatprep.mubr.bf16.mxu0 0
    %8641 = vmatmul.mubr.bf16.gmra.mrb[0].mxu0 %v8351
    %v8642 = vpop.f32.mrb[0].mxu0
    %v8643 = vadd.f32 0.0, %v8642
    %v8644 = vpop.f32.mrb[0].mxu0
    %v8645 = vpop.f32.mrb[0].mxu0
    %v8646 = vadd.f32 0.0, %v8645
    %v8647 = vpop.f32.mrb[0].mxu0
    %8648 = vmatprep.mubr.bf16.mxu0 0
    %8649 = vmatmul.mubr.bf16.gmra.mrb[0].mxu0 %v8352
    %v8650 = vpop.f32.mrb[0].mxu0
    %v8651 = vadd.f32 0.0, %v8650
    %v8652 = vpop.f32.mrb[0].mxu0
    %v8653 = vpop.f32.mrb[0].mxu0
    %v8654 = vadd.f32 0.0, %v8653
    %v8655 = vpop.f32.mrb[0].mxu0
    %8656 = vmatprep.mubr.bf16.mxu0 0
    %8657 = vmatmul.mubr.bf16.gmra.mrb[0].mxu0 %v8353
    %v8658 = vpop.f32.mrb[0].mxu0
    %v8659 = vadd.f32 0.0, %v8658
    %v8660 = vpop.f32.mrb[0].mxu0
    %v8661 = vpop.f32.mrb[0].mxu0
    %v8662 = vadd.f32 0.0, %v8661
    %v8663 = vpop.f32.mrb[0].mxu0
    %8664 = vmatprep.mubr.bf16.mxu0 0
    %8665 = vmatmul.mubr.bf16.gmra.mrb[0].mxu0 %v8354
    %v8666 = vpop.f32.mrb[0].mxu0
    %v8667 = vadd.f32 0.0, %v8666
    %v8668 = vpop.f32.mrb[0].mxu0
    %v8669 = vpop.f32.mrb[0].mxu0
    %v8670 = vadd.f32 0.0, %v8669
    %v8671 = vpop.f32.mrb[0].mxu0
    %8672 = vmatprep.mubr.bf16.mxu0 0
    %8673 = vmatmul.mubr.bf16.gmra.mrb[0].mxu0 %v8355
    %v8674 = vpop.f32.mrb[0].mxu0
    %v8675 = vadd.f32 0.0, %v8674
    %v8676 = vpop.f32.mrb[0].mxu0
    %v8677 = vpop.f32.mrb[0].mxu0
    %v8678 = vadd.f32 0.0, %v8677
    %v8679 = vpop.f32.mrb[0].mxu0
    %8680 = vmatprep.mubr.bf16.mxu0 0
    %8681 = vmatmul.mubr.bf16.gmra.mrb[0].mxu0 %v8356
    %v8682 = vpop.f32.mrb[0].mxu0
    %v8683 = vadd.f32 0.0, %v8682
    %v8684 = vpop.f32.mrb[0].mxu0
    %v8685 = vpop.f32.mrb[0].mxu0
    %v8686 = vadd.f32 0.0, %v8685
    %v8687 = vpop.f32.mrb[0].mxu0
    %8688 = vmatprep.mubr.bf16.mxu0 0
    %8689 = vmatmul.mubr.bf16.gmra.mrb[0].mxu0 %v8357
    %v8690 = vpop.f32.mrb[0].mxu0
    %v8691 = vadd.f32 0.0, %v8690
    %v8692 = vpop.f32.mrb[0].mxu0
    %v8693 = vpop.f32.mrb[0].mxu0
    %v8694 = vadd.f32 0.0, %v8693
    %v8695 = vpop.f32.mrb[0].mxu0
    %8696 = vmatprep.mubr.bf16.mxu0 0
    %8697 = vmatmul.mubr.bf16.gmra.mrb[0].mxu0 %v8358
    %v8698 = vpop.f32.mrb[0].mxu0
    %v8699 = vadd.f32 0.0, %v8698
    %v8700 = vpop.f32.mrb[0].mxu0
    %v8701 = vpop.f32.mrb[0].mxu0
    %v8702 = vadd.f32 0.0, %v8701
    %v8703 = vpop.f32.mrb[0].mxu0
    %8704 = vmatprep.mubr.bf16.mxu0 0
    %8705 = vmatmul.mubr.bf16.gmra.mrb[0].mxu0 %v8359
    %v8706 = vpop.f32.mrb[0].mxu0
    %v8707 = vadd.f32 0.0, %v8706
    %v8708 = vpop.f32.mrb[0].mxu0
    %v8709 = vpop.f32.mrb[0].mxu0
    %v8710 = vadd.f32 0.0, %v8709
    %v8711 = vpop.f32.mrb[0].mxu0
    %8712 = vdwg.mxu0
    %v8713 = vadd.f32 %v8200, %v8459
    %v8714 = vadd.f32 %v8201, %v8462
    %v8715 = vadd.f32 %v8202, %v8467
    %v8716 = vadd.f32 %v8203, %v8470
    %v8717 = vadd.f32 %v8204, %v8475
    %v8718 = vadd.f32 %v8205, %v8478
    %v8719 = vadd.f32 %v8206, %v8483
    %v8720 = vadd.f32 %v8207, %v8486
    %v8721 = vadd.f32 %v8208, %v8491
    %v8722 = vadd.f32 %v8209, %v8494
    %v8723 = vadd.f32 %v8210, %v8499
    %v8724 = vadd.f32 %v8211, %v8502
    %v8725 = vadd.f32 %v8212, %v8507
    %v8726 = vadd.f32 %v8213, %v8510
    %v8727 = vadd.f32 %v8214, %v8515
    %v8728 = vadd.f32 %v8215, %v8518
    %v8729 = vadd.f32 %v8216, %v8523
    %v8730 = vadd.f32 %v8217, %v8526
    %v8731 = vadd.f32 %v8218, %v8531
    %v8732 = vadd.f32 %v8219, %v8534
    %v8733 = vadd.f32 %v8220, %v8539
    %v8734 = vadd.f32 %v8221, %v8542
    %v8735 = vadd.f32 %v8222, %v8547
    %v8736 = vadd.f32 %v8223, %v8550
    %v8737 = vadd.f32 %v8224, %v8555
    %v8738 = vadd.f32 %v8225, %v8558
    %v8739 = vadd.f32 %v8226, %v8563
    %v8740 = vadd.f32 %v8227, %v8566
    %v8741 = vadd.f32 %v8228, %v8571
    %v8742 = vadd.f32 %v8229, %v8574
    %v8743 = vadd.f32 %v8230, %v8579
    %v8744 = vadd.f32 %v8231, %v8582
    %v8745 = vadd.f32 %v8232, %v8587
    %v8746 = vadd.f32 %v8233, %v8590
    %v8747 = vadd.f32 %v8234, %v8595
    %v8748 = vadd.f32 %v8235, %v8598
    %v8749 = vadd.f32 %v8236, %v8603
    %v8750 = vadd.f32 %v8237, %v8606
    %v8751 = vadd.f32 %v8238, %v8611
    %v8752 = vadd.f32 %v8239, %v8614
    %v8753 = vadd.f32 %v8240, %v8619
    %v8754 = vadd.f32 %v8241, %v8622
    %v8755 = vadd.f32 %v8242, %v8627
    %v8756 = vadd.f32 %v8243, %v8630
    %v8757 = vadd.f32 %v8244, %v8635
    %v8758 = vadd.f32 %v8245, %v8638
    %v8759 = vadd.f32 %v8246, %v8643
    %v8760 = vadd.f32 %v8247, %v8646
    %v8761 = vadd.f32 %v8248, %v8651
    %v8762 = vadd.f32 %v8249, %v8654
    %v8763 = vadd.f32 %v8250, %v8659
    %v8764 = vadd.f32 %v8251, %v8662
    %v8765 = vadd.f32 %v8252, %v8667
    %v8766 = vadd.f32 %v8253, %v8670
    %v8767 = vadd.f32 %v8254, %v8675
    %v8768 = vadd.f32 %v8255, %v8678
    %v8769 = vadd.f32 %v8256, %v8683
    %v8770 = vadd.f32 %v8257, %v8686
    %v8771 = vadd.f32 %v8258, %v8691
    %v8772 = vadd.f32 %v8259, %v8694
    %v8773 = vadd.f32 %v8260, %v8699
    %v8774 = vadd.f32 %v8261, %v8702
    %v8775 = vadd.f32 %v8262, %v8707
    %v8776 = vadd.f32 %v8263, %v8710
    %v8777 = vld [vmem:[%s3233 + $0x1] sm:$0xff]
    %v8778 = vld [vmem:[%s3233 + $0x9] sm:$0xff]
    %v8779 = vld [vmem:[%s3233 + $0x19] sm:$0xff]
    %v8780 = vld [vmem:[%s3233 + $0x21] sm:$0xff]
    %v8781 = vld [vmem:[%s3233 + $0x31] sm:$0xff]
    %v8782 = vld [vmem:[%s3233 + $0x39] sm:$0xff]
    %v8783 = vld [vmem:[%s3233 + $0x49] sm:$0xff]
    %v8784 = vld [vmem:[%s3233 + $0x51] sm:$0xff]
    %v8785 = vld [vmem:[%s3233 + $0x61] sm:$0xff]
    %v8786 = vld [vmem:[%s3233 + $0x69] sm:$0xff]
    %v8787 = vld [vmem:[%s3233 + $0x79] sm:$0xff]
    %v8788 = vld [vmem:[%s3233 + $0x81] sm:$0xff]
    %v8789 = vld [vmem:[%s3233 + $0x91] sm:$0xff]
    %v8790 = vld [vmem:[%s3233 + $0x99] sm:$0xff]
    %v8791 = vld [vmem:[%s3233 + $0xa9] sm:$0xff]
    %v8792 = vld [vmem:[%s3233 + $0xb1] sm:$0xff]
    %v8793 = vld [vmem:[%s3233 + $0xc1] sm:$0xff]
    %v8794 = vld [vmem:[%s3233 + $0xc9] sm:$0xff]
    %v8795 = vld [vmem:[%s3233 + $0xd9] sm:$0xff]
    %v8796 = vld [vmem:[%s3233 + $0xe1] sm:$0xff]
    %v8797 = vld [vmem:[%s3233 + $0xf1] sm:$0xff]
    %v8798 = vld [vmem:[%s3233 + $0xf9] sm:$0xff]
    %v8799 = vld [vmem:[%s3233 + $0x109] sm:$0xff]
    %v8800 = vld [vmem:[%s3233 + $0x111] sm:$0xff]
    %v8801 = vld [vmem:[%s3233 + $0x121] sm:$0xff]
    %v8802 = vld [vmem:[%s3233 + $0x129] sm:$0xff]
    %v8803 = vld [vmem:[%s3233 + $0x139] sm:$0xff]
    %v8804 = vld [vmem:[%s3233 + $0x141] sm:$0xff]
    %v8805 = vld [vmem:[%s3233 + $0x151] sm:$0xff]
    %v8806 = vld [vmem:[%s3233 + $0x159] sm:$0xff]
    %v8807 = vld [vmem:[%s3233 + $0x169] sm:$0xff]
    %v8808 = vld [vmem:[%s3233 + $0x171] sm:$0xff]
    %v8809 = vld [vmem:[%s3233 + $0x1b1] sm:$0xff]
    %v8810 = vld [vmem:[%s3233 + $0x1b9] sm:$0xff]
    %v8811 = vld [vmem:[%s3233 + $0x1c9] sm:$0xff]
    %v8812 = vld [vmem:[%s3233 + $0x1d1] sm:$0xff]
    %v8813 = vld [vmem:[%s3233 + $0x1e1] sm:$0xff]
    %v8814 = vld [vmem:[%s3233 + $0x1e9] sm:$0xff]
    %v8815 = vld [vmem:[%s3233 + $0x1f9] sm:$0xff]
    %v8816 = vld [vmem:[%s3233 + $0x201] sm:$0xff]
    %v8817 = vld [vmem:[%s3233 + $0x211] sm:$0xff]
    %v8818 = vld [vmem:[%s3233 + $0x219] sm:$0xff]
    %v8819 = vld [vmem:[%s3233 + $0x229] sm:$0xff]
    %v8820 = vld [vmem:[%s3233 + $0x231] sm:$0xff]
    %v8821 = vld [vmem:[%s3233 + $0x241] sm:$0xff]
    %v8822 = vld [vmem:[%s3233 + $0x249] sm:$0xff]
    %v8823 = vld [vmem:[%s3233 + $0x259] sm:$0xff]
    %v8824 = vld [vmem:[%s3233 + $0x261] sm:$0xff]
    %v8825 = vld [vmem:[%s3233 + $0x271] sm:$0xff]
    %v8826 = vld [vmem:[%s3233 + $0x279] sm:$0xff]
    %v8827 = vld [vmem:[%s3233 + $0x289] sm:$0xff]
    %v8828 = vld [vmem:[%s3233 + $0x291] sm:$0xff]
    %v8829 = vld [vmem:[%s3233 + $0x2a1] sm:$0xff]
    %v8830 = vld [vmem:[%s3233 + $0x2a9] sm:$0xff]
    %v8831 = vld [vmem:[%s3233 + $0x2b9] sm:$0xff]
    %v8832 = vld [vmem:[%s3233 + $0x2c1] sm:$0xff]
    %v8833 = vld [vmem:[%s3233 + $0x2d1] sm:$0xff]
    %v8834 = vld [vmem:[%s3233 + $0x2d9] sm:$0xff]
    %v8835 = vld [vmem:[%s3233 + $0x2e9] sm:$0xff]
    %v8836 = vld [vmem:[%s3233 + $0x2f1] sm:$0xff]
    %v8837 = vld [vmem:[%s3233 + $0x301] sm:$0xff]
    %v8838 = vld [vmem:[%s3233 + $0x309] sm:$0xff]
    %v8839 = vld [vmem:[%s3233 + $0x319] sm:$0xff]
    %v8840 = vld [vmem:[%s3233 + $0x321] sm:$0xff]
    %v8841 = vpack.c.bf16 %v8778, %v8777
    %v8842 = vpack.c.bf16 %v8780, %v8779
    %v8843 = vpack.c.bf16 %v8782, %v8781
    %v8844 = vpack.c.bf16 %v8784, %v8783
    %v8845 = vpack.c.bf16 %v8786, %v8785
    %v8846 = vpack.c.bf16 %v8788, %v8787
    %v8847 = vpack.c.bf16 %v8790, %v8789
    %v8848 = vpack.c.bf16 %v8792, %v8791
    %v8849 = vpack.c.bf16 %v8794, %v8793
    %v8850 = vpack.c.bf16 %v8796, %v8795
    %v8851 = vpack.c.bf16 %v8798, %v8797
    %v8852 = vpack.c.bf16 %v8800, %v8799
    %v8853 = vpack.c.bf16 %v8802, %v8801
    %v8854 = vpack.c.bf16 %v8804, %v8803
    %v8855 = vpack.c.bf16 %v8806, %v8805
    %v8856 = vpack.c.bf16 %v8808, %v8807
    %v8857 = vpack.c.bf16 %v8810, %v8809
    %v8858 = vpack.c.bf16 %v8812, %v8811
    %v8859 = vpack.c.bf16 %v8814, %v8813
    %v8860 = vpack.c.bf16 %v8816, %v8815
    %v8861 = vpack.c.bf16 %v8818, %v8817
    %v8862 = vpack.c.bf16 %v8820, %v8819
    %v8863 = vpack.c.bf16 %v8822, %v8821
    %v8864 = vpack.c.bf16 %v8824, %v8823
    %v8865 = vpack.c.bf16 %v8826, %v8825
    %v8866 = vpack.c.bf16 %v8828, %v8827
    %v8867 = vpack.c.bf16 %v8830, %v8829
    %v8868 = vpack.c.bf16 %v8832, %v8831
    %v8869 = vpack.c.bf16 %v8834, %v8833
    %v8870 = vpack.c.bf16 %v8836, %v8835
    %v8871 = vpack.c.bf16 %v8838, %v8837
    %v8872 = vpack.c.bf16 %v8840, %v8839
    %v8873 = vld [vmem:[#allocation8 + $0x1c0] sm:$0xf]
    %v8874 = vld [vmem:[#allocation8 + $0x1c4] sm:$0xf]
    %v8875 = vld [vmem:[#allocation8 + $0x1c8] sm:$0xf]
    %v8876 = vld [vmem:[#allocation8 + $0x1cc] sm:$0xf]
    %v8877 = vld [vmem:[#allocation8 + $0x1d0] sm:$0xf]
    %v8878 = vld [vmem:[#allocation8 + $0x1d4] sm:$0xf]
    %v8879 = vld [vmem:[#allocation8 + $0x1d8] sm:$0xf]
    %v8880 = vld [vmem:[#allocation8 + $0x1dc] sm:$0xf]
    %v8881 = vld [vmem:[#allocation8 + $0x1e0] sm:$0xf]
    %v8882 = vld [vmem:[#allocation8 + $0x1e4] sm:$0xf]
    %v8883 = vld [vmem:[#allocation8 + $0x1e8] sm:$0xf]
    %v8884 = vld [vmem:[#allocation8 + $0x1ec] sm:$0xf]
    %v8885 = vld [vmem:[#allocation8 + $0x1f0] sm:$0xf]
    %v8886 = vld [vmem:[#allocation8 + $0x1f4] sm:$0xf]
    %v8887 = vld [vmem:[#allocation8 + $0x1f8] sm:$0xf]
    %v8888 = vld [vmem:[#allocation8 + $0x1fc] sm:$0xf]
    %v8905 = vunpack.c.l.b16 %v8873
    %v8906 = vunpack.c.l.b16 %v8874
    %v8907 = vunpack.c.l.b16 %v8875
    %v8908 = vunpack.c.l.b16 %v8876
    %v8909 = vunpack.c.l.b16 %v8877
    %v8910 = vunpack.c.l.b16 %v8878
    %v8911 = vunpack.c.l.b16 %v8879
    %v8912 = vunpack.c.l.b16 %v8880
    %v8913 = vunpack.c.l.b16 %v8881
    %v8914 = vunpack.c.l.b16 %v8882
    %v8915 = vunpack.c.l.b16 %v8883
    %v8916 = vunpack.c.l.b16 %v8884
    %v8917 = vunpack.c.l.b16 %v8885
    %v8918 = vunpack.c.l.b16 %v8886
    %v8919 = vunpack.c.l.b16 %v8887
    %v8920 = vunpack.c.l.b16 %v8888
    %v8921 = vpack.c.b16 %v8906, %v8905
    %v8922 = vpack.c.b16 %v8908, %v8907
    %v8923 = vpack.c.b16 %v8910, %v8909
    %v8924 = vpack.c.b16 %v8912, %v8911
    %v8925 = vpack.c.b16 %v8914, %v8913
    %v8926 = vpack.c.b16 %v8916, %v8915
    %v8927 = vpack.c.b16 %v8918, %v8917
    %v8928 = vpack.c.b16 %v8920, %v8919
    %8937 = vmatprep.subr.bf16.mxu0 0
    %8938 = vmatpush1.bf16.msra.mxu0 %v8921
    %8939 = vmatprep.subr.bf16.mxu0 0
    %8940 = vmatpush1.bf16.msra.mxu0 %v8922
    %8941 = vmatprep.subr.bf16.mxu0 0
    %8942 = vmatpush1.bf16.msra.mxu0 %v8923
    %8943 = vmatprep.subr.bf16.mxu0 0
    %8944 = vmatpush1.bf16.msra.mxu0 %v8924
    %8945 = vmatprep.subr.bf16.mxu0 0
    %8946 = vmatpush1.bf16.msra.mxu0 %v8925
    %8947 = vmatprep.subr.bf16.mxu0 0
    %8948 = vmatpush1.bf16.msra.mxu0 %v8926
    %8949 = vmatprep.subr.bf16.mxu0 0
    %8950 = vmatpush1.bf16.msra.mxu0 %v8927
    %8951 = vmatprep.subr.bf16.mxu0 0
    %8952 = vmatpush1.bf16.msra.mxu0 %v8928
    %8953 = vmatprep.subr.bf16.mxu0 0
    %8954 = vmatpush1.bf16.msra.mxu0 0
    %8955 = vmatprep.subr.bf16.mxu0 0
    %8956 = vmatpush1.bf16.msra.mxu0 0
    %8957 = vmatprep.subr.bf16.mxu0 0
    %8958 = vmatpush1.bf16.msra.mxu0 0
    %8959 = vmatprep.subr.bf16.mxu0 0
    %8960 = vmatpush1.bf16.msra.mxu0 0
    %8961 = vmatprep.subr.bf16.mxu0 0
    %8962 = vmatpush1.bf16.msra.mxu0 0
    %8963 = vmatprep.subr.bf16.mxu0 0
    %8964 = vmatpush1.bf16.msra.mxu0 0
    %8965 = vmatprep.subr.bf16.mxu0 0
    %8966 = vmatpush1.bf16.msra.mxu0 0
    %8967 = vmatprep.subr.bf16.mxu0 0
    %8968 = vmatpush1.bf16.msra.mxu0 0
    %8969 = vmatprep.mubr.bf16.mxu0 0
    %8970 = vmatmul.mubr.bf16.gmra.mrb[0].mxu0 %v8841
    %v8971 = vpop.f32.mrb[0].mxu0
    %v8972 = vadd.f32 0.0, %v8971
    %v8973 = vpop.f32.mrb[0].mxu0
    %v8974 = vpop.f32.mrb[0].mxu0
    %v8975 = vadd.f32 0.0, %v8974
    %v8976 = vpop.f32.mrb[0].mxu0
    %8977 = vmatprep.mubr.bf16.mxu0 0
    %8978 = vmatmul.mubr.bf16.gmra.mrb[0].mxu0 %v8842
    %v8979 = vpop.f32.mrb[0].mxu0
    %v8980 = vadd.f32 0.0, %v8979
    %v8981 = vpop.f32.mrb[0].mxu0
    %v8982 = vpop.f32.mrb[0].mxu0
    %v8983 = vadd.f32 0.0, %v8982
    %v8984 = vpop.f32.mrb[0].mxu0
    %8985 = vmatprep.mubr.bf16.mxu0 0
    %8986 = vmatmul.mubr.bf16.gmra.mrb[0].mxu0 %v8843
    %v8987 = vpop.f32.mrb[0].mxu0
    %v8988 = vadd.f32 0.0, %v8987
    %v8989 = vpop.f32.mrb[0].mxu0
    %v8990 = vpop.f32.mrb[0].mxu0
    %v8991 = vadd.f32 0.0, %v8990
    %v8992 = vpop.f32.mrb[0].mxu0
    %8993 = vmatprep.mubr.bf16.mxu0 0
    %8994 = vmatmul.mubr.bf16.gmra.mrb[0].mxu0 %v8844
    %v8995 = vpop.f32.mrb[0].mxu0
    %v8996 = vadd.f32 0.0, %v8995
    %v8997 = vpop.f32.mrb[0].mxu0
    %v8998 = vpop.f32.mrb[0].mxu0
    %v8999 = vadd.f32 0.0, %v8998
    %v9000 = vpop.f32.mrb[0].mxu0
    %9001 = vmatprep.mubr.bf16.mxu0 0
    %9002 = vmatmul.mubr.bf16.gmra.mrb[0].mxu0 %v8845
    %v9003 = vpop.f32.mrb[0].mxu0
    %v9004 = vadd.f32 0.0, %v9003
    %v9005 = vpop.f32.mrb[0].mxu0
    %v9006 = vpop.f32.mrb[0].mxu0
    %v9007 = vadd.f32 0.0, %v9006
    %v9008 = vpop.f32.mrb[0].mxu0
    %9009 = vmatprep.mubr.bf16.mxu0 0
    %9010 = vmatmul.mubr.bf16.gmra.mrb[0].mxu0 %v8846
    %v9011 = vpop.f32.mrb[0].mxu0
    %v9012 = vadd.f32 0.0, %v9011
    %v9013 = vpop.f32.mrb[0].mxu0
    %v9014 = vpop.f32.mrb[0].mxu0
    %v9015 = vadd.f32 0.0, %v9014
    %v9016 = vpop.f32.mrb[0].mxu0
    %9017 = vmatprep.mubr.bf16.mxu0 0
    %9018 = vmatmul.mubr.bf16.gmra.mrb[0].mxu0 %v8847
    %v9019 = vpop.f32.mrb[0].mxu0
    %v9020 = vadd.f32 0.0, %v9019
    %v9021 = vpop.f32.mrb[0].mxu0
    %v9022 = vpop.f32.mrb[0].mxu0
    %v9023 = vadd.f32 0.0, %v9022
    %v9024 = vpop.f32.mrb[0].mxu0
    %9025 = vmatprep.mubr.bf16.mxu0 0
    %9026 = vmatmul.mubr.bf16.gmra.mrb[0].mxu0 %v8848
    %v9027 = vpop.f32.mrb[0].mxu0
    %v9028 = vadd.f32 0.0, %v9027
    %v9029 = vpop.f32.mrb[0].mxu0
    %v9030 = vpop.f32.mrb[0].mxu0
    %v9031 = vadd.f32 0.0, %v9030
    %v9032 = vpop.f32.mrb[0].mxu0
    %9033 = vmatprep.mubr.bf16.mxu0 0
    %9034 = vmatmul.mubr.bf16.gmra.mrb[0].mxu0 %v8849
    %v9035 = vpop.f32.mrb[0].mxu0
    %v9036 = vadd.f32 0.0, %v9035
    %v9037 = vpop.f32.mrb[0].mxu0
    %v9038 = vpop.f32.mrb[0].mxu0
    %v9039 = vadd.f32 0.0, %v9038
    %v9040 = vpop.f32.mrb[0].mxu0
    %9041 = vmatprep.mubr.bf16.mxu0 0
    %9042 = vmatmul.mubr.bf16.gmra.mrb[0].mxu0 %v8850
    %v9043 = vpop.f32.mrb[0].mxu0
    %v9044 = vadd.f32 0.0, %v9043
    %v9045 = vpop.f32.mrb[0].mxu0
    %v9046 = vpop.f32.mrb[0].mxu0
    %v9047 = vadd.f32 0.0, %v9046
    %v9048 = vpop.f32.mrb[0].mxu0
    %9049 = vmatprep.mubr.bf16.mxu0 0
    %9050 = vmatmul.mubr.bf16.gmra.mrb[0].mxu0 %v8851
    %v9051 = vpop.f32.mrb[0].mxu0
    %v9052 = vadd.f32 0.0, %v9051
    %v9053 = vpop.f32.mrb[0].mxu0
    %v9054 = vpop.f32.mrb[0].mxu0
    %v9055 = vadd.f32 0.0, %v9054
    %v9056 = vpop.f32.mrb[0].mxu0
    %9057 = vmatprep.mubr.bf16.mxu0 0
    %9058 = vmatmul.mubr.bf16.gmra.mrb[0].mxu0 %v8852
    %v9059 = vpop.f32.mrb[0].mxu0
    %v9060 = vadd.f32 0.0, %v9059
    %v9061 = vpop.f32.mrb[0].mxu0
    %v9062 = vpop.f32.mrb[0].mxu0
    %v9063 = vadd.f32 0.0, %v9062
    %v9064 = vpop.f32.mrb[0].mxu0
    %9065 = vmatprep.mubr.bf16.mxu0 0
    %9066 = vmatmul.mubr.bf16.gmra.mrb[0].mxu0 %v8853
    %v9067 = vpop.f32.mrb[0].mxu0
    %v9068 = vadd.f32 0.0, %v9067
    %v9069 = vpop.f32.mrb[0].mxu0
    %v9070 = vpop.f32.mrb[0].mxu0
    %v9071 = vadd.f32 0.0, %v9070
    %v9072 = vpop.f32.mrb[0].mxu0
    %9073 = vmatprep.mubr.bf16.mxu0 0
    %9074 = vmatmul.mubr.bf16.gmra.mrb[0].mxu0 %v8854
    %v9075 = vpop.f32.mrb[0].mxu0
    %v9076 = vadd.f32 0.0, %v9075
    %v9077 = vpop.f32.mrb[0].mxu0
    %v9078 = vpop.f32.mrb[0].mxu0
    %v9079 = vadd.f32 0.0, %v9078
    %v9080 = vpop.f32.mrb[0].mxu0
    %9081 = vmatprep.mubr.bf16.mxu0 0
    %9082 = vmatmul.mubr.bf16.gmra.mrb[0].mxu0 %v8855
    %v9083 = vpop.f32.mrb[0].mxu0
    %v9084 = vadd.f32 0.0, %v9083
    %v9085 = vpop.f32.mrb[0].mxu0
    %v9086 = vpop.f32.mrb[0].mxu0
    %v9087 = vadd.f32 0.0, %v9086
    %v9088 = vpop.f32.mrb[0].mxu0
    %9089 = vmatprep.mubr.bf16.mxu0 0
    %9090 = vmatmul.mubr.bf16.gmra.mrb[0].mxu0 %v8856
    %v9091 = vpop.f32.mrb[0].mxu0
    %v9092 = vadd.f32 0.0, %v9091
    %v9093 = vpop.f32.mrb[0].mxu0
    %v9094 = vpop.f32.mrb[0].mxu0
    %v9095 = vadd.f32 0.0, %v9094
    %v9096 = vpop.f32.mrb[0].mxu0
    %9097 = vmatprep.mubr.bf16.mxu0 0
    %9098 = vmatmul.mubr.bf16.gmra.mrb[0].mxu0 %v8857
    %v9099 = vpop.f32.mrb[0].mxu0
    %v9100 = vadd.f32 0.0, %v9099
    %v9101 = vpop.f32.mrb[0].mxu0
    %v9102 = vpop.f32.mrb[0].mxu0
    %v9103 = vadd.f32 0.0, %v9102
    %v9104 = vpop.f32.mrb[0].mxu0
    %9105 = vmatprep.mubr.bf16.mxu0 0
    %9106 = vmatmul.mubr.bf16.gmra.mrb[0].mxu0 %v8858
    %v9107 = vpop.f32.mrb[0].mxu0
    %v9108 = vadd.f32 0.0, %v9107
    %v9109 = vpop.f32.mrb[0].mxu0
    %v9110 = vpop.f32.mrb[0].mxu0
    %v9111 = vadd.f32 0.0, %v9110
    %v9112 = vpop.f32.mrb[0].mxu0
    %9113 = vmatprep.mubr.bf16.mxu0 0
    %9114 = vmatmul.mubr.bf16.gmra.mrb[0].mxu0 %v8859
    %v9115 = vpop.f32.mrb[0].mxu0
    %v9116 = vadd.f32 0.0, %v9115
    %v9117 = vpop.f32.mrb[0].mxu0
    %v9118 = vpop.f32.mrb[0].mxu0
    %v9119 = vadd.f32 0.0, %v9118
    %v9120 = vpop.f32.mrb[0].mxu0
    %9121 = vmatprep.mubr.bf16.mxu0 0
    %9122 = vmatmul.mubr.bf16.gmra.mrb[0].mxu0 %v8860
    %v9123 = vpop.f32.mrb[0].mxu0
    %v9124 = vadd.f32 0.0, %v9123
    %v9125 = vpop.f32.mrb[0].mxu0
    %v9126 = vpop.f32.mrb[0].mxu0
    %v9127 = vadd.f32 0.0, %v9126
    %v9128 = vpop.f32.mrb[0].mxu0
    %9129 = vmatprep.mubr.bf16.mxu0 0
    %9130 = vmatmul.mubr.bf16.gmra.mrb[0].mxu0 %v8861
    %v9131 = vpop.f32.mrb[0].mxu0
    %v9132 = vadd.f32 0.0, %v9131
    %v9133 = vpop.f32.mrb[0].mxu0
    %v9134 = vpop.f32.mrb[0].mxu0
    %v9135 = vadd.f32 0.0, %v9134
    %v9136 = vpop.f32.mrb[0].mxu0
    %9137 = vmatprep.mubr.bf16.mxu0 0
    %9138 = vmatmul.mubr.bf16.gmra.mrb[0].mxu0 %v8862
    %v9139 = vpop.f32.mrb[0].mxu0
    %v9140 = vadd.f32 0.0, %v9139
    %v9141 = vpop.f32.mrb[0].mxu0
    %v9142 = vpop.f32.mrb[0].mxu0
    %v9143 = vadd.f32 0.0, %v9142
    %v9144 = vpop.f32.mrb[0].mxu0
    %9145 = vmatprep.mubr.bf16.mxu0 0
    %9146 = vmatmul.mubr.bf16.gmra.mrb[0].mxu0 %v8863
    %v9147 = vpop.f32.mrb[0].mxu0
    %v9148 = vadd.f32 0.0, %v9147
    %v9149 = vpop.f32.mrb[0].mxu0
    %v9150 = vpop.f32.mrb[0].mxu0
    %v9151 = vadd.f32 0.0, %v9150
    %v9152 = vpop.f32.mrb[0].mxu0
    %9153 = vmatprep.mubr.bf16.mxu0 0
    %9154 = vmatmul.mubr.bf16.gmra.mrb[0].mxu0 %v8864
    %v9155 = vpop.f32.mrb[0].mxu0
    %v9156 = vadd.f32 0.0, %v9155
    %v9157 = vpop.f32.mrb[0].mxu0
    %v9158 = vpop.f32.mrb[0].mxu0
    %v9159 = vadd.f32 0.0, %v9158
    %v9160 = vpop.f32.mrb[0].mxu0
    %9161 = vmatprep.mubr.bf16.mxu0 0
    %9162 = vmatmul.mubr.bf16.gmra.mrb[0].mxu0 %v8865
    %v9163 = vpop.f32.mrb[0].mxu0
    %v9164 = vadd.f32 0.0, %v9163
    %v9165 = vpop.f32.mrb[0].mxu0
    %v9166 = vpop.f32.mrb[0].mxu0
    %v9167 = vadd.f32 0.0, %v9166
    %v9168 = vpop.f32.mrb[0].mxu0
    %9169 = vmatprep.mubr.bf16.mxu0 0
    %9170 = vmatmul.mubr.bf16.gmra.mrb[0].mxu0 %v8866
    %v9171 = vpop.f32.mrb[0].mxu0
    %v9172 = vadd.f32 0.0, %v9171
    %v9173 = vpop.f32.mrb[0].mxu0
    %v9174 = vpop.f32.mrb[0].mxu0
    %v9175 = vadd.f32 0.0, %v9174
    %v9176 = vpop.f32.mrb[0].mxu0
    %9177 = vmatprep.mubr.bf16.mxu0 0
    %9178 = vmatmul.mubr.bf16.gmra.mrb[0].mxu0 %v8867
    %v9179 = vpop.f32.mrb[0].mxu0
    %v9180 = vadd.f32 0.0, %v9179
    %v9181 = vpop.f32.mrb[0].mxu0
    %v9182 = vpop.f32.mrb[0].mxu0
    %v9183 = vadd.f32 0.0, %v9182
    %v9184 = vpop.f32.mrb[0].mxu0
    %9185 = vmatprep.mubr.bf16.mxu0 0
    %9186 = vmatmul.mubr.bf16.gmra.mrb[0].mxu0 %v8868
    %v9187 = vpop.f32.mrb[0].mxu0
    %v9188 = vadd.f32 0.0, %v9187
    %v9189 = vpop.f32.mrb[0].mxu0
    %v9190 = vpop.f32.mrb[0].mxu0
    %v9191 = vadd.f32 0.0, %v9190
    %v9192 = vpop.f32.mrb[0].mxu0
    %9193 = vmatprep.mubr.bf16.mxu0 0
    %9194 = vmatmul.mubr.bf16.gmra.mrb[0].mxu0 %v8869
    %v9195 = vpop.f32.mrb[0].mxu0
    %v9196 = vadd.f32 0.0, %v9195
    %v9197 = vpop.f32.mrb[0].mxu0
    %v9198 = vpop.f32.mrb[0].mxu0
    %v9199 = vadd.f32 0.0, %v9198
    %v9200 = vpop.f32.mrb[0].mxu0
    %9201 = vmatprep.mubr.bf16.mxu0 0
    %9202 = vmatmul.mubr.bf16.gmra.mrb[0].mxu0 %v8870
    %v9203 = vpop.f32.mrb[0].mxu0
    %v9204 = vadd.f32 0.0, %v9203
    %v9205 = vpop.f32.mrb[0].mxu0
    %v9206 = vpop.f32.mrb[0].mxu0
    %v9207 = vadd.f32 0.0, %v9206
    %v9208 = vpop.f32.mrb[0].mxu0
    %9209 = vmatprep.mubr.bf16.mxu0 0
    %9210 = vmatmul.mubr.bf16.gmra.mrb[0].mxu0 %v8871
    %v9211 = vpop.f32.mrb[0].mxu0
    %v9212 = vadd.f32 0.0, %v9211
    %v9213 = vpop.f32.mrb[0].mxu0
    %v9214 = vpop.f32.mrb[0].mxu0
    %v9215 = vadd.f32 0.0, %v9214
    %v9216 = vpop.f32.mrb[0].mxu0
    %9217 = vmatprep.mubr.bf16.mxu0 0
    %9218 = vmatmul.mubr.bf16.gmra.mrb[0].mxu0 %v8872
    %v9219 = vpop.f32.mrb[0].mxu0
    %v9220 = vadd.f32 0.0, %v9219
    %v9221 = vpop.f32.mrb[0].mxu0
    %v9222 = vpop.f32.mrb[0].mxu0
    %v9223 = vadd.f32 0.0, %v9222
    %v9224 = vpop.f32.mrb[0].mxu0
    %9225 = vdwg.mxu0
    %v9226 = vadd.f32 %v8713, %v8972
    %v9227 = vadd.f32 %v8714, %v8975
    %v9228 = vadd.f32 %v8715, %v8980
    %v9229 = vadd.f32 %v8716, %v8983
    %v9230 = vadd.f32 %v8717, %v8988
    %v9231 = vadd.f32 %v8718, %v8991
    %v9232 = vadd.f32 %v8719, %v8996
    %v9233 = vadd.f32 %v8720, %v8999
    %v9234 = vadd.f32 %v8721, %v9004
    %v9235 = vadd.f32 %v8722, %v9007
    %v9236 = vadd.f32 %v8723, %v9012
    %v9237 = vadd.f32 %v8724, %v9015
    %v9238 = vadd.f32 %v8725, %v9020
    %v9239 = vadd.f32 %v8726, %v9023
    %v9240 = vadd.f32 %v8727, %v9028
    %v9241 = vadd.f32 %v8728, %v9031
    %v9242 = vadd.f32 %v8729, %v9036
    %v9243 = vadd.f32 %v8730, %v9039
    %v9244 = vadd.f32 %v8731, %v9044
    %v9245 = vadd.f32 %v8732, %v9047
    %v9246 = vadd.f32 %v8733, %v9052
    %v9247 = vadd.f32 %v8734, %v9055
    %v9248 = vadd.f32 %v8735, %v9060
    %v9249 = vadd.f32 %v8736, %v9063
    %v9250 = vadd.f32 %v8737, %v9068
    %v9251 = vadd.f32 %v8738, %v9071
    %v9252 = vadd.f32 %v8739, %v9076
    %v9253 = vadd.f32 %v8740, %v9079
    %v9254 = vadd.f32 %v8741, %v9084
    %v9255 = vadd.f32 %v8742, %v9087
    %v9256 = vadd.f32 %v8743, %v9092
    %v9257 = vadd.f32 %v8744, %v9095
    %v9258 = vadd.f32 %v8745, %v9100
    %v9259 = vadd.f32 %v8746, %v9103
    %v9260 = vadd.f32 %v8747, %v9108
    %v9261 = vadd.f32 %v8748, %v9111
    %v9262 = vadd.f32 %v8749, %v9116
    %v9263 = vadd.f32 %v8750, %v9119
    %v9264 = vadd.f32 %v8751, %v9124
    %v9265 = vadd.f32 %v8752, %v9127
    %v9266 = vadd.f32 %v8753, %v9132
    %v9267 = vadd.f32 %v8754, %v9135
    %v9268 = vadd.f32 %v8755, %v9140
    %v9269 = vadd.f32 %v8756, %v9143
    %v9270 = vadd.f32 %v8757, %v9148
    %v9271 = vadd.f32 %v8758, %v9151
    %v9272 = vadd.f32 %v8759, %v9156
    %v9273 = vadd.f32 %v8760, %v9159
    %v9274 = vadd.f32 %v8761, %v9164
    %v9275 = vadd.f32 %v8762, %v9167
    %v9276 = vadd.f32 %v8763, %v9172
    %v9277 = vadd.f32 %v8764, %v9175
    %v9278 = vadd.f32 %v8765, %v9180
    %v9279 = vadd.f32 %v8766, %v9183
    %v9280 = vadd.f32 %v8767, %v9188
    %v9281 = vadd.f32 %v8768, %v9191
    %v9282 = vadd.f32 %v8769, %v9196
    %v9283 = vadd.f32 %v8770, %v9199
    %v9284 = vadd.f32 %v8771, %v9204
    %v9285 = vadd.f32 %v8772, %v9207
    %v9286 = vadd.f32 %v8773, %v9212
    %v9287 = vadd.f32 %v8774, %v9215
    %v9288 = vadd.f32 %v8775, %v9220
    %v9289 = vadd.f32 %v8776, %v9223
    %v9290 = vld [vmem:[%s3233 + $0x2] sm:$0xff]
    %v9291 = vld [vmem:[%s3233 + $0xa] sm:$0xff]
    %v9292 = vld [vmem:[%s3233 + $0x1a] sm:$0xff]
    %v9293 = vld [vmem:[%s3233 + $0x22] sm:$0xff]
    %v9294 = vld [vmem:[%s3233 + $0x32] sm:$0xff]
    %v9295 = vld [vmem:[%s3233 + $0x3a] sm:$0xff]
    %v9296 = vld [vmem:[%s3233 + $0x4a] sm:$0xff]
    %v9297 = vld [vmem:[%s3233 + $0x52] sm:$0xff]
    %v9298 = vld [vmem:[%s3233 + $0x62] sm:$0xff]
    %v9299 = vld [vmem:[%s3233 + $0x6a] sm:$0xff]
    %v9300 = vld [vmem:[%s3233 + $0x7a] sm:$0xff]
    %v9301 = vld [vmem:[%s3233 + $0x82] sm:$0xff]
    %v9302 = vld [vmem:[%s3233 + $0x92] sm:$0xff]
    %v9303 = vld [vmem:[%s3233 + $0x9a] sm:$0xff]
    %v9304 = vld [vmem:[%s3233 + $0xaa] sm:$0xff]
    %v9305 = vld [vmem:[%s3233 + $0xb2] sm:$0xff]
    %v9306 = vld [vmem:[%s3233 + $0xc2] sm:$0xff]
    %v9307 = vld [vmem:[%s3233 + $0xca] sm:$0xff]
    %v9308 = vld [vmem:[%s3233 + $0xda] sm:$0xff]
    %v9309 = vld [vmem:[%s3233 + $0xe2] sm:$0xff]
    %v9310 = vld [vmem:[%s3233 + $0xf2] sm:$0xff]
    %v9311 = vld [vmem:[%s3233 + $0xfa] sm:$0xff]
    %v9312 = vld [vmem:[%s3233 + $0x10a] sm:$0xff]
    %v9313 = vld [vmem:[%s3233 + $0x112] sm:$0xff]
    %v9314 = vld [vmem:[%s3233 + $0x122] sm:$0xff]
    %v9315 = vld [vmem:[%s3233 + $0x12a] sm:$0xff]
    %v9316 = vld [vmem:[%s3233 + $0x13a] sm:$0xff]
    %v9317 = vld [vmem:[%s3233 + $0x142] sm:$0xff]
    %v9318 = vld [vmem:[%s3233 + $0x152] sm:$0xff]
    %v9319 = vld [vmem:[%s3233 + $0x15a] sm:$0xff]
    %v9320 = vld [vmem:[%s3233 + $0x16a] sm:$0xff]
    %v9321 = vld [vmem:[%s3233 + $0x172] sm:$0xff]
    %v9322 = vld [vmem:[%s3233 + $0x1b2] sm:$0xff]
    %v9323 = vld [vmem:[%s3233 + $0x1ba] sm:$0xff]
    %v9324 = vld [vmem:[%s3233 + $0x1ca] sm:$0xff]
    %v9325 = vld [vmem:[%s3233 + $0x1d2] sm:$0xff]
    %v9326 = vld [vmem:[%s3233 + $0x1e2] sm:$0xff]
    %v9327 = vld [vmem:[%s3233 + $0x1ea] sm:$0xff]
    %v9328 = vld [vmem:[%s3233 + $0x1fa] sm:$0xff]
    %v9329 = vld [vmem:[%s3233 + $0x202] sm:$0xff]
    %v9330 = vld [vmem:[%s3233 + $0x212] sm:$0xff]
    %v9331 = vld [vmem:[%s3233 + $0x21a] sm:$0xff]
    %v9332 = vld [vmem:[%s3233 + $0x22a] sm:$0xff]
    %v9333 = vld [vmem:[%s3233 + $0x232] sm:$0xff]
    %v9334 = vld [vmem:[%s3233 + $0x242] sm:$0xff]
    %v9335 = vld [vmem:[%s3233 + $0x24a] sm:$0xff]
    %v9336 = vld [vmem:[%s3233 + $0x25a] sm:$0xff]
    %v9337 = vld [vmem:[%s3233 + $0x262] sm:$0xff]
    %v9338 = vld [vmem:[%s3233 + $0x272] sm:$0xff]
    %v9339 = vld [vmem:[%s3233 + $0x27a] sm:$0xff]
    %v9340 = vld [vmem:[%s3233 + $0x28a] sm:$0xff]
    %v9341 = vld [vmem:[%s3233 + $0x292] sm:$0xff]
    %v9342 = vld [vmem:[%s3233 + $0x2a2] sm:$0xff]
    %v9343 = vld [vmem:[%s3233 + $0x2aa] sm:$0xff]
    %v9344 = vld [vmem:[%s3233 + $0x2ba] sm:$0xff]
    %v9345 = vld [vmem:[%s3233 + $0x2c2] sm:$0xff]
    %v9346 = vld [vmem:[%s3233 + $0x2d2] sm:$0xff]
    %v9347 = vld [vmem:[%s3233 + $0x2da] sm:$0xff]
    %v9348 = vld [vmem:[%s3233 + $0x2ea] sm:$0xff]
    %v9349 = vld [vmem:[%s3233 + $0x2f2] sm:$0xff]
    %v9350 = vld [vmem:[%s3233 + $0x302] sm:$0xff]
    %v9351 = vld [vmem:[%s3233 + $0x30a] sm:$0xff]
    %v9352 = vld [vmem:[%s3233 + $0x31a] sm:$0xff]
    %v9353 = vld [vmem:[%s3233 + $0x322] sm:$0xff]
    %v9354 = vpack.c.bf16 %v9291, %v9290
    %v9355 = vpack.c.bf16 %v9293, %v9292
    %v9356 = vpack.c.bf16 %v9295, %v9294
    %v9357 = vpack.c.bf16 %v9297, %v9296
    %v9358 = vpack.c.bf16 %v9299, %v9298
    %v9359 = vpack.c.bf16 %v9301, %v9300
    %v9360 = vpack.c.bf16 %v9303, %v9302
    %v9361 = vpack.c.bf16 %v9305, %v9304
    %v9362 = vpack.c.bf16 %v9307, %v9306
    %v9363 = vpack.c.bf16 %v9309, %v9308
    %v9364 = vpack.c.bf16 %v9311, %v9310
    %v9365 = vpack.c.bf16 %v9313, %v9312
    %v9366 = vpack.c.bf16 %v9315, %v9314
    %v9367 = vpack.c.bf16 %v9317, %v9316
    %v9368 = vpack.c.bf16 %v9319, %v9318
    %v9369 = vpack.c.bf16 %v9321, %v9320
    %v9370 = vpack.c.bf16 %v9323, %v9322
    %v9371 = vpack.c.bf16 %v9325, %v9324
    %v9372 = vpack.c.bf16 %v9327, %v9326
    %v9373 = vpack.c.bf16 %v9329, %v9328
    %v9374 = vpack.c.bf16 %v9331, %v9330
    %v9375 = vpack.c.bf16 %v9333, %v9332
    %v9376 = vpack.c.bf16 %v9335, %v9334
    %v9377 = vpack.c.bf16 %v9337, %v9336
    %v9378 = vpack.c.bf16 %v9339, %v9338
    %v9379 = vpack.c.bf16 %v9341, %v9340
    %v9380 = vpack.c.bf16 %v9343, %v9342
    %v9381 = vpack.c.bf16 %v9345, %v9344
    %v9382 = vpack.c.bf16 %v9347, %v9346
    %v9383 = vpack.c.bf16 %v9349, %v9348
    %v9384 = vpack.c.bf16 %v9351, %v9350
    %v9385 = vpack.c.bf16 %v9353, %v9352
    %v9386 = vld [vmem:[#allocation8 + $0x200] sm:$0xf]
    %v9387 = vld [vmem:[#allocation8 + $0x204] sm:$0xf]
    %v9388 = vld [vmem:[#allocation8 + $0x208] sm:$0xf]
    %v9389 = vld [vmem:[#allocation8 + $0x20c] sm:$0xf]
    %v9390 = vld [vmem:[#allocation8 + $0x210] sm:$0xf]
    %v9391 = vld [vmem:[#allocation8 + $0x214] sm:$0xf]
    %v9392 = vld [vmem:[#allocation8 + $0x218] sm:$0xf]
    %v9393 = vld [vmem:[#allocation8 + $0x21c] sm:$0xf]
    %v9394 = vld [vmem:[#allocation8 + $0x220] sm:$0xf]
    %v9395 = vld [vmem:[#allocation8 + $0x224] sm:$0xf]
    %v9396 = vld [vmem:[#allocation8 + $0x228] sm:$0xf]
    %v9397 = vld [vmem:[#allocation8 + $0x22c] sm:$0xf]
    %v9398 = vld [vmem:[#allocation8 + $0x230] sm:$0xf]
    %v9399 = vld [vmem:[#allocation8 + $0x234] sm:$0xf]
    %v9400 = vld [vmem:[#allocation8 + $0x238] sm:$0xf]
    %v9401 = vld [vmem:[#allocation8 + $0x23c] sm:$0xf]
    %v9418 = vunpack.c.l.b16 %v9386
    %v9419 = vunpack.c.l.b16 %v9387
    %v9420 = vunpack.c.l.b16 %v9388
    %v9421 = vunpack.c.l.b16 %v9389
    %v9422 = vunpack.c.l.b16 %v9390
    %v9423 = vunpack.c.l.b16 %v9391
    %v9424 = vunpack.c.l.b16 %v9392
    %v9425 = vunpack.c.l.b16 %v9393
    %v9426 = vunpack.c.l.b16 %v9394
    %v9427 = vunpack.c.l.b16 %v9395
    %v9428 = vunpack.c.l.b16 %v9396
    %v9429 = vunpack.c.l.b16 %v9397
    %v9430 = vunpack.c.l.b16 %v9398
    %v9431 = vunpack.c.l.b16 %v9399
    %v9432 = vunpack.c.l.b16 %v9400
    %v9433 = vunpack.c.l.b16 %v9401
    %v9434 = vpack.c.b16 %v9419, %v9418
    %v9435 = vpack.c.b16 %v9421, %v9420
    %v9436 = vpack.c.b16 %v9423, %v9422
    %v9437 = vpack.c.b16 %v9425, %v9424
    %v9438 = vpack.c.b16 %v9427, %v9426
    %v9439 = vpack.c.b16 %v9429, %v9428
    %v9440 = vpack.c.b16 %v9431, %v9430
    %v9441 = vpack.c.b16 %v9433, %v9432
    %9450 = vmatprep.subr.bf16.mxu0 0
    %9451 = vmatpush1.bf16.msra.mxu0 %v9434
    %9452 = vmatprep.subr.bf16.mxu0 0
    %9453 = vmatpush1.bf16.msra.mxu0 %v9435
    %9454 = vmatprep.subr.bf16.mxu0 0
    %9455 = vmatpush1.bf16.msra.mxu0 %v9436
    %9456 = vmatprep.subr.bf16.mxu0 0
    %9457 = vmatpush1.bf16.msra.mxu0 %v9437
    %9458 = vmatprep.subr.bf16.mxu0 0
    %9459 = vmatpush1.bf16.msra.mxu0 %v9438
    %9460 = vmatprep.subr.bf16.mxu0 0
    %9461 = vmatpush1.bf16.msra.mxu0 %v9439
    %9462 = vmatprep.subr.bf16.mxu0 0
    %9463 = vmatpush1.bf16.msra.mxu0 %v9440
    %9464 = vmatprep.subr.bf16.mxu0 0
    %9465 = vmatpush1.bf16.msra.mxu0 %v9441
    %9466 = vmatprep.subr.bf16.mxu0 0
    %9467 = vmatpush1.bf16.msra.mxu0 0
    %9468 = vmatprep.subr.bf16.mxu0 0
    %9469 = vmatpush1.bf16.msra.mxu0 0
    %9470 = vmatprep.subr.bf16.mxu0 0
    %9471 = vmatpush1.bf16.msra.mxu0 0
    %9472 = vmatprep.subr.bf16.mxu0 0
    %9473 = vmatpush1.bf16.msra.mxu0 0
    %9474 = vmatprep.subr.bf16.mxu0 0
    %9475 = vmatpush1.bf16.msra.mxu0 0
    %9476 = vmatprep.subr.bf16.mxu0 0
    %9477 = vmatpush1.bf16.msra.mxu0 0
    %9478 = vmatprep.subr.bf16.mxu0 0
    %9479 = vmatpush1.bf16.msra.mxu0 0
    %9480 = vmatprep.subr.bf16.mxu0 0
    %9481 = vmatpush1.bf16.msra.mxu0 0
    %9482 = vmatprep.mubr.bf16.mxu0 0
    %9483 = vmatmul.mubr.bf16.gmra.mrb[0].mxu0 %v9354
    %v9484 = vpop.f32.mrb[0].mxu0
    %v9485 = vadd.f32 0.0, %v9484
    %v9486 = vpop.f32.mrb[0].mxu0
    %v9487 = vpop.f32.mrb[0].mxu0
    %v9488 = vadd.f32 0.0, %v9487
    %v9489 = vpop.f32.mrb[0].mxu0
    %9490 = vmatprep.mubr.bf16.mxu0 0
    %9491 = vmatmul.mubr.bf16.gmra.mrb[0].mxu0 %v9355
    %v9492 = vpop.f32.mrb[0].mxu0
    %v9493 = vadd.f32 0.0, %v9492
    %v9494 = vpop.f32.mrb[0].mxu0
    %v9495 = vpop.f32.mrb[0].mxu0
    %v9496 = vadd.f32 0.0, %v9495
    %v9497 = vpop.f32.mrb[0].mxu0
    %9498 = vmatprep.mubr.bf16.mxu0 0
    %9499 = vmatmul.mubr.bf16.gmra.mrb[0].mxu0 %v9356
    %v9500 = vpop.f32.mrb[0].mxu0
    %v9501 = vadd.f32 0.0, %v9500
    %v9502 = vpop.f32.mrb[0].mxu0
    %v9503 = vpop.f32.mrb[0].mxu0
    %v9504 = vadd.f32 0.0, %v9503
    %v9505 = vpop.f32.mrb[0].mxu0
    %9506 = vmatprep.mubr.bf16.mxu0 0
    %9507 = vmatmul.mubr.bf16.gmra.mrb[0].mxu0 %v9357
    %v9508 = vpop.f32.mrb[0].mxu0
    %v9509 = vadd.f32 0.0, %v9508
    %v9510 = vpop.f32.mrb[0].mxu0
    %v9511 = vpop.f32.mrb[0].mxu0
    %v9512 = vadd.f32 0.0, %v9511
    %v9513 = vpop.f32.mrb[0].mxu0
    %9514 = vmatprep.mubr.bf16.mxu0 0
    %9515 = vmatmul.mubr.bf16.gmra.mrb[0].mxu0 %v9358
    %v9516 = vpop.f32.mrb[0].mxu0
    %v9517 = vadd.f32 0.0, %v9516
    %v9518 = vpop.f32.mrb[0].mxu0
    %v9519 = vpop.f32.mrb[0].mxu0
    %v9520 = vadd.f32 0.0, %v9519
    %v9521 = vpop.f32.mrb[0].mxu0
    %9522 = vmatprep.mubr.bf16.mxu0 0
    %9523 = vmatmul.mubr.bf16.gmra.mrb[0].mxu0 %v9359
    %v9524 = vpop.f32.mrb[0].mxu0
    %v9525 = vadd.f32 0.0, %v9524
    %v9526 = vpop.f32.mrb[0].mxu0
    %v9527 = vpop.f32.mrb[0].mxu0
    %v9528 = vadd.f32 0.0, %v9527
    %v9529 = vpop.f32.mrb[0].mxu0
    %9530 = vmatprep.mubr.bf16.mxu0 0
    %9531 = vmatmul.mubr.bf16.gmra.mrb[0].mxu0 %v9360
    %v9532 = vpop.f32.mrb[0].mxu0
    %v9533 = vadd.f32 0.0, %v9532
    %v9534 = vpop.f32.mrb[0].mxu0
    %v9535 = vpop.f32.mrb[0].mxu0
    %v9536 = vadd.f32 0.0, %v9535
    %v9537 = vpop.f32.mrb[0].mxu0
    %9538 = vmatprep.mubr.bf16.mxu0 0
    %9539 = vmatmul.mubr.bf16.gmra.mrb[0].mxu0 %v9361
    %v9540 = vpop.f32.mrb[0].mxu0
    %v9541 = vadd.f32 0.0, %v9540
    %v9542 = vpop.f32.mrb[0].mxu0
    %v9543 = vpop.f32.mrb[0].mxu0
    %v9544 = vadd.f32 0.0, %v9543
    %v9545 = vpop.f32.mrb[0].mxu0
    %9546 = vmatprep.mubr.bf16.mxu0 0
    %9547 = vmatmul.mubr.bf16.gmra.mrb[0].mxu0 %v9362
    %v9548 = vpop.f32.mrb[0].mxu0
    %v9549 = vadd.f32 0.0, %v9548
    %v9550 = vpop.f32.mrb[0].mxu0
    %v9551 = vpop.f32.mrb[0].mxu0
    %v9552 = vadd.f32 0.0, %v9551
    %v9553 = vpop.f32.mrb[0].mxu0
    %9554 = vmatprep.mubr.bf16.mxu0 0
    %9555 = vmatmul.mubr.bf16.gmra.mrb[0].mxu0 %v9363
    %v9556 = vpop.f32.mrb[0].mxu0
    %v9557 = vadd.f32 0.0, %v9556
    %v9558 = vpop.f32.mrb[0].mxu0
    %v9559 = vpop.f32.mrb[0].mxu0
    %v9560 = vadd.f32 0.0, %v9559
    %v9561 = vpop.f32.mrb[0].mxu0
    %9562 = vmatprep.mubr.bf16.mxu0 0
    %9563 = vmatmul.mubr.bf16.gmra.mrb[0].mxu0 %v9364
    %v9564 = vpop.f32.mrb[0].mxu0
    %v9565 = vadd.f32 0.0, %v9564
    %v9566 = vpop.f32.mrb[0].mxu0
    %v9567 = vpop.f32.mrb[0].mxu0
    %v9568 = vadd.f32 0.0, %v9567
    %v9569 = vpop.f32.mrb[0].mxu0
    %9570 = vmatprep.mubr.bf16.mxu0 0
    %9571 = vmatmul.mubr.bf16.gmra.mrb[0].mxu0 %v9365
    %v9572 = vpop.f32.mrb[0].mxu0
    %v9573 = vadd.f32 0.0, %v9572
    %v9574 = vpop.f32.mrb[0].mxu0
    %v9575 = vpop.f32.mrb[0].mxu0
    %v9576 = vadd.f32 0.0, %v9575
    %v9577 = vpop.f32.mrb[0].mxu0
    %9578 = vmatprep.mubr.bf16.mxu0 0
    %9579 = vmatmul.mubr.bf16.gmra.mrb[0].mxu0 %v9366
    %v9580 = vpop.f32.mrb[0].mxu0
    %v9581 = vadd.f32 0.0, %v9580
    %v9582 = vpop.f32.mrb[0].mxu0
    %v9583 = vpop.f32.mrb[0].mxu0
    %v9584 = vadd.f32 0.0, %v9583
    %v9585 = vpop.f32.mrb[0].mxu0
    %9586 = vmatprep.mubr.bf16.mxu0 0
    %9587 = vmatmul.mubr.bf16.gmra.mrb[0].mxu0 %v9367
    %v9588 = vpop.f32.mrb[0].mxu0
    %v9589 = vadd.f32 0.0, %v9588
    %v9590 = vpop.f32.mrb[0].mxu0
    %v9591 = vpop.f32.mrb[0].mxu0
    %v9592 = vadd.f32 0.0, %v9591
    %v9593 = vpop.f32.mrb[0].mxu0
    %9594 = vmatprep.mubr.bf16.mxu0 0
    %9595 = vmatmul.mubr.bf16.gmra.mrb[0].mxu0 %v9368
    %v9596 = vpop.f32.mrb[0].mxu0
    %v9597 = vadd.f32 0.0, %v9596
    %v9598 = vpop.f32.mrb[0].mxu0
    %v9599 = vpop.f32.mrb[0].mxu0
    %v9600 = vadd.f32 0.0, %v9599
    %v9601 = vpop.f32.mrb[0].mxu0
    %9602 = vmatprep.mubr.bf16.mxu0 0
    %9603 = vmatmul.mubr.bf16.gmra.mrb[0].mxu0 %v9369
    %v9604 = vpop.f32.mrb[0].mxu0
    %v9605 = vadd.f32 0.0, %v9604
    %v9606 = vpop.f32.mrb[0].mxu0
    %v9607 = vpop.f32.mrb[0].mxu0
    %v9608 = vadd.f32 0.0, %v9607
    %v9609 = vpop.f32.mrb[0].mxu0
    %9610 = vmatprep.mubr.bf16.mxu0 0
    %9611 = vmatmul.mubr.bf16.gmra.mrb[0].mxu0 %v9370
    %v9612 = vpop.f32.mrb[0].mxu0
    %v9613 = vadd.f32 0.0, %v9612
    %v9614 = vpop.f32.mrb[0].mxu0
    %v9615 = vpop.f32.mrb[0].mxu0
    %v9616 = vadd.f32 0.0, %v9615
    %v9617 = vpop.f32.mrb[0].mxu0
    %9618 = vmatprep.mubr.bf16.mxu0 0
    %9619 = vmatmul.mubr.bf16.gmra.mrb[0].mxu0 %v9371
    %v9620 = vpop.f32.mrb[0].mxu0
    %v9621 = vadd.f32 0.0, %v9620
    %v9622 = vpop.f32.mrb[0].mxu0
    %v9623 = vpop.f32.mrb[0].mxu0
    %v9624 = vadd.f32 0.0, %v9623
    %v9625 = vpop.f32.mrb[0].mxu0
    %9626 = vmatprep.mubr.bf16.mxu0 0
    %9627 = vmatmul.mubr.bf16.gmra.mrb[0].mxu0 %v9372
    %v9628 = vpop.f32.mrb[0].mxu0
    %v9629 = vadd.f32 0.0, %v9628
    %v9630 = vpop.f32.mrb[0].mxu0
    %v9631 = vpop.f32.mrb[0].mxu0
    %v9632 = vadd.f32 0.0, %v9631
    %v9633 = vpop.f32.mrb[0].mxu0
    %9634 = vmatprep.mubr.bf16.mxu0 0
    %9635 = vmatmul.mubr.bf16.gmra.mrb[0].mxu0 %v9373
    %v9636 = vpop.f32.mrb[0].mxu0
    %v9637 = vadd.f32 0.0, %v9636
    %v9638 = vpop.f32.mrb[0].mxu0
    %v9639 = vpop.f32.mrb[0].mxu0
    %v9640 = vadd.f32 0.0, %v9639
    %v9641 = vpop.f32.mrb[0].mxu0
    %9642 = vmatprep.mubr.bf16.mxu0 0
    %9643 = vmatmul.mubr.bf16.gmra.mrb[0].mxu0 %v9374
    %v9644 = vpop.f32.mrb[0].mxu0
    %v9645 = vadd.f32 0.0, %v9644
    %v9646 = vpop.f32.mrb[0].mxu0
    %v9647 = vpop.f32.mrb[0].mxu0
    %v9648 = vadd.f32 0.0, %v9647
    %v9649 = vpop.f32.mrb[0].mxu0
    %9650 = vmatprep.mubr.bf16.mxu0 0
    %9651 = vmatmul.mubr.bf16.gmra.mrb[0].mxu0 %v9375
    %v9652 = vpop.f32.mrb[0].mxu0
    %v9653 = vadd.f32 0.0, %v9652
    %v9654 = vpop.f32.mrb[0].mxu0
    %v9655 = vpop.f32.mrb[0].mxu0
    %v9656 = vadd.f32 0.0, %v9655
    %v9657 = vpop.f32.mrb[0].mxu0
    %9658 = vmatprep.mubr.bf16.mxu0 0
    %9659 = vmatmul.mubr.bf16.gmra.mrb[0].mxu0 %v9376
    %v9660 = vpop.f32.mrb[0].mxu0
    %v9661 = vadd.f32 0.0, %v9660
    %v9662 = vpop.f32.mrb[0].mxu0
    %v9663 = vpop.f32.mrb[0].mxu0
    %v9664 = vadd.f32 0.0, %v9663
    %v9665 = vpop.f32.mrb[0].mxu0
    %9666 = vmatprep.mubr.bf16.mxu0 0
    %9667 = vmatmul.mubr.bf16.gmra.mrb[0].mxu0 %v9377
    %v9668 = vpop.f32.mrb[0].mxu0
    %v9669 = vadd.f32 0.0, %v9668
    %v9670 = vpop.f32.mrb[0].mxu0
    %v9671 = vpop.f32.mrb[0].mxu0
    %v9672 = vadd.f32 0.0, %v9671
    %v9673 = vpop.f32.mrb[0].mxu0
    %9674 = vmatprep.mubr.bf16.mxu0 0
    %9675 = vmatmul.mubr.bf16.gmra.mrb[0].mxu0 %v9378
    %v9676 = vpop.f32.mrb[0].mxu0
    %v9677 = vadd.f32 0.0, %v9676
    %v9678 = vpop.f32.mrb[0].mxu0
    %v9679 = vpop.f32.mrb[0].mxu0
    %v9680 = vadd.f32 0.0, %v9679
    %v9681 = vpop.f32.mrb[0].mxu0
    %9682 = vmatprep.mubr.bf16.mxu0 0
    %9683 = vmatmul.mubr.bf16.gmra.mrb[0].mxu0 %v9379
    %v9684 = vpop.f32.mrb[0].mxu0
    %v9685 = vadd.f32 0.0, %v9684
    %v9686 = vpop.f32.mrb[0].mxu0
    %v9687 = vpop.f32.mrb[0].mxu0
    %v9688 = vadd.f32 0.0, %v9687
    %v9689 = vpop.f32.mrb[0].mxu0
    %9690 = vmatprep.mubr.bf16.mxu0 0
    %9691 = vmatmul.mubr.bf16.gmra.mrb[0].mxu0 %v9380
    %v9692 = vpop.f32.mrb[0].mxu0
    %v9693 = vadd.f32 0.0, %v9692
    %v9694 = vpop.f32.mrb[0].mxu0
    %v9695 = vpop.f32.mrb[0].mxu0
    %v9696 = vadd.f32 0.0, %v9695
    %v9697 = vpop.f32.mrb[0].mxu0
    %9698 = vmatprep.mubr.bf16.mxu0 0
    %9699 = vmatmul.mubr.bf16.gmra.mrb[0].mxu0 %v9381
    %v9700 = vpop.f32.mrb[0].mxu0
    %v9701 = vadd.f32 0.0, %v9700
    %v9702 = vpop.f32.mrb[0].mxu0
    %v9703 = vpop.f32.mrb[0].mxu0
    %v9704 = vadd.f32 0.0, %v9703
    %v9705 = vpop.f32.mrb[0].mxu0
    %9706 = vmatprep.mubr.bf16.mxu0 0
    %9707 = vmatmul.mubr.bf16.gmra.mrb[0].mxu0 %v9382
    %v9708 = vpop.f32.mrb[0].mxu0
    %v9709 = vadd.f32 0.0, %v9708
    %v9710 = vpop.f32.mrb[0].mxu0
    %v9711 = vpop.f32.mrb[0].mxu0
    %v9712 = vadd.f32 0.0, %v9711
    %v9713 = vpop.f32.mrb[0].mxu0
    %9714 = vmatprep.mubr.bf16.mxu0 0
    %9715 = vmatmul.mubr.bf16.gmra.mrb[0].mxu0 %v9383
    %v9716 = vpop.f32.mrb[0].mxu0
    %v9717 = vadd.f32 0.0, %v9716
    %v9718 = vpop.f32.mrb[0].mxu0
    %v9719 = vpop.f32.mrb[0].mxu0
    %v9720 = vadd.f32 0.0, %v9719
    %v9721 = vpop.f32.mrb[0].mxu0
    %9722 = vmatprep.mubr.bf16.mxu0 0
    %9723 = vmatmul.mubr.bf16.gmra.mrb[0].mxu0 %v9384
    %v9724 = vpop.f32.mrb[0].mxu0
    %v9725 = vadd.f32 0.0, %v9724
    %v9726 = vpop.f32.mrb[0].mxu0
    %v9727 = vpop.f32.mrb[0].mxu0
    %v9728 = vadd.f32 0.0, %v9727
    %v9729 = vpop.f32.mrb[0].mxu0
    %9730 = vmatprep.mubr.bf16.mxu0 0
    %9731 = vmatmul.mubr.bf16.gmra.mrb[0].mxu0 %v9385
    %v9732 = vpop.f32.mrb[0].mxu0
    %v9733 = vadd.f32 0.0, %v9732
    %v9734 = vpop.f32.mrb[0].mxu0
    %v9735 = vpop.f32.mrb[0].mxu0
    %v9736 = vadd.f32 0.0, %v9735
    %v9737 = vpop.f32.mrb[0].mxu0
    %9738 = vdwg.mxu0
    %v9739 = vadd.f32 %v9226, %v9485
    %v9740 = vadd.f32 %v9227, %v9488
    %v9741 = vadd.f32 %v9228, %v9493
    %v9742 = vadd.f32 %v9229, %v9496
    %v9743 = vadd.f32 %v9230, %v9501
    %v9744 = vadd.f32 %v9231, %v9504
    %v9745 = vadd.f32 %v9232, %v9509
    %v9746 = vadd.f32 %v9233, %v9512
    %v9747 = vadd.f32 %v9234, %v9517
    %v9748 = vadd.f32 %v9235, %v9520
    %v9749 = vadd.f32 %v9236, %v9525
    %v9750 = vadd.f32 %v9237, %v9528
    %v9751 = vadd.f32 %v9238, %v9533
    %v9752 = vadd.f32 %v9239, %v9536
    %v9753 = vadd.f32 %v9240, %v9541
    %v9754 = vadd.f32 %v9241, %v9544
    %v9755 = vadd.f32 %v9242, %v9549
    %v9756 = vadd.f32 %v9243, %v9552
    %v9757 = vadd.f32 %v9244, %v9557
    %v9758 = vadd.f32 %v9245, %v9560
    %v9759 = vadd.f32 %v9246, %v9565
    %v9760 = vadd.f32 %v9247, %v9568
    %v9761 = vadd.f32 %v9248, %v9573
    %v9762 = vadd.f32 %v9249, %v9576
    %v9763 = vadd.f32 %v9250, %v9581
    %v9764 = vadd.f32 %v9251, %v9584
    %v9765 = vadd.f32 %v9252, %v9589
    %v9766 = vadd.f32 %v9253, %v9592
    %v9767 = vadd.f32 %v9254, %v9597
    %v9768 = vadd.f32 %v9255, %v9600
    %v9769 = vadd.f32 %v9256, %v9605
    %v9770 = vadd.f32 %v9257, %v9608
    %v9771 = vadd.f32 %v9258, %v9613
    %v9772 = vadd.f32 %v9259, %v9616
    %v9773 = vadd.f32 %v9260, %v9621
    %v9774 = vadd.f32 %v9261, %v9624
    %v9775 = vadd.f32 %v9262, %v9629
    %v9776 = vadd.f32 %v9263, %v9632
    %v9777 = vadd.f32 %v9264, %v9637
    %v9778 = vadd.f32 %v9265, %v9640
    %v9779 = vadd.f32 %v9266, %v9645
    %v9780 = vadd.f32 %v9267, %v9648
    %v9781 = vadd.f32 %v9268, %v9653
    %v9782 = vadd.f32 %v9269, %v9656
    %v9783 = vadd.f32 %v9270, %v9661
    %v9784 = vadd.f32 %v9271, %v9664
    %v9785 = vadd.f32 %v9272, %v9669
    %v9786 = vadd.f32 %v9273, %v9672
    %v9787 = vadd.f32 %v9274, %v9677
    %v9788 = vadd.f32 %v9275, %v9680
    %v9789 = vadd.f32 %v9276, %v9685
    %v9790 = vadd.f32 %v9277, %v9688
    %v9791 = vadd.f32 %v9278, %v9693
    %v9792 = vadd.f32 %v9279, %v9696
    %v9793 = vadd.f32 %v9280, %v9701
    %v9794 = vadd.f32 %v9281, %v9704
    %v9795 = vadd.f32 %v9282, %v9709
    %v9796 = vadd.f32 %v9283, %v9712
    %v9797 = vadd.f32 %v9284, %v9717
    %v9798 = vadd.f32 %v9285, %v9720
    %v9799 = vadd.f32 %v9286, %v9725
    %v9800 = vadd.f32 %v9287, %v9728
    %v9801 = vadd.f32 %v9288, %v9733
    %v9802 = vadd.f32 %v9289, %v9736
    %v9803 = vld [vmem:[%s5] sm:$0x1]
    %v9804 = vld [vmem:[%s6] sm:$0x1]
    %v9805 = vadd.f32 %v9739, %v9740
    %v9806 = vadd.f32 %v9805, %v9741
    %v9807 = vadd.f32 %v9806, %v9742
    %v9808 = vadd.f32 %v9807, %v9743
    %v9809 = vadd.f32 %v9808, %v9744
    %v9810 = vadd.f32 %v9809, %v9745
    %v9811 = vadd.f32 %v9810, %v9746
    %v9812 = vadd.f32 %v9811, %v9747
    %v9813 = vadd.f32 %v9812, %v9748
    %v9814 = vadd.f32 %v9813, %v9749
    %v9815 = vadd.f32 %v9814, %v9750
    %v9816 = vadd.f32 %v9815, %v9751
    %v9817 = vadd.f32 %v9816, %v9752
    %v9818 = vadd.f32 %v9817, %v9753
    %v9819 = vadd.f32 %v9818, %v9754
    %v9820 = vadd.f32 %v9819, %v9755
    %v9821 = vadd.f32 %v9820, %v9756
    %v9822 = vadd.f32 %v9821, %v9757
    %v9823 = vadd.f32 %v9822, %v9758
    %v9824 = vadd.f32 %v9823, %v9759
    %v9825 = vadd.f32 %v9824, %v9760
    %v9826 = vadd.f32 %v9825, %v9761
    %v9827 = vadd.f32 %v9826, %v9762
    %v9828 = vadd.f32 %v9827, %v9763
    %v9829 = vadd.f32 %v9828, %v9764
    %v9830 = vadd.f32 %v9829, %v9765
    %v9831 = vadd.f32 %v9830, %v9766
    %v9832 = vadd.f32 %v9831, %v9767
    %v9833 = vadd.f32 %v9832, %v9768
    %v9834 = vadd.f32 %v9833, %v9769
    %v9835 = vadd.f32 %v9834, %v9770
    %v9836 = vadd.f32 %v9835, %v9771
    %v9837 = vadd.f32 %v9836, %v9772
    %v9838 = vadd.f32 %v9837, %v9773
    %v9839 = vadd.f32 %v9838, %v9774
    %v9840 = vadd.f32 %v9839, %v9775
    %v9841 = vadd.f32 %v9840, %v9776
    %v9842 = vadd.f32 %v9841, %v9777
    %v9843 = vadd.f32 %v9842, %v9778
    %v9844 = vadd.f32 %v9843, %v9779
    %v9845 = vadd.f32 %v9844, %v9780
    %v9846 = vadd.f32 %v9845, %v9781
    %v9847 = vadd.f32 %v9846, %v9782
    %v9848 = vadd.f32 %v9847, %v9783
    %v9849 = vadd.f32 %v9848, %v9784
    %v9850 = vadd.f32 %v9849, %v9785
    %v9851 = vadd.f32 %v9850, %v9786
    %v9852 = vadd.f32 %v9851, %v9787
    %v9853 = vadd.f32 %v9852, %v9788
    %v9854 = vadd.f32 %v9853, %v9789
    %v9855 = vadd.f32 %v9854, %v9790
    %v9856 = vadd.f32 %v9855, %v9791
    %v9857 = vadd.f32 %v9856, %v9792
    %v9858 = vadd.f32 %v9857, %v9793
    %v9859 = vadd.f32 %v9858, %v9794
    %v9860 = vadd.f32 %v9859, %v9795
    %v9861 = vadd.f32 %v9860, %v9796
    %v9862 = vadd.f32 %v9861, %v9797
    %v9863 = vadd.f32 %v9862, %v9798
    %v9864 = vadd.f32 %v9863, %v9799
    %v9865 = vadd.f32 %v9864, %v9800
    %v9866 = vadd.f32 %v9865, %v9801
    %v9867 = vadd.f32 %v9866, %v9802
    %v9868 = vrot.slane %v9867, 4
    %v9869 = vadd.f32 %v9867, %v9868
    %v9870 = vrot.slane %v9869, 2
    %v9871 = vadd.f32 %v9869, %v9870
    %v9872 = vrot.slane %v9871, 1
    %v9873 = vadd.f32 %v9871, %v9872
    %v9874 = vmul.f32 %v9873, 0.001953125
    %v9875 = vsub.f32 %v9739, %v9874
    %v9876 = vsub.f32 %v9740, %v9874
    %v9877 = vsub.f32 %v9741, %v9874
    %v9878 = vsub.f32 %v9742, %v9874
    %v9879 = vsub.f32 %v9743, %v9874
    %v9880 = vsub.f32 %v9744, %v9874
    %v9881 = vsub.f32 %v9745, %v9874
    %v9882 = vsub.f32 %v9746, %v9874
    %v9883 = vsub.f32 %v9747, %v9874
    %v9884 = vsub.f32 %v9748, %v9874
    %v9885 = vsub.f32 %v9749, %v9874
    %v9886 = vsub.f32 %v9750, %v9874
    %v9887 = vsub.f32 %v9751, %v9874
    %v9888 = vsub.f32 %v9752, %v9874
    %v9889 = vsub.f32 %v9753, %v9874
    %v9890 = vsub.f32 %v9754, %v9874
    %v9891 = vsub.f32 %v9755, %v9874
    %v9892 = vsub.f32 %v9756, %v9874
    %v9893 = vsub.f32 %v9757, %v9874
    %v9894 = vsub.f32 %v9758, %v9874
    %v9895 = vsub.f32 %v9759, %v9874
    %v9896 = vsub.f32 %v9760, %v9874
    %v9897 = vsub.f32 %v9761, %v9874
    %v9898 = vsub.f32 %v9762, %v9874
    %v9899 = vsub.f32 %v9763, %v9874
    %v9900 = vsub.f32 %v9764, %v9874
    %v9901 = vsub.f32 %v9765, %v9874
    %v9902 = vsub.f32 %v9766, %v9874
    %v9903 = vsub.f32 %v9767, %v9874
    %v9904 = vsub.f32 %v9768, %v9874
    %v9905 = vsub.f32 %v9769, %v9874
    %v9906 = vsub.f32 %v9770, %v9874
    %v9907 = vsub.f32 %v9771, %v9874
    %v9908 = vsub.f32 %v9772, %v9874
    %v9909 = vsub.f32 %v9773, %v9874
    %v9910 = vsub.f32 %v9774, %v9874
    %v9911 = vsub.f32 %v9775, %v9874
    %v9912 = vsub.f32 %v9776, %v9874
    %v9913 = vsub.f32 %v9777, %v9874
    %v9914 = vsub.f32 %v9778, %v9874
    %v9915 = vsub.f32 %v9779, %v9874
    %v9916 = vsub.f32 %v9780, %v9874
    %v9917 = vsub.f32 %v9781, %v9874
    %v9918 = vsub.f32 %v9782, %v9874
    %v9919 = vsub.f32 %v9783, %v9874
    %v9920 = vsub.f32 %v9784, %v9874
    %v9921 = vsub.f32 %v9785, %v9874
    %v9922 = vsub.f32 %v9786, %v9874
    %v9923 = vsub.f32 %v9787, %v9874
    %v9924 = vsub.f32 %v9788, %v9874
    %v9925 = vsub.f32 %v9789, %v9874
    %v9926 = vsub.f32 %v9790, %v9874
    %v9927 = vsub.f32 %v9791, %v9874
    %v9928 = vsub.f32 %v9792, %v9874
    %v9929 = vsub.f32 %v9793, %v9874
    %v9930 = vsub.f32 %v9794, %v9874
    %v9931 = vsub.f32 %v9795, %v9874
    %v9932 = vsub.f32 %v9796, %v9874
    %v9933 = vsub.f32 %v9797, %v9874
    %v9934 = vsub.f32 %v9798, %v9874
    %v9935 = vsub.f32 %v9799, %v9874
    %v9936 = vsub.f32 %v9800, %v9874
    %v9937 = vsub.f32 %v9801, %v9874
    %v9938 = vsub.f32 %v9802, %v9874
    %v9939 = vmul.f32 %v9875, %v9875
    %v9940 = vmul.f32 %v9876, %v9876
    %v9941 = vmul.f32 %v9877, %v9877
    %v9942 = vmul.f32 %v9878, %v9878
    %v9943 = vmul.f32 %v9879, %v9879
    %v9944 = vmul.f32 %v9880, %v9880
    %v9945 = vmul.f32 %v9881, %v9881
    %v9946 = vmul.f32 %v9882, %v9882
    %v9947 = vmul.f32 %v9883, %v9883
    %v9948 = vmul.f32 %v9884, %v9884
    %v9949 = vmul.f32 %v9885, %v9885
    %v9950 = vmul.f32 %v9886, %v9886
    %v9951 = vmul.f32 %v9887, %v9887
    %v9952 = vmul.f32 %v9888, %v9888
    %v9953 = vmul.f32 %v9889, %v9889
    %v9954 = vmul.f32 %v9890, %v9890
    %v9955 = vmul.f32 %v9891, %v9891
    %v9956 = vmul.f32 %v9892, %v9892
    %v9957 = vmul.f32 %v9893, %v9893
    %v9958 = vmul.f32 %v9894, %v9894
    %v9959 = vmul.f32 %v9895, %v9895
    %v9960 = vmul.f32 %v9896, %v9896
    %v9961 = vmul.f32 %v9897, %v9897
    %v9962 = vmul.f32 %v9898, %v9898
    %v9963 = vmul.f32 %v9899, %v9899
    %v9964 = vmul.f32 %v9900, %v9900
    %v9965 = vmul.f32 %v9901, %v9901
    %v9966 = vmul.f32 %v9902, %v9902
    %v9967 = vmul.f32 %v9903, %v9903
    %v9968 = vmul.f32 %v9904, %v9904
    %v9969 = vmul.f32 %v9905, %v9905
    %v9970 = vmul.f32 %v9906, %v9906
    %v9971 = vmul.f32 %v9907, %v9907
    %v9972 = vmul.f32 %v9908, %v9908
    %v9973 = vmul.f32 %v9909, %v9909
    %v9974 = vmul.f32 %v9910, %v9910
    %v9975 = vmul.f32 %v9911, %v9911
    %v9976 = vmul.f32 %v9912, %v9912
    %v9977 = vmul.f32 %v9913, %v9913
    %v9978 = vmul.f32 %v9914, %v9914
    %v9979 = vmul.f32 %v9915, %v9915
    %v9980 = vmul.f32 %v9916, %v9916
    %v9981 = vmul.f32 %v9917, %v9917
    %v9982 = vmul.f32 %v9918, %v9918
    %v9983 = vmul.f32 %v9919, %v9919
    %v9984 = vmul.f32 %v9920, %v9920
    %v9985 = vmul.f32 %v9921, %v9921
    %v9986 = vmul.f32 %v9922, %v9922
    %v9987 = vmul.f32 %v9923, %v9923
    %v9988 = vmul.f32 %v9924, %v9924
    %v9989 = vmul.f32 %v9925, %v9925
    %v9990 = vmul.f32 %v9926, %v9926
    %v9991 = vmul.f32 %v9927, %v9927
    %v9992 = vmul.f32 %v9928, %v9928
    %v9993 = vmul.f32 %v9929, %v9929
    %v9994 = vmul.f32 %v9930, %v9930
    %v9995 = vmul.f32 %v9931, %v9931
    %v9996 = vmul.f32 %v9932, %v9932
    %v9997 = vmul.f32 %v9933, %v9933
    %v9998 = vmul.f32 %v9934, %v9934
    %v9999 = vmul.f32 %v9935, %v9935
    %v10000 = vmul.f32 %v9936, %v9936
    %v10001 = vmul.f32 %v9937, %v9937
    %v10002 = vmul.f32 %v9938, %v9938
    %v10003 = vadd.f32 %v9939, %v9940
    %v10004 = vadd.f32 %v10003, %v9941
    %v10005 = vadd.f32 %v10004, %v9942
    %v10006 = vadd.f32 %v10005, %v9943
    %v10007 = vadd.f32 %v10006, %v9944
    %v10008 = vadd.f32 %v10007, %v9945
    %v10009 = vadd.f32 %v10008, %v9946
    %v10010 = vadd.f32 %v10009, %v9947
    %v10011 = vadd.f32 %v10010, %v9948
    %v10012 = vadd.f32 %v10011, %v9949
    %v10013 = vadd.f32 %v10012, %v9950
    %v10014 = vadd.f32 %v10013, %v9951
    %v10015 = vadd.f32 %v10014, %v9952
    %v10016 = vadd.f32 %v10015, %v9953
    %v10017 = vadd.f32 %v10016, %v9954
    %v10018 = vadd.f32 %v10017, %v9955
    %v10019 = vadd.f32 %v10018, %v9956
    %v10020 = vadd.f32 %v10019, %v9957
    %v10021 = vadd.f32 %v10020, %v9958
    %v10022 = vadd.f32 %v10021, %v9959
    %v10023 = vadd.f32 %v10022, %v9960
    %v10024 = vadd.f32 %v10023, %v9961
    %v10025 = vadd.f32 %v10024, %v9962
    %v10026 = vadd.f32 %v10025, %v9963
    %v10027 = vadd.f32 %v10026, %v9964
    %v10028 = vadd.f32 %v10027, %v9965
    %v10029 = vadd.f32 %v10028, %v9966
    %v10030 = vadd.f32 %v10029, %v9967
    %v10031 = vadd.f32 %v10030, %v9968
    %v10032 = vadd.f32 %v10031, %v9969
    %v10033 = vadd.f32 %v10032, %v9970
    %v10034 = vadd.f32 %v10033, %v9971
    %v10035 = vadd.f32 %v10034, %v9972
    %v10036 = vadd.f32 %v10035, %v9973
    %v10037 = vadd.f32 %v10036, %v9974
    %v10038 = vadd.f32 %v10037, %v9975
    %v10039 = vadd.f32 %v10038, %v9976
    %v10040 = vadd.f32 %v10039, %v9977
    %v10041 = vadd.f32 %v10040, %v9978
    %v10042 = vadd.f32 %v10041, %v9979
    %v10043 = vadd.f32 %v10042, %v9980
    %v10044 = vadd.f32 %v10043, %v9981
    %v10045 = vadd.f32 %v10044, %v9982
    %v10046 = vadd.f32 %v10045, %v9983
    %v10047 = vadd.f32 %v10046, %v9984
    %v10048 = vadd.f32 %v10047, %v9985
    %v10049 = vadd.f32 %v10048, %v9986
    %v10050 = vadd.f32 %v10049, %v9987
    %v10051 = vadd.f32 %v10050, %v9988
    %v10052 = vadd.f32 %v10051, %v9989
    %v10053 = vadd.f32 %v10052, %v9990
    %v10054 = vadd.f32 %v10053, %v9991
    %v10055 = vadd.f32 %v10054, %v9992
    %v10056 = vadd.f32 %v10055, %v9993
    %v10057 = vadd.f32 %v10056, %v9994
    %v10058 = vadd.f32 %v10057, %v9995
    %v10059 = vadd.f32 %v10058, %v9996
    %v10060 = vadd.f32 %v10059, %v9997
    %v10061 = vadd.f32 %v10060, %v9998
    %v10062 = vadd.f32 %v10061, %v9999
    %v10063 = vadd.f32 %v10062, %v10000
    %v10064 = vadd.f32 %v10063, %v10001
    %v10065 = vadd.f32 %v10064, %v10002
    %v10066 = vrot.slane %v10065, 4
    %v10067 = vadd.f32 %v10065, %v10066
    %v10068 = vrot.slane %v10067, 2
    %v10069 = vadd.f32 %v10067, %v10068
    %v10070 = vrot.slane %v10069, 1
    %v10071 = vadd.f32 %v10069, %v10070
    %v10072 = vmul.f32 %v10071, 0.001953125
    %v10073 = vadd.f32 %v10072, 1e-05
    %v10074 = vrsqrt.pop %v10073
    %v10075 = vmul.f32 %v9803, %v10074
    %v10077 = vlaneseq
    %v10078 = vshrl.u32 %v10077, 7
    %v10079 = vsub.s32 0, %v10078
    %v10080 = vrot.slane %v10075, %v10079
    %v10082 = vmul.f32 %v9875, %v10080
    %v10083 = vmul.f32 %v9876, %v10080
    %v10084 = vmul.f32 %v9877, %v10080
    %v10085 = vmul.f32 %v9878, %v10080
    %v10086 = vmul.f32 %v9879, %v10080
    %v10087 = vmul.f32 %v9880, %v10080
    %v10088 = vmul.f32 %v9881, %v10080
    %v10089 = vmul.f32 %v9882, %v10080
    %v10090 = vmul.f32 %v9883, %v10080
    %v10091 = vmul.f32 %v9884, %v10080
    %v10092 = vmul.f32 %v9885, %v10080
    %v10093 = vmul.f32 %v9886, %v10080
    %v10094 = vmul.f32 %v9887, %v10080
    %v10095 = vmul.f32 %v9888, %v10080
    %v10096 = vmul.f32 %v9889, %v10080
    %v10097 = vmul.f32 %v9890, %v10080
    %v10098 = vmul.f32 %v9891, %v10080
    %v10099 = vmul.f32 %v9892, %v10080
    %v10100 = vmul.f32 %v9893, %v10080
    %v10101 = vmul.f32 %v9894, %v10080
    %v10102 = vmul.f32 %v9895, %v10080
    %v10103 = vmul.f32 %v9896, %v10080
    %v10104 = vmul.f32 %v9897, %v10080
    %v10105 = vmul.f32 %v9898, %v10080
    %v10106 = vmul.f32 %v9899, %v10080
    %v10107 = vmul.f32 %v9900, %v10080
    %v10108 = vmul.f32 %v9901, %v10080
    %v10109 = vmul.f32 %v9902, %v10080
    %v10110 = vmul.f32 %v9903, %v10080
    %v10111 = vmul.f32 %v9904, %v10080
    %v10112 = vmul.f32 %v9905, %v10080
    %v10113 = vmul.f32 %v9906, %v10080
    %v10114 = vmul.f32 %v9907, %v10080
    %v10115 = vmul.f32 %v9908, %v10080
    %v10116 = vmul.f32 %v9909, %v10080
    %v10117 = vmul.f32 %v9910, %v10080
    %v10118 = vmul.f32 %v9911, %v10080
    %v10119 = vmul.f32 %v9912, %v10080
    %v10120 = vmul.f32 %v9913, %v10080
    %v10121 = vmul.f32 %v9914, %v10080
    %v10122 = vmul.f32 %v9915, %v10080
    %v10123 = vmul.f32 %v9916, %v10080
    %v10124 = vmul.f32 %v9917, %v10080
    %v10125 = vmul.f32 %v9918, %v10080
    %v10126 = vmul.f32 %v9919, %v10080
    %v10127 = vmul.f32 %v9920, %v10080
    %v10128 = vmul.f32 %v9921, %v10080
    %v10129 = vmul.f32 %v9922, %v10080
    %v10130 = vmul.f32 %v9923, %v10080
    %v10131 = vmul.f32 %v9924, %v10080
    %v10132 = vmul.f32 %v9925, %v10080
    %v10133 = vmul.f32 %v9926, %v10080
    %v10134 = vmul.f32 %v9927, %v10080
    %v10135 = vmul.f32 %v9928, %v10080
    %v10136 = vmul.f32 %v9929, %v10080
    %v10137 = vmul.f32 %v9930, %v10080
    %v10138 = vmul.f32 %v9931, %v10080
    %v10139 = vmul.f32 %v9932, %v10080
    %v10140 = vmul.f32 %v9933, %v10080
    %v10141 = vmul.f32 %v9934, %v10080
    %v10142 = vmul.f32 %v9935, %v10080
    %v10143 = vmul.f32 %v9936, %v10080
    %v10144 = vmul.f32 %v9937, %v10080
    %v10145 = vmul.f32 %v9938, %v10080
    %v10147 = vlaneseq
    %v10148 = vshrl.u32 %v10147, 7
    %v10149 = vsub.s32 0, %v10148
    %v10150 = vrot.slane %v9804, %v10149
    %v10152 = vadd.f32 %v10082, %v10150
    %v10153 = vadd.f32 %v10083, %v10150
    %v10154 = vadd.f32 %v10084, %v10150
    %v10155 = vadd.f32 %v10085, %v10150
    %v10156 = vadd.f32 %v10086, %v10150
    %v10157 = vadd.f32 %v10087, %v10150
    %v10158 = vadd.f32 %v10088, %v10150
    %v10159 = vadd.f32 %v10089, %v10150
    %v10160 = vadd.f32 %v10090, %v10150
    %v10161 = vadd.f32 %v10091, %v10150
    %v10162 = vadd.f32 %v10092, %v10150
    %v10163 = vadd.f32 %v10093, %v10150
    %v10164 = vadd.f32 %v10094, %v10150
    %v10165 = vadd.f32 %v10095, %v10150
    %v10166 = vadd.f32 %v10096, %v10150
    %v10167 = vadd.f32 %v10097, %v10150
    %v10168 = vadd.f32 %v10098, %v10150
    %v10169 = vadd.f32 %v10099, %v10150
    %v10170 = vadd.f32 %v10100, %v10150
    %v10171 = vadd.f32 %v10101, %v10150
    %v10172 = vadd.f32 %v10102, %v10150
    %v10173 = vadd.f32 %v10103, %v10150
    %v10174 = vadd.f32 %v10104, %v10150
    %v10175 = vadd.f32 %v10105, %v10150
    %v10176 = vadd.f32 %v10106, %v10150
    %v10177 = vadd.f32 %v10107, %v10150
    %v10178 = vadd.f32 %v10108, %v10150
    %v10179 = vadd.f32 %v10109, %v10150
    %v10180 = vadd.f32 %v10110, %v10150
    %v10181 = vadd.f32 %v10111, %v10150
    %v10182 = vadd.f32 %v10112, %v10150
    %v10183 = vadd.f32 %v10113, %v10150
    %v10184 = vadd.f32 %v10114, %v10150
    %v10185 = vadd.f32 %v10115, %v10150
    %v10186 = vadd.f32 %v10116, %v10150
    %v10187 = vadd.f32 %v10117, %v10150
    %v10188 = vadd.f32 %v10118, %v10150
    %v10189 = vadd.f32 %v10119, %v10150
    %v10190 = vadd.f32 %v10120, %v10150
    %v10191 = vadd.f32 %v10121, %v10150
    %v10192 = vadd.f32 %v10122, %v10150
    %v10193 = vadd.f32 %v10123, %v10150
    %v10194 = vadd.f32 %v10124, %v10150
    %v10195 = vadd.f32 %v10125, %v10150
    %v10196 = vadd.f32 %v10126, %v10150
    %v10197 = vadd.f32 %v10127, %v10150
    %v10198 = vadd.f32 %v10128, %v10150
    %v10199 = vadd.f32 %v10129, %v10150
    %v10200 = vadd.f32 %v10130, %v10150
    %v10201 = vadd.f32 %v10131, %v10150
    %v10202 = vadd.f32 %v10132, %v10150
    %v10203 = vadd.f32 %v10133, %v10150
    %v10204 = vadd.f32 %v10134, %v10150
    %v10205 = vadd.f32 %v10135, %v10150
    %v10206 = vadd.f32 %v10136, %v10150
    %v10207 = vadd.f32 %v10137, %v10150
    %v10208 = vadd.f32 %v10138, %v10150
    %v10209 = vadd.f32 %v10139, %v10150
    %v10210 = vadd.f32 %v10140, %v10150
    %v10211 = vadd.f32 %v10141, %v10150
    %v10212 = vadd.f32 %v10142, %v10150
    %v10213 = vadd.f32 %v10143, %v10150
    %v10214 = vadd.f32 %v10144, %v10150
    %v10215 = vadd.f32 %v10145, %v10150
    %v10216 = vadd.f32 %v10152, %v154
    %v10217 = vadd.f32 %v10153, %v155
    %v10218 = vadd.f32 %v10154, %v156
    %v10219 = vadd.f32 %v10155, %v157
    %v10220 = vadd.f32 %v10156, %v158
    %v10221 = vadd.f32 %v10157, %v159
    %v10222 = vadd.f32 %v10158, %v160
    %v10223 = vadd.f32 %v10159, %v161
    %v10224 = vadd.f32 %v10160, %v162
    %v10225 = vadd.f32 %v10161, %v163
    %v10226 = vadd.f32 %v10162, %v164
    %v10227 = vadd.f32 %v10163, %v165
    %v10228 = vadd.f32 %v10164, %v166
    %v10229 = vadd.f32 %v10165, %v167
    %v10230 = vadd.f32 %v10166, %v168
    %v10231 = vadd.f32 %v10167, %v169
    %v10232 = vadd.f32 %v10168, %v170
    %v10233 = vadd.f32 %v10169, %v171
    %v10234 = vadd.f32 %v10170, %v172
    %v10235 = vadd.f32 %v10171, %v173
    %v10236 = vadd.f32 %v10172, %v174
    %v10237 = vadd.f32 %v10173, %v175
    %v10238 = vadd.f32 %v10174, %v176
    %v10239 = vadd.f32 %v10175, %v177
    %v10240 = vadd.f32 %v10176, %v178
    %v10241 = vadd.f32 %v10177, %v179
    %v10242 = vadd.f32 %v10178, %v180
    %v10243 = vadd.f32 %v10179, %v181
    %v10244 = vadd.f32 %v10180, %v182
    %v10245 = vadd.f32 %v10181, %v183
    %v10246 = vadd.f32 %v10182, %v184
    %v10247 = vadd.f32 %v10183, %v185
    %v10248 = vadd.f32 %v10184, %v186
    %v10249 = vadd.f32 %v10185, %v187
    %v10250 = vadd.f32 %v10186, %v188
    %v10251 = vadd.f32 %v10187, %v189
    %v10252 = vadd.f32 %v10188, %v190
    %v10253 = vadd.f32 %v10189, %v191
    %v10254 = vadd.f32 %v10190, %v192
    %v10255 = vadd.f32 %v10191, %v193
    %v10256 = vadd.f32 %v10192, %v194
    %v10257 = vadd.f32 %v10193, %v195
    %v10258 = vadd.f32 %v10194, %v196
    %v10259 = vadd.f32 %v10195, %v197
    %v10260 = vadd.f32 %v10196, %v198
    %v10261 = vadd.f32 %v10197, %v199
    %v10262 = vadd.f32 %v10198, %v200
    %v10263 = vadd.f32 %v10199, %v201
    %v10264 = vadd.f32 %v10200, %v202
    %v10265 = vadd.f32 %v10201, %v203
    %v10266 = vadd.f32 %v10202, %v204
    %v10267 = vadd.f32 %v10203, %v205
    %v10268 = vadd.f32 %v10204, %v206
    %v10269 = vadd.f32 %v10205, %v207
    %v10270 = vadd.f32 %v10206, %v208
    %v10271 = vadd.f32 %v10207, %v209
    %v10272 = vadd.f32 %v10208, %v210
    %v10273 = vadd.f32 %v10209, %v211
    %v10274 = vadd.f32 %v10210, %v212
    %v10275 = vadd.f32 %v10211, %v213
    %v10276 = vadd.f32 %v10212, %v214
    %v10277 = vadd.f32 %v10213, %v215
    %v10278 = vadd.f32 %v10214, %v216
    %v10279 = vadd.f32 %v10215, %v217
    %v10280 = vmax.f32 %v10216, 0.0
    %v10281 = vmax.f32 %v10217, 0.0
    %v10282 = vmax.f32 %v10218, 0.0
    %v10283 = vmax.f32 %v10219, 0.0
    %v10284 = vmax.f32 %v10220, 0.0
    %v10285 = vmax.f32 %v10221, 0.0
    %v10286 = vmax.f32 %v10222, 0.0
    %v10287 = vmax.f32 %v10223, 0.0
    %v10288 = vmax.f32 %v10224, 0.0
    %v10289 = vmax.f32 %v10225, 0.0
    %v10290 = vmax.f32 %v10226, 0.0
    %v10291 = vmax.f32 %v10227, 0.0
    %v10292 = vmax.f32 %v10228, 0.0
    %v10293 = vmax.f32 %v10229, 0.0
    %v10294 = vmax.f32 %v10230, 0.0
    %v10295 = vmax.f32 %v10231, 0.0
    %v10296 = vmax.f32 %v10232, 0.0
    %v10297 = vmax.f32 %v10233, 0.0
    %v10298 = vmax.f32 %v10234, 0.0
    %v10299 = vmax.f32 %v10235, 0.0
    %v10300 = vmax.f32 %v10236, 0.0
    %v10301 = vmax.f32 %v10237, 0.0
    %v10302 = vmax.f32 %v10238, 0.0
    %v10303 = vmax.f32 %v10239, 0.0
    %v10304 = vmax.f32 %v10240, 0.0
    %v10305 = vmax.f32 %v10241, 0.0
    %v10306 = vmax.f32 %v10242, 0.0
    %v10307 = vmax.f32 %v10243, 0.0
    %v10308 = vmax.f32 %v10244, 0.0
    %v10309 = vmax.f32 %v10245, 0.0
    %v10310 = vmax.f32 %v10246, 0.0
    %v10311 = vmax.f32 %v10247, 0.0
    %v10312 = vmax.f32 %v10248, 0.0
    %v10313 = vmax.f32 %v10249, 0.0
    %v10314 = vmax.f32 %v10250, 0.0
    %v10315 = vmax.f32 %v10251, 0.0
    %v10316 = vmax.f32 %v10252, 0.0
    %v10317 = vmax.f32 %v10253, 0.0
    %v10318 = vmax.f32 %v10254, 0.0
    %v10319 = vmax.f32 %v10255, 0.0
    %v10320 = vmax.f32 %v10256, 0.0
    %v10321 = vmax.f32 %v10257, 0.0
    %v10322 = vmax.f32 %v10258, 0.0
    %v10323 = vmax.f32 %v10259, 0.0
    %v10324 = vmax.f32 %v10260, 0.0
    %v10325 = vmax.f32 %v10261, 0.0
    %v10326 = vmax.f32 %v10262, 0.0
    %v10327 = vmax.f32 %v10263, 0.0
    %v10328 = vmax.f32 %v10264, 0.0
    %v10329 = vmax.f32 %v10265, 0.0
    %v10330 = vmax.f32 %v10266, 0.0
    %v10331 = vmax.f32 %v10267, 0.0
    %v10332 = vmax.f32 %v10268, 0.0
    %v10333 = vmax.f32 %v10269, 0.0
    %v10334 = vmax.f32 %v10270, 0.0
    %v10335 = vmax.f32 %v10271, 0.0
    %v10336 = vmax.f32 %v10272, 0.0
    %v10337 = vmax.f32 %v10273, 0.0
    %v10338 = vmax.f32 %v10274, 0.0
    %v10339 = vmax.f32 %v10275, 0.0
    %v10340 = vmax.f32 %v10276, 0.0
    %v10341 = vmax.f32 %v10277, 0.0
    %v10342 = vmax.f32 %v10278, 0.0
    %v10343 = vmax.f32 %v10279, 0.0
    %10344 = vst [vmem:[#allocation9] sm:$0xff] %v10280
    %10345 = vst [vmem:[#allocation9 + $0x8] sm:$0xff] %v10281
    %10346 = vst [vmem:[#allocation9 + $0x10] sm:$0xff] %v10282
    %10347 = vst [vmem:[#allocation9 + $0x18] sm:$0xff] %v10283
    %10348 = vst [vmem:[#allocation9 + $0x20] sm:$0xff] %v10284
    %10349 = vst [vmem:[#allocation9 + $0x28] sm:$0xff] %v10285
    %10350 = vst [vmem:[#allocation9 + $0x30] sm:$0xff] %v10286
    %10351 = vst [vmem:[#allocation9 + $0x38] sm:$0xff] %v10287
    %10352 = vst [vmem:[#allocation9 + $0x40] sm:$0xff] %v10288
    %10353 = vst [vmem:[#allocation9 + $0x48] sm:$0xff] %v10289
    %10354 = vst [vmem:[#allocation9 + $0x50] sm:$0xff] %v10290
    %10355 = vst [vmem:[#allocation9 + $0x58] sm:$0xff] %v10291
    %10356 = vst [vmem:[#allocation9 + $0x60] sm:$0xff] %v10292
    %10357 = vst [vmem:[#allocation9 + $0x68] sm:$0xff] %v10293
    %10358 = vst [vmem:[#allocation9 + $0x70] sm:$0xff] %v10294
    %10359 = vst [vmem:[#allocation9 + $0x78] sm:$0xff] %v10295
    %10360 = vst [vmem:[#allocation9 + $0x80] sm:$0xff] %v10296
    %10361 = vst [vmem:[#allocation9 + $0x88] sm:$0xff] %v10297
    %10362 = vst [vmem:[#allocation9 + $0x90] sm:$0xff] %v10298
    %10363 = vst [vmem:[#allocation9 + $0x98] sm:$0xff] %v10299
    %10364 = vst [vmem:[#allocation9 + $0xa0] sm:$0xff] %v10300
    %10365 = vst [vmem:[#allocation9 + $0xa8] sm:$0xff] %v10301
    %10366 = vst [vmem:[#allocation9 + $0xb0] sm:$0xff] %v10302
    %10367 = vst [vmem:[#allocation9 + $0xb8] sm:$0xff] %v10303
    %10368 = vst [vmem:[#allocation9 + $0xc0] sm:$0xff] %v10304
    %10369 = vst [vmem:[#allocation9 + $0xc8] sm:$0xff] %v10305
    %10370 = vst [vmem:[#allocation9 + $0xd0] sm:$0xff] %v10306
    %10371 = vst [vmem:[#allocation9 + $0xd8] sm:$0xff] %v10307
    %10372 = vst [vmem:[#allocation9 + $0xe0] sm:$0xff] %v10308
    %10373 = vst [vmem:[#allocation9 + $0xe8] sm:$0xff] %v10309
    %10374 = vst [vmem:[#allocation9 + $0xf0] sm:$0xff] %v10310
    %10375 = vst [vmem:[#allocation9 + $0xf8] sm:$0xff] %v10311
    %10376 = vst [vmem:[#allocation9 + $0x100] sm:$0xff] %v10312
    %10377 = vst [vmem:[#allocation9 + $0x108] sm:$0xff] %v10313
    %10378 = vst [vmem:[#allocation9 + $0x110] sm:$0xff] %v10314
    %10379 = vst [vmem:[#allocation9 + $0x118] sm:$0xff] %v10315
    %10380 = vst [vmem:[#allocation9 + $0x120] sm:$0xff] %v10316
    %10381 = vst [vmem:[#allocation9 + $0x128] sm:$0xff] %v10317
    %10382 = vst [vmem:[#allocation9 + $0x130] sm:$0xff] %v10318
    %10383 = vst [vmem:[#allocation9 + $0x138] sm:$0xff] %v10319
    %10384 = vst [vmem:[#allocation9 + $0x140] sm:$0xff] %v10320
    %10385 = vst [vmem:[#allocation9 + $0x148] sm:$0xff] %v10321
    %10386 = vst [vmem:[#allocation9 + $0x150] sm:$0xff] %v10322
    %10387 = vst [vmem:[#allocation9 + $0x158] sm:$0xff] %v10323
    %10388 = vst [vmem:[#allocation9 + $0x160] sm:$0xff] %v10324
    %10389 = vst [vmem:[#allocation9 + $0x168] sm:$0xff] %v10325
    %10390 = vst [vmem:[#allocation9 + $0x170] sm:$0xff] %v10326
    %10391 = vst [vmem:[#allocation9 + $0x178] sm:$0xff] %v10327
    %10392 = vst [vmem:[#allocation9 + $0x180] sm:$0xff] %v10328
    %10393 = vst [vmem:[#allocation9 + $0x188] sm:$0xff] %v10329
    %10394 = vst [vmem:[#allocation9 + $0x190] sm:$0xff] %v10330
    %10395 = vst [vmem:[#allocation9 + $0x198] sm:$0xff] %v10331
    %10396 = vst [vmem:[#allocation9 + $0x1a0] sm:$0xff] %v10332
    %10397 = vst [vmem:[#allocation9 + $0x1a8] sm:$0xff] %v10333
    %10398 = vst [vmem:[#allocation9 + $0x1b0] sm:$0xff] %v10334
    %10399 = vst [vmem:[#allocation9 + $0x1b8] sm:$0xff] %v10335
    %10400 = vst [vmem:[#allocation9 + $0x1c0] sm:$0xff] %v10336
    %10401 = vst [vmem:[#allocation9 + $0x1c8] sm:$0xff] %v10337
    %10402 = vst [vmem:[#allocation9 + $0x1d0] sm:$0xff] %v10338
    %10403 = vst [vmem:[#allocation9 + $0x1d8] sm:$0xff] %v10339
    %10404 = vst [vmem:[#allocation9 + $0x1e0] sm:$0xff] %v10340
    %10405 = vst [vmem:[#allocation9 + $0x1e8] sm:$0xff] %v10341
    %10406 = vst [vmem:[#allocation9 + $0x1f0] sm:$0xff] %v10342
    %10407 = vst [vmem:[#allocation9 + $0x1f8] sm:$0xff] %v10343
    // Predicated region
    $region42: #{tpu_custom_call.1} parent=1 // pred_check
      _
    $region43: #{tpu_custom_call.1} parent=1 // pred_check_branch
      %10409 = sbr.rel (0) target = $region45
    $region44: #{tpu_custom_call.1} parent=1 // pred_region
      %s10411 = ssub.s32 8192, 8192
      %10412 = vsyncadd [#allocation5], %s10411
      %s10413 = sshll.u32 [#allocation9], 4
      %s10414 = int_to_ptr.vmem [resolvable:$true] %s10413
      %10419 = dma.vmem_to_hbm [thread:$0]  %s10414, 8192, %s7, [#allocation5], 128, 128, 8
    $region45: #{tpu_custom_call.1} parent=1 // pred_fallthru
      _
    // Predicated region
    $region46: #{tpu_custom_call.1} parent=1 // pred_check
      _
    $region47: #{tpu_custom_call.1} parent=1 // pred_check_branch
      %10421 = sbr.rel (0) target = $region49
    $region48: #{tpu_custom_call.1} parent=1 // pred_region
      %10422 = dma.done [#allocation5], 8192
    $region49: #{tpu_custom_call.1} parent=1 // pred_fallthru
      _
    %10423 = vsyncpa [#allocation4], 1
    %10424 = vsyncpa [#allocation7], 1
    %10425 = vsyncpa [#allocation5], 1

</llo_original>
